<compile_context>
chip_gen: v5e
topology: v5e:2x2
jax: 0.10.0
libtpu: 0.0.40
codegen_flags: <defaults>
</compile_context>

<pallas_src>
import math
from functools import partial

import jax
import jax.numpy as jnp
from jax import lax
from jax.experimental import pallas as pl
from jax.experimental.pallas import tpu as pltpu


# ----------------------------------------------------------------------------
# Helpers
# ----------------------------------------------------------------------------

def _pick_tile(dim, target, align):
    """Largest tile <= target that divides dim and is a multiple of align,
    falling back to the full dim (always a legal block size)."""
    if dim <= target:
        return dim
    best = None
    t = align
    while t <= target:
        if dim % t == 0:
            best = t
        t += align
    return best if best is not None else dim


def _rope_cos_sin(T, dim, base=10000.0, rope_scaling=None, max_pos=2048):
    """LlamaRotaryEmbedding (+ linear / dynamic-NTK / nope variants)."""
    if rope_scaling is not None and rope_scaling.get("type") == "nope":
        return (jnp.ones((T, dim), jnp.float32), jnp.zeros((T, dim), jnp.float32))
    t = jnp.arange(T, dtype=jnp.float32)
    if rope_scaling is not None:
        typ, factor = rope_scaling["type"], rope_scaling["factor"]
        if typ == "linear":
            t = t / factor
        elif typ == "dynamic" and T > max_pos:
            base = base * (factor * T / max_pos - (factor - 1)) ** (dim / (dim - 2))
    inv_freq = 1.0 / (base ** (jnp.arange(0, dim, 2, dtype=jnp.float32) / dim))
    freqs = jnp.einsum("i,j->ij", t, inv_freq)
    emb = jnp.concatenate([freqs, freqs], axis=-1)
    return jnp.cos(emb), jnp.sin(emb)          # each [T, dim], f32


def _rotate_half_matrix(d):
    """R such that x @ R == rotate_half(x) == concat(-x2, x1)."""
    half = d // 2
    r = jnp.zeros((d, d), jnp.float32)
    r = r.at[jnp.arange(half) + half, jnp.arange(half)].set(-1.0)
    r = r.at[jnp.arange(half), jnp.arange(half) + half].set(1.0)
    return r


# ----------------------------------------------------------------------------
# Tiled matmul kernel (used for the fused QKV projection and for c_proj)
# ----------------------------------------------------------------------------

def _matmul_kernel(x_ref, w_ref, o_ref, acc_ref):
    @pl.when(pl.program_id(2) == 0)
    def _():
        acc_ref[...] = jnp.zeros_like(acc_ref)

    acc_ref[...] += jnp.dot(x_ref[...], w_ref[...],
                            preferred_element_type=jnp.float32)

    @pl.when(pl.program_id(2) == pl.num_programs(2) - 1)
    def _():
        o_ref[...] = acc_ref[...].astype(o_ref.dtype)


def pallas_matmul(x, w, *, tm=256, tn=256, tk=512):
    """y = x @ w, x:[M,K], w:[K,N] (weight stored pre-transposed, no bias)."""
    M, K = x.shape
    K2, N = w.shape
    assert K == K2
    tm = _pick_tile(M, tm, 8)
    tn = _pick_tile(N, tn, 128)
    tk = _pick_tile(K, tk, 128)
    grid = (M // tm, N // tn, K // tk)
    return pl.pallas_call(
        _matmul_kernel,
        out_shape=jax.ShapeDtypeStruct((M, N), x.dtype),
        grid_spec=pltpu.PrefetchScalarGridSpec(
            num_scalar_prefetch=0,
            grid=grid,
            in_specs=[
                pl.BlockSpec((tm, tk), lambda i, j, k: (i, k)),
                pl.BlockSpec((tk, tn), lambda i, j, k: (k, j)),
            ],
            out_specs=pl.BlockSpec((tm, tn), lambda i, j, k: (i, j)),
            scratch_shapes=[pltpu.VMEM((tm, tn), jnp.float32)],
        ),
        compiler_params=pltpu.CompilerParams(
            dimension_semantics=("parallel", "parallel", "arbitrary"),
            vmem_limit_bytes=48 * 1024 * 1024,
        ),
    )(x, w)


# ----------------------------------------------------------------------------
# Fused RoPE + causal flash attention kernel
#   grid = (B, n_q_blocks, n_kv_blocks); blocks are lane-dense [tq, C] slabs;
#   heads looped inside; online softmax state in f32 VMEM scratch.
# ----------------------------------------------------------------------------

def _attn_kernel(q_ref, k_ref, v_ref, cq_ref, sq_ref, ck_ref, sk_ref, rot_ref,
                 o_ref, m_sc, l_sc, acc_sc, *, n_head, d, scale):
    qi = pl.program_id(1)
    ki = pl.program_id(2)
    tq = q_ref.shape[1]
    tkv = k_ref.shape[1]

    @pl.when(ki == 0)
    def _init():
        m_sc[...] = jnp.full_like(m_sc, -jnp.inf)
        l_sc[...] = jnp.zeros_like(l_sc)
        acc_sc[...] = jnp.zeros_like(acc_sc)

    # Skip KV blocks that lie entirely in the causal future of this q block.
    @pl.when(ki * tkv <= qi * tq + (tq - 1))
    def _compute():
        rot = rot_ref[...]                       # [d, d] signed half-roll matrix
        cq = cq_ref[...] * scale                 # fold 1/sqrt(d) into q's tables
        sq = sq_ref[...] * scale
        ck = ck_ref[...]
        sk = sk_ref[...]

        q_tile = q_ref[0].astype(jnp.float32)    # [tq, C]
        k_tile = k_ref[0].astype(jnp.float32)    # [tkv, C]
        v_tile = v_ref[0]                        # [tkv, C]

        row = qi * tq + lax.broadcasted_iota(jnp.int32, (tq, tkv), 0)
        col = ki * tkv + lax.broadcasted_iota(jnp.int32, (tq, tkv), 1)
        causal = row >= col

        for h in range(n_head):
            sl = slice(h * d, (h + 1) * d)
            q_h = q_tile[:, sl]
            k_h = k_tile[:, sl]
            v_h = v_tile[:, sl]

            # RoPE: rotate_half(x) == x @ rot  (MXU; scale already in cq/sq)
            q_r = q_h * cq + jnp.dot(q_h, rot, preferred_element_type=jnp.float32) * sq
            k_r = k_h * ck + jnp.dot(k_h, rot, preferred_element_type=jnp.float32) * sk

            s = jnp.dot(q_r, k_r.T, preferred_element_type=jnp.float32)   # [tq, tkv]
            s = jnp.where(causal, s, -jnp.inf)

            m_prev = m_sc[h]                                              # [tq, 1]
            m_new = jnp.maximum(m_prev, jnp.max(s, axis=-1, keepdims=True))
            alpha = jnp.exp(m_prev - m_new)
            p = jnp.exp(s - m_new)
            l_sc[h] = alpha * l_sc[h] + jnp.sum(p, axis=-1, keepdims=True)
            acc_sc[:, sl] = alpha * acc_sc[:, sl] + jnp.dot(
                p.astype(v_h.dtype), v_h, preferred_element_type=jnp.float32)
            m_sc[h] = m_new

    @pl.when(ki == pl.num_programs(2) - 1)
    def _finalize():
        outs = []
        for h in range(n_head):
            inv_l = pl.reciprocal(l_sc[h], approx=True)     # EUP slot
            outs.append(acc_sc[:, h * d:(h + 1) * d] * inv_l)
        # single lane-dense [tq, C] store
        o_ref[0] = jnp.concatenate(outs, axis=-1).astype(o_ref.dtype)


def pallas_causal_attention(qkv, cos, sin, rmat, *, n_head, d, q_block=128):
    """qkv: [B, T, 3C] (q | k | v on the last dim), cos/sin: [T, d], rmat: [d, d]."""
    B, T, C3 = qkv.shape
    C = C3 // 3
    assert C == n_head * d
    tq = _pick_tile(T, q_block, 8)
    tkv = tq                                       # equal tiles keep the mask simple
    grid = (B, T // tq, T // tkv)

    kern = partial(_attn_kernel, n_head=n_head, d=d, scale=1.0 / math.sqrt(d))
    return pl.pallas_call(
        kern,
        out_shape=jax.ShapeDtypeStruct((B, T, C), qkv.dtype),
        grid_spec=pltpu.PrefetchScalarGridSpec(
            num_scalar_prefetch=0,
            grid=grid,
            in_specs=[
                pl.BlockSpec((1, tq, C), lambda b, i, j: (b, i, 0)),    # q slab
                pl.BlockSpec((1, tkv, C), lambda b, i, j: (b, j, 1)),   # k slab
                pl.BlockSpec((1, tkv, C), lambda b, i, j: (b, j, 2)),   # v slab
                pl.BlockSpec((tq, d), lambda b, i, j: (i, 0)),          # cos (q rows)
                pl.BlockSpec((tq, d), lambda b, i, j: (i, 0)),          # sin (q rows)
                pl.BlockSpec((tkv, d), lambda b, i, j: (j, 0)),         # cos (k rows)
                pl.BlockSpec((tkv, d), lambda b, i, j: (j, 0)),         # sin (k rows)
                pl.BlockSpec((d, d), lambda b, i, j: (0, 0)),           # rotate-half R
            ],
            out_specs=pl.BlockSpec((1, tq, C), lambda b, i, j: (b, i, 0)),
            scratch_shapes=[
                pltpu.VMEM((n_head, tq, 1), jnp.float32),   # m (running max)
                pltpu.VMEM((n_head, tq, 1), jnp.float32),   # l (running denom)
                pltpu.VMEM((tq, C), jnp.float32),           # acc (running PV)
            ],
        ),
        compiler_params=pltpu.CompilerParams(
            dimension_semantics=("parallel", "parallel", "arbitrary"),
            vmem_limit_bytes=48 * 1024 * 1024,
        ),
    )(qkv, qkv, qkv, cos, sin, cos, sin, rmat)


# ----------------------------------------------------------------------------
# CausalSelfAttention forward (use_kv_cache=False path)
# ----------------------------------------------------------------------------

def causal_self_attention(x, params, *, n_head, n_embd_per_head,
                          rope_scaling=None, block_size=2048, use_kv_cache=False):
    # TODO(synk): the use_kv_cache=True incremental-decode path (stateful
    # self.kv_cache concat + single-position RoPE) is not implemented here.
    if use_kv_cache:
        raise NotImplementedError("kv-cache decode path not implemented")

    B, T, C = x.shape
    d = n_embd_per_head
    assert C == n_head * d

    # fused q/kv projection: one [C, 3C] weight, one tiled matmul
    qkv = pallas_matmul(x.reshape(B * T, C), params["w_qkv"]).reshape(B, T, 3 * C)

    cos, sin = _rope_cos_sin(T, d, rope_scaling=rope_scaling, max_pos=block_size)
    rmat = _rotate_half_matrix(d)

    y = pallas_causal_attention(qkv, cos, sin, rmat, n_head=n_head, d=d)

    # output projection
    y = pallas_matmul(y.reshape(B * T, C), params["w_cproj"]).reshape(B, T, C)
    return y


# ----------------------------------------------------------------------------
# Pure-JAX reference (for correctness check)
# ----------------------------------------------------------------------------

def reference_forward(x, w_q, w_kv, w_c, n_head, d, rope_scaling=None):
    B, T, C = x.shape
    hp = lax.Precision.HIGHEST
    q = jnp.einsum("btc,cd->btd", x, w_q, precision=hp)
    kv = jnp.einsum("btc,cd->btd", x, w_kv, precision=hp)
    k, v = kv[..., :C], kv[..., C:]

    def heads(a):
        return a.reshape(B, T, n_head, d).transpose(0, 2, 1, 3)

    q, k, v = heads(q), heads(k), heads(v)
    cos, sin = _rope_cos_sin(T, d, rope_scaling=rope_scaling)

    def rot_half(a):
        return jnp.concatenate([-a[..., d // 2:], a[..., :d // 2]], axis=-1)

    q = q * cos + rot_half(q) * sin
    k = k * cos + rot_half(k) * sin
    s = jnp.einsum("bhqd,bhkd->bhqk", q, k, precision=hp) / math.sqrt(d)
    mask = jnp.tril(jnp.ones((T, T), dtype=bool))
    s = jnp.where(mask, s, -jnp.inf)
    p = jax.nn.softmax(s, axis=-1)
    y = jnp.einsum("bhqk,bhkd->bhqd", p, v, precision=hp)
    y = y.transpose(0, 2, 1, 3).reshape(B, T, C)
    return jnp.einsum("btc,cd->btd", y, w_c, precision=hp)


# ----------------------------------------------------------------------------
# Driver
# ----------------------------------------------------------------------------

if __name__ == "__main__":
    B, T = 2, 256
    n_head, d = 4, 32
    C = n_head * d                      # 128 (lane-dense)

    key = jax.random.PRNGKey(0)
    kx, kq, kkv, kc = jax.random.split(key, 4)
    x = jax.random.normal(kx, (B, T, C), jnp.float32)
    # weights stored pre-transposed [in, out]; q_proj/kv_proj/c_proj have no bias
    w_q = 0.02 * jax.random.normal(kq, (C, C), jnp.float32)
    w_kv = 0.02 * jax.random.normal(kkv, (C, 2 * C), jnp.float32)
    w_c = 0.02 * jax.random.normal(kc, (C, C), jnp.float32)
    params = {"w_qkv": jnp.concatenate([w_q, w_kv], axis=1),   # [C, 3C]
              "w_cproj": w_c}

    fwd = jax.jit(partial(causal_self_attention,
                          n_head=n_head, n_embd_per_head=d))
    y = fwd(x, params)
    jax.block_until_ready(y)

    y_ref = reference_forward(x, w_q, w_kv, w_c, n_head, d)
    err = float(jnp.max(jnp.abs(y - y_ref)))
    assert err < 5e-3, f"max abs err {err}"

    print("KERNEL_OK")
</pallas_src>

<mosaic_0001>
module attributes {stable_mosaic.version = 11 : i64} {
  func.func @_attn_kernel(%arg0: i32, %arg1: i32, %arg2: i32, %arg3: memref<1x128x128xf32, #tpu.memory_space<vmem>>, %arg4: memref<1x128x128xf32, #tpu.memory_space<vmem>>, %arg5: memref<1x128x128xf32, #tpu.memory_space<vmem>>, %arg6: memref<128x32xf32, #tpu.memory_space<vmem>>, %arg7: memref<128x32xf32, #tpu.memory_space<vmem>>, %arg8: memref<128x32xf32, #tpu.memory_space<vmem>>, %arg9: memref<128x32xf32, #tpu.memory_space<vmem>>, %arg10: memref<32x32xf32, #tpu.memory_space<vmem>>, %arg11: memref<1x128x128xf32, #tpu.memory_space<vmem>>, %arg12: memref<4x128x1xf32, #tpu.memory_space<vmem>>, %arg13: memref<4x128x1xf32, #tpu.memory_space<vmem>>, %arg14: memref<128x128xf32, #tpu.memory_space<vmem>>) attributes {dimension_semantics = [#tpu.dimension_semantics<parallel>, #tpu.dimension_semantics<parallel>, #tpu.dimension_semantics<arbitrary>], iteration_bounds = array<i64: 2, 2, 2>, scalar_prefetch = 0 : i64, scratch_operands = 3 : i64, tpu.core_type = #tpu.core_type<tc>, window_params = [{transform_indices = @transform_0, window_bounds = array<i64: 1, 128, 128>}, {transform_indices = @transform_1, window_bounds = array<i64: 1, 128, 128>}, {transform_indices = @transform_2, window_bounds = array<i64: 1, 128, 128>}, {transform_indices = @transform_3, window_bounds = array<i64: 128, 32>}, {transform_indices = @transform_4, window_bounds = array<i64: 128, 32>}, {transform_indices = @transform_5, window_bounds = array<i64: 128, 32>}, {transform_indices = @transform_6, window_bounds = array<i64: 128, 32>}, {pipeline_mode = #tpu.pipeline_mode<synchronous>, transform_indices = @transform_7, window_bounds = array<i64: 32, 32>}, {transform_indices = @transform_8, window_bounds = array<i64: 1, 128, 128>}]} {
    %c0_i32 = arith.constant 0 : i32
    %0 = arith.cmpi eq, %arg2, %c0_i32 : i32
    %1 = arith.extui %0 : i1 to i32
    %c0_i32_0 = arith.constant 0 : i32
    %2 = arith.cmpi ne, %1, %c0_i32_0 : i32
    scf.if %2 {
      %cst = arith.constant 0xFF800000 : f32
      %12 = vector.broadcast %cst : f32 to vector<4x128x1xf32>
      %c0 = arith.constant 0 : index
      %c0_4 = arith.constant 0 : index
      %c0_5 = arith.constant 0 : index
      %13 = vector.load %arg12[%c0, %c0_4, %c0_5] : memref<4x128x1xf32, #tpu.memory_space<vmem>>, vector<4x128x1xf32>
      tpu.vector_store %arg12[%c0, %c0_4, %c0_5], %12 {strides = array<i32>} : memref<4x128x1xf32, #tpu.memory_space<vmem>>, vector<4x128x1xf32>,
      %cst_6 = arith.constant 0.000000e+00 : f32
      %14 = vector.broadcast %cst_6 : f32 to vector<4x128x1xf32>
      %c0_7 = arith.constant 0 : index
      %c0_8 = arith.constant 0 : index
      %c0_9 = arith.constant 0 : index
      %15 = vector.load %arg13[%c0_7, %c0_8, %c0_9] : memref<4x128x1xf32, #tpu.memory_space<vmem>>, vector<4x128x1xf32>
      tpu.vector_store %arg13[%c0_7, %c0_8, %c0_9], %14 {strides = array<i32>} : memref<4x128x1xf32, #tpu.memory_space<vmem>>, vector<4x128x1xf32>,
      %cst_10 = arith.constant 0.000000e+00 : f32
      %16 = vector.broadcast %cst_10 : f32 to vector<128x128xf32>
      %c0_11 = arith.constant 0 : index
      %c0_12 = arith.constant 0 : index
      %17 = vector.load %arg14[%c0_11, %c0_12] : memref<128x128xf32, #tpu.memory_space<vmem>>, vector<128x128xf32>
      tpu.vector_store %arg14[%c0_11, %c0_12], %16 {strides = array<i32>} : memref<128x128xf32, #tpu.memory_space<vmem>>, vector<128x128xf32>,
    } else {
    }
    %c128_i32 = arith.constant 128 : i32
    %3 = arith.muli %arg2, %c128_i32 : i32
    %c128_i32_1 = arith.constant 128 : i32
    %4 = arith.muli %arg1, %c128_i32_1 : i32
    %c127_i32 = arith.constant 127 : i32
    %5 = arith.addi %4, %c127_i32 : i32
    %6 = arith.cmpi sle, %3, %5 : i32
    %7 = arith.extui %6 : i1 to i32
    %c0_i32_2 = arith.constant 0 : i32
    %8 = arith.cmpi ne, %7, %c0_i32_2 : i32
    scf.if %8 {
      %c0 = arith.constant 0 : index
      %c0_4 = arith.constant 0 : index
      %12 = vector.load %arg10[%c0, %c0_4] : memref<32x32xf32, #tpu.memory_space<vmem>>, vector<32x32xf32>
      %c0_5 = arith.constant 0 : index
      %c0_6 = arith.constant 0 : index
      %13 = vector.load %arg6[%c0_5, %c0_6] : memref<128x32xf32, #tpu.memory_space<vmem>>, vector<128x32xf32>
      %cst = arith.constant 0.176776692 : f32
      %14 = vector.broadcast %cst : f32 to vector<128x32xf32>
      %15 = arith.mulf %13, %14 : vector<128x32xf32>
      %c0_7 = arith.constant 0 : index
      %c0_8 = arith.constant 0 : index
      %16 = vector.load %arg7[%c0_7, %c0_8] : memref<128x32xf32, #tpu.memory_space<vmem>>, vector<128x32xf32>
      %cst_9 = arith.constant 0.176776692 : f32
      %17 = vector.broadcast %cst_9 : f32 to vector<128x32xf32>
      %18 = arith.mulf %16, %17 : vector<128x32xf32>
      %c0_10 = arith.constant 0 : index
      %c0_11 = arith.constant 0 : index
      %19 = vector.load %arg8[%c0_10, %c0_11] : memref<128x32xf32, #tpu.memory_space<vmem>>, vector<128x32xf32>
      %c0_12 = arith.constant 0 : index
      %c0_13 = arith.constant 0 : index
      %20 = vector.load %arg9[%c0_12, %c0_13] : memref<128x32xf32, #tpu.memory_space<vmem>>, vector<128x32xf32>
      %c0_14 = arith.constant 0 : index
      %c0_15 = arith.constant 0 : index
      %c0_16 = arith.constant 0 : index
      %21 = vector.load %arg3[%c0_14, %c0_15, %c0_16] : memref<1x128x128xf32, #tpu.memory_space<vmem>>, vector<1x128x128xf32>
      %22 = vector.shape_cast %21 : vector<1x128x128xf32> to vector<128x128xf32>
      %c0_17 = arith.constant 0 : index
      %c0_18 = arith.constant 0 : index
      %c0_19 = arith.constant 0 : index
      %23 = vector.load %arg4[%c0_17, %c0_18, %c0_19] : memref<1x128x128xf32, #tpu.memory_space<vmem>>, vector<1x128x128xf32>
      %24 = vector.shape_cast %23 : vector<1x128x128xf32> to vector<128x128xf32>
      %c0_20 = arith.constant 0 : index
      %c0_21 = arith.constant 0 : index
      %c0_22 = arith.constant 0 : index
      %25 = vector.load %arg5[%c0_20, %c0_21, %c0_22] : memref<1x128x128xf32, #tpu.memory_space<vmem>>, vector<1x128x128xf32>
      %26 = vector.shape_cast %25 : vector<1x128x128xf32> to vector<128x128xf32>
      %c128_i32_23 = arith.constant 128 : i32
      %27 = arith.muli %arg1, %c128_i32_23 : i32
      %28 = tpu.iota {dimensions = array<i32: 0>} : vector<128x128xi32>
      %29 = vector.broadcast %27 : i32 to vector<128x128xi32>
      %30 = arith.addi %29, %28 : vector<128x128xi32>
      %c128_i32_24 = arith.constant 128 : i32
      %31 = arith.muli %arg2, %c128_i32_24 : i32
      %32 = tpu.iota {dimensions = array<i32: 1>} : vector<128x128xi32>
      %33 = vector.broadcast %31 : i32 to vector<128x128xi32>
      %34 = arith.addi %33, %32 : vector<128x128xi32>
      %35 = arith.cmpi sge, %30, %34 : vector<128x128xi32>
      %36 = vector.extract_strided_slice %22 {offsets = [0, 0], sizes = [128, 32], strides = [1, 1]} : vector<128x128xf32> to vector<128x32xf32>
      %37 = vector.extract_strided_slice %24 {offsets = [0, 0], sizes = [128, 32], strides = [1, 1]} : vector<128x128xf32> to vector<128x32xf32>
      %38 = vector.extract_strided_slice %26 {offsets = [0, 0], sizes = [128, 32], strides = [1, 1]} : vector<128x128xf32> to vector<128x32xf32>
      %39 = arith.mulf %36, %15 : vector<128x32xf32>
      %cst_25 = arith.constant dense<0.000000e+00> : vector<128x32xf32>
      %40 = tpu.matmul %36, %12, %cst_25 {dimension_numbers = #tpu.dot_dimension_numbers<[1], [0], [0], [1], [0, 0, 1, 1], [], []>} : vector<128x32xf32>, vector<32x32xf32>, vector<128x32xf32> -> vector<128x32xf32>
      %41 = arith.mulf %40, %18 : vector<128x32xf32>
      %42 = arith.addf %39, %41 : vector<128x32xf32>
      %43 = arith.mulf %37, %19 : vector<128x32xf32>
      %cst_26 = arith.constant dense<0.000000e+00> : vector<128x32xf32>
      %44 = tpu.matmul %37, %12, %cst_26 {dimension_numbers = #tpu.dot_dimension_numbers<[1], [0], [0], [1], [0, 0, 1, 1], [], []>} : vector<128x32xf32>, vector<32x32xf32>, vector<128x32xf32> -> vector<128x32xf32>
      %45 = arith.mulf %44, %20 : vector<128x32xf32>
      %46 = arith.addf %43, %45 : vector<128x32xf32>
      %47 = tpu.transpose %46, [1, 0] : vector<128x32xf32> -> vector<32x128xf32>
      %cst_27 = arith.constant dense<0.000000e+00> : vector<128x128xf32>
      %48 = tpu.matmul %42, %47, %cst_27 {dimension_numbers = #tpu.dot_dimension_numbers<[1], [0], [0], [1], [0, 0, 1, 1], [], []>} : vector<128x32xf32>, vector<32x128xf32>, vector<128x128xf32> -> vector<128x128xf32>
      %cst_28 = arith.constant 0xFF800000 : f32
      %49 = vector.broadcast %cst_28 : f32 to vector<128x128xf32>
      %50 = arith.select %35, %48, %49 : vector<128x128xi1>, vector<128x128xf32>
      %c0_29 = arith.constant 0 : index
      %c0_30 = arith.constant 0 : index
      %c0_31 = arith.constant 0 : index
      %51 = vector.load %arg12[%c0_29, %c0_30, %c0_31] : memref<4x128x1xf32, #tpu.memory_space<vmem>>, vector<1x128x1xf32>
      %52 = vector.shape_cast %51 : vector<1x128x1xf32> to vector<128x1xf32>
      %cst_32 = arith.constant dense<0xFF800000> : vector<128xf32>
      %53 = vector.multi_reduction <maximumf>, %50, %cst_32 [1] : vector<128x128xf32> to vector<128xf32>
      %54 = vector.shape_cast %53 : vector<128xf32> to vector<128x1xf32>
      %55 = arith.maximumf %52, %54 : vector<128x1xf32>
      %56 = arith.subf %52, %55 : vector<128x1xf32>
      %57 = math.exp %56 : vector<128x1xf32>
      %58 = vector.broadcast %55 : vector<128x1xf32> to vector<128x128xf32>
      %59 = arith.subf %50, %58 : vector<128x128xf32>
      %60 = math.exp %59 : vector<128x128xf32>
      %c0_33 = arith.constant 0 : index
      %c0_34 = arith.constant 0 : index
      %c0_35 = arith.constant 0 : index
      %61 = vector.load %arg13[%c0_33, %c0_34, %c0_35] : memref<4x128x1xf32, #tpu.memory_space<vmem>>, vector<1x128x1xf32>
      %62 = vector.shape_cast %61 : vector<1x128x1xf32> to vector<128x1xf32>
      %63 = arith.mulf %57, %62 : vector<128x1xf32>
      %cst_36 = arith.constant dense<0.000000e+00> : vector<128xf32>
      %64 = vector.multi_reduction <add>, %60, %cst_36 [1] : vector<128x128xf32> to vector<128xf32>
      %65 = vector.shape_cast %64 : vector<128xf32> to vector<128x1xf32>
      %66 = arith.addf %63, %65 : vector<128x1xf32>
      %c0_37 = arith.constant 0 : index
      %c0_38 = arith.constant 0 : index
      %c0_39 = arith.constant 0 : index
      %67 = vector.load %arg13[%c0_37, %c0_38, %c0_39] : memref<4x128x1xf32, #tpu.memory_space<vmem>>, vector<1x128x1xf32>
      %68 = vector.shape_cast %67 : vector<1x128x1xf32> to vector<128x1xf32>
      %69 = vector.shape_cast %66 : vector<128x1xf32> to vector<1x128x1xf32>
      tpu.vector_store %arg13[%c0_37, %c0_38, %c0_39], %69 {strides = array<i32>} : memref<4x128x1xf32, #tpu.memory_space<vmem>>, vector<1x128x1xf32>,
      %c0_40 = arith.constant 0 : index
      %c0_41 = arith.constant 0 : index
      %70 = vector.load %arg14[%c0_40, %c0_41] : memref<128x128xf32, #tpu.memory_space<vmem>>, vector<128x32xf32>
      %71 = vector.broadcast %57 : vector<128x1xf32> to vector<128x32xf32>
      %72 = arith.mulf %71, %70 : vector<128x32xf32>
      %cst_42 = arith.constant dense<0.000000e+00> : vector<128x32xf32>
      %73 = tpu.matmul %60, %38, %cst_42 {dimension_numbers = #tpu.dot_dimension_numbers<[1], [0], [0], [1], [0, 0, 1, 1], [], []>} : vector<128x128xf32>, vector<128x32xf32>, vector<128x32xf32> -> vector<128x32xf32>
      %74 = arith.addf %72, %73 : vector<128x32xf32>
      %c0_43 = arith.constant 0 : index
      %c0_44 = arith.constant 0 : index
      %75 = vector.load %arg14[%c0_43, %c0_44] : memref<128x128xf32, #tpu.memory_space<vmem>>, vector<128x32xf32>
      tpu.vector_store %arg14[%c0_43, %c0_44], %74 {strides = array<i32>} : memref<128x128xf32, #tpu.memory_space<vmem>>, vector<128x32xf32>,
      %c0_45 = arith.constant 0 : index
      %c0_46 = arith.constant 0 : index
      %c0_47 = arith.constant 0 : index
      %76 = vector.load %arg12[%c0_45, %c0_46, %c0_47] : memref<4x128x1xf32, #tpu.memory_space<vmem>>, vector<1x128x1xf32>
      %77 = vector.shape_cast %76 : vector<1x128x1xf32> to vector<128x1xf32>
      %78 = vector.shape_cast %55 : vector<128x1xf32> to vector<1x128x1xf32>
      tpu.vector_store %arg12[%c0_45, %c0_46, %c0_47], %78 {strides = array<i32>} : memref<4x128x1xf32, #tpu.memory_space<vmem>>, vector<1x128x1xf32>,
      %79 = vector.extract_strided_slice %22 {offsets = [0, 32], sizes = [128, 32], strides = [1, 1]} : vector<128x128xf32> to vector<128x32xf32>
      %80 = vector.extract_strided_slice %24 {offsets = [0, 32], sizes = [128, 32], strides = [1, 1]} : vector<128x128xf32> to vector<128x32xf32>
      %81 = vector.extract_strided_slice %26 {offsets = [0, 32], sizes = [128, 32], strides = [1, 1]} : vector<128x128xf32> to vector<128x32xf32>
      %82 = arith.mulf %79, %15 : vector<128x32xf32>
      %cst_48 = arith.constant dense<0.000000e+00> : vector<128x32xf32>
      %83 = tpu.matmul %79, %12, %cst_48 {dimension_numbers = #tpu.dot_dimension_numbers<[1], [0], [0], [1], [0, 0, 1, 1], [], []>} : vector<128x32xf32>, vector<32x32xf32>, vector<128x32xf32> -> vector<128x32xf32>
      %84 = arith.mulf %83, %18 : vector<128x32xf32>
      %85 = arith.addf %82, %84 : vector<128x32xf32>
      %86 = arith.mulf %80, %19 : vector<128x32xf32>
      %cst_49 = arith.constant dense<0.000000e+00> : vector<128x32xf32>
      %87 = tpu.matmul %80, %12, %cst_49 {dimension_numbers = #tpu.dot_dimension_numbers<[1], [0], [0], [1], [0, 0, 1, 1], [], []>} : vector<128x32xf32>, vector<32x32xf32>, vector<128x32xf32> -> vector<128x32xf32>
      %88 = arith.mulf %87, %20 : vector<128x32xf32>
      %89 = arith.addf %86, %88 : vector<128x32xf32>
      %90 = tpu.transpose %89, [1, 0] : vector<128x32xf32> -> vector<32x128xf32>
      %cst_50 = arith.constant dense<0.000000e+00> : vector<128x128xf32>
      %91 = tpu.matmul %85, %90, %cst_50 {dimension_numbers = #tpu.dot_dimension_numbers<[1], [0], [0], [1], [0, 0, 1, 1], [], []>} : vector<128x32xf32>, vector<32x128xf32>, vector<128x128xf32> -> vector<128x128xf32>
      %cst_51 = arith.constant 0xFF800000 : f32
      %92 = vector.broadcast %cst_51 : f32 to vector<128x128xf32>
      %93 = arith.select %35, %91, %92 : vector<128x128xi1>, vector<128x128xf32>
      %c1 = arith.constant 1 : index
      %c0_52 = arith.constant 0 : index
      %c0_53 = arith.constant 0 : index
      %94 = vector.load %arg12[%c1, %c0_52, %c0_53] : memref<4x128x1xf32, #tpu.memory_space<vmem>>, vector<1x128x1xf32>
      %95 = vector.shape_cast %94 : vector<1x128x1xf32> to vector<128x1xf32>
      %cst_54 = arith.constant dense<0xFF800000> : vector<128xf32>
      %96 = vector.multi_reduction <maximumf>, %93, %cst_54 [1] : vector<128x128xf32> to vector<128xf32>
      %97 = vector.shape_cast %96 : vector<128xf32> to vector<128x1xf32>
      %98 = arith.maximumf %95, %97 : vector<128x1xf32>
      %99 = arith.subf %95, %98 : vector<128x1xf32>
      %100 = math.exp %99 : vector<128x1xf32>
      %101 = vector.broadcast %98 : vector<128x1xf32> to vector<128x128xf32>
      %102 = arith.subf %93, %101 : vector<128x128xf32>
      %103 = math.exp %102 : vector<128x128xf32>
      %c1_55 = arith.constant 1 : index
      %c0_56 = arith.constant 0 : index
      %c0_57 = arith.constant 0 : index
      %104 = vector.load %arg13[%c1_55, %c0_56, %c0_57] : memref<4x128x1xf32, #tpu.memory_space<vmem>>, vector<1x128x1xf32>
      %105 = vector.shape_cast %104 : vector<1x128x1xf32> to vector<128x1xf32>
      %106 = arith.mulf %100, %105 : vector<128x1xf32>
      %cst_58 = arith.constant dense<0.000000e+00> : vector<128xf32>
      %107 = vector.multi_reduction <add>, %103, %cst_58 [1] : vector<128x128xf32> to vector<128xf32>
      %108 = vector.shape_cast %107 : vector<128xf32> to vector<128x1xf32>
      %109 = arith.addf %106, %108 : vector<128x1xf32>
      %c1_59 = arith.constant 1 : index
      %c0_60 = arith.constant 0 : index
      %c0_61 = arith.constant 0 : index
      %110 = vector.load %arg13[%c1_59, %c0_60, %c0_61] : memref<4x128x1xf32, #tpu.memory_space<vmem>>, vector<1x128x1xf32>
      %111 = vector.shape_cast %110 : vector<1x128x1xf32> to vector<128x1xf32>
      %112 = vector.shape_cast %109 : vector<128x1xf32> to vector<1x128x1xf32>
      tpu.vector_store %arg13[%c1_59, %c0_60, %c0_61], %112 {strides = array<i32>} : memref<4x128x1xf32, #tpu.memory_space<vmem>>, vector<1x128x1xf32>,
      %c0_62 = arith.constant 0 : index
      %c32 = arith.constant 32 : index
      %113 = vector.load %arg14[%c0_62, %c32] : memref<128x128xf32, #tpu.memory_space<vmem>>, vector<128x32xf32>
      %114 = vector.broadcast %100 : vector<128x1xf32> to vector<128x32xf32>
      %115 = arith.mulf %114, %113 : vector<128x32xf32>
      %cst_63 = arith.constant dense<0.000000e+00> : vector<128x32xf32>
      %116 = tpu.matmul %103, %81, %cst_63 {dimension_numbers = #tpu.dot_dimension_numbers<[1], [0], [0], [1], [0, 0, 1, 1], [], []>} : vector<128x128xf32>, vector<128x32xf32>, vector<128x32xf32> -> vector<128x32xf32>
      %117 = arith.addf %115, %116 : vector<128x32xf32>
      %c0_64 = arith.constant 0 : index
      %c32_65 = arith.constant 32 : index
      %118 = vector.load %arg14[%c0_64, %c32_65] : memref<128x128xf32, #tpu.memory_space<vmem>>, vector<128x32xf32>
      tpu.vector_store %arg14[%c0_64, %c32_65], %117 {strides = array<i32>} : memref<128x128xf32, #tpu.memory_space<vmem>>, vector<128x32xf32>,
      %c1_66 = arith.constant 1 : index
      %c0_67 = arith.constant 0 : index
      %c0_68 = arith.constant 0 : index
      %119 = vector.load %arg12[%c1_66, %c0_67, %c0_68] : memref<4x128x1xf32, #tpu.memory_space<vmem>>, vector<1x128x1xf32>
      %120 = vector.shape_cast %119 : vector<1x128x1xf32> to vector<128x1xf32>
      %121 = vector.shape_cast %98 : vector<128x1xf32> to vector<1x128x1xf32>
      tpu.vector_store %arg12[%c1_66, %c0_67, %c0_68], %121 {strides = array<i32>} : memref<4x128x1xf32, #tpu.memory_space<vmem>>, vector<1x128x1xf32>,
      %122 = vector.extract_strided_slice %22 {offsets = [0, 64], sizes = [128, 32], strides = [1, 1]} : vector<128x128xf32> to vector<128x32xf32>
      %123 = vector.extract_strided_slice %24 {offsets = [0, 64], sizes = [128, 32], strides = [1, 1]} : vector<128x128xf32> to vector<128x32xf32>
      %124 = vector.extract_strided_slice %26 {offsets = [0, 64], sizes = [128, 32], strides = [1, 1]} : vector<128x128xf32> to vector<128x32xf32>
      %125 = arith.mulf %122, %15 : vector<128x32xf32>
      %cst_69 = arith.constant dense<0.000000e+00> : vector<128x32xf32>
      %126 = tpu.matmul %122, %12, %cst_69 {dimension_numbers = #tpu.dot_dimension_numbers<[1], [0], [0], [1], [0, 0, 1, 1], [], []>} : vector<128x32xf32>, vector<32x32xf32>, vector<128x32xf32> -> vector<128x32xf32>
      %127 = arith.mulf %126, %18 : vector<128x32xf32>
      %128 = arith.addf %125, %127 : vector<128x32xf32>
      %129 = arith.mulf %123, %19 : vector<128x32xf32>
      %cst_70 = arith.constant dense<0.000000e+00> : vector<128x32xf32>
      %130 = tpu.matmul %123, %12, %cst_70 {dimension_numbers = #tpu.dot_dimension_numbers<[1], [0], [0], [1], [0, 0, 1, 1], [], []>} : vector<128x32xf32>, vector<32x32xf32>, vector<128x32xf32> -> vector<128x32xf32>
      %131 = arith.mulf %130, %20 : vector<128x32xf32>
      %132 = arith.addf %129, %131 : vector<128x32xf32>
      %133 = tpu.transpose %132, [1, 0] : vector<128x32xf32> -> vector<32x128xf32>
      %cst_71 = arith.constant dense<0.000000e+00> : vector<128x128xf32>
      %134 = tpu.matmul %128, %133, %cst_71 {dimension_numbers = #tpu.dot_dimension_numbers<[1], [0], [0], [1], [0, 0, 1, 1], [], []>} : vector<128x32xf32>, vector<32x128xf32>, vector<128x128xf32> -> vector<128x128xf32>
      %cst_72 = arith.constant 0xFF800000 : f32
      %135 = vector.broadcast %cst_72 : f32 to vector<128x128xf32>
      %136 = arith.select %35, %134, %135 : vector<128x128xi1>, vector<128x128xf32>
      %c2 = arith.constant 2 : index
      %c0_73 = arith.constant 0 : index
      %c0_74 = arith.constant 0 : index
      %137 = vector.load %arg12[%c2, %c0_73, %c0_74] : memref<4x128x1xf32, #tpu.memory_space<vmem>>, vector<1x128x1xf32>
      %138 = vector.shape_cast %137 : vector<1x128x1xf32> to vector<128x1xf32>
      %cst_75 = arith.constant dense<0xFF800000> : vector<128xf32>
      %139 = vector.multi_reduction <maximumf>, %136, %cst_75 [1] : vector<128x128xf32> to vector<128xf32>
      %140 = vector.shape_cast %139 : vector<128xf32> to vector<128x1xf32>
      %141 = arith.maximumf %138, %140 : vector<128x1xf32>
      %142 = arith.subf %138, %141 : vector<128x1xf32>
      %143 = math.exp %142 : vector<128x1xf32>
      %144 = vector.broadcast %141 : vector<128x1xf32> to vector<128x128xf32>
      %145 = arith.subf %136, %144 : vector<128x128xf32>
      %146 = math.exp %145 : vector<128x128xf32>
      %c2_76 = arith.constant 2 : index
      %c0_77 = arith.constant 0 : index
      %c0_78 = arith.constant 0 : index
      %147 = vector.load %arg13[%c2_76, %c0_77, %c0_78] : memref<4x128x1xf32, #tpu.memory_space<vmem>>, vector<1x128x1xf32>
      %148 = vector.shape_cast %147 : vector<1x128x1xf32> to vector<128x1xf32>
      %149 = arith.mulf %143, %148 : vector<128x1xf32>
      %cst_79 = arith.constant dense<0.000000e+00> : vector<128xf32>
      %150 = vector.multi_reduction <add>, %146, %cst_79 [1] : vector<128x128xf32> to vector<128xf32>
      %151 = vector.shape_cast %150 : vector<128xf32> to vector<128x1xf32>
      %152 = arith.addf %149, %151 : vector<128x1xf32>
      %c2_80 = arith.constant 2 : index
      %c0_81 = arith.constant 0 : index
      %c0_82 = arith.constant 0 : index
      %153 = vector.load %arg13[%c2_80, %c0_81, %c0_82] : memref<4x128x1xf32, #tpu.memory_space<vmem>>, vector<1x128x1xf32>
      %154 = vector.shape_cast %153 : vector<1x128x1xf32> to vector<128x1xf32>
      %155 = vector.shape_cast %152 : vector<128x1xf32> to vector<1x128x1xf32>
      tpu.vector_store %arg13[%c2_80, %c0_81, %c0_82], %155 {strides = array<i32>} : memref<4x128x1xf32, #tpu.memory_space<vmem>>, vector<1x128x1xf32>,
      %c0_83 = arith.constant 0 : index
      %c64 = arith.constant 64 : index
      %156 = vector.load %arg14[%c0_83, %c64] : memref<128x128xf32, #tpu.memory_space<vmem>>, vector<128x32xf32>
      %157 = vector.broadcast %143 : vector<128x1xf32> to vector<128x32xf32>
      %158 = arith.mulf %157, %156 : vector<128x32xf32>
      %cst_84 = arith.constant dense<0.000000e+00> : vector<128x32xf32>
      %159 = tpu.matmul %146, %124, %cst_84 {dimension_numbers = #tpu.dot_dimension_numbers<[1], [0], [0], [1], [0, 0, 1, 1], [], []>} : vector<128x128xf32>, vector<128x32xf32>, vector<128x32xf32> -> vector<128x32xf32>
      %160 = arith.addf %158, %159 : vector<128x32xf32>
      %c0_85 = arith.constant 0 : index
      %c64_86 = arith.constant 64 : index
      %161 = vector.load %arg14[%c0_85, %c64_86] : memref<128x128xf32, #tpu.memory_space<vmem>>, vector<128x32xf32>
      tpu.vector_store %arg14[%c0_85, %c64_86], %160 {strides = array<i32>} : memref<128x128xf32, #tpu.memory_space<vmem>>, vector<128x32xf32>,
      %c2_87 = arith.constant 2 : index
      %c0_88 = arith.constant 0 : index
      %c0_89 = arith.constant 0 : index
      %162 = vector.load %arg12[%c2_87, %c0_88, %c0_89] : memref<4x128x1xf32, #tpu.memory_space<vmem>>, vector<1x128x1xf32>
      %163 = vector.shape_cast %162 : vector<1x128x1xf32> to vector<128x1xf32>
      %164 = vector.shape_cast %141 : vector<128x1xf32> to vector<1x128x1xf32>
      tpu.vector_store %arg12[%c2_87, %c0_88, %c0_89], %164 {strides = array<i32>} : memref<4x128x1xf32, #tpu.memory_space<vmem>>, vector<1x128x1xf32>,
      %165 = vector.extract_strided_slice %22 {offsets = [0, 96], sizes = [128, 32], strides = [1, 1]} : vector<128x128xf32> to vector<128x32xf32>
      %166 = vector.extract_strided_slice %24 {offsets = [0, 96], sizes = [128, 32], strides = [1, 1]} : vector<128x128xf32> to vector<128x32xf32>
      %167 = vector.extract_strided_slice %26 {offsets = [0, 96], sizes = [128, 32], strides = [1, 1]} : vector<128x128xf32> to vector<128x32xf32>
      %168 = arith.mulf %165, %15 : vector<128x32xf32>
      %cst_90 = arith.constant dense<0.000000e+00> : vector<128x32xf32>
      %169 = tpu.matmul %165, %12, %cst_90 {dimension_numbers = #tpu.dot_dimension_numbers<[1], [0], [0], [1], [0, 0, 1, 1], [], []>} : vector<128x32xf32>, vector<32x32xf32>, vector<128x32xf32> -> vector<128x32xf32>
      %170 = arith.mulf %169, %18 : vector<128x32xf32>
      %171 = arith.addf %168, %170 : vector<128x32xf32>
      %172 = arith.mulf %166, %19 : vector<128x32xf32>
      %cst_91 = arith.constant dense<0.000000e+00> : vector<128x32xf32>
      %173 = tpu.matmul %166, %12, %cst_91 {dimension_numbers = #tpu.dot_dimension_numbers<[1], [0], [0], [1], [0, 0, 1, 1], [], []>} : vector<128x32xf32>, vector<32x32xf32>, vector<128x32xf32> -> vector<128x32xf32>
      %174 = arith.mulf %173, %20 : vector<128x32xf32>
      %175 = arith.addf %172, %174 : vector<128x32xf32>
      %176 = tpu.transpose %175, [1, 0] : vector<128x32xf32> -> vector<32x128xf32>
      %cst_92 = arith.constant dense<0.000000e+00> : vector<128x128xf32>
      %177 = tpu.matmul %171, %176, %cst_92 {dimension_numbers = #tpu.dot_dimension_numbers<[1], [0], [0], [1], [0, 0, 1, 1], [], []>} : vector<128x32xf32>, vector<32x128xf32>, vector<128x128xf32> -> vector<128x128xf32>
      %cst_93 = arith.constant 0xFF800000 : f32
      %178 = vector.broadcast %cst_93 : f32 to vector<128x128xf32>
      %179 = arith.select %35, %177, %178 : vector<128x128xi1>, vector<128x128xf32>
      %c3 = arith.constant 3 : index
      %c0_94 = arith.constant 0 : index
      %c0_95 = arith.constant 0 : index
      %180 = vector.load %arg12[%c3, %c0_94, %c0_95] : memref<4x128x1xf32, #tpu.memory_space<vmem>>, vector<1x128x1xf32>
      %181 = vector.shape_cast %180 : vector<1x128x1xf32> to vector<128x1xf32>
      %cst_96 = arith.constant dense<0xFF800000> : vector<128xf32>
      %182 = vector.multi_reduction <maximumf>, %179, %cst_96 [1] : vector<128x128xf32> to vector<128xf32>
      %183 = vector.shape_cast %182 : vector<128xf32> to vector<128x1xf32>
      %184 = arith.maximumf %181, %183 : vector<128x1xf32>
      %185 = arith.subf %181, %184 : vector<128x1xf32>
      %186 = math.exp %185 : vector<128x1xf32>
      %187 = vector.broadcast %184 : vector<128x1xf32> to vector<128x128xf32>
      %188 = arith.subf %179, %187 : vector<128x128xf32>
      %189 = math.exp %188 : vector<128x128xf32>
      %c3_97 = arith.constant 3 : index
      %c0_98 = arith.constant 0 : index
      %c0_99 = arith.constant 0 : index
      %190 = vector.load %arg13[%c3_97, %c0_98, %c0_99] : memref<4x128x1xf32, #tpu.memory_space<vmem>>, vector<1x128x1xf32>
      %191 = vector.shape_cast %190 : vector<1x128x1xf32> to vector<128x1xf32>
      %192 = arith.mulf %186, %191 : vector<128x1xf32>
      %cst_100 = arith.constant dense<0.000000e+00> : vector<128xf32>
      %193 = vector.multi_reduction <add>, %189, %cst_100 [1] : vector<128x128xf32> to vector<128xf32>
      %194 = vector.shape_cast %193 : vector<128xf32> to vector<128x1xf32>
      %195 = arith.addf %192, %194 : vector<128x1xf32>
      %c3_101 = arith.constant 3 : index
      %c0_102 = arith.constant 0 : index
      %c0_103 = arith.constant 0 : index
      %196 = vector.load %arg13[%c3_101, %c0_102, %c0_103] : memref<4x128x1xf32, #tpu.memory_space<vmem>>, vector<1x128x1xf32>
      %197 = vector.shape_cast %196 : vector<1x128x1xf32> to vector<128x1xf32>
      %198 = vector.shape_cast %195 : vector<128x1xf32> to vector<1x128x1xf32>
      tpu.vector_store %arg13[%c3_101, %c0_102, %c0_103], %198 {strides = array<i32>} : memref<4x128x1xf32, #tpu.memory_space<vmem>>, vector<1x128x1xf32>,
      %c0_104 = arith.constant 0 : index
      %c96 = arith.constant 96 : index
      %199 = vector.load %arg14[%c0_104, %c96] : memref<128x128xf32, #tpu.memory_space<vmem>>, vector<128x32xf32>
      %200 = vector.broadcast %186 : vector<128x1xf32> to vector<128x32xf32>
      %201 = arith.mulf %200, %199 : vector<128x32xf32>
      %cst_105 = arith.constant dense<0.000000e+00> : vector<128x32xf32>
      %202 = tpu.matmul %189, %167, %cst_105 {dimension_numbers = #tpu.dot_dimension_numbers<[1], [0], [0], [1], [0, 0, 1, 1], [], []>} : vector<128x128xf32>, vector<128x32xf32>, vector<128x32xf32> -> vector<128x32xf32>
      %203 = arith.addf %201, %202 : vector<128x32xf32>
      %c0_106 = arith.constant 0 : index
      %c96_107 = arith.constant 96 : index
      %204 = vector.load %arg14[%c0_106, %c96_107] : memref<128x128xf32, #tpu.memory_space<vmem>>, vector<128x32xf32>
      tpu.vector_store %arg14[%c0_106, %c96_107], %203 {strides = array<i32>} : memref<128x128xf32, #tpu.memory_space<vmem>>, vector<128x32xf32>,
      %c3_108 = arith.constant 3 : index
      %c0_109 = arith.constant 0 : index
      %c0_110 = arith.constant 0 : index
      %205 = vector.load %arg12[%c3_108, %c0_109, %c0_110] : memref<4x128x1xf32, #tpu.memory_space<vmem>>, vector<1x128x1xf32>
      %206 = vector.shape_cast %205 : vector<1x128x1xf32> to vector<128x1xf32>
      %207 = vector.shape_cast %184 : vector<128x1xf32> to vector<1x128x1xf32>
      tpu.vector_store %arg12[%c3_108, %c0_109, %c0_110], %207 {strides = array<i32>} : memref<4x128x1xf32, #tpu.memory_space<vmem>>, vector<1x128x1xf32>,
    } else {
    }
    %c1_i32 = arith.constant 1 : i32
    %9 = arith.cmpi eq, %arg2, %c1_i32 : i32
    %10 = arith.extui %9 : i1 to i32
    %c0_i32_3 = arith.constant 0 : i32
    %11 = arith.cmpi ne, %10, %c0_i32_3 : i32
    scf.if %11 {
      %c0 = arith.constant 0 : index
      %c0_4 = arith.constant 0 : index
      %c0_5 = arith.constant 0 : index
      %12 = vector.load %arg13[%c0, %c0_4, %c0_5] : memref<4x128x1xf32, #tpu.memory_space<vmem>>, vector<1x128x1xf32>
      %13 = vector.shape_cast %12 : vector<1x128x1xf32> to vector<128x1xf32>
      %14 = tpu.reciprocal %13 {approx = true} : vector<128x1xf32> -> vector<128x1xf32>
      %c0_6 = arith.constant 0 : index
      %c0_7 = arith.constant 0 : index
      %15 = vector.load %arg14[%c0_6, %c0_7] : memref<128x128xf32, #tpu.memory_space<vmem>>, vector<128x32xf32>
      %16 = vector.broadcast %14 : vector<128x1xf32> to vector<128x32xf32>
      %17 = arith.mulf %15, %16 : vector<128x32xf32>
      %c1 = arith.constant 1 : index
      %c0_8 = arith.constant 0 : index
      %c0_9 = arith.constant 0 : index
      %18 = vector.load %arg13[%c1, %c0_8, %c0_9] : memref<4x128x1xf32, #tpu.memory_space<vmem>>, vector<1x128x1xf32>
      %19 = vector.shape_cast %18 : vector<1x128x1xf32> to vector<128x1xf32>
      %20 = tpu.reciprocal %19 {approx = true} : vector<128x1xf32> -> vector<128x1xf32>
      %c0_10 = arith.constant 0 : index
      %c32 = arith.constant 32 : index
      %21 = vector.load %arg14[%c0_10, %c32] : memref<128x128xf32, #tpu.memory_space<vmem>>, vector<128x32xf32>
      %22 = vector.broadcast %20 : vector<128x1xf32> to vector<128x32xf32>
      %23 = arith.mulf %21, %22 : vector<128x32xf32>
      %c2 = arith.constant 2 : index
      %c0_11 = arith.constant 0 : index
      %c0_12 = arith.constant 0 : index
      %24 = vector.load %arg13[%c2, %c0_11, %c0_12] : memref<4x128x1xf32, #tpu.memory_space<vmem>>, vector<1x128x1xf32>
      %25 = vector.shape_cast %24 : vector<1x128x1xf32> to vector<128x1xf32>
      %26 = tpu.reciprocal %25 {approx = true} : vector<128x1xf32> -> vector<128x1xf32>
      %c0_13 = arith.constant 0 : index
      %c64 = arith.constant 64 : index
      %27 = vector.load %arg14[%c0_13, %c64] : memref<128x128xf32, #tpu.memory_space<vmem>>, vector<128x32xf32>
      %28 = vector.broadcast %26 : vector<128x1xf32> to vector<128x32xf32>
      %29 = arith.mulf %27, %28 : vector<128x32xf32>
      %c3 = arith.constant 3 : index
      %c0_14 = arith.constant 0 : index
      %c0_15 = arith.constant 0 : index
      %30 = vector.load %arg13[%c3, %c0_14, %c0_15] : memref<4x128x1xf32, #tpu.memory_space<vmem>>, vector<1x128x1xf32>
      %31 = vector.shape_cast %30 : vector<1x128x1xf32> to vector<128x1xf32>
      %32 = tpu.reciprocal %31 {approx = true} : vector<128x1xf32> -> vector<128x1xf32>
      %c0_16 = arith.constant 0 : index
      %c96 = arith.constant 96 : index
      %33 = vector.load %arg14[%c0_16, %c96] : memref<128x128xf32, #tpu.memory_space<vmem>>, vector<128x32xf32>
      %34 = vector.broadcast %32 : vector<128x1xf32> to vector<128x32xf32>
      %35 = arith.mulf %33, %34 : vector<128x32xf32>
      %36 = tpu.concatenate %17, %23, %29, %35 in 1 : vector<128x32xf32>, vector<128x32xf32>, vector<128x32xf32>, vector<128x32xf32> -> vector<128x128xf32>
      %c0_17 = arith.constant 0 : index
      %c0_18 = arith.constant 0 : index
      %c0_19 = arith.constant 0 : index
      %37 = vector.load %arg11[%c0_17, %c0_18, %c0_19] : memref<1x128x128xf32, #tpu.memory_space<vmem>>, vector<1x128x128xf32>
      %38 = vector.shape_cast %37 : vector<1x128x128xf32> to vector<128x128xf32>
      %39 = vector.shape_cast %36 : vector<128x128xf32> to vector<1x128x128xf32>
      tpu.vector_store %arg11[%c0_17, %c0_18, %c0_19], %39 {strides = array<i32>} : memref<1x128x128xf32, #tpu.memory_space<vmem>>, vector<1x128x128xf32>,
    } else {
    }
    return
  }
  func.func @transform_0(%arg0: i32, %arg1: i32, %arg2: i32) -> (i32, i32, i32) {
    %c0_i32 = arith.constant 0 : i32
    %c0_i32_0 = arith.constant 0 : i32
    return %arg0, %arg1, %c0_i32 : i32, i32, i32
  }
  func.func @transform_1(%arg0: i32, %arg1: i32, %arg2: i32) -> (i32, i32, i32) {
    %c1_i32 = arith.constant 1 : i32
    %c0_i32 = arith.constant 0 : i32
    return %arg0, %arg2, %c1_i32 : i32, i32, i32
  }
  func.func @transform_2(%arg0: i32, %arg1: i32, %arg2: i32) -> (i32, i32, i32) {
    %c2_i32 = arith.constant 2 : i32
    %c0_i32 = arith.constant 0 : i32
    return %arg0, %arg2, %c2_i32 : i32, i32, i32
  }
  func.func @transform_3(%arg0: i32, %arg1: i32, %arg2: i32) -> (i32, i32) {
    %c0_i32 = arith.constant 0 : i32
    %c0_i32_0 = arith.constant 0 : i32
    return %arg1, %c0_i32 : i32, i32
  }
  func.func @transform_4(%arg0: i32, %arg1: i32, %arg2: i32) -> (i32, i32) {
    %c0_i32 = arith.constant 0 : i32
    %c0_i32_0 = arith.constant 0 : i32
    return %arg1, %c0_i32 : i32, i32
  }
  func.func @transform_5(%arg0: i32, %arg1: i32, %arg2: i32) -> (i32, i32) {
    %c0_i32 = arith.constant 0 : i32
    %c0_i32_0 = arith.constant 0 : i32
    return %arg2, %c0_i32 : i32, i32
  }
  func.func @transform_6(%arg0: i32, %arg1: i32, %arg2: i32) -> (i32, i32) {
    %c0_i32 = arith.constant 0 : i32
    %c0_i32_0 = arith.constant 0 : i32
    return %arg2, %c0_i32 : i32, i32
  }
  func.func @transform_7(%arg0: i32, %arg1: i32, %arg2: i32) -> (i32, i32) {
    %c0_i32 = arith.constant 0 : i32
    %c0_i32_0 = arith.constant 0 : i32
    %c0_i32_1 = arith.constant 0 : i32
    return %c0_i32, %c0_i32_0 : i32, i32
  }
  func.func @transform_8(%arg0: i32, %arg1: i32, %arg2: i32) -> (i32, i32, i32) {
    %c0_i32 = arith.constant 0 : i32
    %c0_i32_0 = arith.constant 0 : i32
    return %arg0, %arg1, %c0_i32 : i32, i32, i32
  }
}

module attributes {stable_mosaic.version = 11 : i64} {
  func.func @_matmul_kernel(%arg0: i32, %arg1: i32, %arg2: i32, %arg3: memref<256x128xf32, #tpu.memory_space<vmem>>, %arg4: memref<128x128xf32, #tpu.memory_space<vmem>>, %arg5: memref<256x128xf32, #tpu.memory_space<vmem>>, %arg6: memref<256x128xf32, #tpu.memory_space<vmem>>) attributes {dimension_semantics = [#tpu.dimension_semantics<parallel>, #tpu.dimension_semantics<parallel>, #tpu.dimension_semantics<arbitrary>], iteration_bounds = array<i64: 2, 3, 1>, scalar_prefetch = 0 : i64, scratch_operands = 1 : i64, tpu.core_type = #tpu.core_type<tc>, window_params = [{transform_indices = @transform_0, window_bounds = array<i64: 256, 128>}, {transform_indices = @transform_1, window_bounds = array<i64: 128, 128>}, {transform_indices = @transform_2, window_bounds = array<i64: 256, 128>}]} {
    %c0_i32 = arith.constant 0 : i32
    %0 = arith.cmpi eq, %arg2, %c0_i32 : i32
    %1 = arith.extui %0 : i1 to i32
    %c0_i32_0 = arith.constant 0 : i32
    %2 = arith.cmpi ne, %1, %c0_i32_0 : i32
    scf.if %2 {
      %cst_10 = arith.constant 0.000000e+00 : f32
      %12 = vector.broadcast %cst_10 : f32 to vector<256x128xf32>
      %c0_11 = arith.constant 0 : index
      %c0_12 = arith.constant 0 : index
      %13 = vector.load %arg6[%c0_11, %c0_12] : memref<256x128xf32, #tpu.memory_space<vmem>>, vector<256x128xf32>
      tpu.vector_store %arg6[%c0_11, %c0_12], %12 {strides = array<i32>} : memref<256x128xf32, #tpu.memory_space<vmem>>, vector<256x128xf32>,
    } else {
    }
    %c0 = arith.constant 0 : index
    %c0_1 = arith.constant 0 : index
    %3 = vector.load %arg6[%c0, %c0_1] : memref<256x128xf32, #tpu.memory_space<vmem>>, vector<256x128xf32>
    %c0_2 = arith.constant 0 : index
    %c0_3 = arith.constant 0 : index
    %4 = vector.load %arg3[%c0_2, %c0_3] : memref<256x128xf32, #tpu.memory_space<vmem>>, vector<256x128xf32>
    %c0_4 = arith.constant 0 : index
    %c0_5 = arith.constant 0 : index
    %5 = vector.load %arg4[%c0_4, %c0_5] : memref<128x128xf32, #tpu.memory_space<vmem>>, vector<128x128xf32>
    %cst = arith.constant dense<0.000000e+00> : vector<256x128xf32>
    %6 = tpu.matmul %4, %5, %cst {dimension_numbers = #tpu.dot_dimension_numbers<[1], [0], [0], [1], [0, 0, 1, 1], [], []>} : vector<256x128xf32>, vector<128x128xf32>, vector<256x128xf32> -> vector<256x128xf32>
    %7 = arith.addf %3, %6 : vector<256x128xf32>
    %c0_6 = arith.constant 0 : index
    %c0_7 = arith.constant 0 : index
    %8 = vector.load %arg6[%c0_6, %c0_7] : memref<256x128xf32, #tpu.memory_space<vmem>>, vector<256x128xf32>
    tpu.vector_store %arg6[%c0_6, %c0_7], %7 {strides = array<i32>} : memref<256x128xf32, #tpu.memory_space<vmem>>, vector<256x128xf32>,
    %c0_i32_8 = arith.constant 0 : i32
    %9 = arith.cmpi eq, %arg2, %c0_i32_8 : i32
    %10 = arith.extui %9 : i1 to i32
    %c0_i32_9 = arith.constant 0 : i32
    %11 = arith.cmpi ne, %10, %c0_i32_9 : i32
    scf.if %11 {
      %c0_10 = arith.constant 0 : index
      %c0_11 = arith.constant 0 : index
      %12 = vector.load %arg6[%c0_10, %c0_11] : memref<256x128xf32, #tpu.memory_space<vmem>>, vector<256x128xf32>
      %c0_12 = arith.constant 0 : index
      %c0_13 = arith.constant 0 : index
      %13 = vector.load %arg5[%c0_12, %c0_13] : memref<256x128xf32, #tpu.memory_space<vmem>>, vector<256x128xf32>
      tpu.vector_store %arg5[%c0_12, %c0_13], %12 {strides = array<i32>} : memref<256x128xf32, #tpu.memory_space<vmem>>, vector<256x128xf32>,
    } else {
    }
    return
  }
  func.func @transform_0(%arg0: i32, %arg1: i32, %arg2: i32) -> (i32, i32) {
    %c0_i32 = arith.constant 0 : i32
    return %arg0, %arg2 : i32, i32
  }
  func.func @transform_1(%arg0: i32, %arg1: i32, %arg2: i32) -> (i32, i32) {
    %c0_i32 = arith.constant 0 : i32
    return %arg2, %arg1 : i32, i32
  }
  func.func @transform_2(%arg0: i32, %arg1: i32, %arg2: i32) -> (i32, i32) {
    %c0_i32 = arith.constant 0 : i32
    return %arg0, %arg1 : i32, i32
  }
}

module attributes {stable_mosaic.version = 11 : i64} {
  func.func @_matmul_kernel(%arg0: i32, %arg1: i32, %arg2: i32, %arg3: memref<256x128xf32, #tpu.memory_space<vmem>>, %arg4: memref<128x128xf32, #tpu.memory_space<vmem>>, %arg5: memref<256x128xf32, #tpu.memory_space<vmem>>, %arg6: memref<256x128xf32, #tpu.memory_space<vmem>>) attributes {dimension_semantics = [#tpu.dimension_semantics<parallel>, #tpu.dimension_semantics<parallel>, #tpu.dimension_semantics<arbitrary>], iteration_bounds = array<i64: 2, 1, 1>, scalar_prefetch = 0 : i64, scratch_operands = 1 : i64, tpu.core_type = #tpu.core_type<tc>, window_params = [{transform_indices = @transform_0, window_bounds = array<i64: 256, 128>}, {transform_indices = @transform_1, window_bounds = array<i64: 128, 128>}, {transform_indices = @transform_2, window_bounds = array<i64: 256, 128>}]} {
    %c0_i32 = arith.constant 0 : i32
    %0 = arith.cmpi eq, %arg2, %c0_i32 : i32
    %1 = arith.extui %0 : i1 to i32
    %c0_i32_0 = arith.constant 0 : i32
    %2 = arith.cmpi ne, %1, %c0_i32_0 : i32
    scf.if %2 {
      %cst_10 = arith.constant 0.000000e+00 : f32
      %12 = vector.broadcast %cst_10 : f32 to vector<256x128xf32>
      %c0_11 = arith.constant 0 : index
      %c0_12 = arith.constant 0 : index
      %13 = vector.load %arg6[%c0_11, %c0_12] : memref<256x128xf32, #tpu.memory_space<vmem>>, vector<256x128xf32>
      tpu.vector_store %arg6[%c0_11, %c0_12], %12 {strides = array<i32>} : memref<256x128xf32, #tpu.memory_space<vmem>>, vector<256x128xf32>,
    } else {
    }
    %c0 = arith.constant 0 : index
    %c0_1 = arith.constant 0 : index
    %3 = vector.load %arg6[%c0, %c0_1] : memref<256x128xf32, #tpu.memory_space<vmem>>, vector<256x128xf32>
    %c0_2 = arith.constant 0 : index
    %c0_3 = arith.constant 0 : index
    %4 = vector.load %arg3[%c0_2, %c0_3] : memref<256x128xf32, #tpu.memory_space<vmem>>, vector<256x128xf32>
    %c0_4 = arith.constant 0 : index
    %c0_5 = arith.constant 0 : index
    %5 = vector.load %arg4[%c0_4, %c0_5] : memref<128x128xf32, #tpu.memory_space<vmem>>, vector<128x128xf32>
    %cst = arith.constant dense<0.000000e+00> : vector<256x128xf32>
    %6 = tpu.matmul %4, %5, %cst {dimension_numbers = #tpu.dot_dimension_numbers<[1], [0], [0], [1], [0, 0, 1, 1], [], []>} : vector<256x128xf32>, vector<128x128xf32>, vector<256x128xf32> -> vector<256x128xf32>
    %7 = arith.addf %3, %6 : vector<256x128xf32>
    %c0_6 = arith.constant 0 : index
    %c0_7 = arith.constant 0 : index
    %8 = vector.load %arg6[%c0_6, %c0_7] : memref<256x128xf32, #tpu.memory_space<vmem>>, vector<256x128xf32>
    tpu.vector_store %arg6[%c0_6, %c0_7], %7 {strides = array<i32>} : memref<256x128xf32, #tpu.memory_space<vmem>>, vector<256x128xf32>,
    %c0_i32_8 = arith.constant 0 : i32
    %9 = arith.cmpi eq, %arg2, %c0_i32_8 : i32
    %10 = arith.extui %9 : i1 to i32
    %c0_i32_9 = arith.constant 0 : i32
    %11 = arith.cmpi ne, %10, %c0_i32_9 : i32
    scf.if %11 {
      %c0_10 = arith.constant 0 : index
      %c0_11 = arith.constant 0 : index
      %12 = vector.load %arg6[%c0_10, %c0_11] : memref<256x128xf32, #tpu.memory_space<vmem>>, vector<256x128xf32>
      %c0_12 = arith.constant 0 : index
      %c0_13 = arith.constant 0 : index
      %13 = vector.load %arg5[%c0_12, %c0_13] : memref<256x128xf32, #tpu.memory_space<vmem>>, vector<256x128xf32>
      tpu.vector_store %arg5[%c0_12, %c0_13], %12 {strides = array<i32>} : memref<256x128xf32, #tpu.memory_space<vmem>>, vector<256x128xf32>,
    } else {
    }
    return
  }
  func.func @transform_0(%arg0: i32, %arg1: i32, %arg2: i32) -> (i32, i32) {
    %c0_i32 = arith.constant 0 : i32
    return %arg0, %arg2 : i32, i32
  }
  func.func @transform_1(%arg0: i32, %arg1: i32, %arg2: i32) -> (i32, i32) {
    %c0_i32 = arith.constant 0 : i32
    return %arg2, %arg1 : i32, i32
  }
  func.func @transform_2(%arg0: i32, %arg1: i32, %arg2: i32) -> (i32, i32) {
    %c0_i32 = arith.constant 0 : i32
    return %arg0, %arg1 : i32, i32
  }
}

</mosaic_0001>

<llo_original>
// kernel: causal_self_attention.3
$region0: #{causal_self_attention.3}
  #allocation0 [shape = 'u32[]', space=smem, size = 0x4, offset = 0x4, fixed_abs, tag = 'smem constant byte address 0x4 - core index']
  #allocation1 [shape = 'u32[72,128]{1,0:T(1,128)}', space=vmem, size = 0x9000, scoped, tag = 'internal scratch']
  #allocation2 [shape = 'f32[256,128]{1,0:T(8,128)}', space=vmem, size = 0x20000, scoped, tag = 'scratch operand']
  %s0 = inlined_call_operand.vmem [shape: f32[512,128], index: 0, kind: input, shape index: {}]
  %s1 = inlined_call_operand.vmem [shape: f32[128,384], index: 1, kind: input, shape index: {}]
  %s2 = inlined_call_operand.vmem [shape: f32[512,384], index: 2, kind: output, shape index: {}]
  %s3 = sld [smem:[#allocation0]]
  $region121: #{causal_self_attention.3} parent=0
    _
  %s5 = ssub.s32 1, %s3
  %s6 = scalar_select 0, %s5, %s3
  $region1: #{causal_self_attention.3} parent=0
    #allocation3 [shape = 'u8[131072]{0}', space=vmem, size = 0x20000, scoped, tag = 'input window, operand 1']
    #allocation4 [shape = 'u8[262144]{0}', space=vmem, size = 0x40000, scoped, tag = 'output window, operand 0']
    loop: start=0, step=1, limit=8
    $region2: #{causal_self_attention.3} parent=1 // loop_pre_header
      _
    $region3: #{causal_self_attention.3} parent=1 // loop_header
      %s8 = sphi 0, %s12
      %p9 = scmp.ge.s32.totalorder %s8, 8
      %s15 = sphi 0, %s34
      %s16 = sphi 0, %s30
      %s17 = sphi 0, %s26
      %s18 = sphi 0, %s15
      %s19 = sphi 0, %s16
      %s20 = sphi 0, %s17
      %s21 = sphi 0, %s18
      %s22 = sphi 0, %s19
      %s23 = sphi 0, %s20
      %s39 = sphi 0, %s41
      %s42 = sphi 0, %s39
      %s43 = sphi 0, %s42
      %s59 = sphi 0, %s43
      %s67 = sphi 0, %s69
      %s70 = sphi 0, %s67
      %s71 = sphi 0, %s70
      %s87 = sphi 0, %s71
      %s95 = sphi 0, %s97
      %s98 = sphi 0, %s95
      %s99 = sphi 0, %s98
      %s115 = sphi 0, %s99
    $region4: #{causal_self_attention.3} parent=1 // loop_header_branch
      %11 = sbr.rel (%p9) target = $region8
    $region5: #{causal_self_attention.3} parent=1 // loop_body
      %s13 = ssub.s32 %s8, 1
      %s14 = ssub.s32 %s8, 2
      %s24 = sadd.s32 1, %s17
      %p25 = scmp.ge.s32.totalorder %s24, 1
      %s26 = scalar_select %p25, 0, %s24
      %s27 = sadd.s32 1, %s16
      %s28 = scalar_select %p25, %s27, %s16
      %p29 = scmp.ge.s32.totalorder %s28, 3
      %s30 = scalar_select %p29, 0, %s28
      %s31 = sadd.s32 1, %s15
      %s32 = scalar_select %p29, %s31, %s15
      %p33 = scmp.ge.s32.totalorder %s32, 2
      %s34 = scalar_select %p33, 0, %s32
      %s35 = ssub.s32 %s15, %s34
      %s36 = ssub.s32 %s17, %s26
      %s37 = sor.u32 %s35, %s36
      %p38 = scmp.eq.s32.totalorder %s37, 0
      %s40 = sadd.s32 %s39, 1
      %s41 = scalar_select %p38, %s39, %s40
      %p44 = pneg %p38
      %p45 = scmp.eq.s32.totalorder %s8, 5
      %p46 = por %p44, %p45
      %p47 = scmp.ne.s32.totalorder %s39, %s42
      %p48 = scmp.eq.s32.totalorder %s8, 0
      %p49 = por %p47, %p48
      %p50 = scmp.ne.s32.totalorder %s39, %s42
      %p51 = scmp.eq.s32.totalorder %s13, 5
      %p52 = por %p50, %p51
      %p53 = scmp.ne.s32.totalorder %s42, %s43
      %p54 = scmp.eq.s32.totalorder %s13, 0
      %p55 = por %p53, %p54
      %p56 = scmp.ne.s32.totalorder %s42, %s43
      %p57 = scmp.eq.s32.totalorder %s14, 5
      %p58 = por %p56, %p57
      %p60 = scmp.ne.s32.totalorder %s43, %s59
      %p61 = scmp.eq.s32.totalorder %s14, 0
      %p62 = por %p60, %p61
      %s63 = ssub.s32 %s17, %s26
      %s64 = ssub.s32 %s16, %s30
      %s65 = sor.u32 %s63, %s64
      %p66 = scmp.eq.s32.totalorder %s65, 0
      %s68 = sadd.s32 %s67, 1
      %s69 = scalar_select %p66, %s67, %s68
      %p72 = pneg %p66
      %p73 = scmp.eq.s32.totalorder %s8, 5
      %p74 = por %p72, %p73
      %p75 = scmp.ne.s32.totalorder %s67, %s70
      %p76 = scmp.eq.s32.totalorder %s8, 0
      %p77 = por %p75, %p76
      %p78 = scmp.ne.s32.totalorder %s67, %s70
      %p79 = scmp.eq.s32.totalorder %s13, 5
      %p80 = por %p78, %p79
      %p81 = scmp.ne.s32.totalorder %s70, %s71
      %p82 = scmp.eq.s32.totalorder %s13, 0
      %p83 = por %p81, %p82
      %p84 = scmp.ne.s32.totalorder %s70, %s71
      %p85 = scmp.eq.s32.totalorder %s14, 5
      %p86 = por %p84, %p85
      %p88 = scmp.ne.s32.totalorder %s71, %s87
      %p89 = scmp.eq.s32.totalorder %s14, 0
      %p90 = por %p88, %p89
      %s91 = ssub.s32 %s15, %s34
      %s92 = ssub.s32 %s16, %s30
      %s93 = sor.u32 %s91, %s92
      %p94 = scmp.eq.s32.totalorder %s93, 0
      %s96 = sadd.s32 %s95, 1
      %s97 = scalar_select %p94, %s95, %s96
      %p100 = pneg %p94
      %p101 = scmp.eq.s32.totalorder %s8, 5
      %p102 = por %p100, %p101
      %p103 = scmp.ne.s32.totalorder %s95, %s98
      %p104 = scmp.eq.s32.totalorder %s8, 0
      %p105 = por %p103, %p104
      %p106 = scmp.ne.s32.totalorder %s95, %s98
      %p107 = scmp.eq.s32.totalorder %s13, 5
      %p108 = por %p106, %p107
      %p109 = scmp.ne.s32.totalorder %s98, %s99
      %p110 = scmp.eq.s32.totalorder %s13, 0
      %p111 = por %p109, %p110
      %p112 = scmp.ne.s32.totalorder %s98, %s99
      %p113 = scmp.eq.s32.totalorder %s14, 5
      %p114 = por %p112, %p113
      %p116 = scmp.ne.s32.totalorder %s99, %s115
      %p117 = scmp.eq.s32.totalorder %s14, 0
      %p118 = por %p116, %p117
      %p119 = scmp.le.s32.totalorder 1, %s8
      %p120 = scmp.lt.s32.totalorder %s8, 7
      %p121 = pnand %p119, %p120
      %p122 = pneg %p121
      // Predicated region
      $region9: #{causal_self_attention.3} parent=5 // pred_check
        _
      $region10: #{causal_self_attention.3} parent=5 // pred_check_branch
        %124 = sbr.rel (%p121) target = $region12
      $region11: #{causal_self_attention.3} parent=5 // pred_region
        %s125 = ssub.s32 %s8, 1
      $region12: #{causal_self_attention.3} parent=5 // pred_fallthru
        _
      %p126 = scmp.lt.s32.totalorder %s8, 6
      // Predicated region
      $region13: #{causal_self_attention.3} parent=5 // pred_check
        %p127 = pneg %p126
      $region14: #{causal_self_attention.3} parent=5 // pred_check_branch
        %129 = sbr.rel (%p127) target = $region16
      $region15: #{causal_self_attention.3} parent=5 // pred_region
        // Predicated region
        $region17: #{causal_self_attention.3} parent=15 // pred_check
          %p130 = pneg %p49
        $region18: #{causal_self_attention.3} parent=15 // pred_check_branch
          %132 = sbr.rel (%p130) target = $region20
        $region19: #{causal_self_attention.3} parent=15 // pred_region
          %s133 = smul.u32 32, %s15
          %p134 = scmp.lt.s32.totalorder %s133, 63
          %s135 = scalar_select %p134, %s133, 63
          %p136 = scmp.lt.s32.totalorder %s17, 0
          %s137 = scalar_select %p136, %s17, 0
          %s138 = sadd.s32 %s137, %s135
          %s139 = smul.addr %s138, 8
          %s140 = scalar_lea.vmem %s0, %s139
          %s141 = smul.u32 32, %s15
        $region20: #{causal_self_attention.3} parent=15 // pred_fallthru
          _
        // Predicated region
        $region21: #{causal_self_attention.3} parent=15 // pred_check
          %p142 = pneg %p77
        $region22: #{causal_self_attention.3} parent=15 // pred_check_branch
          %144 = sbr.rel (%p142) target = $region24
        $region23: #{causal_self_attention.3} parent=15 // pred_region
          %s145 = sand.u32 %s67, 1
          %s146 = sand.u32 %s67, 1
          %s147 = smul.addr %s146, 128
          %s148 = scalar_lea.vmem [#allocation3], %s147
          %s149 = smul.u32 16, %s17
          %s150 = smul.addr %s149, 3
          %s151 = sadd.s32 %s16, %s150
          %s152 = smul.addr %s151, 8
          %s153 = scalar_lea.vmem %s1, %s152
          // Predicated region
          $region25: #{causal_self_attention.3} parent=23 // pred_check
            _
          $region26: #{causal_self_attention.3} parent=23 // pred_check_branch
            %155 = sbr.rel (0) target = $region28
          $region27: #{causal_self_attention.3} parent=23 // pred_region
            // Predicated region
            $region29: #{causal_self_attention.3} parent=27 // pred_check
              _
            $region30: #{causal_self_attention.3} parent=27 // pred_check_branch
              %157 = sbr.rel (0) target = $region32
            $region31: #{causal_self_attention.3} parent=27 // pred_region
              // Predicated region
              $region44: #{causal_self_attention.3} parent=31 // pred_check
                _
              $region45: #{causal_self_attention.3} parent=31 // pred_check_branch
                %203 = sbr.rel (0) target = $region47
              $region46: #{causal_self_attention.3} parent=31 // pred_region
                loop: start=0, step=1, limit=1
                $region48: #{causal_self_attention.3} parent=46 // loop_pre_header
                  _
                $region49: #{causal_self_attention.3} parent=46 // loop_header
                  %s205 = sphi 0, %s209
                  %p206 = scmp.ge.s32.totalorder %s205, 1
                  %s210 = sphi %s153, %s153
                  %s211 = sphi %s148, %s148
                $region50: #{causal_self_attention.3} parent=46 // loop_header_branch
                  %208 = sbr.rel (%p206) target = $region54
                $region51: #{causal_self_attention.3} parent=46 // loop_body
                  %v212 = vld [vmem:[%s210] sm:$0xff]
                  %213 = vst [vmem:[%s211] sm:$0xff] %v212
                  %v214 = vld [vmem:[%s210 + $0x18] sm:$0xff]
                  %215 = vst [vmem:[%s211 + $0x8] sm:$0xff] %v214
                  %v216 = vld [vmem:[%s210 + $0x30] sm:$0xff]
                  %217 = vst [vmem:[%s211 + $0x10] sm:$0xff] %v216
                  %v218 = vld [vmem:[%s210 + $0x48] sm:$0xff]
                  %219 = vst [vmem:[%s211 + $0x18] sm:$0xff] %v218
                  %v220 = vld [vmem:[%s210 + $0x60] sm:$0xff]
                  %221 = vst [vmem:[%s211 + $0x20] sm:$0xff] %v220
                  %v222 = vld [vmem:[%s210 + $0x78] sm:$0xff]
                  %223 = vst [vmem:[%s211 + $0x28] sm:$0xff] %v222
                  %v224 = vld [vmem:[%s210 + $0x90] sm:$0xff]
                  %225 = vst [vmem:[%s211 + $0x30] sm:$0xff] %v224
                  %v226 = vld [vmem:[%s210 + $0xa8] sm:$0xff]
                  %227 = vst [vmem:[%s211 + $0x38] sm:$0xff] %v226
                  %v228 = vld [vmem:[%s210 + $0xc0] sm:$0xff]
                  %229 = vst [vmem:[%s211 + $0x40] sm:$0xff] %v228
                  %v230 = vld [vmem:[%s210 + $0xd8] sm:$0xff]
                  %231 = vst [vmem:[%s211 + $0x48] sm:$0xff] %v230
                  %v232 = vld [vmem:[%s210 + $0xf0] sm:$0xff]
                  %233 = vst [vmem:[%s211 + $0x50] sm:$0xff] %v232
                  %v234 = vld [vmem:[%s210 + $0x108] sm:$0xff]
                  %235 = vst [vmem:[%s211 + $0x58] sm:$0xff] %v234
                  %v236 = vld [vmem:[%s210 + $0x120] sm:$0xff]
                  %237 = vst [vmem:[%s211 + $0x60] sm:$0xff] %v236
                  %v238 = vld [vmem:[%s210 + $0x138] sm:$0xff]
                  %239 = vst [vmem:[%s211 + $0x68] sm:$0xff] %v238
                  %v240 = vld [vmem:[%s210 + $0x150] sm:$0xff]
                  %241 = vst [vmem:[%s211 + $0x70] sm:$0xff] %v240
                  %v242 = vld [vmem:[%s210 + $0x168] sm:$0xff]
                  %243 = vst [vmem:[%s211 + $0x78] sm:$0xff] %v242
                $region52: #{causal_self_attention.3} parent=46 // loop_footer
                  %s209 = sadd.s32 1, %s205
                $region53: #{causal_self_attention.3} parent=46 // loop_footer_branch
                  %204 = sbr.rel target = $region49
                $region54: #{causal_self_attention.3} parent=46 // loop_exit
                  _
              $region47: #{causal_self_attention.3} parent=31 // pred_fallthru
                _
              // Predicated region
              $region55: #{causal_self_attention.3} parent=31 // pred_check
                _
              $region56: #{causal_self_attention.3} parent=31 // pred_check_branch
                %245 = sbr.rel target = $region58
              $region57: #{causal_self_attention.3} parent=31 // pred_region
                _
              $region58: #{causal_self_attention.3} parent=31 // pred_fallthru
                _
            $region32: #{causal_self_attention.3} parent=27 // pred_fallthru
              _
            // Predicated region
            $region33: #{causal_self_attention.3} parent=27 // pred_check
              _
            $region34: #{causal_self_attention.3} parent=27 // pred_check_branch
              %159 = sbr.rel target = $region36
            $region35: #{causal_self_attention.3} parent=27 // pred_region
              %s161 = ssub.s32 256, 1
              loop: start=0, step=1, limit=1
              $region37: #{causal_self_attention.3} parent=35 // loop_pre_header
                _
              $region38: #{causal_self_attention.3} parent=35 // loop_header
                %s163 = sphi 0, %s167
                %p164 = scmp.ge.s32.totalorder %s163, 1
                %s168 = sphi %s153, %s153
                %s169 = sphi %s148, %s148
              $region39: #{causal_self_attention.3} parent=35 // loop_header_branch
                %166 = sbr.rel (%p164) target = $region43
              $region40: #{causal_self_attention.3} parent=35 // loop_body
                %v170 = vld [vmem:[%s168] sm:%s161]
                %171 = vst [vmem:[%s169] sm:%s161] %v170
                %v172 = vld [vmem:[%s168 + $0x18] sm:%s161]
                %173 = vst [vmem:[%s169 + $0x8] sm:%s161] %v172
                %v174 = vld [vmem:[%s168 + $0x30] sm:%s161]
                %175 = vst [vmem:[%s169 + $0x10] sm:%s161] %v174
                %v176 = vld [vmem:[%s168 + $0x48] sm:%s161]
                %177 = vst [vmem:[%s169 + $0x18] sm:%s161] %v176
                %v178 = vld [vmem:[%s168 + $0x60] sm:%s161]
                %179 = vst [vmem:[%s169 + $0x20] sm:%s161] %v178
                %v180 = vld [vmem:[%s168 + $0x78] sm:%s161]
                %181 = vst [vmem:[%s169 + $0x28] sm:%s161] %v180
                %v182 = vld [vmem:[%s168 + $0x90] sm:%s161]
                %183 = vst [vmem:[%s169 + $0x30] sm:%s161] %v182
                %v184 = vld [vmem:[%s168 + $0xa8] sm:%s161]
                %185 = vst [vmem:[%s169 + $0x38] sm:%s161] %v184
                %v186 = vld [vmem:[%s168 + $0xc0] sm:%s161]
                %187 = vst [vmem:[%s169 + $0x40] sm:%s161] %v186
                %v188 = vld [vmem:[%s168 + $0xd8] sm:%s161]
                %189 = vst [vmem:[%s169 + $0x48] sm:%s161] %v188
                %v190 = vld [vmem:[%s168 + $0xf0] sm:%s161]
                %191 = vst [vmem:[%s169 + $0x50] sm:%s161] %v190
                %v192 = vld [vmem:[%s168 + $0x108] sm:%s161]
                %193 = vst [vmem:[%s169 + $0x58] sm:%s161] %v192
                %v194 = vld [vmem:[%s168 + $0x120] sm:%s161]
                %195 = vst [vmem:[%s169 + $0x60] sm:%s161] %v194
                %v196 = vld [vmem:[%s168 + $0x138] sm:%s161]
                %197 = vst [vmem:[%s169 + $0x68] sm:%s161] %v196
                %v198 = vld [vmem:[%s168 + $0x150] sm:%s161]
                %199 = vst [vmem:[%s169 + $0x70] sm:%s161] %v198
                %v200 = vld [vmem:[%s168 + $0x168] sm:%s161]
                %201 = vst [vmem:[%s169 + $0x78] sm:%s161] %v200
              $region41: #{causal_self_attention.3} parent=35 // loop_footer
                %s167 = sadd.s32 1, %s163
              $region42: #{causal_self_attention.3} parent=35 // loop_footer_branch
                %162 = sbr.rel target = $region38
              $region43: #{causal_self_attention.3} parent=35 // loop_exit
                _
            $region36: #{causal_self_attention.3} parent=27 // pred_fallthru
              _
          $region28: #{causal_self_attention.3} parent=23 // pred_fallthru
            _
          %246 = vnop
        $region24: #{causal_self_attention.3} parent=15 // pred_fallthru
          _
      $region16: #{causal_self_attention.3} parent=5 // pred_fallthru
        _
      %p247 = scmp.le.s32.totalorder 1, %s8
      %p248 = scmp.lt.s32.totalorder %s8, 7
      %p249 = pnand %p247, %p248
      %p250 = pneg %p249
      // Predicated region
      $region59: #{causal_self_attention.3} parent=5 // pred_check
        _
      $region60: #{causal_self_attention.3} parent=5 // pred_check_branch
        %252 = sbr.rel (%p249) target = $region62
      $region61: #{causal_self_attention.3} parent=5 // pred_region
        %s253 = ssub.s32 %s8, 1
        %s254 = sand.u32 %s70, 1
        %s255 = sand.u32 %s70, 1
        %s256 = smul.addr %s255, 128
        %s257 = scalar_lea.vmem [#allocation3], %s256
        // Predicated region
        $region63: #{causal_self_attention.3} parent=61 // pred_check
          %p258 = pneg %p83
        $region64: #{causal_self_attention.3} parent=61 // pred_check_branch
          %260 = sbr.rel (%p258) target = $region66
        $region65: #{causal_self_attention.3} parent=61 // pred_region
          _
        $region66: #{causal_self_attention.3} parent=61 // pred_fallthru
          _
        %s261 = smul.u32 32, %s18
        %p262 = scmp.lt.s32.totalorder %s261, 63
        %s263 = scalar_select %p262, %s261, 63
        %p264 = scmp.lt.s32.totalorder %s20, 0
        %s265 = scalar_select %p264, %s20, 0
        %s266 = sadd.s32 %s265, %s263
        %s267 = smul.addr %s266, 8
        %s268 = scalar_lea.vmem %s0, %s267
        %p269 = pneg %p55
        %p270 = pneg %p52
        %s271 = sand.u32 %s70, 1
        %s272 = sand.u32 %s70, 1
        %s273 = smul.addr %s272, 128
        %s274 = scalar_lea.vmem [#allocation3], %s273
        %p275 = pneg %p83
        %p276 = pneg %p80
        %p277 = pneg %p111
        %p278 = pneg %p108
        %s279 = sand.u32 %s98, 1
        %s280 = sand.u32 %s98, 1
        %s281 = smul.addr %s280, 256
        %s282 = scalar_lea.vmem [#allocation4], %s281
        %s283 = smul.u32 32, %s18
        %p284 = scmp.lt.s32.totalorder %s283, 63
        %s285 = scalar_select %p284, %s283, 63
        %p286 = scmp.lt.s32.totalorder %s20, 0
        %s287 = scalar_select %p286, %s20, 0
        %s288 = sadd.s32 %s287, %s285
        %s289 = smul.addr %s288, 8
        %s290 = scalar_lea.vmem %s0, %s289
        %s291 = smul.u32 32, %s18
        %s292 = smul.u32 16, %s20
        %s293 = smul.u32 32, %s18
        %p294 = scmp.eq.s32.totalorder %s20, 0
        // Predicated region
        $region67: #{causal_self_attention.3} parent=61 // pred_check
          %p295 = pneg %p294
        $region68: #{causal_self_attention.3} parent=61 // pred_check_branch
          %297 = sbr.rel (%p295) target = $region70
        $region69: #{causal_self_attention.3} parent=61 // pred_region
          %298 = vst [vmem:[#allocation2] sm:$0xff] 0.0
          %299 = vst [vmem:[#allocation2 + $0x8] sm:$0xff] 0.0
          %300 = vst [vmem:[#allocation2 + $0x10] sm:$0xff] 0.0
          %301 = vst [vmem:[#allocation2 + $0x18] sm:$0xff] 0.0
          %302 = vst [vmem:[#allocation2 + $0x20] sm:$0xff] 0.0
          %303 = vst [vmem:[#allocation2 + $0x28] sm:$0xff] 0.0
          %304 = vst [vmem:[#allocation2 + $0x30] sm:$0xff] 0.0
          %305 = vst [vmem:[#allocation2 + $0x38] sm:$0xff] 0.0
          %306 = vst [vmem:[#allocation2 + $0x40] sm:$0xff] 0.0
          %307 = vst [vmem:[#allocation2 + $0x48] sm:$0xff] 0.0
          %308 = vst [vmem:[#allocation2 + $0x50] sm:$0xff] 0.0
          %309 = vst [vmem:[#allocation2 + $0x58] sm:$0xff] 0.0
          %310 = vst [vmem:[#allocation2 + $0x60] sm:$0xff] 0.0
          %311 = vst [vmem:[#allocation2 + $0x68] sm:$0xff] 0.0
          %312 = vst [vmem:[#allocation2 + $0x70] sm:$0xff] 0.0
          %313 = vst [vmem:[#allocation2 + $0x78] sm:$0xff] 0.0
          %314 = vst [vmem:[#allocation2 + $0x80] sm:$0xff] 0.0
          %315 = vst [vmem:[#allocation2 + $0x88] sm:$0xff] 0.0
          %316 = vst [vmem:[#allocation2 + $0x90] sm:$0xff] 0.0
          %317 = vst [vmem:[#allocation2 + $0x98] sm:$0xff] 0.0
          %318 = vst [vmem:[#allocation2 + $0xa0] sm:$0xff] 0.0
          %319 = vst [vmem:[#allocation2 + $0xa8] sm:$0xff] 0.0
          %320 = vst [vmem:[#allocation2 + $0xb0] sm:$0xff] 0.0
          %321 = vst [vmem:[#allocation2 + $0xb8] sm:$0xff] 0.0
          %322 = vst [vmem:[#allocation2 + $0xc0] sm:$0xff] 0.0
          %323 = vst [vmem:[#allocation2 + $0xc8] sm:$0xff] 0.0
          %324 = vst [vmem:[#allocation2 + $0xd0] sm:$0xff] 0.0
          %325 = vst [vmem:[#allocation2 + $0xd8] sm:$0xff] 0.0
          %326 = vst [vmem:[#allocation2 + $0xe0] sm:$0xff] 0.0
          %327 = vst [vmem:[#allocation2 + $0xe8] sm:$0xff] 0.0
          %328 = vst [vmem:[#allocation2 + $0xf0] sm:$0xff] 0.0
          %329 = vst [vmem:[#allocation2 + $0xf8] sm:$0xff] 0.0
        $region70: #{causal_self_attention.3} parent=61 // pred_fallthru
          _
        %v330 = vld [vmem:[#allocation2] sm:$0xff]
        %v331 = vld [vmem:[#allocation2 + $0x8] sm:$0xff]
        %v332 = vld [vmem:[#allocation2 + $0x10] sm:$0xff]
        %v333 = vld [vmem:[#allocation2 + $0x18] sm:$0xff]
        %v334 = vld [vmem:[#allocation2 + $0x20] sm:$0xff]
        %v335 = vld [vmem:[#allocation2 + $0x28] sm:$0xff]
        %v336 = vld [vmem:[#allocation2 + $0x30] sm:$0xff]
        %v337 = vld [vmem:[#allocation2 + $0x38] sm:$0xff]
        %v338 = vld [vmem:[#allocation2 + $0x40] sm:$0xff]
        %v339 = vld [vmem:[#allocation2 + $0x48] sm:$0xff]
        %v340 = vld [vmem:[#allocation2 + $0x50] sm:$0xff]
        %v341 = vld [vmem:[#allocation2 + $0x58] sm:$0xff]
        %v342 = vld [vmem:[#allocation2 + $0x60] sm:$0xff]
        %v343 = vld [vmem:[#allocation2 + $0x68] sm:$0xff]
        %v344 = vld [vmem:[#allocation2 + $0x70] sm:$0xff]
        %v345 = vld [vmem:[#allocation2 + $0x78] sm:$0xff]
        %v346 = vld [vmem:[#allocation2 + $0x80] sm:$0xff]
        %v347 = vld [vmem:[#allocation2 + $0x88] sm:$0xff]
        %v348 = vld [vmem:[#allocation2 + $0x90] sm:$0xff]
        %v349 = vld [vmem:[#allocation2 + $0x98] sm:$0xff]
        %v350 = vld [vmem:[#allocation2 + $0xa0] sm:$0xff]
        %v351 = vld [vmem:[#allocation2 + $0xa8] sm:$0xff]
        %v352 = vld [vmem:[#allocation2 + $0xb0] sm:$0xff]
        %v353 = vld [vmem:[#allocation2 + $0xb8] sm:$0xff]
        %v354 = vld [vmem:[#allocation2 + $0xc0] sm:$0xff]
        %v355 = vld [vmem:[#allocation2 + $0xc8] sm:$0xff]
        %v356 = vld [vmem:[#allocation2 + $0xd0] sm:$0xff]
        %v357 = vld [vmem:[#allocation2 + $0xd8] sm:$0xff]
        %v358 = vld [vmem:[#allocation2 + $0xe0] sm:$0xff]
        %v359 = vld [vmem:[#allocation2 + $0xe8] sm:$0xff]
        %v360 = vld [vmem:[#allocation2 + $0xf0] sm:$0xff]
        %v361 = vld [vmem:[#allocation2 + $0xf8] sm:$0xff]
        %v362 = vld [vmem:[%s290] sm:$0xff]
        %v363 = vld [vmem:[%s290 + $0x8] sm:$0xff]
        %v364 = vld [vmem:[%s290 + $0x10] sm:$0xff]
        %v365 = vld [vmem:[%s290 + $0x18] sm:$0xff]
        %v366 = vld [vmem:[%s290 + $0x20] sm:$0xff]
        %v367 = vld [vmem:[%s290 + $0x28] sm:$0xff]
        %v368 = vld [vmem:[%s290 + $0x30] sm:$0xff]
        %v369 = vld [vmem:[%s290 + $0x38] sm:$0xff]
        %v370 = vld [vmem:[%s290 + $0x40] sm:$0xff]
        %v371 = vld [vmem:[%s290 + $0x48] sm:$0xff]
        %v372 = vld [vmem:[%s290 + $0x50] sm:$0xff]
        %v373 = vld [vmem:[%s290 + $0x58] sm:$0xff]
        %v374 = vld [vmem:[%s290 + $0x60] sm:$0xff]
        %v375 = vld [vmem:[%s290 + $0x68] sm:$0xff]
        %v376 = vld [vmem:[%s290 + $0x70] sm:$0xff]
        %v377 = vld [vmem:[%s290 + $0x78] sm:$0xff]
        %v378 = vld [vmem:[%s290 + $0x80] sm:$0xff]
        %v379 = vld [vmem:[%s290 + $0x88] sm:$0xff]
        %v380 = vld [vmem:[%s290 + $0x90] sm:$0xff]
        %v381 = vld [vmem:[%s290 + $0x98] sm:$0xff]
        %v382 = vld [vmem:[%s290 + $0xa0] sm:$0xff]
        %v383 = vld [vmem:[%s290 + $0xa8] sm:$0xff]
        %v384 = vld [vmem:[%s290 + $0xb0] sm:$0xff]
        %v385 = vld [vmem:[%s290 + $0xb8] sm:$0xff]
        %v386 = vld [vmem:[%s290 + $0xc0] sm:$0xff]
        %v387 = vld [vmem:[%s290 + $0xc8] sm:$0xff]
        %v388 = vld [vmem:[%s290 + $0xd0] sm:$0xff]
        %v389 = vld [vmem:[%s290 + $0xd8] sm:$0xff]
        %v390 = vld [vmem:[%s290 + $0xe0] sm:$0xff]
        %v391 = vld [vmem:[%s290 + $0xe8] sm:$0xff]
        %v392 = vld [vmem:[%s290 + $0xf0] sm:$0xff]
        %v393 = vld [vmem:[%s290 + $0xf8] sm:$0xff]
        %v394 = vld [vmem:[%s257] sm:$0xff]
        %v395 = vld [vmem:[%s257 + $0x8] sm:$0xff]
        %v396 = vld [vmem:[%s257 + $0x10] sm:$0xff]
        %v397 = vld [vmem:[%s257 + $0x18] sm:$0xff]
        %v398 = vld [vmem:[%s257 + $0x20] sm:$0xff]
        %v399 = vld [vmem:[%s257 + $0x28] sm:$0xff]
        %v400 = vld [vmem:[%s257 + $0x30] sm:$0xff]
        %v401 = vld [vmem:[%s257 + $0x38] sm:$0xff]
        %v402 = vld [vmem:[%s257 + $0x40] sm:$0xff]
        %v403 = vld [vmem:[%s257 + $0x48] sm:$0xff]
        %v404 = vld [vmem:[%s257 + $0x50] sm:$0xff]
        %v405 = vld [vmem:[%s257 + $0x58] sm:$0xff]
        %v406 = vld [vmem:[%s257 + $0x60] sm:$0xff]
        %v407 = vld [vmem:[%s257 + $0x68] sm:$0xff]
        %v408 = vld [vmem:[%s257 + $0x70] sm:$0xff]
        %v409 = vld [vmem:[%s257 + $0x78] sm:$0xff]
        %410 = vmatpush.msra.mxu0 %v409
        %411 = vmatpush.msra.mxu0 %v408
        %412 = vmatpush.msra.mxu0 %v407
        %413 = vmatpush.msra.mxu0 %v406
        %414 = vmatpush.msra.mxu0 %v405
        %415 = vmatpush.msra.mxu0 %v404
        %416 = vmatpush.msra.mxu0 %v403
        %417 = vmatpush.msra.mxu0 %v402
        %418 = vmatpush.msra.mxu0 %v401
        %419 = vmatpush.msra.mxu0 %v400
        %420 = vmatpush.msra.mxu0 %v399
        %421 = vmatpush.msra.mxu0 %v398
        %422 = vmatpush.msra.mxu0 %v397
        %423 = vmatpush.msra.mxu0 %v396
        %424 = vmatpush.msra.mxu0 %v395
        %425 = vmatpush.msra.mxu0 %v394
        %426 = vmatmul.f32.gmra.mxu0 %v362
        %v427 = vpop.f32.mrf.mxu0
        %v428 = vadd.f32 0.0, %v427
        %429 = vmatmul.f32.gmra.mxu0 %v363
        %v430 = vpop.f32.mrf.mxu0
        %v431 = vadd.f32 0.0, %v430
        %432 = vmatmul.f32.gmra.mxu0 %v364
        %v433 = vpop.f32.mrf.mxu0
        %v434 = vadd.f32 0.0, %v433
        %435 = vmatmul.f32.gmra.mxu0 %v365
        %v436 = vpop.f32.mrf.mxu0
        %v437 = vadd.f32 0.0, %v436
        %438 = vmatmul.f32.gmra.mxu0 %v366
        %v439 = vpop.f32.mrf.mxu0
        %v440 = vadd.f32 0.0, %v439
        %441 = vmatmul.f32.gmra.mxu0 %v367
        %v442 = vpop.f32.mrf.mxu0
        %v443 = vadd.f32 0.0, %v442
        %444 = vmatmul.f32.gmra.mxu0 %v368
        %v445 = vpop.f32.mrf.mxu0
        %v446 = vadd.f32 0.0, %v445
        %447 = vmatmul.f32.gmra.mxu0 %v369
        %v448 = vpop.f32.mrf.mxu0
        %v449 = vadd.f32 0.0, %v448
        %450 = vmatmul.f32.gmra.mxu0 %v370
        %v451 = vpop.f32.mrf.mxu0
        %v452 = vadd.f32 0.0, %v451
        %453 = vmatmul.f32.gmra.mxu0 %v371
        %v454 = vpop.f32.mrf.mxu0
        %v455 = vadd.f32 0.0, %v454
        %456 = vmatmul.f32.gmra.mxu0 %v372
        %v457 = vpop.f32.mrf.mxu0
        %v458 = vadd.f32 0.0, %v457
        %459 = vmatmul.f32.gmra.mxu0 %v373
        %v460 = vpop.f32.mrf.mxu0
        %v461 = vadd.f32 0.0, %v460
        %462 = vmatmul.f32.gmra.mxu0 %v374
        %v463 = vpop.f32.mrf.mxu0
        %v464 = vadd.f32 0.0, %v463
        %465 = vmatmul.f32.gmra.mxu0 %v375
        %v466 = vpop.f32.mrf.mxu0
        %v467 = vadd.f32 0.0, %v466
        %468 = vmatmul.f32.gmra.mxu0 %v376
        %v469 = vpop.f32.mrf.mxu0
        %v470 = vadd.f32 0.0, %v469
        %471 = vmatmul.f32.gmra.mxu0 %v377
        %v472 = vpop.f32.mrf.mxu0
        %v473 = vadd.f32 0.0, %v472
        %474 = vmatmul.f32.gmra.mxu0 %v378
        %v475 = vpop.f32.mrf.mxu0
        %v476 = vadd.f32 0.0, %v475
        %477 = vmatmul.f32.gmra.mxu0 %v379
        %v478 = vpop.f32.mrf.mxu0
        %v479 = vadd.f32 0.0, %v478
        %480 = vmatmul.f32.gmra.mxu0 %v380
        %v481 = vpop.f32.mrf.mxu0
        %v482 = vadd.f32 0.0, %v481
        %483 = vmatmul.f32.gmra.mxu0 %v381
        %v484 = vpop.f32.mrf.mxu0
        %v485 = vadd.f32 0.0, %v484
        %486 = vmatmul.f32.gmra.mxu0 %v382
        %v487 = vpop.f32.mrf.mxu0
        %v488 = vadd.f32 0.0, %v487
        %489 = vmatmul.f32.gmra.mxu0 %v383
        %v490 = vpop.f32.mrf.mxu0
        %v491 = vadd.f32 0.0, %v490
        %492 = vmatmul.f32.gmra.mxu0 %v384
        %v493 = vpop.f32.mrf.mxu0
        %v494 = vadd.f32 0.0, %v493
        %495 = vmatmul.f32.gmra.mxu0 %v385
        %v496 = vpop.f32.mrf.mxu0
        %v497 = vadd.f32 0.0, %v496
        %498 = vmatmul.f32.gmra.mxu0 %v386
        %v499 = vpop.f32.mrf.mxu0
        %v500 = vadd.f32 0.0, %v499
        %501 = vmatmul.f32.gmra.mxu0 %v387
        %v502 = vpop.f32.mrf.mxu0
        %v503 = vadd.f32 0.0, %v502
        %504 = vmatmul.f32.gmra.mxu0 %v388
        %v505 = vpop.f32.mrf.mxu0
        %v506 = vadd.f32 0.0, %v505
        %507 = vmatmul.f32.gmra.mxu0 %v389
        %v508 = vpop.f32.mrf.mxu0
        %v509 = vadd.f32 0.0, %v508
        %510 = vmatmul.f32.gmra.mxu0 %v390
        %v511 = vpop.f32.mrf.mxu0
        %v512 = vadd.f32 0.0, %v511
        %513 = vmatmul.f32.gmra.mxu0 %v391
        %v514 = vpop.f32.mrf.mxu0
        %v515 = vadd.f32 0.0, %v514
        %516 = vmatmul.f32.gmra.mxu0 %v392
        %v517 = vpop.f32.mrf.mxu0
        %v518 = vadd.f32 0.0, %v517
        %519 = vmatmul.f32.gmra.mxu0 %v393
        %v520 = vpop.f32.mrf.mxu0
        %v521 = vadd.f32 0.0, %v520
        %522 = vdwg.mxu0
        %v523 = vadd.f32 %v330, %v428
        %v524 = vadd.f32 %v331, %v431
        %v525 = vadd.f32 %v332, %v434
        %v526 = vadd.f32 %v333, %v437
        %v527 = vadd.f32 %v334, %v440
        %v528 = vadd.f32 %v335, %v443
        %v529 = vadd.f32 %v336, %v446
        %v530 = vadd.f32 %v337, %v449
        %v531 = vadd.f32 %v338, %v452
        %v532 = vadd.f32 %v339, %v455
        %v533 = vadd.f32 %v340, %v458
        %v534 = vadd.f32 %v341, %v461
        %v535 = vadd.f32 %v342, %v464
        %v536 = vadd.f32 %v343, %v467
        %v537 = vadd.f32 %v344, %v470
        %v538 = vadd.f32 %v345, %v473
        %v539 = vadd.f32 %v346, %v476
        %v540 = vadd.f32 %v347, %v479
        %v541 = vadd.f32 %v348, %v482
        %v542 = vadd.f32 %v349, %v485
        %v543 = vadd.f32 %v350, %v488
        %v544 = vadd.f32 %v351, %v491
        %v545 = vadd.f32 %v352, %v494
        %v546 = vadd.f32 %v353, %v497
        %v547 = vadd.f32 %v354, %v500
        %v548 = vadd.f32 %v355, %v503
        %v549 = vadd.f32 %v356, %v506
        %v550 = vadd.f32 %v357, %v509
        %v551 = vadd.f32 %v358, %v512
        %v552 = vadd.f32 %v359, %v515
        %v553 = vadd.f32 %v360, %v518
        %v554 = vadd.f32 %v361, %v521
        %555 = vst [vmem:[#allocation2] sm:$0xff] %v523
        %556 = vst [vmem:[#allocation2 + $0x8] sm:$0xff] %v524
        %557 = vst [vmem:[#allocation2 + $0x10] sm:$0xff] %v525
        %558 = vst [vmem:[#allocation2 + $0x18] sm:$0xff] %v526
        %559 = vst [vmem:[#allocation2 + $0x20] sm:$0xff] %v527
        %560 = vst [vmem:[#allocation2 + $0x28] sm:$0xff] %v528
        %561 = vst [vmem:[#allocation2 + $0x30] sm:$0xff] %v529
        %562 = vst [vmem:[#allocation2 + $0x38] sm:$0xff] %v530
        %563 = vst [vmem:[#allocation2 + $0x40] sm:$0xff] %v531
        %564 = vst [vmem:[#allocation2 + $0x48] sm:$0xff] %v532
        %565 = vst [vmem:[#allocation2 + $0x50] sm:$0xff] %v533
        %566 = vst [vmem:[#allocation2 + $0x58] sm:$0xff] %v534
        %567 = vst [vmem:[#allocation2 + $0x60] sm:$0xff] %v535
        %568 = vst [vmem:[#allocation2 + $0x68] sm:$0xff] %v536
        %569 = vst [vmem:[#allocation2 + $0x70] sm:$0xff] %v537
        %570 = vst [vmem:[#allocation2 + $0x78] sm:$0xff] %v538
        %571 = vst [vmem:[#allocation2 + $0x80] sm:$0xff] %v539
        %572 = vst [vmem:[#allocation2 + $0x88] sm:$0xff] %v540
        %573 = vst [vmem:[#allocation2 + $0x90] sm:$0xff] %v541
        %574 = vst [vmem:[#allocation2 + $0x98] sm:$0xff] %v542
        %575 = vst [vmem:[#allocation2 + $0xa0] sm:$0xff] %v543
        %576 = vst [vmem:[#allocation2 + $0xa8] sm:$0xff] %v544
        %577 = vst [vmem:[#allocation2 + $0xb0] sm:$0xff] %v545
        %578 = vst [vmem:[#allocation2 + $0xb8] sm:$0xff] %v546
        %579 = vst [vmem:[#allocation2 + $0xc0] sm:$0xff] %v547
        %580 = vst [vmem:[#allocation2 + $0xc8] sm:$0xff] %v548
        %581 = vst [vmem:[#allocation2 + $0xd0] sm:$0xff] %v549
        %582 = vst [vmem:[#allocation2 + $0xd8] sm:$0xff] %v550
        %583 = vst [vmem:[#allocation2 + $0xe0] sm:$0xff] %v551
        %584 = vst [vmem:[#allocation2 + $0xe8] sm:$0xff] %v552
        %585 = vst [vmem:[#allocation2 + $0xf0] sm:$0xff] %v553
        %586 = vst [vmem:[#allocation2 + $0xf8] sm:$0xff] %v554
        // Predicated region
        $region71: #{causal_self_attention.3} parent=61 // pred_check
          %p587 = pneg %p294
        $region72: #{causal_self_attention.3} parent=61 // pred_check_branch
          %589 = sbr.rel (%p587) target = $region74
        $region73: #{causal_self_attention.3} parent=61 // pred_region
          %v590 = vld [vmem:[#allocation2] sm:$0xff]
          %v591 = vld [vmem:[#allocation2 + $0x8] sm:$0xff]
          %v592 = vld [vmem:[#allocation2 + $0x10] sm:$0xff]
          %v593 = vld [vmem:[#allocation2 + $0x18] sm:$0xff]
          %v594 = vld [vmem:[#allocation2 + $0x20] sm:$0xff]
          %v595 = vld [vmem:[#allocation2 + $0x28] sm:$0xff]
          %v596 = vld [vmem:[#allocation2 + $0x30] sm:$0xff]
          %v597 = vld [vmem:[#allocation2 + $0x38] sm:$0xff]
          %v598 = vld [vmem:[#allocation2 + $0x40] sm:$0xff]
          %v599 = vld [vmem:[#allocation2 + $0x48] sm:$0xff]
          %v600 = vld [vmem:[#allocation2 + $0x50] sm:$0xff]
          %v601 = vld [vmem:[#allocation2 + $0x58] sm:$0xff]
          %v602 = vld [vmem:[#allocation2 + $0x60] sm:$0xff]
          %v603 = vld [vmem:[#allocation2 + $0x68] sm:$0xff]
          %v604 = vld [vmem:[#allocation2 + $0x70] sm:$0xff]
          %v605 = vld [vmem:[#allocation2 + $0x78] sm:$0xff]
          %v606 = vld [vmem:[#allocation2 + $0x80] sm:$0xff]
          %v607 = vld [vmem:[#allocation2 + $0x88] sm:$0xff]
          %v608 = vld [vmem:[#allocation2 + $0x90] sm:$0xff]
          %v609 = vld [vmem:[#allocation2 + $0x98] sm:$0xff]
          %v610 = vld [vmem:[#allocation2 + $0xa0] sm:$0xff]
          %v611 = vld [vmem:[#allocation2 + $0xa8] sm:$0xff]
          %v612 = vld [vmem:[#allocation2 + $0xb0] sm:$0xff]
          %v613 = vld [vmem:[#allocation2 + $0xb8] sm:$0xff]
          %v614 = vld [vmem:[#allocation2 + $0xc0] sm:$0xff]
          %v615 = vld [vmem:[#allocation2 + $0xc8] sm:$0xff]
          %v616 = vld [vmem:[#allocation2 + $0xd0] sm:$0xff]
          %v617 = vld [vmem:[#allocation2 + $0xd8] sm:$0xff]
          %v618 = vld [vmem:[#allocation2 + $0xe0] sm:$0xff]
          %v619 = vld [vmem:[#allocation2 + $0xe8] sm:$0xff]
          %v620 = vld [vmem:[#allocation2 + $0xf0] sm:$0xff]
          %v621 = vld [vmem:[#allocation2 + $0xf8] sm:$0xff]
          %622 = vst [vmem:[%s282] sm:$0xff] %v590
          %623 = vst [vmem:[%s282 + $0x8] sm:$0xff] %v591
          %624 = vst [vmem:[%s282 + $0x10] sm:$0xff] %v592
          %625 = vst [vmem:[%s282 + $0x18] sm:$0xff] %v593
          %626 = vst [vmem:[%s282 + $0x20] sm:$0xff] %v594
          %627 = vst [vmem:[%s282 + $0x28] sm:$0xff] %v595
          %628 = vst [vmem:[%s282 + $0x30] sm:$0xff] %v596
          %629 = vst [vmem:[%s282 + $0x38] sm:$0xff] %v597
          %630 = vst [vmem:[%s282 + $0x40] sm:$0xff] %v598
          %631 = vst [vmem:[%s282 + $0x48] sm:$0xff] %v599
          %632 = vst [vmem:[%s282 + $0x50] sm:$0xff] %v600
          %633 = vst [vmem:[%s282 + $0x58] sm:$0xff] %v601
          %634 = vst [vmem:[%s282 + $0x60] sm:$0xff] %v602
          %635 = vst [vmem:[%s282 + $0x68] sm:$0xff] %v603
          %636 = vst [vmem:[%s282 + $0x70] sm:$0xff] %v604
          %637 = vst [vmem:[%s282 + $0x78] sm:$0xff] %v605
          %638 = vst [vmem:[%s282 + $0x80] sm:$0xff] %v606
          %639 = vst [vmem:[%s282 + $0x88] sm:$0xff] %v607
          %640 = vst [vmem:[%s282 + $0x90] sm:$0xff] %v608
          %641 = vst [vmem:[%s282 + $0x98] sm:$0xff] %v609
          %642 = vst [vmem:[%s282 + $0xa0] sm:$0xff] %v610
          %643 = vst [vmem:[%s282 + $0xa8] sm:$0xff] %v611
          %644 = vst [vmem:[%s282 + $0xb0] sm:$0xff] %v612
          %645 = vst [vmem:[%s282 + $0xb8] sm:$0xff] %v613
          %646 = vst [vmem:[%s282 + $0xc0] sm:$0xff] %v614
          %647 = vst [vmem:[%s282 + $0xc8] sm:$0xff] %v615
          %648 = vst [vmem:[%s282 + $0xd0] sm:$0xff] %v616
          %649 = vst [vmem:[%s282 + $0xd8] sm:$0xff] %v617
          %650 = vst [vmem:[%s282 + $0xe0] sm:$0xff] %v618
          %651 = vst [vmem:[%s282 + $0xe8] sm:$0xff] %v619
          %652 = vst [vmem:[%s282 + $0xf0] sm:$0xff] %v620
          %653 = vst [vmem:[%s282 + $0xf8] sm:$0xff] %v621
        $region74: #{causal_self_attention.3} parent=61 // pred_fallthru
          _
        %s654 = sand.u32 %s98, 1
        %s655 = sand.u32 %s98, 1
        %s656 = smul.addr %s655, 256
        %s657 = scalar_lea.vmem [#allocation4], %s656
        // Predicated region
        $region75: #{causal_self_attention.3} parent=61 // pred_check
          %p658 = pneg %p108
        $region76: #{causal_self_attention.3} parent=61 // pred_check_branch
          %660 = sbr.rel (%p658) target = $region78
        $region77: #{causal_self_attention.3} parent=61 // pred_region
          %s661 = smul.u32 32, %s18
          %s662 = smul.addr %s661, 3
          %s663 = sadd.s32 %s19, %s662
          %s664 = smul.addr %s663, 8
          %s665 = scalar_lea.vmem %s2, %s664
          // Predicated region
          $region79: #{causal_self_attention.3} parent=77 // pred_check
            _
          $region80: #{causal_self_attention.3} parent=77 // pred_check_branch
            %667 = sbr.rel (0) target = $region82
          $region81: #{causal_self_attention.3} parent=77 // pred_region
            // Predicated region
            $region83: #{causal_self_attention.3} parent=81 // pred_check
              _
            $region84: #{causal_self_attention.3} parent=81 // pred_check_branch
              %669 = sbr.rel (0) target = $region86
            $region85: #{causal_self_attention.3} parent=81 // pred_region
              // Predicated region
              $region98: #{causal_self_attention.3} parent=85 // pred_check
                _
              $region99: #{causal_self_attention.3} parent=85 // pred_check_branch
                %747 = sbr.rel (0) target = $region101
              $region100: #{causal_self_attention.3} parent=85 // pred_region
                loop: start=0, step=1, limit=1
                $region102: #{causal_self_attention.3} parent=100 // loop_pre_header
                  _
                $region103: #{causal_self_attention.3} parent=100 // loop_header
                  %s749 = sphi 0, %s753
                  %p750 = scmp.ge.s32.totalorder %s749, 1
                  %s754 = sphi %s657, %s657
                  %s755 = sphi %s665, %s665
                $region104: #{causal_self_attention.3} parent=100 // loop_header_branch
                  %752 = sbr.rel (%p750) target = $region108
                $region105: #{causal_self_attention.3} parent=100 // loop_body
                  %v756 = vld [vmem:[%s754] sm:$0xff]
                  %757 = vst [vmem:[%s755] sm:$0xff] %v756
                  %v758 = vld [vmem:[%s754 + $0x8] sm:$0xff]
                  %759 = vst [vmem:[%s755 + $0x18] sm:$0xff] %v758
                  %v760 = vld [vmem:[%s754 + $0x10] sm:$0xff]
                  %761 = vst [vmem:[%s755 + $0x30] sm:$0xff] %v760
                  %v762 = vld [vmem:[%s754 + $0x18] sm:$0xff]
                  %763 = vst [vmem:[%s755 + $0x48] sm:$0xff] %v762
                  %v764 = vld [vmem:[%s754 + $0x20] sm:$0xff]
                  %765 = vst [vmem:[%s755 + $0x60] sm:$0xff] %v764
                  %v766 = vld [vmem:[%s754 + $0x28] sm:$0xff]
                  %767 = vst [vmem:[%s755 + $0x78] sm:$0xff] %v766
                  %v768 = vld [vmem:[%s754 + $0x30] sm:$0xff]
                  %769 = vst [vmem:[%s755 + $0x90] sm:$0xff] %v768
                  %v770 = vld [vmem:[%s754 + $0x38] sm:$0xff]
                  %771 = vst [vmem:[%s755 + $0xa8] sm:$0xff] %v770
                  %v772 = vld [vmem:[%s754 + $0x40] sm:$0xff]
                  %773 = vst [vmem:[%s755 + $0xc0] sm:$0xff] %v772
                  %v774 = vld [vmem:[%s754 + $0x48] sm:$0xff]
                  %775 = vst [vmem:[%s755 + $0xd8] sm:$0xff] %v774
                  %v776 = vld [vmem:[%s754 + $0x50] sm:$0xff]
                  %777 = vst [vmem:[%s755 + $0xf0] sm:$0xff] %v776
                  %v778 = vld [vmem:[%s754 + $0x58] sm:$0xff]
                  %779 = vst [vmem:[%s755 + $0x108] sm:$0xff] %v778
                  %v780 = vld [vmem:[%s754 + $0x60] sm:$0xff]
                  %781 = vst [vmem:[%s755 + $0x120] sm:$0xff] %v780
                  %v782 = vld [vmem:[%s754 + $0x68] sm:$0xff]
                  %783 = vst [vmem:[%s755 + $0x138] sm:$0xff] %v782
                  %v784 = vld [vmem:[%s754 + $0x70] sm:$0xff]
                  %785 = vst [vmem:[%s755 + $0x150] sm:$0xff] %v784
                  %v786 = vld [vmem:[%s754 + $0x78] sm:$0xff]
                  %787 = vst [vmem:[%s755 + $0x168] sm:$0xff] %v786
                  %v788 = vld [vmem:[%s754 + $0x80] sm:$0xff]
                  %789 = vst [vmem:[%s755 + $0x180] sm:$0xff] %v788
                  %v790 = vld [vmem:[%s754 + $0x88] sm:$0xff]
                  %791 = vst [vmem:[%s755 + $0x198] sm:$0xff] %v790
                  %v792 = vld [vmem:[%s754 + $0x90] sm:$0xff]
                  %793 = vst [vmem:[%s755 + $0x1b0] sm:$0xff] %v792
                  %v794 = vld [vmem:[%s754 + $0x98] sm:$0xff]
                  %795 = vst [vmem:[%s755 + $0x1c8] sm:$0xff] %v794
                  %v796 = vld [vmem:[%s754 + $0xa0] sm:$0xff]
                  %797 = vst [vmem:[%s755 + $0x1e0] sm:$0xff] %v796
                  %v798 = vld [vmem:[%s754 + $0xa8] sm:$0xff]
                  %799 = vst [vmem:[%s755 + $0x1f8] sm:$0xff] %v798
                  %v800 = vld [vmem:[%s754 + $0xb0] sm:$0xff]
                  %801 = vst [vmem:[%s755 + $0x210] sm:$0xff] %v800
                  %v802 = vld [vmem:[%s754 + $0xb8] sm:$0xff]
                  %803 = vst [vmem:[%s755 + $0x228] sm:$0xff] %v802
                  %v804 = vld [vmem:[%s754 + $0xc0] sm:$0xff]
                  %805 = vst [vmem:[%s755 + $0x240] sm:$0xff] %v804
                  %v806 = vld [vmem:[%s754 + $0xc8] sm:$0xff]
                  %807 = vst [vmem:[%s755 + $0x258] sm:$0xff] %v806
                  %v808 = vld [vmem:[%s754 + $0xd0] sm:$0xff]
                  %809 = vst [vmem:[%s755 + $0x270] sm:$0xff] %v808
                  %v810 = vld [vmem:[%s754 + $0xd8] sm:$0xff]
                  %811 = vst [vmem:[%s755 + $0x288] sm:$0xff] %v810
                  %v812 = vld [vmem:[%s754 + $0xe0] sm:$0xff]
                  %813 = vst [vmem:[%s755 + $0x2a0] sm:$0xff] %v812
                  %v814 = vld [vmem:[%s754 + $0xe8] sm:$0xff]
                  %815 = vst [vmem:[%s755 + $0x2b8] sm:$0xff] %v814
                  %v816 = vld [vmem:[%s754 + $0xf0] sm:$0xff]
                  %817 = vst [vmem:[%s755 + $0x2d0] sm:$0xff] %v816
                  %v818 = vld [vmem:[%s754 + $0xf8] sm:$0xff]
                  %819 = vst [vmem:[%s755 + $0x2e8] sm:$0xff] %v818
                $region106: #{causal_self_attention.3} parent=100 // loop_footer
                  %s753 = sadd.s32 1, %s749
                $region107: #{causal_self_attention.3} parent=100 // loop_footer_branch
                  %748 = sbr.rel target = $region103
                $region108: #{causal_self_attention.3} parent=100 // loop_exit
                  _
              $region101: #{causal_self_attention.3} parent=85 // pred_fallthru
                _
              // Predicated region
              $region109: #{causal_self_attention.3} parent=85 // pred_check
                _
              $region110: #{causal_self_attention.3} parent=85 // pred_check_branch
                %821 = sbr.rel target = $region112
              $region111: #{causal_self_attention.3} parent=85 // pred_region
                _
              $region112: #{causal_self_attention.3} parent=85 // pred_fallthru
                _
            $region86: #{causal_self_attention.3} parent=81 // pred_fallthru
              _
            // Predicated region
            $region87: #{causal_self_attention.3} parent=81 // pred_check
              _
            $region88: #{causal_self_attention.3} parent=81 // pred_check_branch
              %671 = sbr.rel target = $region90
            $region89: #{causal_self_attention.3} parent=81 // pred_region
              %s673 = ssub.s32 256, 1
              loop: start=0, step=1, limit=1
              $region91: #{causal_self_attention.3} parent=89 // loop_pre_header
                _
              $region92: #{causal_self_attention.3} parent=89 // loop_header
                %s675 = sphi 0, %s679
                %p676 = scmp.ge.s32.totalorder %s675, 1
                %s680 = sphi %s657, %s657
                %s681 = sphi %s665, %s665
              $region93: #{causal_self_attention.3} parent=89 // loop_header_branch
                %678 = sbr.rel (%p676) target = $region97
              $region94: #{causal_self_attention.3} parent=89 // loop_body
                %v682 = vld [vmem:[%s680] sm:%s673]
                %683 = vst [vmem:[%s681] sm:%s673] %v682
                %v684 = vld [vmem:[%s680 + $0x8] sm:%s673]
                %685 = vst [vmem:[%s681 + $0x18] sm:%s673] %v684
                %v686 = vld [vmem:[%s680 + $0x10] sm:%s673]
                %687 = vst [vmem:[%s681 + $0x30] sm:%s673] %v686
                %v688 = vld [vmem:[%s680 + $0x18] sm:%s673]
                %689 = vst [vmem:[%s681 + $0x48] sm:%s673] %v688
                %v690 = vld [vmem:[%s680 + $0x20] sm:%s673]
                %691 = vst [vmem:[%s681 + $0x60] sm:%s673] %v690
                %v692 = vld [vmem:[%s680 + $0x28] sm:%s673]
                %693 = vst [vmem:[%s681 + $0x78] sm:%s673] %v692
                %v694 = vld [vmem:[%s680 + $0x30] sm:%s673]
                %695 = vst [vmem:[%s681 + $0x90] sm:%s673] %v694
                %v696 = vld [vmem:[%s680 + $0x38] sm:%s673]
                %697 = vst [vmem:[%s681 + $0xa8] sm:%s673] %v696
                %v698 = vld [vmem:[%s680 + $0x40] sm:%s673]
                %699 = vst [vmem:[%s681 + $0xc0] sm:%s673] %v698
                %v700 = vld [vmem:[%s680 + $0x48] sm:%s673]
                %701 = vst [vmem:[%s681 + $0xd8] sm:%s673] %v700
                %v702 = vld [vmem:[%s680 + $0x50] sm:%s673]
                %703 = vst [vmem:[%s681 + $0xf0] sm:%s673] %v702
                %v704 = vld [vmem:[%s680 + $0x58] sm:%s673]
                %705 = vst [vmem:[%s681 + $0x108] sm:%s673] %v704
                %v706 = vld [vmem:[%s680 + $0x60] sm:%s673]
                %707 = vst [vmem:[%s681 + $0x120] sm:%s673] %v706
                %v708 = vld [vmem:[%s680 + $0x68] sm:%s673]
                %709 = vst [vmem:[%s681 + $0x138] sm:%s673] %v708
                %v710 = vld [vmem:[%s680 + $0x70] sm:%s673]
                %711 = vst [vmem:[%s681 + $0x150] sm:%s673] %v710
                %v712 = vld [vmem:[%s680 + $0x78] sm:%s673]
                %713 = vst [vmem:[%s681 + $0x168] sm:%s673] %v712
                %v714 = vld [vmem:[%s680 + $0x80] sm:%s673]
                %715 = vst [vmem:[%s681 + $0x180] sm:%s673] %v714
                %v716 = vld [vmem:[%s680 + $0x88] sm:%s673]
                %717 = vst [vmem:[%s681 + $0x198] sm:%s673] %v716
                %v718 = vld [vmem:[%s680 + $0x90] sm:%s673]
                %719 = vst [vmem:[%s681 + $0x1b0] sm:%s673] %v718
                %v720 = vld [vmem:[%s680 + $0x98] sm:%s673]
                %721 = vst [vmem:[%s681 + $0x1c8] sm:%s673] %v720
                %v722 = vld [vmem:[%s680 + $0xa0] sm:%s673]
                %723 = vst [vmem:[%s681 + $0x1e0] sm:%s673] %v722
                %v724 = vld [vmem:[%s680 + $0xa8] sm:%s673]
                %725 = vst [vmem:[%s681 + $0x1f8] sm:%s673] %v724
                %v726 = vld [vmem:[%s680 + $0xb0] sm:%s673]
                %727 = vst [vmem:[%s681 + $0x210] sm:%s673] %v726
                %v728 = vld [vmem:[%s680 + $0xb8] sm:%s673]
                %729 = vst [vmem:[%s681 + $0x228] sm:%s673] %v728
                %v730 = vld [vmem:[%s680 + $0xc0] sm:%s673]
                %731 = vst [vmem:[%s681 + $0x240] sm:%s673] %v730
                %v732 = vld [vmem:[%s680 + $0xc8] sm:%s673]
                %733 = vst [vmem:[%s681 + $0x258] sm:%s673] %v732
                %v734 = vld [vmem:[%s680 + $0xd0] sm:%s673]
                %735 = vst [vmem:[%s681 + $0x270] sm:%s673] %v734
                %v736 = vld [vmem:[%s680 + $0xd8] sm:%s673]
                %737 = vst [vmem:[%s681 + $0x288] sm:%s673] %v736
                %v738 = vld [vmem:[%s680 + $0xe0] sm:%s673]
                %739 = vst [vmem:[%s681 + $0x2a0] sm:%s673] %v738
                %v740 = vld [vmem:[%s680 + $0xe8] sm:%s673]
                %741 = vst [vmem:[%s681 + $0x2b8] sm:%s673] %v740
                %v742 = vld [vmem:[%s680 + $0xf0] sm:%s673]
                %743 = vst [vmem:[%s681 + $0x2d0] sm:%s673] %v742
                %v744 = vld [vmem:[%s680 + $0xf8] sm:%s673]
                %745 = vst [vmem:[%s681 + $0x2e8] sm:%s673] %v744
              $region95: #{causal_self_attention.3} parent=89 // loop_footer
                %s679 = sadd.s32 1, %s675
              $region96: #{causal_self_attention.3} parent=89 // loop_footer_branch
                %674 = sbr.rel target = $region92
              $region97: #{causal_self_attention.3} parent=89 // loop_exit
                _
            $region90: #{causal_self_attention.3} parent=81 // pred_fallthru
              _
          $region82: #{causal_self_attention.3} parent=77 // pred_fallthru
            _
          %822 = vnop
        $region78: #{causal_self_attention.3} parent=61 // pred_fallthru
          _
      $region62: #{causal_self_attention.3} parent=5 // pred_fallthru
        _
      %p823 = scmp.le.s32.totalorder 2, %s8
      // Predicated region
      $region113: #{causal_self_attention.3} parent=5 // pred_check
        %p824 = pneg %p823
      $region114: #{causal_self_attention.3} parent=5 // pred_check_branch
        %826 = sbr.rel (%p824) target = $region116
      $region115: #{causal_self_attention.3} parent=5 // pred_region
        %s827 = ssub.s32 %s8, 2
        // Predicated region
        $region117: #{causal_self_attention.3} parent=115 // pred_check
          %p828 = pneg %p114
        $region118: #{causal_self_attention.3} parent=115 // pred_check_branch
          %830 = sbr.rel (%p828) target = $region120
        $region119: #{causal_self_attention.3} parent=115 // pred_region
          %s831 = sand.u32 %s99, 1
          %s832 = sand.u32 %s99, 1
          %s833 = smul.addr %s832, 256
          %s834 = scalar_lea.vmem [#allocation4], %s833
        $region120: #{causal_self_attention.3} parent=115 // pred_fallthru
          _
      $region116: #{causal_self_attention.3} parent=5 // pred_fallthru
        _
    $region6: #{causal_self_attention.3} parent=1 // loop_footer
      %s12 = sadd.s32 1, %s8
    $region7: #{causal_self_attention.3} parent=1 // loop_footer_branch
      %7 = sbr.rel target = $region3
    $region8: #{causal_self_attention.3} parent=1 // loop_exit
      _

// kernel: causal_self_attention.5
$region0: #{causal_self_attention.5}
  #allocation0 [shape = 'u32[]', space=smem, size = 0x4, offset = 0x4, fixed_abs, tag = 'smem constant byte address 0x4 - core index']
  #allocation1 [shape = 'u32[72,128]{1,0:T(1,128)}', space=vmem, size = 0x9000, scoped, tag = 'internal scratch']
  #allocation2 [shape = 'f32[256,128]{1,0:T(8,128)}', space=vmem, size = 0x20000, scoped, tag = 'scratch operand']
  %s0 = inlined_call_operand.vmem [shape: f32[512,128], index: 0, kind: input, shape index: {}]
  %s1 = inlined_call_operand.vmem [shape: f32[128,128], index: 1, kind: input, shape index: {}]
  %s2 = inlined_call_operand.hbm [shape: f32[512,128], index: 2, kind: output, shape index: {}]
  %s3 = sld [smem:[#allocation0]]
  $region49: #{causal_self_attention.5} parent=0
    _
  %s5 = ssub.s32 1, %s3
  %s6 = scalar_select 0, %s5, %s3
  $region1: #{causal_self_attention.5} parent=0
    #allocation3 [shape = 'u8[262144]{0}', space=vmem, size = 0x40000, scoped, tag = 'output window, operand 0']
    #allocation4 [shape = 's32[2]{0}', space=sflag, size = 0x8, scoped, tag = 'scoped memory for causal_self_attention.5']
    %7 = vsyncpa [#allocation4], 0
    %s8 = scalar_lea.sflag [#allocation4], 1
    %9 = vsyncpa %s8, 0
    loop: start=0, step=1, limit=4
    $region2: #{causal_self_attention.5} parent=1 // loop_pre_header
      _
    $region3: #{causal_self_attention.5} parent=1 // loop_header
      %s11 = sphi 0, %s15
      %p12 = scmp.ge.s32.totalorder %s11, 4
      %s18 = sphi 0, %s37
      %s19 = sphi 0, %s33
      %s20 = sphi 0, %s29
      %s21 = sphi 0, %s18
      %s22 = sphi 0, %s19
      %s23 = sphi 0, %s20
      %s24 = sphi 0, %s21
      %s25 = sphi 0, %s22
      %s26 = sphi 0, %s23
      %s42 = sphi 0, %s44
      %s45 = sphi 0, %s42
      %s46 = sphi 0, %s45
      %s62 = sphi 0, %s46
      %s70 = sphi 0, %s72
      %s73 = sphi 0, %s70
      %s74 = sphi 0, %s73
      %s90 = sphi 0, %s74
      %s98 = sphi 0, %s100
      %s101 = sphi 0, %s98
      %s102 = sphi 0, %s101
      %s118 = sphi 0, %s102
    $region4: #{causal_self_attention.5} parent=1 // loop_header_branch
      %14 = sbr.rel (%p12) target = $region8
    $region5: #{causal_self_attention.5} parent=1 // loop_body
      %s16 = ssub.s32 %s11, 1
      %s17 = ssub.s32 %s11, 2
      %s27 = sadd.s32 1, %s20
      %p28 = scmp.ge.s32.totalorder %s27, 1
      %s29 = scalar_select %p28, 0, %s27
      %s30 = sadd.s32 1, %s19
      %s31 = scalar_select %p28, %s30, %s19
      %p32 = scmp.ge.s32.totalorder %s31, 1
      %s33 = scalar_select %p32, 0, %s31
      %s34 = sadd.s32 1, %s18
      %s35 = scalar_select %p32, %s34, %s18
      %p36 = scmp.ge.s32.totalorder %s35, 2
      %s37 = scalar_select %p36, 0, %s35
      %s38 = ssub.s32 %s18, %s37
      %s39 = ssub.s32 %s20, %s29
      %s40 = sor.u32 %s38, %s39
      %p41 = scmp.eq.s32.totalorder %s40, 0
      %s43 = sadd.s32 %s42, 1
      %s44 = scalar_select %p41, %s42, %s43
      %p47 = pneg %p41
      %p48 = scmp.eq.s32.totalorder %s11, 1
      %p49 = por %p47, %p48
      %p50 = scmp.ne.s32.totalorder %s42, %s45
      %p51 = scmp.eq.s32.totalorder %s11, 0
      %p52 = por %p50, %p51
      %p53 = scmp.ne.s32.totalorder %s42, %s45
      %p54 = scmp.eq.s32.totalorder %s16, 1
      %p55 = por %p53, %p54
      %p56 = scmp.ne.s32.totalorder %s45, %s46
      %p57 = scmp.eq.s32.totalorder %s16, 0
      %p58 = por %p56, %p57
      %p59 = scmp.ne.s32.totalorder %s45, %s46
      %p60 = scmp.eq.s32.totalorder %s17, 1
      %p61 = por %p59, %p60
      %p63 = scmp.ne.s32.totalorder %s46, %s62
      %p64 = scmp.eq.s32.totalorder %s17, 0
      %p65 = por %p63, %p64
      %s66 = ssub.s32 %s20, %s29
      %s67 = ssub.s32 %s19, %s33
      %s68 = sor.u32 %s66, %s67
      %p69 = scmp.eq.s32.totalorder %s68, 0
      %s71 = sadd.s32 %s70, 1
      %s72 = scalar_select %p69, %s70, %s71
      %p75 = pneg %p69
      %p76 = scmp.eq.s32.totalorder %s11, 1
      %p77 = por %p75, %p76
      %p78 = scmp.ne.s32.totalorder %s70, %s73
      %p79 = scmp.eq.s32.totalorder %s11, 0
      %p80 = por %p78, %p79
      %p81 = scmp.ne.s32.totalorder %s70, %s73
      %p82 = scmp.eq.s32.totalorder %s16, 1
      %p83 = por %p81, %p82
      %p84 = scmp.ne.s32.totalorder %s73, %s74
      %p85 = scmp.eq.s32.totalorder %s16, 0
      %p86 = por %p84, %p85
      %p87 = scmp.ne.s32.totalorder %s73, %s74
      %p88 = scmp.eq.s32.totalorder %s17, 1
      %p89 = por %p87, %p88
      %p91 = scmp.ne.s32.totalorder %s74, %s90
      %p92 = scmp.eq.s32.totalorder %s17, 0
      %p93 = por %p91, %p92
      %s94 = ssub.s32 %s18, %s37
      %s95 = ssub.s32 %s19, %s33
      %s96 = sor.u32 %s94, %s95
      %p97 = scmp.eq.s32.totalorder %s96, 0
      %s99 = sadd.s32 %s98, 1
      %s100 = scalar_select %p97, %s98, %s99
      %p103 = pneg %p97
      %p104 = scmp.eq.s32.totalorder %s11, 1
      %p105 = por %p103, %p104
      %p106 = scmp.ne.s32.totalorder %s98, %s101
      %p107 = scmp.eq.s32.totalorder %s11, 0
      %p108 = por %p106, %p107
      %p109 = scmp.ne.s32.totalorder %s98, %s101
      %p110 = scmp.eq.s32.totalorder %s16, 1
      %p111 = por %p109, %p110
      %p112 = scmp.ne.s32.totalorder %s101, %s102
      %p113 = scmp.eq.s32.totalorder %s16, 0
      %p114 = por %p112, %p113
      %p115 = scmp.ne.s32.totalorder %s101, %s102
      %p116 = scmp.eq.s32.totalorder %s17, 1
      %p117 = por %p115, %p116
      %p119 = scmp.ne.s32.totalorder %s102, %s118
      %p120 = scmp.eq.s32.totalorder %s17, 0
      %p121 = por %p119, %p120
      %p122 = scmp.le.s32.totalorder 1, %s11
      %p123 = scmp.lt.s32.totalorder %s11, 3
      %p124 = pnand %p122, %p123
      %p125 = pneg %p124
      // Predicated region
      $region9: #{causal_self_attention.5} parent=5 // pred_check
        _
      $region10: #{causal_self_attention.5} parent=5 // pred_check_branch
        %127 = sbr.rel (%p124) target = $region12
      $region11: #{causal_self_attention.5} parent=5 // pred_region
        %s128 = ssub.s32 %s11, 1
        // Predicated region
        $region13: #{causal_self_attention.5} parent=11 // pred_check
          %p129 = pneg %p86
        $region14: #{causal_self_attention.5} parent=11 // pred_check_branch
          %131 = sbr.rel (%p129) target = $region16
        $region15: #{causal_self_attention.5} parent=11 // pred_region
          %s132 = smul.u32 16, %s23
          %p133 = scmp.lt.s32.totalorder %s132, 15
          %s134 = scalar_select %p133, %s132, 15
          %p135 = scmp.lt.s32.totalorder %s22, 0
          %s136 = scalar_select %p135, %s22, 0
          %s137 = sadd.s32 %s136, %s134
          %s138 = smul.addr %s137, 8
          %s139 = scalar_lea.vmem %s1, %s138
          %s140 = smul.u32 16, %s23
        $region16: #{causal_self_attention.5} parent=11 // pred_fallthru
          _
      $region12: #{causal_self_attention.5} parent=5 // pred_fallthru
        _
      %p141 = scmp.lt.s32.totalorder %s11, 2
      // Predicated region
      $region17: #{causal_self_attention.5} parent=5 // pred_check
        %p142 = pneg %p141
      $region18: #{causal_self_attention.5} parent=5 // pred_check_branch
        %144 = sbr.rel (%p142) target = $region20
      $region19: #{causal_self_attention.5} parent=5 // pred_region
        // Predicated region
        $region21: #{causal_self_attention.5} parent=19 // pred_check
          %p145 = pneg %p52
        $region22: #{causal_self_attention.5} parent=19 // pred_check_branch
          %147 = sbr.rel (%p145) target = $region24
        $region23: #{causal_self_attention.5} parent=19 // pred_region
          %s148 = smul.u32 32, %s18
          %p149 = scmp.lt.s32.totalorder %s148, 63
          %s150 = scalar_select %p149, %s148, 63
          %p151 = scmp.lt.s32.totalorder %s20, 0
          %s152 = scalar_select %p151, %s20, 0
          %s153 = sadd.s32 %s152, %s150
          %s154 = smul.addr %s153, 8
          %s155 = scalar_lea.vmem %s0, %s154
          %s156 = smul.u32 32, %s18
        $region24: #{causal_self_attention.5} parent=19 // pred_fallthru
          _
      $region20: #{causal_self_attention.5} parent=5 // pred_fallthru
        _
      %p157 = scmp.le.s32.totalorder 1, %s11
      %p158 = scmp.lt.s32.totalorder %s11, 3
      %p159 = pnand %p157, %p158
      %p160 = pneg %p159
      // Predicated region
      $region25: #{causal_self_attention.5} parent=5 // pred_check
        _
      $region26: #{causal_self_attention.5} parent=5 // pred_check_branch
        %162 = sbr.rel (%p159) target = $region28
      $region27: #{causal_self_attention.5} parent=5 // pred_region
        %s163 = ssub.s32 %s11, 1
        %s164 = smul.u32 32, %s21
        %p165 = scmp.lt.s32.totalorder %s164, 63
        %s166 = scalar_select %p165, %s164, 63
        %p167 = scmp.lt.s32.totalorder %s23, 0
        %s168 = scalar_select %p167, %s23, 0
        %s169 = sadd.s32 %s168, %s166
        %s170 = smul.addr %s169, 8
        %s171 = scalar_lea.vmem %s0, %s170
        %p172 = pneg %p58
        %p173 = pneg %p55
        %s174 = smul.u32 16, %s23
        %p175 = scmp.lt.s32.totalorder %s174, 15
        %s176 = scalar_select %p175, %s174, 15
        %p177 = scmp.lt.s32.totalorder %s22, 0
        %s178 = scalar_select %p177, %s22, 0
        %s179 = sadd.s32 %s178, %s176
        %s180 = smul.addr %s179, 8
        %s181 = scalar_lea.vmem %s1, %s180
        %p182 = pneg %p86
        %p183 = pneg %p83
        %p184 = pneg %p114
        %p185 = pneg %p111
        %s186 = sand.u32 %s101, 1
        %s187 = scalar_lea.sflag [#allocation4], %s186
        %s188 = sand.u32 %s101, 1
        %s189 = smul.addr %s188, 256
        %s190 = scalar_lea.vmem [#allocation3], %s189
        %s191 = smul.u32 32, %s21
        %p192 = scmp.lt.s32.totalorder %s191, 63
        %s193 = scalar_select %p192, %s191, 63
        %p194 = scmp.lt.s32.totalorder %s23, 0
        %s195 = scalar_select %p194, %s23, 0
        %s196 = sadd.s32 %s195, %s193
        %s197 = smul.addr %s196, 8
        %s198 = scalar_lea.vmem %s0, %s197
        %s199 = smul.u32 32, %s21
        %s200 = smul.u32 16, %s23
        %p201 = scmp.lt.s32.totalorder %s200, 15
        %s202 = scalar_select %p201, %s200, 15
        %p203 = scmp.lt.s32.totalorder %s22, 0
        %s204 = scalar_select %p203, %s22, 0
        %s205 = sadd.s32 %s204, %s202
        %s206 = smul.addr %s205, 8
        %s207 = scalar_lea.vmem %s1, %s206
        %s208 = smul.u32 16, %s23
        %s209 = smul.u32 32, %s21
        %p210 = scmp.eq.s32.totalorder %s23, 0
        // Predicated region
        $region29: #{causal_self_attention.5} parent=27 // pred_check
          %p211 = pneg %p210
        $region30: #{causal_self_attention.5} parent=27 // pred_check_branch
          %213 = sbr.rel (%p211) target = $region32
        $region31: #{causal_self_attention.5} parent=27 // pred_region
          %214 = vst [vmem:[#allocation2] sm:$0xff] 0.0
          %215 = vst [vmem:[#allocation2 + $0x8] sm:$0xff] 0.0
          %216 = vst [vmem:[#allocation2 + $0x10] sm:$0xff] 0.0
          %217 = vst [vmem:[#allocation2 + $0x18] sm:$0xff] 0.0
          %218 = vst [vmem:[#allocation2 + $0x20] sm:$0xff] 0.0
          %219 = vst [vmem:[#allocation2 + $0x28] sm:$0xff] 0.0
          %220 = vst [vmem:[#allocation2 + $0x30] sm:$0xff] 0.0
          %221 = vst [vmem:[#allocation2 + $0x38] sm:$0xff] 0.0
          %222 = vst [vmem:[#allocation2 + $0x40] sm:$0xff] 0.0
          %223 = vst [vmem:[#allocation2 + $0x48] sm:$0xff] 0.0
          %224 = vst [vmem:[#allocation2 + $0x50] sm:$0xff] 0.0
          %225 = vst [vmem:[#allocation2 + $0x58] sm:$0xff] 0.0
          %226 = vst [vmem:[#allocation2 + $0x60] sm:$0xff] 0.0
          %227 = vst [vmem:[#allocation2 + $0x68] sm:$0xff] 0.0
          %228 = vst [vmem:[#allocation2 + $0x70] sm:$0xff] 0.0
          %229 = vst [vmem:[#allocation2 + $0x78] sm:$0xff] 0.0
          %230 = vst [vmem:[#allocation2 + $0x80] sm:$0xff] 0.0
          %231 = vst [vmem:[#allocation2 + $0x88] sm:$0xff] 0.0
          %232 = vst [vmem:[#allocation2 + $0x90] sm:$0xff] 0.0
          %233 = vst [vmem:[#allocation2 + $0x98] sm:$0xff] 0.0
          %234 = vst [vmem:[#allocation2 + $0xa0] sm:$0xff] 0.0
          %235 = vst [vmem:[#allocation2 + $0xa8] sm:$0xff] 0.0
          %236 = vst [vmem:[#allocation2 + $0xb0] sm:$0xff] 0.0
          %237 = vst [vmem:[#allocation2 + $0xb8] sm:$0xff] 0.0
          %238 = vst [vmem:[#allocation2 + $0xc0] sm:$0xff] 0.0
          %239 = vst [vmem:[#allocation2 + $0xc8] sm:$0xff] 0.0
          %240 = vst [vmem:[#allocation2 + $0xd0] sm:$0xff] 0.0
          %241 = vst [vmem:[#allocation2 + $0xd8] sm:$0xff] 0.0
          %242 = vst [vmem:[#allocation2 + $0xe0] sm:$0xff] 0.0
          %243 = vst [vmem:[#allocation2 + $0xe8] sm:$0xff] 0.0
          %244 = vst [vmem:[#allocation2 + $0xf0] sm:$0xff] 0.0
          %245 = vst [vmem:[#allocation2 + $0xf8] sm:$0xff] 0.0
        $region32: #{causal_self_attention.5} parent=27 // pred_fallthru
          _
        %v246 = vld [vmem:[#allocation2] sm:$0xff]
        %v247 = vld [vmem:[#allocation2 + $0x8] sm:$0xff]
        %v248 = vld [vmem:[#allocation2 + $0x10] sm:$0xff]
        %v249 = vld [vmem:[#allocation2 + $0x18] sm:$0xff]
        %v250 = vld [vmem:[#allocation2 + $0x20] sm:$0xff]
        %v251 = vld [vmem:[#allocation2 + $0x28] sm:$0xff]
        %v252 = vld [vmem:[#allocation2 + $0x30] sm:$0xff]
        %v253 = vld [vmem:[#allocation2 + $0x38] sm:$0xff]
        %v254 = vld [vmem:[#allocation2 + $0x40] sm:$0xff]
        %v255 = vld [vmem:[#allocation2 + $0x48] sm:$0xff]
        %v256 = vld [vmem:[#allocation2 + $0x50] sm:$0xff]
        %v257 = vld [vmem:[#allocation2 + $0x58] sm:$0xff]
        %v258 = vld [vmem:[#allocation2 + $0x60] sm:$0xff]
        %v259 = vld [vmem:[#allocation2 + $0x68] sm:$0xff]
        %v260 = vld [vmem:[#allocation2 + $0x70] sm:$0xff]
        %v261 = vld [vmem:[#allocation2 + $0x78] sm:$0xff]
        %v262 = vld [vmem:[#allocation2 + $0x80] sm:$0xff]
        %v263 = vld [vmem:[#allocation2 + $0x88] sm:$0xff]
        %v264 = vld [vmem:[#allocation2 + $0x90] sm:$0xff]
        %v265 = vld [vmem:[#allocation2 + $0x98] sm:$0xff]
        %v266 = vld [vmem:[#allocation2 + $0xa0] sm:$0xff]
        %v267 = vld [vmem:[#allocation2 + $0xa8] sm:$0xff]
        %v268 = vld [vmem:[#allocation2 + $0xb0] sm:$0xff]
        %v269 = vld [vmem:[#allocation2 + $0xb8] sm:$0xff]
        %v270 = vld [vmem:[#allocation2 + $0xc0] sm:$0xff]
        %v271 = vld [vmem:[#allocation2 + $0xc8] sm:$0xff]
        %v272 = vld [vmem:[#allocation2 + $0xd0] sm:$0xff]
        %v273 = vld [vmem:[#allocation2 + $0xd8] sm:$0xff]
        %v274 = vld [vmem:[#allocation2 + $0xe0] sm:$0xff]
        %v275 = vld [vmem:[#allocation2 + $0xe8] sm:$0xff]
        %v276 = vld [vmem:[#allocation2 + $0xf0] sm:$0xff]
        %v277 = vld [vmem:[#allocation2 + $0xf8] sm:$0xff]
        %v278 = vld [vmem:[%s198] sm:$0xff]
        %v279 = vld [vmem:[%s198 + $0x8] sm:$0xff]
        %v280 = vld [vmem:[%s198 + $0x10] sm:$0xff]
        %v281 = vld [vmem:[%s198 + $0x18] sm:$0xff]
        %v282 = vld [vmem:[%s198 + $0x20] sm:$0xff]
        %v283 = vld [vmem:[%s198 + $0x28] sm:$0xff]
        %v284 = vld [vmem:[%s198 + $0x30] sm:$0xff]
        %v285 = vld [vmem:[%s198 + $0x38] sm:$0xff]
        %v286 = vld [vmem:[%s198 + $0x40] sm:$0xff]
        %v287 = vld [vmem:[%s198 + $0x48] sm:$0xff]
        %v288 = vld [vmem:[%s198 + $0x50] sm:$0xff]
        %v289 = vld [vmem:[%s198 + $0x58] sm:$0xff]
        %v290 = vld [vmem:[%s198 + $0x60] sm:$0xff]
        %v291 = vld [vmem:[%s198 + $0x68] sm:$0xff]
        %v292 = vld [vmem:[%s198 + $0x70] sm:$0xff]
        %v293 = vld [vmem:[%s198 + $0x78] sm:$0xff]
        %v294 = vld [vmem:[%s198 + $0x80] sm:$0xff]
        %v295 = vld [vmem:[%s198 + $0x88] sm:$0xff]
        %v296 = vld [vmem:[%s198 + $0x90] sm:$0xff]
        %v297 = vld [vmem:[%s198 + $0x98] sm:$0xff]
        %v298 = vld [vmem:[%s198 + $0xa0] sm:$0xff]
        %v299 = vld [vmem:[%s198 + $0xa8] sm:$0xff]
        %v300 = vld [vmem:[%s198 + $0xb0] sm:$0xff]
        %v301 = vld [vmem:[%s198 + $0xb8] sm:$0xff]
        %v302 = vld [vmem:[%s198 + $0xc0] sm:$0xff]
        %v303 = vld [vmem:[%s198 + $0xc8] sm:$0xff]
        %v304 = vld [vmem:[%s198 + $0xd0] sm:$0xff]
        %v305 = vld [vmem:[%s198 + $0xd8] sm:$0xff]
        %v306 = vld [vmem:[%s198 + $0xe0] sm:$0xff]
        %v307 = vld [vmem:[%s198 + $0xe8] sm:$0xff]
        %v308 = vld [vmem:[%s198 + $0xf0] sm:$0xff]
        %v309 = vld [vmem:[%s198 + $0xf8] sm:$0xff]
        %v310 = vld [vmem:[%s207] sm:$0xff]
        %v311 = vld [vmem:[%s207 + $0x8] sm:$0xff]
        %v312 = vld [vmem:[%s207 + $0x10] sm:$0xff]
        %v313 = vld [vmem:[%s207 + $0x18] sm:$0xff]
        %v314 = vld [vmem:[%s207 + $0x20] sm:$0xff]
        %v315 = vld [vmem:[%s207 + $0x28] sm:$0xff]
        %v316 = vld [vmem:[%s207 + $0x30] sm:$0xff]
        %v317 = vld [vmem:[%s207 + $0x38] sm:$0xff]
        %v318 = vld [vmem:[%s207 + $0x40] sm:$0xff]
        %v319 = vld [vmem:[%s207 + $0x48] sm:$0xff]
        %v320 = vld [vmem:[%s207 + $0x50] sm:$0xff]
        %v321 = vld [vmem:[%s207 + $0x58] sm:$0xff]
        %v322 = vld [vmem:[%s207 + $0x60] sm:$0xff]
        %v323 = vld [vmem:[%s207 + $0x68] sm:$0xff]
        %v324 = vld [vmem:[%s207 + $0x70] sm:$0xff]
        %v325 = vld [vmem:[%s207 + $0x78] sm:$0xff]
        %326 = vmatpush.msra.mxu0 %v325
        %327 = vmatpush.msra.mxu0 %v324
        %328 = vmatpush.msra.mxu0 %v323
        %329 = vmatpush.msra.mxu0 %v322
        %330 = vmatpush.msra.mxu0 %v321
        %331 = vmatpush.msra.mxu0 %v320
        %332 = vmatpush.msra.mxu0 %v319
        %333 = vmatpush.msra.mxu0 %v318
        %334 = vmatpush.msra.mxu0 %v317
        %335 = vmatpush.msra.mxu0 %v316
        %336 = vmatpush.msra.mxu0 %v315
        %337 = vmatpush.msra.mxu0 %v314
        %338 = vmatpush.msra.mxu0 %v313
        %339 = vmatpush.msra.mxu0 %v312
        %340 = vmatpush.msra.mxu0 %v311
        %341 = vmatpush.msra.mxu0 %v310
        %342 = vmatmul.f32.gmra.mxu0 %v278
        %v343 = vpop.f32.mrf.mxu0
        %v344 = vadd.f32 0.0, %v343
        %345 = vmatmul.f32.gmra.mxu0 %v279
        %v346 = vpop.f32.mrf.mxu0
        %v347 = vadd.f32 0.0, %v346
        %348 = vmatmul.f32.gmra.mxu0 %v280
        %v349 = vpop.f32.mrf.mxu0
        %v350 = vadd.f32 0.0, %v349
        %351 = vmatmul.f32.gmra.mxu0 %v281
        %v352 = vpop.f32.mrf.mxu0
        %v353 = vadd.f32 0.0, %v352
        %354 = vmatmul.f32.gmra.mxu0 %v282
        %v355 = vpop.f32.mrf.mxu0
        %v356 = vadd.f32 0.0, %v355
        %357 = vmatmul.f32.gmra.mxu0 %v283
        %v358 = vpop.f32.mrf.mxu0
        %v359 = vadd.f32 0.0, %v358
        %360 = vmatmul.f32.gmra.mxu0 %v284
        %v361 = vpop.f32.mrf.mxu0
        %v362 = vadd.f32 0.0, %v361
        %363 = vmatmul.f32.gmra.mxu0 %v285
        %v364 = vpop.f32.mrf.mxu0
        %v365 = vadd.f32 0.0, %v364
        %366 = vmatmul.f32.gmra.mxu0 %v286
        %v367 = vpop.f32.mrf.mxu0
        %v368 = vadd.f32 0.0, %v367
        %369 = vmatmul.f32.gmra.mxu0 %v287
        %v370 = vpop.f32.mrf.mxu0
        %v371 = vadd.f32 0.0, %v370
        %372 = vmatmul.f32.gmra.mxu0 %v288
        %v373 = vpop.f32.mrf.mxu0
        %v374 = vadd.f32 0.0, %v373
        %375 = vmatmul.f32.gmra.mxu0 %v289
        %v376 = vpop.f32.mrf.mxu0
        %v377 = vadd.f32 0.0, %v376
        %378 = vmatmul.f32.gmra.mxu0 %v290
        %v379 = vpop.f32.mrf.mxu0
        %v380 = vadd.f32 0.0, %v379
        %381 = vmatmul.f32.gmra.mxu0 %v291
        %v382 = vpop.f32.mrf.mxu0
        %v383 = vadd.f32 0.0, %v382
        %384 = vmatmul.f32.gmra.mxu0 %v292
        %v385 = vpop.f32.mrf.mxu0
        %v386 = vadd.f32 0.0, %v385
        %387 = vmatmul.f32.gmra.mxu0 %v293
        %v388 = vpop.f32.mrf.mxu0
        %v389 = vadd.f32 0.0, %v388
        %390 = vmatmul.f32.gmra.mxu0 %v294
        %v391 = vpop.f32.mrf.mxu0
        %v392 = vadd.f32 0.0, %v391
        %393 = vmatmul.f32.gmra.mxu0 %v295
        %v394 = vpop.f32.mrf.mxu0
        %v395 = vadd.f32 0.0, %v394
        %396 = vmatmul.f32.gmra.mxu0 %v296
        %v397 = vpop.f32.mrf.mxu0
        %v398 = vadd.f32 0.0, %v397
        %399 = vmatmul.f32.gmra.mxu0 %v297
        %v400 = vpop.f32.mrf.mxu0
        %v401 = vadd.f32 0.0, %v400
        %402 = vmatmul.f32.gmra.mxu0 %v298
        %v403 = vpop.f32.mrf.mxu0
        %v404 = vadd.f32 0.0, %v403
        %405 = vmatmul.f32.gmra.mxu0 %v299
        %v406 = vpop.f32.mrf.mxu0
        %v407 = vadd.f32 0.0, %v406
        %408 = vmatmul.f32.gmra.mxu0 %v300
        %v409 = vpop.f32.mrf.mxu0
        %v410 = vadd.f32 0.0, %v409
        %411 = vmatmul.f32.gmra.mxu0 %v301
        %v412 = vpop.f32.mrf.mxu0
        %v413 = vadd.f32 0.0, %v412
        %414 = vmatmul.f32.gmra.mxu0 %v302
        %v415 = vpop.f32.mrf.mxu0
        %v416 = vadd.f32 0.0, %v415
        %417 = vmatmul.f32.gmra.mxu0 %v303
        %v418 = vpop.f32.mrf.mxu0
        %v419 = vadd.f32 0.0, %v418
        %420 = vmatmul.f32.gmra.mxu0 %v304
        %v421 = vpop.f32.mrf.mxu0
        %v422 = vadd.f32 0.0, %v421
        %423 = vmatmul.f32.gmra.mxu0 %v305
        %v424 = vpop.f32.mrf.mxu0
        %v425 = vadd.f32 0.0, %v424
        %426 = vmatmul.f32.gmra.mxu0 %v306
        %v427 = vpop.f32.mrf.mxu0
        %v428 = vadd.f32 0.0, %v427
        %429 = vmatmul.f32.gmra.mxu0 %v307
        %v430 = vpop.f32.mrf.mxu0
        %v431 = vadd.f32 0.0, %v430
        %432 = vmatmul.f32.gmra.mxu0 %v308
        %v433 = vpop.f32.mrf.mxu0
        %v434 = vadd.f32 0.0, %v433
        %435 = vmatmul.f32.gmra.mxu0 %v309
        %v436 = vpop.f32.mrf.mxu0
        %v437 = vadd.f32 0.0, %v436
        %438 = vdwg.mxu0
        %v439 = vadd.f32 %v246, %v344
        %v440 = vadd.f32 %v247, %v347
        %v441 = vadd.f32 %v248, %v350
        %v442 = vadd.f32 %v249, %v353
        %v443 = vadd.f32 %v250, %v356
        %v444 = vadd.f32 %v251, %v359
        %v445 = vadd.f32 %v252, %v362
        %v446 = vadd.f32 %v253, %v365
        %v447 = vadd.f32 %v254, %v368
        %v448 = vadd.f32 %v255, %v371
        %v449 = vadd.f32 %v256, %v374
        %v450 = vadd.f32 %v257, %v377
        %v451 = vadd.f32 %v258, %v380
        %v452 = vadd.f32 %v259, %v383
        %v453 = vadd.f32 %v260, %v386
        %v454 = vadd.f32 %v261, %v389
        %v455 = vadd.f32 %v262, %v392
        %v456 = vadd.f32 %v263, %v395
        %v457 = vadd.f32 %v264, %v398
        %v458 = vadd.f32 %v265, %v401
        %v459 = vadd.f32 %v266, %v404
        %v460 = vadd.f32 %v267, %v407
        %v461 = vadd.f32 %v268, %v410
        %v462 = vadd.f32 %v269, %v413
        %v463 = vadd.f32 %v270, %v416
        %v464 = vadd.f32 %v271, %v419
        %v465 = vadd.f32 %v272, %v422
        %v466 = vadd.f32 %v273, %v425
        %v467 = vadd.f32 %v274, %v428
        %v468 = vadd.f32 %v275, %v431
        %v469 = vadd.f32 %v276, %v434
        %v470 = vadd.f32 %v277, %v437
        %471 = vst [vmem:[#allocation2] sm:$0xff] %v439
        %472 = vst [vmem:[#allocation2 + $0x8] sm:$0xff] %v440
        %473 = vst [vmem:[#allocation2 + $0x10] sm:$0xff] %v441
        %474 = vst [vmem:[#allocation2 + $0x18] sm:$0xff] %v442
        %475 = vst [vmem:[#allocation2 + $0x20] sm:$0xff] %v443
        %476 = vst [vmem:[#allocation2 + $0x28] sm:$0xff] %v444
        %477 = vst [vmem:[#allocation2 + $0x30] sm:$0xff] %v445
        %478 = vst [vmem:[#allocation2 + $0x38] sm:$0xff] %v446
        %479 = vst [vmem:[#allocation2 + $0x40] sm:$0xff] %v447
        %480 = vst [vmem:[#allocation2 + $0x48] sm:$0xff] %v448
        %481 = vst [vmem:[#allocation2 + $0x50] sm:$0xff] %v449
        %482 = vst [vmem:[#allocation2 + $0x58] sm:$0xff] %v450
        %483 = vst [vmem:[#allocation2 + $0x60] sm:$0xff] %v451
        %484 = vst [vmem:[#allocation2 + $0x68] sm:$0xff] %v452
        %485 = vst [vmem:[#allocation2 + $0x70] sm:$0xff] %v453
        %486 = vst [vmem:[#allocation2 + $0x78] sm:$0xff] %v454
        %487 = vst [vmem:[#allocation2 + $0x80] sm:$0xff] %v455
        %488 = vst [vmem:[#allocation2 + $0x88] sm:$0xff] %v456
        %489 = vst [vmem:[#allocation2 + $0x90] sm:$0xff] %v457
        %490 = vst [vmem:[#allocation2 + $0x98] sm:$0xff] %v458
        %491 = vst [vmem:[#allocation2 + $0xa0] sm:$0xff] %v459
        %492 = vst [vmem:[#allocation2 + $0xa8] sm:$0xff] %v460
        %493 = vst [vmem:[#allocation2 + $0xb0] sm:$0xff] %v461
        %494 = vst [vmem:[#allocation2 + $0xb8] sm:$0xff] %v462
        %495 = vst [vmem:[#allocation2 + $0xc0] sm:$0xff] %v463
        %496 = vst [vmem:[#allocation2 + $0xc8] sm:$0xff] %v464
        %497 = vst [vmem:[#allocation2 + $0xd0] sm:$0xff] %v465
        %498 = vst [vmem:[#allocation2 + $0xd8] sm:$0xff] %v466
        %499 = vst [vmem:[#allocation2 + $0xe0] sm:$0xff] %v467
        %500 = vst [vmem:[#allocation2 + $0xe8] sm:$0xff] %v468
        %501 = vst [vmem:[#allocation2 + $0xf0] sm:$0xff] %v469
        %502 = vst [vmem:[#allocation2 + $0xf8] sm:$0xff] %v470
        // Predicated region
        $region33: #{causal_self_attention.5} parent=27 // pred_check
          %p503 = pneg %p210
        $region34: #{causal_self_attention.5} parent=27 // pred_check_branch
          %505 = sbr.rel (%p503) target = $region36
        $region35: #{causal_self_attention.5} parent=27 // pred_region
          %v506 = vld [vmem:[#allocation2] sm:$0xff]
          %v507 = vld [vmem:[#allocation2 + $0x8] sm:$0xff]
          %v508 = vld [vmem:[#allocation2 + $0x10] sm:$0xff]
          %v509 = vld [vmem:[#allocation2 + $0x18] sm:$0xff]
          %v510 = vld [vmem:[#allocation2 + $0x20] sm:$0xff]
          %v511 = vld [vmem:[#allocation2 + $0x28] sm:$0xff]
          %v512 = vld [vmem:[#allocation2 + $0x30] sm:$0xff]
          %v513 = vld [vmem:[#allocation2 + $0x38] sm:$0xff]
          %v514 = vld [vmem:[#allocation2 + $0x40] sm:$0xff]
          %v515 = vld [vmem:[#allocation2 + $0x48] sm:$0xff]
          %v516 = vld [vmem:[#allocation2 + $0x50] sm:$0xff]
          %v517 = vld [vmem:[#allocation2 + $0x58] sm:$0xff]
          %v518 = vld [vmem:[#allocation2 + $0x60] sm:$0xff]
          %v519 = vld [vmem:[#allocation2 + $0x68] sm:$0xff]
          %v520 = vld [vmem:[#allocation2 + $0x70] sm:$0xff]
          %v521 = vld [vmem:[#allocation2 + $0x78] sm:$0xff]
          %v522 = vld [vmem:[#allocation2 + $0x80] sm:$0xff]
          %v523 = vld [vmem:[#allocation2 + $0x88] sm:$0xff]
          %v524 = vld [vmem:[#allocation2 + $0x90] sm:$0xff]
          %v525 = vld [vmem:[#allocation2 + $0x98] sm:$0xff]
          %v526 = vld [vmem:[#allocation2 + $0xa0] sm:$0xff]
          %v527 = vld [vmem:[#allocation2 + $0xa8] sm:$0xff]
          %v528 = vld [vmem:[#allocation2 + $0xb0] sm:$0xff]
          %v529 = vld [vmem:[#allocation2 + $0xb8] sm:$0xff]
          %v530 = vld [vmem:[#allocation2 + $0xc0] sm:$0xff]
          %v531 = vld [vmem:[#allocation2 + $0xc8] sm:$0xff]
          %v532 = vld [vmem:[#allocation2 + $0xd0] sm:$0xff]
          %v533 = vld [vmem:[#allocation2 + $0xd8] sm:$0xff]
          %v534 = vld [vmem:[#allocation2 + $0xe0] sm:$0xff]
          %v535 = vld [vmem:[#allocation2 + $0xe8] sm:$0xff]
          %v536 = vld [vmem:[#allocation2 + $0xf0] sm:$0xff]
          %v537 = vld [vmem:[#allocation2 + $0xf8] sm:$0xff]
          %538 = vst [vmem:[%s190] sm:$0xff] %v506
          %539 = vst [vmem:[%s190 + $0x8] sm:$0xff] %v507
          %540 = vst [vmem:[%s190 + $0x10] sm:$0xff] %v508
          %541 = vst [vmem:[%s190 + $0x18] sm:$0xff] %v509
          %542 = vst [vmem:[%s190 + $0x20] sm:$0xff] %v510
          %543 = vst [vmem:[%s190 + $0x28] sm:$0xff] %v511
          %544 = vst [vmem:[%s190 + $0x30] sm:$0xff] %v512
          %545 = vst [vmem:[%s190 + $0x38] sm:$0xff] %v513
          %546 = vst [vmem:[%s190 + $0x40] sm:$0xff] %v514
          %547 = vst [vmem:[%s190 + $0x48] sm:$0xff] %v515
          %548 = vst [vmem:[%s190 + $0x50] sm:$0xff] %v516
          %549 = vst [vmem:[%s190 + $0x58] sm:$0xff] %v517
          %550 = vst [vmem:[%s190 + $0x60] sm:$0xff] %v518
          %551 = vst [vmem:[%s190 + $0x68] sm:$0xff] %v519
          %552 = vst [vmem:[%s190 + $0x70] sm:$0xff] %v520
          %553 = vst [vmem:[%s190 + $0x78] sm:$0xff] %v521
          %554 = vst [vmem:[%s190 + $0x80] sm:$0xff] %v522
          %555 = vst [vmem:[%s190 + $0x88] sm:$0xff] %v523
          %556 = vst [vmem:[%s190 + $0x90] sm:$0xff] %v524
          %557 = vst [vmem:[%s190 + $0x98] sm:$0xff] %v525
          %558 = vst [vmem:[%s190 + $0xa0] sm:$0xff] %v526
          %559 = vst [vmem:[%s190 + $0xa8] sm:$0xff] %v527
          %560 = vst [vmem:[%s190 + $0xb0] sm:$0xff] %v528
          %561 = vst [vmem:[%s190 + $0xb8] sm:$0xff] %v529
          %562 = vst [vmem:[%s190 + $0xc0] sm:$0xff] %v530
          %563 = vst [vmem:[%s190 + $0xc8] sm:$0xff] %v531
          %564 = vst [vmem:[%s190 + $0xd0] sm:$0xff] %v532
          %565 = vst [vmem:[%s190 + $0xd8] sm:$0xff] %v533
          %566 = vst [vmem:[%s190 + $0xe0] sm:$0xff] %v534
          %567 = vst [vmem:[%s190 + $0xe8] sm:$0xff] %v535
          %568 = vst [vmem:[%s190 + $0xf0] sm:$0xff] %v536
          %569 = vst [vmem:[%s190 + $0xf8] sm:$0xff] %v537
        $region36: #{causal_self_attention.5} parent=27 // pred_fallthru
          _
        %s570 = sand.u32 %s101, 1
        %s571 = scalar_lea.sflag [#allocation4], %s570
        %s572 = sand.u32 %s101, 1
        %s573 = smul.addr %s572, 256
        %s574 = scalar_lea.vmem [#allocation3], %s573
        // Predicated region
        $region37: #{causal_self_attention.5} parent=27 // pred_check
          %p575 = pneg %p111
        $region38: #{causal_self_attention.5} parent=27 // pred_check_branch
          %577 = sbr.rel (%p575) target = $region40
        $region39: #{causal_self_attention.5} parent=27 // pred_region
          %s578 = smul.u32 32, %s21
          %580 = vsyncadd %s571, 0
          %s581 = sadd.s32 %s22, %s578
          %s582 = smul.addr %s581, 8
          %s583 = scalar_lea.hbm %s2, %s582
          %s584 = sshll.u32 %s574, 4
          %s585 = int_to_ptr.vmem [resolvable:$true] %s584
          %s586 = sshll.u32 %s583, 4
          %s587 = int_to_ptr.hbm [resolvable:$true] %s586
          %592 = dma.vmem_to_hbm [thread:$0]  %s585, 4096, %s587, %s571, 128, 128, 8
        $region40: #{causal_self_attention.5} parent=27 // pred_fallthru
          _
      $region28: #{causal_self_attention.5} parent=5 // pred_fallthru
        _
      %p593 = scmp.le.s32.totalorder 2, %s11
      // Predicated region
      $region41: #{causal_self_attention.5} parent=5 // pred_check
        %p594 = pneg %p593
      $region42: #{causal_self_attention.5} parent=5 // pred_check_branch
        %596 = sbr.rel (%p594) target = $region44
      $region43: #{causal_self_attention.5} parent=5 // pred_region
        %s597 = ssub.s32 %s11, 2
        // Predicated region
        $region45: #{causal_self_attention.5} parent=43 // pred_check
          %p598 = pneg %p117
        $region46: #{causal_self_attention.5} parent=43 // pred_check_branch
          %600 = sbr.rel (%p598) target = $region48
        $region47: #{causal_self_attention.5} parent=43 // pred_region
          %s601 = sand.u32 %s102, 1
          %s602 = scalar_lea.sflag [#allocation4], %s601
          %s603 = sand.u32 %s102, 1
          %s604 = smul.addr %s603, 256
          %s605 = scalar_lea.vmem [#allocation3], %s604
          %607 = dma.done %s602, 4096
        $region48: #{causal_self_attention.5} parent=43 // pred_fallthru
          _
      $region44: #{causal_self_attention.5} parent=5 // pred_fallthru
        _
    $region6: #{causal_self_attention.5} parent=1 // loop_footer
      %s15 = sadd.s32 1, %s11
    $region7: #{causal_self_attention.5} parent=1 // loop_footer_branch
      %10 = sbr.rel target = $region3
    $region8: #{causal_self_attention.5} parent=1 // loop_exit
      _
    %608 = vsyncpa [#allocation4], 1
    %s609 = scalar_lea.sflag [#allocation4], 1
    %610 = vsyncpa %s609, 1

// kernel: causal_self_attention.4
$region0: #{causal_self_attention.4}
  #allocation0 [shape = 'u32[]', space=smem, size = 0x4, offset = 0x4, fixed_abs, tag = 'smem constant byte address 0x4 - core index']
  #allocation1 [shape = 'u32[72,128]{1,0:T(1,128)}', space=vmem, size = 0x9000, scoped, tag = 'internal scratch']
  #allocation2 [shape = 'f32[4,128,1]{2,1,0:T(8,128)}', space=vmem, size = 0x40000, scoped, tag = 'scratch operand']
  #allocation3 [shape = 'f32[4,128,1]{2,1,0:T(8,128)}', space=vmem, size = 0x40000, scoped, tag = 'scratch operand']
  #allocation4 [shape = 'f32[128,128]{1,0:T(8,128)}', space=vmem, size = 0x10000, scoped, tag = 'scratch operand']
  %s0 = inlined_call_operand.vmem [shape: f32[2,256,384], index: 0, kind: input, shape index: {}, may-alias: {0,1,2}]
  %s1 = inlined_call_operand.vmem [shape: f32[2,256,384], index: 1, kind: input, shape index: {}, may-alias: {0,1,2}]
  %s2 = inlined_call_operand.vmem [shape: f32[2,256,384], index: 2, kind: input, shape index: {}, may-alias: {0,1,2}]
  %s3 = inlined_call_operand.vmem [shape: f32[256,32], index: 3, kind: input, shape index: {}, may-alias: {3,5}]
  %s4 = inlined_call_operand.vmem [shape: f32[256,32], index: 4, kind: input, shape index: {}, may-alias: {4,6}]
  %s5 = inlined_call_operand.vmem [shape: f32[256,32], index: 5, kind: input, shape index: {}, may-alias: {3,5}]
  %s6 = inlined_call_operand.vmem [shape: f32[256,32], index: 6, kind: input, shape index: {}, may-alias: {4,6}]
  %s7 = inlined_call_operand.vmem [shape: f32[32,32], index: 7, kind: input, shape index: {}]
  %s8 = inlined_call_operand.vmem [shape: f32[2,256,128], index: 8, kind: output, shape index: {}]
  %s9 = sld [smem:[#allocation0]]
  $region191: #{causal_self_attention.4} parent=0
    _
  %s11 = ssub.s32 1, %s9
  %s12 = scalar_select 0, %s11, %s9
  $region1: #{causal_self_attention.4} parent=0
    #allocation5 [shape = 'u8[131072]{0}', space=vmem, size = 0x20000, scoped, tag = 'input window, operand 0']
    #allocation6 [shape = 'u8[131072]{0}', space=vmem, size = 0x20000, scoped, tag = 'input window, operand 1']
    #allocation7 [shape = 'u8[131072]{0}', space=vmem, size = 0x20000, scoped, tag = 'input window, operand 2']
    loop: start=0, step=1, limit=10
    $region2: #{causal_self_attention.4} parent=1 // loop_pre_header
      _
    $region3: #{causal_self_attention.4} parent=1 // loop_header
      %s14 = sphi 0, %s18
      %p15 = scmp.ge.s32.totalorder %s14, 10
      %s21 = sphi 0, %s40
      %s22 = sphi 0, %s36
      %s23 = sphi 0, %s32
      %s24 = sphi 0, %s21
      %s25 = sphi 0, %s22
      %s26 = sphi 0, %s23
      %s27 = sphi 0, %s24
      %s28 = sphi 0, %s25
      %s29 = sphi 0, %s26
      %s45 = sphi 0, %s47
      %s48 = sphi 0, %s45
      %s49 = sphi 0, %s48
      %s65 = sphi 0, %s49
      %s73 = sphi 0, %s75
      %s76 = sphi 0, %s73
      %s77 = sphi 0, %s76
      %s93 = sphi 0, %s77
      %s101 = sphi 0, %s103
      %s104 = sphi 0, %s101
      %s105 = sphi 0, %s104
      %s121 = sphi 0, %s105
      %s127 = sphi 0, %s129
      %s130 = sphi 0, %s127
      %s131 = sphi 0, %s130
      %s147 = sphi 0, %s131
      %s153 = sphi 0, %s155
      %s156 = sphi 0, %s153
      %s157 = sphi 0, %s156
      %s173 = sphi 0, %s157
      %s179 = sphi 0, %s181
      %s182 = sphi 0, %s179
      %s183 = sphi 0, %s182
      %s199 = sphi 0, %s183
      %s205 = sphi 0, %s207
      %s208 = sphi 0, %s205
      %s209 = sphi 0, %s208
      %s225 = sphi 0, %s209
      %s229 = sphi 0, %s229
      %s231 = sphi 0, %s229
      %s232 = sphi 0, %s231
      %s246 = sphi 0, %s232
      %s254 = sphi 0, %s256
      %s257 = sphi 0, %s254
      %s258 = sphi 0, %s257
      %s274 = sphi 0, %s258
    $region4: #{causal_self_attention.4} parent=1 // loop_header_branch
      %17 = sbr.rel (%p15) target = $region8
    $region5: #{causal_self_attention.4} parent=1 // loop_body
      %s19 = ssub.s32 %s14, 1
      %s20 = ssub.s32 %s14, 2
      %s30 = sadd.s32 1, %s23
      %p31 = scmp.ge.s32.totalorder %s30, 2
      %s32 = scalar_select %p31, 0, %s30
      %s33 = sadd.s32 1, %s22
      %s34 = scalar_select %p31, %s33, %s22
      %p35 = scmp.ge.s32.totalorder %s34, 2
      %s36 = scalar_select %p35, 0, %s34
      %s37 = sadd.s32 1, %s21
      %s38 = scalar_select %p35, %s37, %s21
      %p39 = scmp.ge.s32.totalorder %s38, 2
      %s40 = scalar_select %p39, 0, %s38
      %s41 = ssub.s32 %s21, %s40
      %s42 = ssub.s32 %s22, %s36
      %s43 = sor.u32 %s41, %s42
      %p44 = scmp.eq.s32.totalorder %s43, 0
      %s46 = sadd.s32 %s45, 1
      %s47 = scalar_select %p44, %s45, %s46
      %p50 = pneg %p44
      %p51 = scmp.eq.s32.totalorder %s14, 7
      %p52 = por %p50, %p51
      %p53 = scmp.ne.s32.totalorder %s45, %s48
      %p54 = scmp.eq.s32.totalorder %s14, 0
      %p55 = por %p53, %p54
      %p56 = scmp.ne.s32.totalorder %s45, %s48
      %p57 = scmp.eq.s32.totalorder %s19, 7
      %p58 = por %p56, %p57
      %p59 = scmp.ne.s32.totalorder %s48, %s49
      %p60 = scmp.eq.s32.totalorder %s19, 0
      %p61 = por %p59, %p60
      %p62 = scmp.ne.s32.totalorder %s48, %s49
      %p63 = scmp.eq.s32.totalorder %s20, 7
      %p64 = por %p62, %p63
      %p66 = scmp.ne.s32.totalorder %s49, %s65
      %p67 = scmp.eq.s32.totalorder %s20, 0
      %p68 = por %p66, %p67
      %s69 = ssub.s32 %s21, %s40
      %s70 = ssub.s32 %s23, %s32
      %s71 = sor.u32 %s69, %s70
      %p72 = scmp.eq.s32.totalorder %s71, 0
      %s74 = sadd.s32 %s73, 1
      %s75 = scalar_select %p72, %s73, %s74
      %p78 = pneg %p72
      %p79 = scmp.eq.s32.totalorder %s14, 7
      %p80 = por %p78, %p79
      %p81 = scmp.ne.s32.totalorder %s73, %s76
      %p82 = scmp.eq.s32.totalorder %s14, 0
      %p83 = por %p81, %p82
      %p84 = scmp.ne.s32.totalorder %s73, %s76
      %p85 = scmp.eq.s32.totalorder %s19, 7
      %p86 = por %p84, %p85
      %p87 = scmp.ne.s32.totalorder %s76, %s77
      %p88 = scmp.eq.s32.totalorder %s19, 0
      %p89 = por %p87, %p88
      %p90 = scmp.ne.s32.totalorder %s76, %s77
      %p91 = scmp.eq.s32.totalorder %s20, 7
      %p92 = por %p90, %p91
      %p94 = scmp.ne.s32.totalorder %s77, %s93
      %p95 = scmp.eq.s32.totalorder %s20, 0
      %p96 = por %p94, %p95
      %s97 = ssub.s32 %s21, %s40
      %s98 = ssub.s32 %s23, %s32
      %s99 = sor.u32 %s97, %s98
      %p100 = scmp.eq.s32.totalorder %s99, 0
      %s102 = sadd.s32 %s101, 1
      %s103 = scalar_select %p100, %s101, %s102
      %p106 = pneg %p100
      %p107 = scmp.eq.s32.totalorder %s14, 7
      %p108 = por %p106, %p107
      %p109 = scmp.ne.s32.totalorder %s101, %s104
      %p110 = scmp.eq.s32.totalorder %s14, 0
      %p111 = por %p109, %p110
      %p112 = scmp.ne.s32.totalorder %s101, %s104
      %p113 = scmp.eq.s32.totalorder %s19, 7
      %p114 = por %p112, %p113
      %p115 = scmp.ne.s32.totalorder %s104, %s105
      %p116 = scmp.eq.s32.totalorder %s19, 0
      %p117 = por %p115, %p116
      %p118 = scmp.ne.s32.totalorder %s104, %s105
      %p119 = scmp.eq.s32.totalorder %s20, 7
      %p120 = por %p118, %p119
      %p122 = scmp.ne.s32.totalorder %s105, %s121
      %p123 = scmp.eq.s32.totalorder %s20, 0
      %p124 = por %p122, %p123
      %s125 = ssub.s32 %s22, %s36
      %p126 = scmp.eq.s32.totalorder %s125, 0
      %s128 = sadd.s32 %s127, 1
      %s129 = scalar_select %p126, %s127, %s128
      %p132 = pneg %p126
      %p133 = scmp.eq.s32.totalorder %s14, 7
      %p134 = por %p132, %p133
      %p135 = scmp.ne.s32.totalorder %s127, %s130
      %p136 = scmp.eq.s32.totalorder %s14, 0
      %p137 = por %p135, %p136
      %p138 = scmp.ne.s32.totalorder %s127, %s130
      %p139 = scmp.eq.s32.totalorder %s19, 7
      %p140 = por %p138, %p139
      %p141 = scmp.ne.s32.totalorder %s130, %s131
      %p142 = scmp.eq.s32.totalorder %s19, 0
      %p143 = por %p141, %p142
      %p144 = scmp.ne.s32.totalorder %s130, %s131
      %p145 = scmp.eq.s32.totalorder %s20, 7
      %p146 = por %p144, %p145
      %p148 = scmp.ne.s32.totalorder %s131, %s147
      %p149 = scmp.eq.s32.totalorder %s20, 0
      %p150 = por %p148, %p149
      %s151 = ssub.s32 %s22, %s36
      %p152 = scmp.eq.s32.totalorder %s151, 0
      %s154 = sadd.s32 %s153, 1
      %s155 = scalar_select %p152, %s153, %s154
      %p158 = pneg %p152
      %p159 = scmp.eq.s32.totalorder %s14, 7
      %p160 = por %p158, %p159
      %p161 = scmp.ne.s32.totalorder %s153, %s156
      %p162 = scmp.eq.s32.totalorder %s14, 0
      %p163 = por %p161, %p162
      %p164 = scmp.ne.s32.totalorder %s153, %s156
      %p165 = scmp.eq.s32.totalorder %s19, 7
      %p166 = por %p164, %p165
      %p167 = scmp.ne.s32.totalorder %s156, %s157
      %p168 = scmp.eq.s32.totalorder %s19, 0
      %p169 = por %p167, %p168
      %p170 = scmp.ne.s32.totalorder %s156, %s157
      %p171 = scmp.eq.s32.totalorder %s20, 7
      %p172 = por %p170, %p171
      %p174 = scmp.ne.s32.totalorder %s157, %s173
      %p175 = scmp.eq.s32.totalorder %s20, 0
      %p176 = por %p174, %p175
      %s177 = ssub.s32 %s23, %s32
      %p178 = scmp.eq.s32.totalorder %s177, 0
      %s180 = sadd.s32 %s179, 1
      %s181 = scalar_select %p178, %s179, %s180
      %p184 = pneg %p178
      %p185 = scmp.eq.s32.totalorder %s14, 7
      %p186 = por %p184, %p185
      %p187 = scmp.ne.s32.totalorder %s179, %s182
      %p188 = scmp.eq.s32.totalorder %s14, 0
      %p189 = por %p187, %p188
      %p190 = scmp.ne.s32.totalorder %s179, %s182
      %p191 = scmp.eq.s32.totalorder %s19, 7
      %p192 = por %p190, %p191
      %p193 = scmp.ne.s32.totalorder %s182, %s183
      %p194 = scmp.eq.s32.totalorder %s19, 0
      %p195 = por %p193, %p194
      %p196 = scmp.ne.s32.totalorder %s182, %s183
      %p197 = scmp.eq.s32.totalorder %s20, 7
      %p198 = por %p196, %p197
      %p200 = scmp.ne.s32.totalorder %s183, %s199
      %p201 = scmp.eq.s32.totalorder %s20, 0
      %p202 = por %p200, %p201
      %s203 = ssub.s32 %s23, %s32
      %p204 = scmp.eq.s32.totalorder %s203, 0
      %s206 = sadd.s32 %s205, 1
      %s207 = scalar_select %p204, %s205, %s206
      %p210 = pneg %p204
      %p211 = scmp.eq.s32.totalorder %s14, 7
      %p212 = por %p210, %p211
      %p213 = scmp.ne.s32.totalorder %s205, %s208
      %p214 = scmp.eq.s32.totalorder %s14, 0
      %p215 = por %p213, %p214
      %p216 = scmp.ne.s32.totalorder %s205, %s208
      %p217 = scmp.eq.s32.totalorder %s19, 7
      %p218 = por %p216, %p217
      %p219 = scmp.ne.s32.totalorder %s208, %s209
      %p220 = scmp.eq.s32.totalorder %s19, 0
      %p221 = por %p219, %p220
      %p222 = scmp.ne.s32.totalorder %s208, %s209
      %p223 = scmp.eq.s32.totalorder %s20, 7
      %p224 = por %p222, %p223
      %p226 = scmp.ne.s32.totalorder %s209, %s225
      %p227 = scmp.eq.s32.totalorder %s20, 0
      %p228 = por %p226, %p227
      %s230 = sadd.s32 %s229, 1
      %p233 = scmp.eq.s32.totalorder %s14, 7
      %p234 = scmp.ne.s32.totalorder %s229, %s231
      %p235 = scmp.eq.s32.totalorder %s14, 0
      %p236 = por %p234, %p235
      %p237 = scmp.ne.s32.totalorder %s229, %s231
      %p238 = scmp.eq.s32.totalorder %s19, 7
      %p239 = por %p237, %p238
      %p240 = scmp.ne.s32.totalorder %s231, %s232
      %p241 = scmp.eq.s32.totalorder %s19, 0
      %p242 = por %p240, %p241
      %p243 = scmp.ne.s32.totalorder %s231, %s232
      %p244 = scmp.eq.s32.totalorder %s20, 7
      %p245 = por %p243, %p244
      %p247 = scmp.ne.s32.totalorder %s232, %s246
      %p248 = scmp.eq.s32.totalorder %s20, 0
      %p249 = por %p247, %p248
      %s250 = ssub.s32 %s21, %s40
      %s251 = ssub.s32 %s22, %s36
      %s252 = sor.u32 %s250, %s251
      %p253 = scmp.eq.s32.totalorder %s252, 0
      %s255 = sadd.s32 %s254, 1
      %s256 = scalar_select %p253, %s254, %s255
      %p259 = pneg %p253
      %p260 = scmp.eq.s32.totalorder %s14, 7
      %p261 = por %p259, %p260
      %p262 = scmp.ne.s32.totalorder %s254, %s257
      %p263 = scmp.eq.s32.totalorder %s14, 0
      %p264 = por %p262, %p263
      %p265 = scmp.ne.s32.totalorder %s254, %s257
      %p266 = scmp.eq.s32.totalorder %s19, 7
      %p267 = por %p265, %p266
      %p268 = scmp.ne.s32.totalorder %s257, %s258
      %p269 = scmp.eq.s32.totalorder %s19, 0
      %p270 = por %p268, %p269
      %p271 = scmp.ne.s32.totalorder %s257, %s258
      %p272 = scmp.eq.s32.totalorder %s20, 7
      %p273 = por %p271, %p272
      %p275 = scmp.ne.s32.totalorder %s258, %s274
      %p276 = scmp.eq.s32.totalorder %s20, 0
      %p277 = por %p275, %p276
      %p278 = scmp.le.s32.totalorder 1, %s14
      %p279 = scmp.lt.s32.totalorder %s14, 9
      %p280 = pnand %p278, %p279
      %p281 = pneg %p280
      // Predicated region
      $region9: #{causal_self_attention.4} parent=5 // pred_check
        _
      $region10: #{causal_self_attention.4} parent=5 // pred_check_branch
        %283 = sbr.rel (%p280) target = $region12
      $region11: #{causal_self_attention.4} parent=5 // pred_region
        %s284 = ssub.s32 %s14, 1
        // Predicated region
        $region13: #{causal_self_attention.4} parent=11 // pred_check
          %p285 = pneg %p242
        $region14: #{causal_self_attention.4} parent=11 // pred_check_branch
          %287 = sbr.rel (%p285) target = $region16
        $region15: #{causal_self_attention.4} parent=11 // pred_region
          _
        $region16: #{causal_self_attention.4} parent=11 // pred_fallthru
          _
      $region12: #{causal_self_attention.4} parent=5 // pred_fallthru
        _
      %p288 = scmp.lt.s32.totalorder %s14, 8
      // Predicated region
      $region17: #{causal_self_attention.4} parent=5 // pred_check
        %p289 = pneg %p288
      $region18: #{causal_self_attention.4} parent=5 // pred_check_branch
        %291 = sbr.rel (%p289) target = $region20
      $region19: #{causal_self_attention.4} parent=5 // pred_region
        // Predicated region
        $region21: #{causal_self_attention.4} parent=19 // pred_check
          %p292 = pneg %p55
        $region22: #{causal_self_attention.4} parent=19 // pred_check_branch
          %294 = sbr.rel (%p292) target = $region24
        $region23: #{causal_self_attention.4} parent=19 // pred_region
          %s295 = sand.u32 %s45, 1
          %s296 = sand.u32 %s45, 1
          %s297 = smul.addr %s296, 128
          %s298 = scalar_lea.vmem [#allocation5], %s297
          %s299 = smul.u32 16, %s22
          %s300 = smul.addr %s299, 3
          %s301 = smul.addr %s21, 96
          %s302 = sadd.s32 %s300, %s301
          %s303 = smul.addr %s302, 8
          %s304 = scalar_lea.vmem %s0, %s303
          // Predicated region
          $region25: #{causal_self_attention.4} parent=23 // pred_check
            _
          $region26: #{causal_self_attention.4} parent=23 // pred_check_branch
            %306 = sbr.rel (0) target = $region28
          $region27: #{causal_self_attention.4} parent=23 // pred_region
            // Predicated region
            $region29: #{causal_self_attention.4} parent=27 // pred_check
              _
            $region30: #{causal_self_attention.4} parent=27 // pred_check_branch
              %308 = sbr.rel (0) target = $region32
            $region31: #{causal_self_attention.4} parent=27 // pred_region
              // Predicated region
              $region44: #{causal_self_attention.4} parent=31 // pred_check
                _
              $region45: #{causal_self_attention.4} parent=31 // pred_check_branch
                %354 = sbr.rel (0) target = $region47
              $region46: #{causal_self_attention.4} parent=31 // pred_region
                loop: start=0, step=1, limit=1
                $region48: #{causal_self_attention.4} parent=46 // loop_pre_header
                  _
                $region49: #{causal_self_attention.4} parent=46 // loop_header
                  %s356 = sphi 0, %s360
                  %p357 = scmp.ge.s32.totalorder %s356, 1
                  %s361 = sphi %s304, %s304
                  %s362 = sphi %s298, %s298
                $region50: #{causal_self_attention.4} parent=46 // loop_header_branch
                  %359 = sbr.rel (%p357) target = $region54
                $region51: #{causal_self_attention.4} parent=46 // loop_body
                  %v363 = vld [vmem:[%s361] sm:$0xff]
                  %364 = vst [vmem:[%s362] sm:$0xff] %v363
                  %v365 = vld [vmem:[%s361 + $0x18] sm:$0xff]
                  %366 = vst [vmem:[%s362 + $0x8] sm:$0xff] %v365
                  %v367 = vld [vmem:[%s361 + $0x30] sm:$0xff]
                  %368 = vst [vmem:[%s362 + $0x10] sm:$0xff] %v367
                  %v369 = vld [vmem:[%s361 + $0x48] sm:$0xff]
                  %370 = vst [vmem:[%s362 + $0x18] sm:$0xff] %v369
                  %v371 = vld [vmem:[%s361 + $0x60] sm:$0xff]
                  %372 = vst [vmem:[%s362 + $0x20] sm:$0xff] %v371
                  %v373 = vld [vmem:[%s361 + $0x78] sm:$0xff]
                  %374 = vst [vmem:[%s362 + $0x28] sm:$0xff] %v373
                  %v375 = vld [vmem:[%s361 + $0x90] sm:$0xff]
                  %376 = vst [vmem:[%s362 + $0x30] sm:$0xff] %v375
                  %v377 = vld [vmem:[%s361 + $0xa8] sm:$0xff]
                  %378 = vst [vmem:[%s362 + $0x38] sm:$0xff] %v377
                  %v379 = vld [vmem:[%s361 + $0xc0] sm:$0xff]
                  %380 = vst [vmem:[%s362 + $0x40] sm:$0xff] %v379
                  %v381 = vld [vmem:[%s361 + $0xd8] sm:$0xff]
                  %382 = vst [vmem:[%s362 + $0x48] sm:$0xff] %v381
                  %v383 = vld [vmem:[%s361 + $0xf0] sm:$0xff]
                  %384 = vst [vmem:[%s362 + $0x50] sm:$0xff] %v383
                  %v385 = vld [vmem:[%s361 + $0x108] sm:$0xff]
                  %386 = vst [vmem:[%s362 + $0x58] sm:$0xff] %v385
                  %v387 = vld [vmem:[%s361 + $0x120] sm:$0xff]
                  %388 = vst [vmem:[%s362 + $0x60] sm:$0xff] %v387
                  %v389 = vld [vmem:[%s361 + $0x138] sm:$0xff]
                  %390 = vst [vmem:[%s362 + $0x68] sm:$0xff] %v389
                  %v391 = vld [vmem:[%s361 + $0x150] sm:$0xff]
                  %392 = vst [vmem:[%s362 + $0x70] sm:$0xff] %v391
                  %v393 = vld [vmem:[%s361 + $0x168] sm:$0xff]
                  %394 = vst [vmem:[%s362 + $0x78] sm:$0xff] %v393
                $region52: #{causal_self_attention.4} parent=46 // loop_footer
                  %s360 = sadd.s32 1, %s356
                $region53: #{causal_self_attention.4} parent=46 // loop_footer_branch
                  %355 = sbr.rel target = $region49
                $region54: #{causal_self_attention.4} parent=46 // loop_exit
                  _
              $region47: #{causal_self_attention.4} parent=31 // pred_fallthru
                _
              // Predicated region
              $region55: #{causal_self_attention.4} parent=31 // pred_check
                _
              $region56: #{causal_self_attention.4} parent=31 // pred_check_branch
                %396 = sbr.rel target = $region58
              $region57: #{causal_self_attention.4} parent=31 // pred_region
                _
              $region58: #{causal_self_attention.4} parent=31 // pred_fallthru
                _
            $region32: #{causal_self_attention.4} parent=27 // pred_fallthru
              _
            // Predicated region
            $region33: #{causal_self_attention.4} parent=27 // pred_check
              _
            $region34: #{causal_self_attention.4} parent=27 // pred_check_branch
              %310 = sbr.rel target = $region36
            $region35: #{causal_self_attention.4} parent=27 // pred_region
              %s312 = ssub.s32 256, 1
              loop: start=0, step=1, limit=1
              $region37: #{causal_self_attention.4} parent=35 // loop_pre_header
                _
              $region38: #{causal_self_attention.4} parent=35 // loop_header
                %s314 = sphi 0, %s318
                %p315 = scmp.ge.s32.totalorder %s314, 1
                %s319 = sphi %s304, %s304
                %s320 = sphi %s298, %s298
              $region39: #{causal_self_attention.4} parent=35 // loop_header_branch
                %317 = sbr.rel (%p315) target = $region43
              $region40: #{causal_self_attention.4} parent=35 // loop_body
                %v321 = vld [vmem:[%s319] sm:%s312]
                %322 = vst [vmem:[%s320] sm:%s312] %v321
                %v323 = vld [vmem:[%s319 + $0x18] sm:%s312]
                %324 = vst [vmem:[%s320 + $0x8] sm:%s312] %v323
                %v325 = vld [vmem:[%s319 + $0x30] sm:%s312]
                %326 = vst [vmem:[%s320 + $0x10] sm:%s312] %v325
                %v327 = vld [vmem:[%s319 + $0x48] sm:%s312]
                %328 = vst [vmem:[%s320 + $0x18] sm:%s312] %v327
                %v329 = vld [vmem:[%s319 + $0x60] sm:%s312]
                %330 = vst [vmem:[%s320 + $0x20] sm:%s312] %v329
                %v331 = vld [vmem:[%s319 + $0x78] sm:%s312]
                %332 = vst [vmem:[%s320 + $0x28] sm:%s312] %v331
                %v333 = vld [vmem:[%s319 + $0x90] sm:%s312]
                %334 = vst [vmem:[%s320 + $0x30] sm:%s312] %v333
                %v335 = vld [vmem:[%s319 + $0xa8] sm:%s312]
                %336 = vst [vmem:[%s320 + $0x38] sm:%s312] %v335
                %v337 = vld [vmem:[%s319 + $0xc0] sm:%s312]
                %338 = vst [vmem:[%s320 + $0x40] sm:%s312] %v337
                %v339 = vld [vmem:[%s319 + $0xd8] sm:%s312]
                %340 = vst [vmem:[%s320 + $0x48] sm:%s312] %v339
                %v341 = vld [vmem:[%s319 + $0xf0] sm:%s312]
                %342 = vst [vmem:[%s320 + $0x50] sm:%s312] %v341
                %v343 = vld [vmem:[%s319 + $0x108] sm:%s312]
                %344 = vst [vmem:[%s320 + $0x58] sm:%s312] %v343
                %v345 = vld [vmem:[%s319 + $0x120] sm:%s312]
                %346 = vst [vmem:[%s320 + $0x60] sm:%s312] %v345
                %v347 = vld [vmem:[%s319 + $0x138] sm:%s312]
                %348 = vst [vmem:[%s320 + $0x68] sm:%s312] %v347
                %v349 = vld [vmem:[%s319 + $0x150] sm:%s312]
                %350 = vst [vmem:[%s320 + $0x70] sm:%s312] %v349
                %v351 = vld [vmem:[%s319 + $0x168] sm:%s312]
                %352 = vst [vmem:[%s320 + $0x78] sm:%s312] %v351
              $region41: #{causal_self_attention.4} parent=35 // loop_footer
                %s318 = sadd.s32 1, %s314
              $region42: #{causal_self_attention.4} parent=35 // loop_footer_branch
                %313 = sbr.rel target = $region38
              $region43: #{causal_self_attention.4} parent=35 // loop_exit
                _
            $region36: #{causal_self_attention.4} parent=27 // pred_fallthru
              _
          $region28: #{causal_self_attention.4} parent=23 // pred_fallthru
            _
          %397 = vnop
        $region24: #{causal_self_attention.4} parent=19 // pred_fallthru
          _
        // Predicated region
        $region59: #{causal_self_attention.4} parent=19 // pred_check
          %p398 = pneg %p83
        $region60: #{causal_self_attention.4} parent=19 // pred_check_branch
          %400 = sbr.rel (%p398) target = $region62
        $region61: #{causal_self_attention.4} parent=19 // pred_region
          %s401 = sand.u32 %s73, 1
          %s402 = sand.u32 %s73, 1
          %s403 = smul.addr %s402, 128
          %s404 = scalar_lea.vmem [#allocation6], %s403
          %s405 = smul.u32 16, %s23
          %s406 = smul.addr %s405, 3
          %s407 = sadd.s32 1, %s406
          %s408 = smul.addr %s21, 96
          %s409 = sadd.s32 %s407, %s408
          %s410 = smul.addr %s409, 8
          %s411 = scalar_lea.vmem %s1, %s410
          // Predicated region
          $region63: #{causal_self_attention.4} parent=61 // pred_check
            _
          $region64: #{causal_self_attention.4} parent=61 // pred_check_branch
            %413 = sbr.rel (0) target = $region66
          $region65: #{causal_self_attention.4} parent=61 // pred_region
            // Predicated region
            $region67: #{causal_self_attention.4} parent=65 // pred_check
              _
            $region68: #{causal_self_attention.4} parent=65 // pred_check_branch
              %415 = sbr.rel (0) target = $region70
            $region69: #{causal_self_attention.4} parent=65 // pred_region
              // Predicated region
              $region82: #{causal_self_attention.4} parent=69 // pred_check
                _
              $region83: #{causal_self_attention.4} parent=69 // pred_check_branch
                %461 = sbr.rel (0) target = $region85
              $region84: #{causal_self_attention.4} parent=69 // pred_region
                loop: start=0, step=1, limit=1
                $region86: #{causal_self_attention.4} parent=84 // loop_pre_header
                  _
                $region87: #{causal_self_attention.4} parent=84 // loop_header
                  %s463 = sphi 0, %s467
                  %p464 = scmp.ge.s32.totalorder %s463, 1
                  %s468 = sphi %s411, %s411
                  %s469 = sphi %s404, %s404
                $region88: #{causal_self_attention.4} parent=84 // loop_header_branch
                  %466 = sbr.rel (%p464) target = $region92
                $region89: #{causal_self_attention.4} parent=84 // loop_body
                  %v470 = vld [vmem:[%s468] sm:$0xff]
                  %471 = vst [vmem:[%s469] sm:$0xff] %v470
                  %v472 = vld [vmem:[%s468 + $0x18] sm:$0xff]
                  %473 = vst [vmem:[%s469 + $0x8] sm:$0xff] %v472
                  %v474 = vld [vmem:[%s468 + $0x30] sm:$0xff]
                  %475 = vst [vmem:[%s469 + $0x10] sm:$0xff] %v474
                  %v476 = vld [vmem:[%s468 + $0x48] sm:$0xff]
                  %477 = vst [vmem:[%s469 + $0x18] sm:$0xff] %v476
                  %v478 = vld [vmem:[%s468 + $0x60] sm:$0xff]
                  %479 = vst [vmem:[%s469 + $0x20] sm:$0xff] %v478
                  %v480 = vld [vmem:[%s468 + $0x78] sm:$0xff]
                  %481 = vst [vmem:[%s469 + $0x28] sm:$0xff] %v480
                  %v482 = vld [vmem:[%s468 + $0x90] sm:$0xff]
                  %483 = vst [vmem:[%s469 + $0x30] sm:$0xff] %v482
                  %v484 = vld [vmem:[%s468 + $0xa8] sm:$0xff]
                  %485 = vst [vmem:[%s469 + $0x38] sm:$0xff] %v484
                  %v486 = vld [vmem:[%s468 + $0xc0] sm:$0xff]
                  %487 = vst [vmem:[%s469 + $0x40] sm:$0xff] %v486
                  %v488 = vld [vmem:[%s468 + $0xd8] sm:$0xff]
                  %489 = vst [vmem:[%s469 + $0x48] sm:$0xff] %v488
                  %v490 = vld [vmem:[%s468 + $0xf0] sm:$0xff]
                  %491 = vst [vmem:[%s469 + $0x50] sm:$0xff] %v490
                  %v492 = vld [vmem:[%s468 + $0x108] sm:$0xff]
                  %493 = vst [vmem:[%s469 + $0x58] sm:$0xff] %v492
                  %v494 = vld [vmem:[%s468 + $0x120] sm:$0xff]
                  %495 = vst [vmem:[%s469 + $0x60] sm:$0xff] %v494
                  %v496 = vld [vmem:[%s468 + $0x138] sm:$0xff]
                  %497 = vst [vmem:[%s469 + $0x68] sm:$0xff] %v496
                  %v498 = vld [vmem:[%s468 + $0x150] sm:$0xff]
                  %499 = vst [vmem:[%s469 + $0x70] sm:$0xff] %v498
                  %v500 = vld [vmem:[%s468 + $0x168] sm:$0xff]
                  %501 = vst [vmem:[%s469 + $0x78] sm:$0xff] %v500
                $region90: #{causal_self_attention.4} parent=84 // loop_footer
                  %s467 = sadd.s32 1, %s463
                $region91: #{causal_self_attention.4} parent=84 // loop_footer_branch
                  %462 = sbr.rel target = $region87
                $region92: #{causal_self_attention.4} parent=84 // loop_exit
                  _
              $region85: #{causal_self_attention.4} parent=69 // pred_fallthru
                _
              // Predicated region
              $region93: #{causal_self_attention.4} parent=69 // pred_check
                _
              $region94: #{causal_self_attention.4} parent=69 // pred_check_branch
                %503 = sbr.rel target = $region96
              $region95: #{causal_self_attention.4} parent=69 // pred_region
                _
              $region96: #{causal_self_attention.4} parent=69 // pred_fallthru
                _
            $region70: #{causal_self_attention.4} parent=65 // pred_fallthru
              _
            // Predicated region
            $region71: #{causal_self_attention.4} parent=65 // pred_check
              _
            $region72: #{causal_self_attention.4} parent=65 // pred_check_branch
              %417 = sbr.rel target = $region74
            $region73: #{causal_self_attention.4} parent=65 // pred_region
              %s419 = ssub.s32 256, 1
              loop: start=0, step=1, limit=1
              $region75: #{causal_self_attention.4} parent=73 // loop_pre_header
                _
              $region76: #{causal_self_attention.4} parent=73 // loop_header
                %s421 = sphi 0, %s425
                %p422 = scmp.ge.s32.totalorder %s421, 1
                %s426 = sphi %s411, %s411
                %s427 = sphi %s404, %s404
              $region77: #{causal_self_attention.4} parent=73 // loop_header_branch
                %424 = sbr.rel (%p422) target = $region81
              $region78: #{causal_self_attention.4} parent=73 // loop_body
                %v428 = vld [vmem:[%s426] sm:%s419]
                %429 = vst [vmem:[%s427] sm:%s419] %v428
                %v430 = vld [vmem:[%s426 + $0x18] sm:%s419]
                %431 = vst [vmem:[%s427 + $0x8] sm:%s419] %v430
                %v432 = vld [vmem:[%s426 + $0x30] sm:%s419]
                %433 = vst [vmem:[%s427 + $0x10] sm:%s419] %v432
                %v434 = vld [vmem:[%s426 + $0x48] sm:%s419]
                %435 = vst [vmem:[%s427 + $0x18] sm:%s419] %v434
                %v436 = vld [vmem:[%s426 + $0x60] sm:%s419]
                %437 = vst [vmem:[%s427 + $0x20] sm:%s419] %v436
                %v438 = vld [vmem:[%s426 + $0x78] sm:%s419]
                %439 = vst [vmem:[%s427 + $0x28] sm:%s419] %v438
                %v440 = vld [vmem:[%s426 + $0x90] sm:%s419]
                %441 = vst [vmem:[%s427 + $0x30] sm:%s419] %v440
                %v442 = vld [vmem:[%s426 + $0xa8] sm:%s419]
                %443 = vst [vmem:[%s427 + $0x38] sm:%s419] %v442
                %v444 = vld [vmem:[%s426 + $0xc0] sm:%s419]
                %445 = vst [vmem:[%s427 + $0x40] sm:%s419] %v444
                %v446 = vld [vmem:[%s426 + $0xd8] sm:%s419]
                %447 = vst [vmem:[%s427 + $0x48] sm:%s419] %v446
                %v448 = vld [vmem:[%s426 + $0xf0] sm:%s419]
                %449 = vst [vmem:[%s427 + $0x50] sm:%s419] %v448
                %v450 = vld [vmem:[%s426 + $0x108] sm:%s419]
                %451 = vst [vmem:[%s427 + $0x58] sm:%s419] %v450
                %v452 = vld [vmem:[%s426 + $0x120] sm:%s419]
                %453 = vst [vmem:[%s427 + $0x60] sm:%s419] %v452
                %v454 = vld [vmem:[%s426 + $0x138] sm:%s419]
                %455 = vst [vmem:[%s427 + $0x68] sm:%s419] %v454
                %v456 = vld [vmem:[%s426 + $0x150] sm:%s419]
                %457 = vst [vmem:[%s427 + $0x70] sm:%s419] %v456
                %v458 = vld [vmem:[%s426 + $0x168] sm:%s419]
                %459 = vst [vmem:[%s427 + $0x78] sm:%s419] %v458
              $region79: #{causal_self_attention.4} parent=73 // loop_footer
                %s425 = sadd.s32 1, %s421
              $region80: #{causal_self_attention.4} parent=73 // loop_footer_branch
                %420 = sbr.rel target = $region76
              $region81: #{causal_self_attention.4} parent=73 // loop_exit
                _
            $region74: #{causal_self_attention.4} parent=65 // pred_fallthru
              _
          $region66: #{causal_self_attention.4} parent=61 // pred_fallthru
            _
          %504 = vnop
        $region62: #{causal_self_attention.4} parent=19 // pred_fallthru
          _
        // Predicated region
        $region97: #{causal_self_attention.4} parent=19 // pred_check
          %p505 = pneg %p111
        $region98: #{causal_self_attention.4} parent=19 // pred_check_branch
          %507 = sbr.rel (%p505) target = $region100
        $region99: #{causal_self_attention.4} parent=19 // pred_region
          %s508 = sand.u32 %s101, 1
          %s509 = sand.u32 %s101, 1
          %s510 = smul.addr %s509, 128
          %s511 = scalar_lea.vmem [#allocation7], %s510
          %s512 = smul.u32 16, %s23
          %s513 = smul.addr %s512, 3
          %s514 = sadd.s32 2, %s513
          %s515 = smul.addr %s21, 96
          %s516 = sadd.s32 %s514, %s515
          %s517 = smul.addr %s516, 8
          %s518 = scalar_lea.vmem %s2, %s517
          // Predicated region
          $region101: #{causal_self_attention.4} parent=99 // pred_check
            _
          $region102: #{causal_self_attention.4} parent=99 // pred_check_branch
            %520 = sbr.rel (0) target = $region104
          $region103: #{causal_self_attention.4} parent=99 // pred_region
            // Predicated region
            $region105: #{causal_self_attention.4} parent=103 // pred_check
              _
            $region106: #{causal_self_attention.4} parent=103 // pred_check_branch
              %522 = sbr.rel (0) target = $region108
            $region107: #{causal_self_attention.4} parent=103 // pred_region
              // Predicated region
              $region120: #{causal_self_attention.4} parent=107 // pred_check
                _
              $region121: #{causal_self_attention.4} parent=107 // pred_check_branch
                %568 = sbr.rel (0) target = $region123
              $region122: #{causal_self_attention.4} parent=107 // pred_region
                loop: start=0, step=1, limit=1
                $region124: #{causal_self_attention.4} parent=122 // loop_pre_header
                  _
                $region125: #{causal_self_attention.4} parent=122 // loop_header
                  %s570 = sphi 0, %s574
                  %p571 = scmp.ge.s32.totalorder %s570, 1
                  %s575 = sphi %s518, %s518
                  %s576 = sphi %s511, %s511
                $region126: #{causal_self_attention.4} parent=122 // loop_header_branch
                  %573 = sbr.rel (%p571) target = $region130
                $region127: #{causal_self_attention.4} parent=122 // loop_body
                  %v577 = vld [vmem:[%s575] sm:$0xff]
                  %578 = vst [vmem:[%s576] sm:$0xff] %v577
                  %v579 = vld [vmem:[%s575 + $0x18] sm:$0xff]
                  %580 = vst [vmem:[%s576 + $0x8] sm:$0xff] %v579
                  %v581 = vld [vmem:[%s575 + $0x30] sm:$0xff]
                  %582 = vst [vmem:[%s576 + $0x10] sm:$0xff] %v581
                  %v583 = vld [vmem:[%s575 + $0x48] sm:$0xff]
                  %584 = vst [vmem:[%s576 + $0x18] sm:$0xff] %v583
                  %v585 = vld [vmem:[%s575 + $0x60] sm:$0xff]
                  %586 = vst [vmem:[%s576 + $0x20] sm:$0xff] %v585
                  %v587 = vld [vmem:[%s575 + $0x78] sm:$0xff]
                  %588 = vst [vmem:[%s576 + $0x28] sm:$0xff] %v587
                  %v589 = vld [vmem:[%s575 + $0x90] sm:$0xff]
                  %590 = vst [vmem:[%s576 + $0x30] sm:$0xff] %v589
                  %v591 = vld [vmem:[%s575 + $0xa8] sm:$0xff]
                  %592 = vst [vmem:[%s576 + $0x38] sm:$0xff] %v591
                  %v593 = vld [vmem:[%s575 + $0xc0] sm:$0xff]
                  %594 = vst [vmem:[%s576 + $0x40] sm:$0xff] %v593
                  %v595 = vld [vmem:[%s575 + $0xd8] sm:$0xff]
                  %596 = vst [vmem:[%s576 + $0x48] sm:$0xff] %v595
                  %v597 = vld [vmem:[%s575 + $0xf0] sm:$0xff]
                  %598 = vst [vmem:[%s576 + $0x50] sm:$0xff] %v597
                  %v599 = vld [vmem:[%s575 + $0x108] sm:$0xff]
                  %600 = vst [vmem:[%s576 + $0x58] sm:$0xff] %v599
                  %v601 = vld [vmem:[%s575 + $0x120] sm:$0xff]
                  %602 = vst [vmem:[%s576 + $0x60] sm:$0xff] %v601
                  %v603 = vld [vmem:[%s575 + $0x138] sm:$0xff]
                  %604 = vst [vmem:[%s576 + $0x68] sm:$0xff] %v603
                  %v605 = vld [vmem:[%s575 + $0x150] sm:$0xff]
                  %606 = vst [vmem:[%s576 + $0x70] sm:$0xff] %v605
                  %v607 = vld [vmem:[%s575 + $0x168] sm:$0xff]
                  %608 = vst [vmem:[%s576 + $0x78] sm:$0xff] %v607
                $region128: #{causal_self_attention.4} parent=122 // loop_footer
                  %s574 = sadd.s32 1, %s570
                $region129: #{causal_self_attention.4} parent=122 // loop_footer_branch
                  %569 = sbr.rel target = $region125
                $region130: #{causal_self_attention.4} parent=122 // loop_exit
                  _
              $region123: #{causal_self_attention.4} parent=107 // pred_fallthru
                _
              // Predicated region
              $region131: #{causal_self_attention.4} parent=107 // pred_check
                _
              $region132: #{causal_self_attention.4} parent=107 // pred_check_branch
                %610 = sbr.rel target = $region134
              $region133: #{causal_self_attention.4} parent=107 // pred_region
                _
              $region134: #{causal_self_attention.4} parent=107 // pred_fallthru
                _
            $region108: #{causal_self_attention.4} parent=103 // pred_fallthru
              _
            // Predicated region
            $region109: #{causal_self_attention.4} parent=103 // pred_check
              _
            $region110: #{causal_self_attention.4} parent=103 // pred_check_branch
              %524 = sbr.rel target = $region112
            $region111: #{causal_self_attention.4} parent=103 // pred_region
              %s526 = ssub.s32 256, 1
              loop: start=0, step=1, limit=1
              $region113: #{causal_self_attention.4} parent=111 // loop_pre_header
                _
              $region114: #{causal_self_attention.4} parent=111 // loop_header
                %s528 = sphi 0, %s532
                %p529 = scmp.ge.s32.totalorder %s528, 1
                %s533 = sphi %s518, %s518
                %s534 = sphi %s511, %s511
              $region115: #{causal_self_attention.4} parent=111 // loop_header_branch
                %531 = sbr.rel (%p529) target = $region119
              $region116: #{causal_self_attention.4} parent=111 // loop_body
                %v535 = vld [vmem:[%s533] sm:%s526]
                %536 = vst [vmem:[%s534] sm:%s526] %v535
                %v537 = vld [vmem:[%s533 + $0x18] sm:%s526]
                %538 = vst [vmem:[%s534 + $0x8] sm:%s526] %v537
                %v539 = vld [vmem:[%s533 + $0x30] sm:%s526]
                %540 = vst [vmem:[%s534 + $0x10] sm:%s526] %v539
                %v541 = vld [vmem:[%s533 + $0x48] sm:%s526]
                %542 = vst [vmem:[%s534 + $0x18] sm:%s526] %v541
                %v543 = vld [vmem:[%s533 + $0x60] sm:%s526]
                %544 = vst [vmem:[%s534 + $0x20] sm:%s526] %v543
                %v545 = vld [vmem:[%s533 + $0x78] sm:%s526]
                %546 = vst [vmem:[%s534 + $0x28] sm:%s526] %v545
                %v547 = vld [vmem:[%s533 + $0x90] sm:%s526]
                %548 = vst [vmem:[%s534 + $0x30] sm:%s526] %v547
                %v549 = vld [vmem:[%s533 + $0xa8] sm:%s526]
                %550 = vst [vmem:[%s534 + $0x38] sm:%s526] %v549
                %v551 = vld [vmem:[%s533 + $0xc0] sm:%s526]
                %552 = vst [vmem:[%s534 + $0x40] sm:%s526] %v551
                %v553 = vld [vmem:[%s533 + $0xd8] sm:%s526]
                %554 = vst [vmem:[%s534 + $0x48] sm:%s526] %v553
                %v555 = vld [vmem:[%s533 + $0xf0] sm:%s526]
                %556 = vst [vmem:[%s534 + $0x50] sm:%s526] %v555
                %v557 = vld [vmem:[%s533 + $0x108] sm:%s526]
                %558 = vst [vmem:[%s534 + $0x58] sm:%s526] %v557
                %v559 = vld [vmem:[%s533 + $0x120] sm:%s526]
                %560 = vst [vmem:[%s534 + $0x60] sm:%s526] %v559
                %v561 = vld [vmem:[%s533 + $0x138] sm:%s526]
                %562 = vst [vmem:[%s534 + $0x68] sm:%s526] %v561
                %v563 = vld [vmem:[%s533 + $0x150] sm:%s526]
                %564 = vst [vmem:[%s534 + $0x70] sm:%s526] %v563
                %v565 = vld [vmem:[%s533 + $0x168] sm:%s526]
                %566 = vst [vmem:[%s534 + $0x78] sm:%s526] %v565
              $region117: #{causal_self_attention.4} parent=111 // loop_footer
                %s532 = sadd.s32 1, %s528
              $region118: #{causal_self_attention.4} parent=111 // loop_footer_branch
                %527 = sbr.rel target = $region114
              $region119: #{causal_self_attention.4} parent=111 // loop_exit
                _
            $region112: #{causal_self_attention.4} parent=103 // pred_fallthru
              _
          $region104: #{causal_self_attention.4} parent=99 // pred_fallthru
            _
          %611 = vnop
        $region100: #{causal_self_attention.4} parent=19 // pred_fallthru
          _
        // Predicated region
        $region135: #{causal_self_attention.4} parent=19 // pred_check
          %p612 = pneg %p137
        $region136: #{causal_self_attention.4} parent=19 // pred_check_branch
          %614 = sbr.rel (%p612) target = $region138
        $region137: #{causal_self_attention.4} parent=19 // pred_region
          %s615 = smul.u32 16, %s22
          %p616 = scmp.lt.s32.totalorder %s615, 31
          %s617 = scalar_select %p616, %s615, 31
          %s618 = smul.addr %s617, 8
          %s619 = scalar_lea.vmem %s3, %s618
          %s620 = smul.u32 16, %s22
        $region138: #{causal_self_attention.4} parent=19 // pred_fallthru
          _
        // Predicated region
        $region139: #{causal_self_attention.4} parent=19 // pred_check
          %p621 = pneg %p163
        $region140: #{causal_self_attention.4} parent=19 // pred_check_branch
          %623 = sbr.rel (%p621) target = $region142
        $region141: #{causal_self_attention.4} parent=19 // pred_region
          %s624 = smul.u32 16, %s22
          %p625 = scmp.lt.s32.totalorder %s624, 31
          %s626 = scalar_select %p625, %s624, 31
          %s627 = smul.addr %s626, 8
          %s628 = scalar_lea.vmem %s4, %s627
          %s629 = smul.u32 16, %s22
        $region142: #{causal_self_attention.4} parent=19 // pred_fallthru
          _
        // Predicated region
        $region143: #{causal_self_attention.4} parent=19 // pred_check
          %p630 = pneg %p189
        $region144: #{causal_self_attention.4} parent=19 // pred_check_branch
          %632 = sbr.rel (%p630) target = $region146
        $region145: #{causal_self_attention.4} parent=19 // pred_region
          %s633 = smul.u32 16, %s23
          %p634 = scmp.lt.s32.totalorder %s633, 31
          %s635 = scalar_select %p634, %s633, 31
          %s636 = smul.addr %s635, 8
          %s637 = scalar_lea.vmem %s5, %s636
          %s638 = smul.u32 16, %s23
        $region146: #{causal_self_attention.4} parent=19 // pred_fallthru
          _
        // Predicated region
        $region147: #{causal_self_attention.4} parent=19 // pred_check
          %p639 = pneg %p215
        $region148: #{causal_self_attention.4} parent=19 // pred_check_branch
          %641 = sbr.rel (%p639) target = $region150
        $region149: #{causal_self_attention.4} parent=19 // pred_region
          %s642 = smul.u32 16, %s23
          %p643 = scmp.lt.s32.totalorder %s642, 31
          %s644 = scalar_select %p643, %s642, 31
          %s645 = smul.addr %s644, 8
          %s646 = scalar_lea.vmem %s6, %s645
          %s647 = smul.u32 16, %s23
        $region150: #{causal_self_attention.4} parent=19 // pred_fallthru
          _
      $region20: #{causal_self_attention.4} parent=5 // pred_fallthru
        _
      %p648 = scmp.le.s32.totalorder 1, %s14
      %p649 = scmp.lt.s32.totalorder %s14, 9
      %p650 = pnand %p648, %p649
      %p651 = pneg %p650
      // Predicated region
      $region151: #{causal_self_attention.4} parent=5 // pred_check
        _
      $region152: #{causal_self_attention.4} parent=5 // pred_check_branch
        %653 = sbr.rel (%p650) target = $region154
      $region153: #{causal_self_attention.4} parent=5 // pred_region
        %s654 = ssub.s32 %s14, 1
        %s655 = sand.u32 %s48, 1
        %s656 = sand.u32 %s48, 1
        %s657 = smul.addr %s656, 128
        %s658 = scalar_lea.vmem [#allocation5], %s657
        // Predicated region
        $region155: #{causal_self_attention.4} parent=153 // pred_check
          %p659 = pneg %p61
        $region156: #{causal_self_attention.4} parent=153 // pred_check_branch
          %661 = sbr.rel (%p659) target = $region158
        $region157: #{causal_self_attention.4} parent=153 // pred_region
          _
        $region158: #{causal_self_attention.4} parent=153 // pred_fallthru
          _
        %s662 = sand.u32 %s76, 1
        %s663 = sand.u32 %s76, 1
        %s664 = smul.addr %s663, 128
        %s665 = scalar_lea.vmem [#allocation6], %s664
        // Predicated region
        $region159: #{causal_self_attention.4} parent=153 // pred_check
          %p666 = pneg %p89
        $region160: #{causal_self_attention.4} parent=153 // pred_check_branch
          %668 = sbr.rel (%p666) target = $region162
        $region161: #{causal_self_attention.4} parent=153 // pred_region
          _
        $region162: #{causal_self_attention.4} parent=153 // pred_fallthru
          _
        %s669 = sand.u32 %s104, 1
        %s670 = sand.u32 %s104, 1
        %s671 = smul.addr %s670, 128
        %s672 = scalar_lea.vmem [#allocation7], %s671
        // Predicated region
        $region163: #{causal_self_attention.4} parent=153 // pred_check
          %p673 = pneg %p117
        $region164: #{causal_self_attention.4} parent=153 // pred_check_branch
          %675 = sbr.rel (%p673) target = $region166
        $region165: #{causal_self_attention.4} parent=153 // pred_region
          _
        $region166: #{causal_self_attention.4} parent=153 // pred_fallthru
          _
        %s676 = sand.u32 %s48, 1
        %s677 = sand.u32 %s48, 1
        %s678 = smul.addr %s677, 128
        %s679 = scalar_lea.vmem [#allocation5], %s678
        %p680 = pneg %p61
        %p681 = pneg %p58
        %s682 = sand.u32 %s76, 1
        %s683 = sand.u32 %s76, 1
        %s684 = smul.addr %s683, 128
        %s685 = scalar_lea.vmem [#allocation6], %s684
        %p686 = pneg %p89
        %p687 = pneg %p86
        %s688 = sand.u32 %s104, 1
        %s689 = sand.u32 %s104, 1
        %s690 = smul.addr %s689, 128
        %s691 = scalar_lea.vmem [#allocation7], %s690
        %p692 = pneg %p117
        %p693 = pneg %p114
        %s694 = smul.u32 16, %s25
        %p695 = scmp.lt.s32.totalorder %s694, 31
        %s696 = scalar_select %p695, %s694, 31
        %s697 = smul.addr %s696, 8
        %s698 = scalar_lea.vmem %s3, %s697
        %p699 = pneg %p143
        %p700 = pneg %p140
        %s701 = smul.u32 16, %s25
        %p702 = scmp.lt.s32.totalorder %s701, 31
        %s703 = scalar_select %p702, %s701, 31
        %s704 = smul.addr %s703, 8
        %s705 = scalar_lea.vmem %s4, %s704
        %p706 = pneg %p169
        %p707 = pneg %p166
        %s708 = smul.u32 16, %s26
        %p709 = scmp.lt.s32.totalorder %s708, 31
        %s710 = scalar_select %p709, %s708, 31
        %s711 = smul.addr %s710, 8
        %s712 = scalar_lea.vmem %s5, %s711
        %p713 = pneg %p195
        %p714 = pneg %p192
        %s715 = smul.u32 16, %s26
        %p716 = scmp.lt.s32.totalorder %s715, 31
        %s717 = scalar_select %p716, %s715, 31
        %s718 = smul.addr %s717, 8
        %s719 = scalar_lea.vmem %s6, %s718
        %p720 = pneg %p221
        %p721 = pneg %p218
        %p722 = pneg %p242
        %p723 = pneg %p239
        %p724 = pneg %p270
        %p725 = pneg %p267
        %s726 = smul.u32 16, %s25
        %p727 = scmp.lt.s32.totalorder %s24, 1
        %s728 = scalar_select %p727, %s24, 1
        %p729 = scmp.lt.s32.totalorder %s726, 31
        %s730 = scalar_select %p729, %s726, 31
        %s731 = smul.addr %s728, 32
        %s732 = sadd.s32 %s730, %s731
        %s733 = smul.addr %s732, 8
        %s734 = scalar_lea.vmem %s8, %s733
        %s735 = smul.u32 16, %s25
        %s736 = smul.u32 16, %s26
        %s737 = smul.u32 16, %s26
        %s738 = smul.u32 16, %s25
        %p739 = scmp.lt.s32.totalorder %s738, 31
        %s740 = scalar_select %p739, %s738, 31
        %s741 = smul.addr %s740, 8
        %s742 = scalar_lea.vmem %s3, %s741
        %s743 = smul.u32 16, %s25
        %s744 = smul.u32 16, %s25
        %p745 = scmp.lt.s32.totalorder %s744, 31
        %s746 = scalar_select %p745, %s744, 31
        %s747 = smul.addr %s746, 8
        %s748 = scalar_lea.vmem %s4, %s747
        %s749 = smul.u32 16, %s25
        %s750 = smul.u32 16, %s26
        %p751 = scmp.lt.s32.totalorder %s750, 31
        %s752 = scalar_select %p751, %s750, 31
        %s753 = smul.addr %s752, 8
        %s754 = scalar_lea.vmem %s5, %s753
        %s755 = smul.u32 16, %s26
        %s756 = smul.u32 16, %s26
        %p757 = scmp.lt.s32.totalorder %s756, 31
        %s758 = scalar_select %p757, %s756, 31
        %s759 = smul.addr %s758, 8
        %s760 = scalar_lea.vmem %s6, %s759
        %s761 = smul.u32 16, %s26
        %s762 = smul.u32 16, %s25
        %p763 = scmp.lt.s32.totalorder %s24, 1
        %s764 = scalar_select %p763, %s24, 1
        %p765 = scmp.lt.s32.totalorder %s762, 31
        %s766 = scalar_select %p765, %s762, 31
        %s767 = smul.addr %s764, 32
        %s768 = sadd.s32 %s766, %s767
        %s769 = smul.addr %s768, 8
        %s770 = scalar_lea.vmem %s8, %s769
        %s771 = smul.u32 16, %s25
        %p772 = scmp.eq.s32.totalorder %s26, 0
        // Predicated region
        $region167: #{causal_self_attention.4} parent=153 // pred_check
          %p773 = pneg %p772
        $region168: #{causal_self_attention.4} parent=153 // pred_check_branch
          %775 = sbr.rel (%p773) target = $region170
        $region169: #{causal_self_attention.4} parent=153 // pred_region
          %vm776 = vcmask 7168
          %777 = vst.msk [vmem:[#allocation2] sm:$0xff] %vm776, -inf
          %778 = vst.msk [vmem:[#allocation2 + $0x8] sm:$0xff] %vm776, -inf
          %779 = vst.msk [vmem:[#allocation2 + $0x10] sm:$0xff] %vm776, -inf
          %780 = vst.msk [vmem:[#allocation2 + $0x18] sm:$0xff] %vm776, -inf
          %781 = vst.msk [vmem:[#allocation2 + $0x20] sm:$0xff] %vm776, -inf
          %782 = vst.msk [vmem:[#allocation2 + $0x28] sm:$0xff] %vm776, -inf
          %783 = vst.msk [vmem:[#allocation2 + $0x30] sm:$0xff] %vm776, -inf
          %784 = vst.msk [vmem:[#allocation2 + $0x38] sm:$0xff] %vm776, -inf
          %785 = vst.msk [vmem:[#allocation2 + $0x40] sm:$0xff] %vm776, -inf
          %786 = vst.msk [vmem:[#allocation2 + $0x48] sm:$0xff] %vm776, -inf
          %787 = vst.msk [vmem:[#allocation2 + $0x50] sm:$0xff] %vm776, -inf
          %788 = vst.msk [vmem:[#allocation2 + $0x58] sm:$0xff] %vm776, -inf
          %789 = vst.msk [vmem:[#allocation2 + $0x60] sm:$0xff] %vm776, -inf
          %790 = vst.msk [vmem:[#allocation2 + $0x68] sm:$0xff] %vm776, -inf
          %791 = vst.msk [vmem:[#allocation2 + $0x70] sm:$0xff] %vm776, -inf
          %792 = vst.msk [vmem:[#allocation2 + $0x78] sm:$0xff] %vm776, -inf
          %793 = vst.msk [vmem:[#allocation2 + $0x80] sm:$0xff] %vm776, -inf
          %794 = vst.msk [vmem:[#allocation2 + $0x88] sm:$0xff] %vm776, -inf
          %795 = vst.msk [vmem:[#allocation2 + $0x90] sm:$0xff] %vm776, -inf
          %796 = vst.msk [vmem:[#allocation2 + $0x98] sm:$0xff] %vm776, -inf
          %797 = vst.msk [vmem:[#allocation2 + $0xa0] sm:$0xff] %vm776, -inf
          %798 = vst.msk [vmem:[#allocation2 + $0xa8] sm:$0xff] %vm776, -inf
          %799 = vst.msk [vmem:[#allocation2 + $0xb0] sm:$0xff] %vm776, -inf
          %800 = vst.msk [vmem:[#allocation2 + $0xb8] sm:$0xff] %vm776, -inf
          %801 = vst.msk [vmem:[#allocation2 + $0xc0] sm:$0xff] %vm776, -inf
          %802 = vst.msk [vmem:[#allocation2 + $0xc8] sm:$0xff] %vm776, -inf
          %803 = vst.msk [vmem:[#allocation2 + $0xd0] sm:$0xff] %vm776, -inf
          %804 = vst.msk [vmem:[#allocation2 + $0xd8] sm:$0xff] %vm776, -inf
          %805 = vst.msk [vmem:[#allocation2 + $0xe0] sm:$0xff] %vm776, -inf
          %806 = vst.msk [vmem:[#allocation2 + $0xe8] sm:$0xff] %vm776, -inf
          %807 = vst.msk [vmem:[#allocation2 + $0xf0] sm:$0xff] %vm776, -inf
          %808 = vst.msk [vmem:[#allocation2 + $0xf8] sm:$0xff] %vm776, -inf
          %809 = vst.msk [vmem:[#allocation2 + $0x100] sm:$0xff] %vm776, -inf
          %810 = vst.msk [vmem:[#allocation2 + $0x108] sm:$0xff] %vm776, -inf
          %811 = vst.msk [vmem:[#allocation2 + $0x110] sm:$0xff] %vm776, -inf
          %812 = vst.msk [vmem:[#allocation2 + $0x118] sm:$0xff] %vm776, -inf
          %813 = vst.msk [vmem:[#allocation2 + $0x120] sm:$0xff] %vm776, -inf
          %814 = vst.msk [vmem:[#allocation2 + $0x128] sm:$0xff] %vm776, -inf
          %815 = vst.msk [vmem:[#allocation2 + $0x130] sm:$0xff] %vm776, -inf
          %816 = vst.msk [vmem:[#allocation2 + $0x138] sm:$0xff] %vm776, -inf
          %817 = vst.msk [vmem:[#allocation2 + $0x140] sm:$0xff] %vm776, -inf
          %818 = vst.msk [vmem:[#allocation2 + $0x148] sm:$0xff] %vm776, -inf
          %819 = vst.msk [vmem:[#allocation2 + $0x150] sm:$0xff] %vm776, -inf
          %820 = vst.msk [vmem:[#allocation2 + $0x158] sm:$0xff] %vm776, -inf
          %821 = vst.msk [vmem:[#allocation2 + $0x160] sm:$0xff] %vm776, -inf
          %822 = vst.msk [vmem:[#allocation2 + $0x168] sm:$0xff] %vm776, -inf
          %823 = vst.msk [vmem:[#allocation2 + $0x170] sm:$0xff] %vm776, -inf
          %824 = vst.msk [vmem:[#allocation2 + $0x178] sm:$0xff] %vm776, -inf
          %825 = vst.msk [vmem:[#allocation2 + $0x180] sm:$0xff] %vm776, -inf
          %826 = vst.msk [vmem:[#allocation2 + $0x188] sm:$0xff] %vm776, -inf
          %827 = vst.msk [vmem:[#allocation2 + $0x190] sm:$0xff] %vm776, -inf
          %828 = vst.msk [vmem:[#allocation2 + $0x198] sm:$0xff] %vm776, -inf
          %829 = vst.msk [vmem:[#allocation2 + $0x1a0] sm:$0xff] %vm776, -inf
          %830 = vst.msk [vmem:[#allocation2 + $0x1a8] sm:$0xff] %vm776, -inf
          %831 = vst.msk [vmem:[#allocation2 + $0x1b0] sm:$0xff] %vm776, -inf
          %832 = vst.msk [vmem:[#allocation2 + $0x1b8] sm:$0xff] %vm776, -inf
          %833 = vst.msk [vmem:[#allocation2 + $0x1c0] sm:$0xff] %vm776, -inf
          %834 = vst.msk [vmem:[#allocation2 + $0x1c8] sm:$0xff] %vm776, -inf
          %835 = vst.msk [vmem:[#allocation2 + $0x1d0] sm:$0xff] %vm776, -inf
          %836 = vst.msk [vmem:[#allocation2 + $0x1d8] sm:$0xff] %vm776, -inf
          %837 = vst.msk [vmem:[#allocation2 + $0x1e0] sm:$0xff] %vm776, -inf
          %838 = vst.msk [vmem:[#allocation2 + $0x1e8] sm:$0xff] %vm776, -inf
          %839 = vst.msk [vmem:[#allocation2 + $0x1f0] sm:$0xff] %vm776, -inf
          %840 = vst.msk [vmem:[#allocation2 + $0x1f8] sm:$0xff] %vm776, -inf
          %841 = vst.msk [vmem:[#allocation3] sm:$0xff] %vm776, 0.0
          %842 = vst.msk [vmem:[#allocation3 + $0x8] sm:$0xff] %vm776, 0.0
          %843 = vst.msk [vmem:[#allocation3 + $0x10] sm:$0xff] %vm776, 0.0
          %844 = vst.msk [vmem:[#allocation3 + $0x18] sm:$0xff] %vm776, 0.0
          %845 = vst.msk [vmem:[#allocation3 + $0x20] sm:$0xff] %vm776, 0.0
          %846 = vst.msk [vmem:[#allocation3 + $0x28] sm:$0xff] %vm776, 0.0
          %847 = vst.msk [vmem:[#allocation3 + $0x30] sm:$0xff] %vm776, 0.0
          %848 = vst.msk [vmem:[#allocation3 + $0x38] sm:$0xff] %vm776, 0.0
          %849 = vst.msk [vmem:[#allocation3 + $0x40] sm:$0xff] %vm776, 0.0
          %850 = vst.msk [vmem:[#allocation3 + $0x48] sm:$0xff] %vm776, 0.0
          %851 = vst.msk [vmem:[#allocation3 + $0x50] sm:$0xff] %vm776, 0.0
          %852 = vst.msk [vmem:[#allocation3 + $0x58] sm:$0xff] %vm776, 0.0
          %853 = vst.msk [vmem:[#allocation3 + $0x60] sm:$0xff] %vm776, 0.0
          %854 = vst.msk [vmem:[#allocation3 + $0x68] sm:$0xff] %vm776, 0.0
          %855 = vst.msk [vmem:[#allocation3 + $0x70] sm:$0xff] %vm776, 0.0
          %856 = vst.msk [vmem:[#allocation3 + $0x78] sm:$0xff] %vm776, 0.0
          %857 = vst.msk [vmem:[#allocation3 + $0x80] sm:$0xff] %vm776, 0.0
          %858 = vst.msk [vmem:[#allocation3 + $0x88] sm:$0xff] %vm776, 0.0
          %859 = vst.msk [vmem:[#allocation3 + $0x90] sm:$0xff] %vm776, 0.0
          %860 = vst.msk [vmem:[#allocation3 + $0x98] sm:$0xff] %vm776, 0.0
          %861 = vst.msk [vmem:[#allocation3 + $0xa0] sm:$0xff] %vm776, 0.0
          %862 = vst.msk [vmem:[#allocation3 + $0xa8] sm:$0xff] %vm776, 0.0
          %863 = vst.msk [vmem:[#allocation3 + $0xb0] sm:$0xff] %vm776, 0.0
          %864 = vst.msk [vmem:[#allocation3 + $0xb8] sm:$0xff] %vm776, 0.0
          %865 = vst.msk [vmem:[#allocation3 + $0xc0] sm:$0xff] %vm776, 0.0
          %866 = vst.msk [vmem:[#allocation3 + $0xc8] sm:$0xff] %vm776, 0.0
          %867 = vst.msk [vmem:[#allocation3 + $0xd0] sm:$0xff] %vm776, 0.0
          %868 = vst.msk [vmem:[#allocation3 + $0xd8] sm:$0xff] %vm776, 0.0
          %869 = vst.msk [vmem:[#allocation3 + $0xe0] sm:$0xff] %vm776, 0.0
          %870 = vst.msk [vmem:[#allocation3 + $0xe8] sm:$0xff] %vm776, 0.0
          %871 = vst.msk [vmem:[#allocation3 + $0xf0] sm:$0xff] %vm776, 0.0
          %872 = vst.msk [vmem:[#allocation3 + $0xf8] sm:$0xff] %vm776, 0.0
          %873 = vst.msk [vmem:[#allocation3 + $0x100] sm:$0xff] %vm776, 0.0
          %874 = vst.msk [vmem:[#allocation3 + $0x108] sm:$0xff] %vm776, 0.0
          %875 = vst.msk [vmem:[#allocation3 + $0x110] sm:$0xff] %vm776, 0.0
          %876 = vst.msk [vmem:[#allocation3 + $0x118] sm:$0xff] %vm776, 0.0
          %877 = vst.msk [vmem:[#allocation3 + $0x120] sm:$0xff] %vm776, 0.0
          %878 = vst.msk [vmem:[#allocation3 + $0x128] sm:$0xff] %vm776, 0.0
          %879 = vst.msk [vmem:[#allocation3 + $0x130] sm:$0xff] %vm776, 0.0
          %880 = vst.msk [vmem:[#allocation3 + $0x138] sm:$0xff] %vm776, 0.0
          %881 = vst.msk [vmem:[#allocation3 + $0x140] sm:$0xff] %vm776, 0.0
          %882 = vst.msk [vmem:[#allocation3 + $0x148] sm:$0xff] %vm776, 0.0
          %883 = vst.msk [vmem:[#allocation3 + $0x150] sm:$0xff] %vm776, 0.0
          %884 = vst.msk [vmem:[#allocation3 + $0x158] sm:$0xff] %vm776, 0.0
          %885 = vst.msk [vmem:[#allocation3 + $0x160] sm:$0xff] %vm776, 0.0
          %886 = vst.msk [vmem:[#allocation3 + $0x168] sm:$0xff] %vm776, 0.0
          %887 = vst.msk [vmem:[#allocation3 + $0x170] sm:$0xff] %vm776, 0.0
          %888 = vst.msk [vmem:[#allocation3 + $0x178] sm:$0xff] %vm776, 0.0
          %889 = vst.msk [vmem:[#allocation3 + $0x180] sm:$0xff] %vm776, 0.0
          %890 = vst.msk [vmem:[#allocation3 + $0x188] sm:$0xff] %vm776, 0.0
          %891 = vst.msk [vmem:[#allocation3 + $0x190] sm:$0xff] %vm776, 0.0
          %892 = vst.msk [vmem:[#allocation3 + $0x198] sm:$0xff] %vm776, 0.0
          %893 = vst.msk [vmem:[#allocation3 + $0x1a0] sm:$0xff] %vm776, 0.0
          %894 = vst.msk [vmem:[#allocation3 + $0x1a8] sm:$0xff] %vm776, 0.0
          %895 = vst.msk [vmem:[#allocation3 + $0x1b0] sm:$0xff] %vm776, 0.0
          %896 = vst.msk [vmem:[#allocation3 + $0x1b8] sm:$0xff] %vm776, 0.0
          %897 = vst.msk [vmem:[#allocation3 + $0x1c0] sm:$0xff] %vm776, 0.0
          %898 = vst.msk [vmem:[#allocation3 + $0x1c8] sm:$0xff] %vm776, 0.0
          %899 = vst.msk [vmem:[#allocation3 + $0x1d0] sm:$0xff] %vm776, 0.0
          %900 = vst.msk [vmem:[#allocation3 + $0x1d8] sm:$0xff] %vm776, 0.0
          %901 = vst.msk [vmem:[#allocation3 + $0x1e0] sm:$0xff] %vm776, 0.0
          %902 = vst.msk [vmem:[#allocation3 + $0x1e8] sm:$0xff] %vm776, 0.0
          %903 = vst.msk [vmem:[#allocation3 + $0x1f0] sm:$0xff] %vm776, 0.0
          %904 = vst.msk [vmem:[#allocation3 + $0x1f8] sm:$0xff] %vm776, 0.0
          %905 = vst [vmem:[#allocation4] sm:$0xff] 0.0
          %906 = vst [vmem:[#allocation4 + $0x8] sm:$0xff] 0.0
          %907 = vst [vmem:[#allocation4 + $0x10] sm:$0xff] 0.0
          %908 = vst [vmem:[#allocation4 + $0x18] sm:$0xff] 0.0
          %909 = vst [vmem:[#allocation4 + $0x20] sm:$0xff] 0.0
          %910 = vst [vmem:[#allocation4 + $0x28] sm:$0xff] 0.0
          %911 = vst [vmem:[#allocation4 + $0x30] sm:$0xff] 0.0
          %912 = vst [vmem:[#allocation4 + $0x38] sm:$0xff] 0.0
          %913 = vst [vmem:[#allocation4 + $0x40] sm:$0xff] 0.0
          %914 = vst [vmem:[#allocation4 + $0x48] sm:$0xff] 0.0
          %915 = vst [vmem:[#allocation4 + $0x50] sm:$0xff] 0.0
          %916 = vst [vmem:[#allocation4 + $0x58] sm:$0xff] 0.0
          %917 = vst [vmem:[#allocation4 + $0x60] sm:$0xff] 0.0
          %918 = vst [vmem:[#allocation4 + $0x68] sm:$0xff] 0.0
          %919 = vst [vmem:[#allocation4 + $0x70] sm:$0xff] 0.0
          %920 = vst [vmem:[#allocation4 + $0x78] sm:$0xff] 0.0
        $region170: #{causal_self_attention.4} parent=153 // pred_fallthru
          _
        %s921 = smul.u32 %s26, 128
        %s922 = smul.u32 %s25, 128
        %s923 = sadd.s32 %s922, 127
        %p924 = scmp.le.s32.totalorder %s921, %s923
        // Predicated region
        $region171: #{causal_self_attention.4} parent=153 // pred_check
          %p925 = pneg %p924
        $region172: #{causal_self_attention.4} parent=153 // pred_check_branch
          %927 = sbr.rel (%p925) target = $region174
        $region173: #{causal_self_attention.4} parent=153 // pred_region
          %v928 = vld [vmem:[%s7] sm:$0xff]
          %v929 = vld [vmem:[%s7 + $0x8] sm:$0xff]
          %v930 = vld [vmem:[%s7 + $0x10] sm:$0xff]
          %v931 = vld [vmem:[%s7 + $0x18] sm:$0xff]
          %v932 = vld [vmem:[%s742] sm:$0xff]
          %v933 = vld [vmem:[%s742 + $0x8] sm:$0xff]
          %v934 = vld [vmem:[%s742 + $0x10] sm:$0xff]
          %v935 = vld [vmem:[%s742 + $0x18] sm:$0xff]
          %v936 = vld [vmem:[%s742 + $0x20] sm:$0xff]
          %v937 = vld [vmem:[%s742 + $0x28] sm:$0xff]
          %v938 = vld [vmem:[%s742 + $0x30] sm:$0xff]
          %v939 = vld [vmem:[%s742 + $0x38] sm:$0xff]
          %v940 = vld [vmem:[%s742 + $0x40] sm:$0xff]
          %v941 = vld [vmem:[%s742 + $0x48] sm:$0xff]
          %v942 = vld [vmem:[%s742 + $0x50] sm:$0xff]
          %v943 = vld [vmem:[%s742 + $0x58] sm:$0xff]
          %v944 = vld [vmem:[%s742 + $0x60] sm:$0xff]
          %v945 = vld [vmem:[%s742 + $0x68] sm:$0xff]
          %v946 = vld [vmem:[%s742 + $0x70] sm:$0xff]
          %v947 = vld [vmem:[%s742 + $0x78] sm:$0xff]
          %v948 = vmul.f32 %v932, 0.17677669
          %v949 = vmul.f32 %v933, 0.17677669
          %v950 = vmul.f32 %v934, 0.17677669
          %v951 = vmul.f32 %v935, 0.17677669
          %v952 = vmul.f32 %v936, 0.17677669
          %v953 = vmul.f32 %v937, 0.17677669
          %v954 = vmul.f32 %v938, 0.17677669
          %v955 = vmul.f32 %v939, 0.17677669
          %v956 = vmul.f32 %v940, 0.17677669
          %v957 = vmul.f32 %v941, 0.17677669
          %v958 = vmul.f32 %v942, 0.17677669
          %v959 = vmul.f32 %v943, 0.17677669
          %v960 = vmul.f32 %v944, 0.17677669
          %v961 = vmul.f32 %v945, 0.17677669
          %v962 = vmul.f32 %v946, 0.17677669
          %v963 = vmul.f32 %v947, 0.17677669
          %v964 = vld [vmem:[%s748] sm:$0xff]
          %v965 = vld [vmem:[%s748 + $0x8] sm:$0xff]
          %v966 = vld [vmem:[%s748 + $0x10] sm:$0xff]
          %v967 = vld [vmem:[%s748 + $0x18] sm:$0xff]
          %v968 = vld [vmem:[%s748 + $0x20] sm:$0xff]
          %v969 = vld [vmem:[%s748 + $0x28] sm:$0xff]
          %v970 = vld [vmem:[%s748 + $0x30] sm:$0xff]
          %v971 = vld [vmem:[%s748 + $0x38] sm:$0xff]
          %v972 = vld [vmem:[%s748 + $0x40] sm:$0xff]
          %v973 = vld [vmem:[%s748 + $0x48] sm:$0xff]
          %v974 = vld [vmem:[%s748 + $0x50] sm:$0xff]
          %v975 = vld [vmem:[%s748 + $0x58] sm:$0xff]
          %v976 = vld [vmem:[%s748 + $0x60] sm:$0xff]
          %v977 = vld [vmem:[%s748 + $0x68] sm:$0xff]
          %v978 = vld [vmem:[%s748 + $0x70] sm:$0xff]
          %v979 = vld [vmem:[%s748 + $0x78] sm:$0xff]
          %v980 = vmul.f32 %v964, 0.17677669
          %v981 = vmul.f32 %v965, 0.17677669
          %v982 = vmul.f32 %v966, 0.17677669
          %v983 = vmul.f32 %v967, 0.17677669
          %v984 = vmul.f32 %v968, 0.17677669
          %v985 = vmul.f32 %v969, 0.17677669
          %v986 = vmul.f32 %v970, 0.17677669
          %v987 = vmul.f32 %v971, 0.17677669
          %v988 = vmul.f32 %v972, 0.17677669
          %v989 = vmul.f32 %v973, 0.17677669
          %v990 = vmul.f32 %v974, 0.17677669
          %v991 = vmul.f32 %v975, 0.17677669
          %v992 = vmul.f32 %v976, 0.17677669
          %v993 = vmul.f32 %v977, 0.17677669
          %v994 = vmul.f32 %v978, 0.17677669
          %v995 = vmul.f32 %v979, 0.17677669
          %v996 = vld [vmem:[%s754] sm:$0xff]
          %v997 = vld [vmem:[%s754 + $0x8] sm:$0xff]
          %v998 = vld [vmem:[%s754 + $0x10] sm:$0xff]
          %v999 = vld [vmem:[%s754 + $0x18] sm:$0xff]
          %v1000 = vld [vmem:[%s754 + $0x20] sm:$0xff]
          %v1001 = vld [vmem:[%s754 + $0x28] sm:$0xff]
          %v1002 = vld [vmem:[%s754 + $0x30] sm:$0xff]
          %v1003 = vld [vmem:[%s754 + $0x38] sm:$0xff]
          %v1004 = vld [vmem:[%s754 + $0x40] sm:$0xff]
          %v1005 = vld [vmem:[%s754 + $0x48] sm:$0xff]
          %v1006 = vld [vmem:[%s754 + $0x50] sm:$0xff]
          %v1007 = vld [vmem:[%s754 + $0x58] sm:$0xff]
          %v1008 = vld [vmem:[%s754 + $0x60] sm:$0xff]
          %v1009 = vld [vmem:[%s754 + $0x68] sm:$0xff]
          %v1010 = vld [vmem:[%s754 + $0x70] sm:$0xff]
          %v1011 = vld [vmem:[%s754 + $0x78] sm:$0xff]
          %v1012 = vld [vmem:[%s760] sm:$0xff]
          %v1013 = vld [vmem:[%s760 + $0x8] sm:$0xff]
          %v1014 = vld [vmem:[%s760 + $0x10] sm:$0xff]
          %v1015 = vld [vmem:[%s760 + $0x18] sm:$0xff]
          %v1016 = vld [vmem:[%s760 + $0x20] sm:$0xff]
          %v1017 = vld [vmem:[%s760 + $0x28] sm:$0xff]
          %v1018 = vld [vmem:[%s760 + $0x30] sm:$0xff]
          %v1019 = vld [vmem:[%s760 + $0x38] sm:$0xff]
          %v1020 = vld [vmem:[%s760 + $0x40] sm:$0xff]
          %v1021 = vld [vmem:[%s760 + $0x48] sm:$0xff]
          %v1022 = vld [vmem:[%s760 + $0x50] sm:$0xff]
          %v1023 = vld [vmem:[%s760 + $0x58] sm:$0xff]
          %v1024 = vld [vmem:[%s760 + $0x60] sm:$0xff]
          %v1025 = vld [vmem:[%s760 + $0x68] sm:$0xff]
          %v1026 = vld [vmem:[%s760 + $0x70] sm:$0xff]
          %v1027 = vld [vmem:[%s760 + $0x78] sm:$0xff]
          %v1028 = vld [vmem:[%s658] sm:$0xff]
          %v1029 = vld [vmem:[%s658 + $0x8] sm:$0xff]
          %v1030 = vld [vmem:[%s658 + $0x10] sm:$0xff]
          %v1031 = vld [vmem:[%s658 + $0x18] sm:$0xff]
          %v1032 = vld [vmem:[%s658 + $0x20] sm:$0xff]
          %v1033 = vld [vmem:[%s658 + $0x28] sm:$0xff]
          %v1034 = vld [vmem:[%s658 + $0x30] sm:$0xff]
          %v1035 = vld [vmem:[%s658 + $0x38] sm:$0xff]
          %v1036 = vld [vmem:[%s658 + $0x40] sm:$0xff]
          %v1037 = vld [vmem:[%s658 + $0x48] sm:$0xff]
          %v1038 = vld [vmem:[%s658 + $0x50] sm:$0xff]
          %v1039 = vld [vmem:[%s658 + $0x58] sm:$0xff]
          %v1040 = vld [vmem:[%s658 + $0x60] sm:$0xff]
          %v1041 = vld [vmem:[%s658 + $0x68] sm:$0xff]
          %v1042 = vld [vmem:[%s658 + $0x70] sm:$0xff]
          %v1043 = vld [vmem:[%s658 + $0x78] sm:$0xff]
          %v1044 = vld [vmem:[%s665] sm:$0xff]
          %v1045 = vld [vmem:[%s665 + $0x8] sm:$0xff]
          %v1046 = vld [vmem:[%s665 + $0x10] sm:$0xff]
          %v1047 = vld [vmem:[%s665 + $0x18] sm:$0xff]
          %v1048 = vld [vmem:[%s665 + $0x20] sm:$0xff]
          %v1049 = vld [vmem:[%s665 + $0x28] sm:$0xff]
          %v1050 = vld [vmem:[%s665 + $0x30] sm:$0xff]
          %v1051 = vld [vmem:[%s665 + $0x38] sm:$0xff]
          %v1052 = vld [vmem:[%s665 + $0x40] sm:$0xff]
          %v1053 = vld [vmem:[%s665 + $0x48] sm:$0xff]
          %v1054 = vld [vmem:[%s665 + $0x50] sm:$0xff]
          %v1055 = vld [vmem:[%s665 + $0x58] sm:$0xff]
          %v1056 = vld [vmem:[%s665 + $0x60] sm:$0xff]
          %v1057 = vld [vmem:[%s665 + $0x68] sm:$0xff]
          %v1058 = vld [vmem:[%s665 + $0x70] sm:$0xff]
          %v1059 = vld [vmem:[%s665 + $0x78] sm:$0xff]
          %v1060 = vld [vmem:[%s672] sm:$0xff]
          %v1061 = vld [vmem:[%s672 + $0x8] sm:$0xff]
          %v1062 = vld [vmem:[%s672 + $0x10] sm:$0xff]
          %v1063 = vld [vmem:[%s672 + $0x18] sm:$0xff]
          %v1064 = vld [vmem:[%s672 + $0x20] sm:$0xff]
          %v1065 = vld [vmem:[%s672 + $0x28] sm:$0xff]
          %v1066 = vld [vmem:[%s672 + $0x30] sm:$0xff]
          %v1067 = vld [vmem:[%s672 + $0x38] sm:$0xff]
          %v1068 = vld [vmem:[%s672 + $0x40] sm:$0xff]
          %v1069 = vld [vmem:[%s672 + $0x48] sm:$0xff]
          %v1070 = vld [vmem:[%s672 + $0x50] sm:$0xff]
          %v1071 = vld [vmem:[%s672 + $0x58] sm:$0xff]
          %v1072 = vld [vmem:[%s672 + $0x60] sm:$0xff]
          %v1073 = vld [vmem:[%s672 + $0x68] sm:$0xff]
          %v1074 = vld [vmem:[%s672 + $0x70] sm:$0xff]
          %v1075 = vld [vmem:[%s672 + $0x78] sm:$0xff]
          %v1076 = vlaneseq
          %v1077 = vshrl.u32 %v1076, 7
          %v1078 = vadd.s32 %v1077, 8
          %v1079 = vadd.s32 %v1077, 16
          %v1080 = vadd.s32 %v1077, 24
          %v1081 = vadd.s32 %v1077, 32
          %v1082 = vadd.s32 %v1077, 40
          %v1083 = vadd.s32 %v1077, 48
          %v1084 = vadd.s32 %v1077, 56
          %v1085 = vadd.s32 %v1077, 64
          %v1086 = vadd.s32 %v1077, 72
          %v1087 = vadd.s32 %v1077, 80
          %v1088 = vadd.s32 %v1077, 88
          %v1089 = vadd.s32 %v1077, 96
          %v1090 = vadd.s32 %v1077, 104
          %v1091 = vadd.s32 %v1077, 112
          %v1092 = vadd.s32 %v1077, 120
          %v1093 = vstv %s922
          %v1094 = vadd.s32 %v1093, %v1077
          %v1095 = vadd.s32 %v1093, %v1078
          %v1096 = vadd.s32 %v1093, %v1079
          %v1097 = vadd.s32 %v1093, %v1080
          %v1098 = vadd.s32 %v1093, %v1081
          %v1099 = vadd.s32 %v1093, %v1082
          %v1100 = vadd.s32 %v1093, %v1083
          %v1101 = vadd.s32 %v1093, %v1084
          %v1102 = vadd.s32 %v1093, %v1085
          %v1103 = vadd.s32 %v1093, %v1086
          %v1104 = vadd.s32 %v1093, %v1087
          %v1105 = vadd.s32 %v1093, %v1088
          %v1106 = vadd.s32 %v1093, %v1089
          %v1107 = vadd.s32 %v1093, %v1090
          %v1108 = vadd.s32 %v1093, %v1091
          %v1109 = vadd.s32 %v1093, %v1092
          %v1110 = vlaneseq
          %v1111 = vand.u32 %v1110, 127
          %v1112 = vstv %s921
          %v1113 = vadd.s32 %v1112, %v1111
          %vm1114 = vcmp.ge.s32.totalorder %v1094, %v1113
          %vm1115 = vcmp.ge.s32.totalorder %v1095, %v1113
          %vm1116 = vcmp.ge.s32.totalorder %v1096, %v1113
          %vm1117 = vcmp.ge.s32.totalorder %v1097, %v1113
          %vm1118 = vcmp.ge.s32.totalorder %v1098, %v1113
          %vm1119 = vcmp.ge.s32.totalorder %v1099, %v1113
          %vm1120 = vcmp.ge.s32.totalorder %v1100, %v1113
          %vm1121 = vcmp.ge.s32.totalorder %v1101, %v1113
          %vm1122 = vcmp.ge.s32.totalorder %v1102, %v1113
          %vm1123 = vcmp.ge.s32.totalorder %v1103, %v1113
          %vm1124 = vcmp.ge.s32.totalorder %v1104, %v1113
          %vm1125 = vcmp.ge.s32.totalorder %v1105, %v1113
          %vm1126 = vcmp.ge.s32.totalorder %v1106, %v1113
          %vm1127 = vcmp.ge.s32.totalorder %v1107, %v1113
          %vm1128 = vcmp.ge.s32.totalorder %v1108, %v1113
          %vm1129 = vcmp.ge.s32.totalorder %v1109, %v1113
          %v1130 = vmul.f32 %v1028, %v948
          %v1131 = vmul.f32 %v1029, %v949
          %v1132 = vmul.f32 %v1030, %v950
          %v1133 = vmul.f32 %v1031, %v951
          %v1134 = vmul.f32 %v1032, %v952
          %v1135 = vmul.f32 %v1033, %v953
          %v1136 = vmul.f32 %v1034, %v954
          %v1137 = vmul.f32 %v1035, %v955
          %v1138 = vmul.f32 %v1036, %v956
          %v1139 = vmul.f32 %v1037, %v957
          %v1140 = vmul.f32 %v1038, %v958
          %v1141 = vmul.f32 %v1039, %v959
          %v1142 = vmul.f32 %v1040, %v960
          %v1143 = vmul.f32 %v1041, %v961
          %v1144 = vmul.f32 %v1042, %v962
          %v1145 = vmul.f32 %v1043, %v963
          %vm1146 = vcmask 261120
          %v1148 = vsel %vm1146, %v1028, 0
          %v1151 = vsel %vm1146, %v1029, 0
          %v1154 = vsel %vm1146, %v1030, 0
          %v1157 = vsel %vm1146, %v1031, 0
          %v1160 = vsel %vm1146, %v1032, 0
          %v1163 = vsel %vm1146, %v1033, 0
          %v1166 = vsel %vm1146, %v1034, 0
          %v1169 = vsel %vm1146, %v1035, 0
          %v1172 = vsel %vm1146, %v1036, 0
          %v1175 = vsel %vm1146, %v1037, 0
          %v1178 = vsel %vm1146, %v1038, 0
          %v1181 = vsel %vm1146, %v1039, 0
          %v1184 = vsel %vm1146, %v1040, 0
          %v1187 = vsel %vm1146, %v1041, 0
          %v1190 = vsel %vm1146, %v1042, 0
          %v1193 = vsel %vm1146, %v1043, 0
          %1195 = vmatpush.msra.mxu0 0.0
          %1196 = vmatpush.msra.mxu0 0.0
          %1197 = vmatpush.msra.mxu0 0.0
          %1198 = vmatpush.msra.mxu0 0.0
          %1199 = vmatpush.msra.mxu0 0.0
          %1200 = vmatpush.msra.mxu0 0.0
          %1201 = vmatpush.msra.mxu0 0.0
          %1202 = vmatpush.msra.mxu0 0.0
          %1203 = vmatpush.msra.mxu0 0.0
          %1204 = vmatpush.msra.mxu0 0.0
          %1205 = vmatpush.msra.mxu0 0.0
          %1206 = vmatpush.msra.mxu0 0.0
          %1207 = vmatpush.msra.mxu0 %v931
          %1208 = vmatpush.msra.mxu0 %v930
          %1209 = vmatpush.msra.mxu0 %v929
          %1210 = vmatpush.msra.mxu0 %v928
          %1211 = vmatmul.f32.gmra.mxu0 %v1148
          %v1212 = vpop.f32.mrf.mxu0
          %v1213 = vadd.f32 0.0, %v1212
          %1214 = vmatmul.f32.gmra.mxu0 %v1151
          %v1215 = vpop.f32.mrf.mxu0
          %v1216 = vadd.f32 0.0, %v1215
          %1217 = vmatmul.f32.gmra.mxu0 %v1154
          %v1218 = vpop.f32.mrf.mxu0
          %v1219 = vadd.f32 0.0, %v1218
          %1220 = vmatmul.f32.gmra.mxu0 %v1157
          %v1221 = vpop.f32.mrf.mxu0
          %v1222 = vadd.f32 0.0, %v1221
          %1223 = vmatmul.f32.gmra.mxu0 %v1160
          %v1224 = vpop.f32.mrf.mxu0
          %v1225 = vadd.f32 0.0, %v1224
          %1226 = vmatmul.f32.gmra.mxu0 %v1163
          %v1227 = vpop.f32.mrf.mxu0
          %v1228 = vadd.f32 0.0, %v1227
          %1229 = vmatmul.f32.gmra.mxu0 %v1166
          %v1230 = vpop.f32.mrf.mxu0
          %v1231 = vadd.f32 0.0, %v1230
          %1232 = vmatmul.f32.gmra.mxu0 %v1169
          %v1233 = vpop.f32.mrf.mxu0
          %v1234 = vadd.f32 0.0, %v1233
          %1235 = vmatmul.f32.gmra.mxu0 %v1172
          %v1236 = vpop.f32.mrf.mxu0
          %v1237 = vadd.f32 0.0, %v1236
          %1238 = vmatmul.f32.gmra.mxu0 %v1175
          %v1239 = vpop.f32.mrf.mxu0
          %v1240 = vadd.f32 0.0, %v1239
          %1241 = vmatmul.f32.gmra.mxu0 %v1178
          %v1242 = vpop.f32.mrf.mxu0
          %v1243 = vadd.f32 0.0, %v1242
          %1244 = vmatmul.f32.gmra.mxu0 %v1181
          %v1245 = vpop.f32.mrf.mxu0
          %v1246 = vadd.f32 0.0, %v1245
          %1247 = vmatmul.f32.gmra.mxu0 %v1184
          %v1248 = vpop.f32.mrf.mxu0
          %v1249 = vadd.f32 0.0, %v1248
          %1250 = vmatmul.f32.gmra.mxu0 %v1187
          %v1251 = vpop.f32.mrf.mxu0
          %v1252 = vadd.f32 0.0, %v1251
          %1253 = vmatmul.f32.gmra.mxu0 %v1190
          %v1254 = vpop.f32.mrf.mxu0
          %v1255 = vadd.f32 0.0, %v1254
          %1256 = vmatmul.f32.gmra.mxu0 %v1193
          %v1257 = vpop.f32.mrf.mxu0
          %v1258 = vadd.f32 0.0, %v1257
          %1259 = vdwg.mxu0
          %v1260 = vmul.f32 %v1213, %v980
          %v1261 = vmul.f32 %v1216, %v981
          %v1262 = vmul.f32 %v1219, %v982
          %v1263 = vmul.f32 %v1222, %v983
          %v1264 = vmul.f32 %v1225, %v984
          %v1265 = vmul.f32 %v1228, %v985
          %v1266 = vmul.f32 %v1231, %v986
          %v1267 = vmul.f32 %v1234, %v987
          %v1268 = vmul.f32 %v1237, %v988
          %v1269 = vmul.f32 %v1240, %v989
          %v1270 = vmul.f32 %v1243, %v990
          %v1271 = vmul.f32 %v1246, %v991
          %v1272 = vmul.f32 %v1249, %v992
          %v1273 = vmul.f32 %v1252, %v993
          %v1274 = vmul.f32 %v1255, %v994
          %v1275 = vmul.f32 %v1258, %v995
          %v1276 = vadd.f32 %v1130, %v1260
          %v1277 = vadd.f32 %v1131, %v1261
          %v1278 = vadd.f32 %v1132, %v1262
          %v1279 = vadd.f32 %v1133, %v1263
          %v1280 = vadd.f32 %v1134, %v1264
          %v1281 = vadd.f32 %v1135, %v1265
          %v1282 = vadd.f32 %v1136, %v1266
          %v1283 = vadd.f32 %v1137, %v1267
          %v1284 = vadd.f32 %v1138, %v1268
          %v1285 = vadd.f32 %v1139, %v1269
          %v1286 = vadd.f32 %v1140, %v1270
          %v1287 = vadd.f32 %v1141, %v1271
          %v1288 = vadd.f32 %v1142, %v1272
          %v1289 = vadd.f32 %v1143, %v1273
          %v1290 = vadd.f32 %v1144, %v1274
          %v1291 = vadd.f32 %v1145, %v1275
          %v1292 = vmul.f32 %v1044, %v996
          %v1293 = vmul.f32 %v1045, %v997
          %v1294 = vmul.f32 %v1046, %v998
          %v1295 = vmul.f32 %v1047, %v999
          %v1296 = vmul.f32 %v1048, %v1000
          %v1297 = vmul.f32 %v1049, %v1001
          %v1298 = vmul.f32 %v1050, %v1002
          %v1299 = vmul.f32 %v1051, %v1003
          %v1300 = vmul.f32 %v1052, %v1004
          %v1301 = vmul.f32 %v1053, %v1005
          %v1302 = vmul.f32 %v1054, %v1006
          %v1303 = vmul.f32 %v1055, %v1007
          %v1304 = vmul.f32 %v1056, %v1008
          %v1305 = vmul.f32 %v1057, %v1009
          %v1306 = vmul.f32 %v1058, %v1010
          %v1307 = vmul.f32 %v1059, %v1011
          %v1309 = vsel %vm1146, %v1044, 0
          %v1312 = vsel %vm1146, %v1045, 0
          %v1315 = vsel %vm1146, %v1046, 0
          %v1318 = vsel %vm1146, %v1047, 0
          %v1321 = vsel %vm1146, %v1048, 0
          %v1324 = vsel %vm1146, %v1049, 0
          %v1327 = vsel %vm1146, %v1050, 0
          %v1330 = vsel %vm1146, %v1051, 0
          %v1333 = vsel %vm1146, %v1052, 0
          %v1336 = vsel %vm1146, %v1053, 0
          %v1339 = vsel %vm1146, %v1054, 0
          %v1342 = vsel %vm1146, %v1055, 0
          %v1345 = vsel %vm1146, %v1056, 0
          %v1348 = vsel %vm1146, %v1057, 0
          %v1351 = vsel %vm1146, %v1058, 0
          %v1354 = vsel %vm1146, %v1059, 0
          %1356 = vmatpush.msra.mxu0 0.0
          %1357 = vmatpush.msra.mxu0 0.0
          %1358 = vmatpush.msra.mxu0 0.0
          %1359 = vmatpush.msra.mxu0 0.0
          %1360 = vmatpush.msra.mxu0 0.0
          %1361 = vmatpush.msra.mxu0 0.0
          %1362 = vmatpush.msra.mxu0 0.0
          %1363 = vmatpush.msra.mxu0 0.0
          %1364 = vmatpush.msra.mxu0 0.0
          %1365 = vmatpush.msra.mxu0 0.0
          %1366 = vmatpush.msra.mxu0 0.0
          %1367 = vmatpush.msra.mxu0 0.0
          %1368 = vmatpush.msra.mxu0 %v931
          %1369 = vmatpush.msra.mxu0 %v930
          %1370 = vmatpush.msra.mxu0 %v929
          %1371 = vmatpush.msra.mxu0 %v928
          %1372 = vmatmul.f32.gmra.mxu0 %v1309
          %v1373 = vpop.f32.mrf.mxu0
          %v1374 = vadd.f32 0.0, %v1373
          %1375 = vmatmul.f32.gmra.mxu0 %v1312
          %v1376 = vpop.f32.mrf.mxu0
          %v1377 = vadd.f32 0.0, %v1376
          %1378 = vmatmul.f32.gmra.mxu0 %v1315
          %v1379 = vpop.f32.mrf.mxu0
          %v1380 = vadd.f32 0.0, %v1379
          %1381 = vmatmul.f32.gmra.mxu0 %v1318
          %v1382 = vpop.f32.mrf.mxu0
          %v1383 = vadd.f32 0.0, %v1382
          %1384 = vmatmul.f32.gmra.mxu0 %v1321
          %v1385 = vpop.f32.mrf.mxu0
          %v1386 = vadd.f32 0.0, %v1385
          %1387 = vmatmul.f32.gmra.mxu0 %v1324
          %v1388 = vpop.f32.mrf.mxu0
          %v1389 = vadd.f32 0.0, %v1388
          %1390 = vmatmul.f32.gmra.mxu0 %v1327
          %v1391 = vpop.f32.mrf.mxu0
          %v1392 = vadd.f32 0.0, %v1391
          %1393 = vmatmul.f32.gmra.mxu0 %v1330
          %v1394 = vpop.f32.mrf.mxu0
          %v1395 = vadd.f32 0.0, %v1394
          %1396 = vmatmul.f32.gmra.mxu0 %v1333
          %v1397 = vpop.f32.mrf.mxu0
          %v1398 = vadd.f32 0.0, %v1397
          %1399 = vmatmul.f32.gmra.mxu0 %v1336
          %v1400 = vpop.f32.mrf.mxu0
          %v1401 = vadd.f32 0.0, %v1400
          %1402 = vmatmul.f32.gmra.mxu0 %v1339
          %v1403 = vpop.f32.mrf.mxu0
          %v1404 = vadd.f32 0.0, %v1403
          %1405 = vmatmul.f32.gmra.mxu0 %v1342
          %v1406 = vpop.f32.mrf.mxu0
          %v1407 = vadd.f32 0.0, %v1406
          %1408 = vmatmul.f32.gmra.mxu0 %v1345
          %v1409 = vpop.f32.mrf.mxu0
          %v1410 = vadd.f32 0.0, %v1409
          %1411 = vmatmul.f32.gmra.mxu0 %v1348
          %v1412 = vpop.f32.mrf.mxu0
          %v1413 = vadd.f32 0.0, %v1412
          %1414 = vmatmul.f32.gmra.mxu0 %v1351
          %v1415 = vpop.f32.mrf.mxu0
          %v1416 = vadd.f32 0.0, %v1415
          %1417 = vmatmul.f32.gmra.mxu0 %v1354
          %v1418 = vpop.f32.mrf.mxu0
          %v1419 = vadd.f32 0.0, %v1418
          %1420 = vdwg.mxu0
          %v1421 = vmul.f32 %v1374, %v1012
          %v1422 = vmul.f32 %v1377, %v1013
          %v1423 = vmul.f32 %v1380, %v1014
          %v1424 = vmul.f32 %v1383, %v1015
          %v1425 = vmul.f32 %v1386, %v1016
          %v1426 = vmul.f32 %v1389, %v1017
          %v1427 = vmul.f32 %v1392, %v1018
          %v1428 = vmul.f32 %v1395, %v1019
          %v1429 = vmul.f32 %v1398, %v1020
          %v1430 = vmul.f32 %v1401, %v1021
          %v1431 = vmul.f32 %v1404, %v1022
          %v1432 = vmul.f32 %v1407, %v1023
          %v1433 = vmul.f32 %v1410, %v1024
          %v1434 = vmul.f32 %v1413, %v1025
          %v1435 = vmul.f32 %v1416, %v1026
          %v1436 = vmul.f32 %v1419, %v1027
          %v1437 = vadd.f32 %v1292, %v1421
          %v1438 = vadd.f32 %v1293, %v1422
          %v1439 = vadd.f32 %v1294, %v1423
          %v1440 = vadd.f32 %v1295, %v1424
          %v1441 = vadd.f32 %v1296, %v1425
          %v1442 = vadd.f32 %v1297, %v1426
          %v1443 = vadd.f32 %v1298, %v1427
          %v1444 = vadd.f32 %v1299, %v1428
          %v1445 = vadd.f32 %v1300, %v1429
          %v1446 = vadd.f32 %v1301, %v1430
          %v1447 = vadd.f32 %v1302, %v1431
          %v1448 = vadd.f32 %v1303, %v1432
          %v1449 = vadd.f32 %v1304, %v1433
          %v1450 = vadd.f32 %v1305, %v1434
          %v1451 = vadd.f32 %v1306, %v1435
          %v1452 = vadd.f32 %v1307, %v1436
          %v1454 = vsel %vm1146, %v1276, 0
          %v1457 = vsel %vm1146, %v1277, 0
          %v1460 = vsel %vm1146, %v1278, 0
          %v1463 = vsel %vm1146, %v1279, 0
          %v1466 = vsel %vm1146, %v1280, 0
          %v1469 = vsel %vm1146, %v1281, 0
          %v1472 = vsel %vm1146, %v1282, 0
          %v1475 = vsel %vm1146, %v1283, 0
          %v1478 = vsel %vm1146, %v1284, 0
          %v1481 = vsel %vm1146, %v1285, 0
          %v1484 = vsel %vm1146, %v1286, 0
          %v1487 = vsel %vm1146, %v1287, 0
          %v1490 = vsel %vm1146, %v1288, 0
          %v1493 = vsel %vm1146, %v1289, 0
          %v1496 = vsel %vm1146, %v1290, 0
          %v1499 = vsel %vm1146, %v1291, 0
          %v1502 = vsel %vm1146, %v1437, 0
          %v1505 = vsel %vm1146, %v1438, 0
          %v1508 = vsel %vm1146, %v1439, 0
          %v1511 = vsel %vm1146, %v1440, 0
          %v1514 = vsel %vm1146, %v1441, 0
          %v1517 = vsel %vm1146, %v1442, 0
          %v1520 = vsel %vm1146, %v1443, 0
          %v1523 = vsel %vm1146, %v1444, 0
          %v1526 = vsel %vm1146, %v1445, 0
          %v1529 = vsel %vm1146, %v1446, 0
          %v1532 = vsel %vm1146, %v1447, 0
          %v1535 = vsel %vm1146, %v1448, 0
          %v1538 = vsel %vm1146, %v1449, 0
          %v1541 = vsel %vm1146, %v1450, 0
          %v1544 = vsel %vm1146, %v1451, 0
          %v1547 = vsel %vm1146, %v1452, 0
          %1549 = vmatpush.xpose.msra.mxu0 %v1547
          %1550 = vmatpush.xpose.msra.mxu0 %v1544
          %1551 = vmatpush.xpose.msra.mxu0 %v1541
          %1552 = vmatpush.xpose.msra.mxu0 %v1538
          %1553 = vmatpush.xpose.msra.mxu0 %v1535
          %1554 = vmatpush.xpose.msra.mxu0 %v1532
          %1555 = vmatpush.xpose.msra.mxu0 %v1529
          %1556 = vmatpush.xpose.msra.mxu0 %v1526
          %1557 = vmatpush.xpose.msra.mxu0 %v1523
          %1558 = vmatpush.xpose.msra.mxu0 %v1520
          %1559 = vmatpush.xpose.msra.mxu0 %v1517
          %1560 = vmatpush.xpose.msra.mxu0 %v1514
          %1561 = vmatpush.xpose.msra.mxu0 %v1511
          %1562 = vmatpush.xpose.msra.mxu0 %v1508
          %1563 = vmatpush.xpose.msra.mxu0 %v1505
          %1564 = vmatpush.xpose.msra.mxu0 %v1502
          %1565 = vmatmul.f32.gmra.mxu0 %v1454
          %v1566 = vpop.f32.mrf.mxu0
          %v1567 = vadd.f32 0.0, %v1566
          %1568 = vmatmul.f32.gmra.mxu0 %v1457
          %v1569 = vpop.f32.mrf.mxu0
          %v1570 = vadd.f32 0.0, %v1569
          %1571 = vmatmul.f32.gmra.mxu0 %v1460
          %v1572 = vpop.f32.mrf.mxu0
          %v1573 = vadd.f32 0.0, %v1572
          %1574 = vmatmul.f32.gmra.mxu0 %v1463
          %v1575 = vpop.f32.mrf.mxu0
          %v1576 = vadd.f32 0.0, %v1575
          %1577 = vmatmul.f32.gmra.mxu0 %v1466
          %v1578 = vpop.f32.mrf.mxu0
          %v1579 = vadd.f32 0.0, %v1578
          %1580 = vmatmul.f32.gmra.mxu0 %v1469
          %v1581 = vpop.f32.mrf.mxu0
          %v1582 = vadd.f32 0.0, %v1581
          %1583 = vmatmul.f32.gmra.mxu0 %v1472
          %v1584 = vpop.f32.mrf.mxu0
          %v1585 = vadd.f32 0.0, %v1584
          %1586 = vmatmul.f32.gmra.mxu0 %v1475
          %v1587 = vpop.f32.mrf.mxu0
          %v1588 = vadd.f32 0.0, %v1587
          %1589 = vmatmul.f32.gmra.mxu0 %v1478
          %v1590 = vpop.f32.mrf.mxu0
          %v1591 = vadd.f32 0.0, %v1590
          %1592 = vmatmul.f32.gmra.mxu0 %v1481
          %v1593 = vpop.f32.mrf.mxu0
          %v1594 = vadd.f32 0.0, %v1593
          %1595 = vmatmul.f32.gmra.mxu0 %v1484
          %v1596 = vpop.f32.mrf.mxu0
          %v1597 = vadd.f32 0.0, %v1596
          %1598 = vmatmul.f32.gmra.mxu0 %v1487
          %v1599 = vpop.f32.mrf.mxu0
          %v1600 = vadd.f32 0.0, %v1599
          %1601 = vmatmul.f32.gmra.mxu0 %v1490
          %v1602 = vpop.f32.mrf.mxu0
          %v1603 = vadd.f32 0.0, %v1602
          %1604 = vmatmul.f32.gmra.mxu0 %v1493
          %v1605 = vpop.f32.mrf.mxu0
          %v1606 = vadd.f32 0.0, %v1605
          %1607 = vmatmul.f32.gmra.mxu0 %v1496
          %v1608 = vpop.f32.mrf.mxu0
          %v1609 = vadd.f32 0.0, %v1608
          %1610 = vmatmul.f32.gmra.mxu0 %v1499
          %v1611 = vpop.f32.mrf.mxu0
          %v1612 = vadd.f32 0.0, %v1611
          %1613 = vdwg.mxu0
          %v1614 = vsel %vm1114, %v1567, -inf
          %v1615 = vsel %vm1115, %v1570, -inf
          %v1616 = vsel %vm1116, %v1573, -inf
          %v1617 = vsel %vm1117, %v1576, -inf
          %v1618 = vsel %vm1118, %v1579, -inf
          %v1619 = vsel %vm1119, %v1582, -inf
          %v1620 = vsel %vm1120, %v1585, -inf
          %v1621 = vsel %vm1121, %v1588, -inf
          %v1622 = vsel %vm1122, %v1591, -inf
          %v1623 = vsel %vm1123, %v1594, -inf
          %v1624 = vsel %vm1124, %v1597, -inf
          %v1625 = vsel %vm1125, %v1600, -inf
          %v1626 = vsel %vm1126, %v1603, -inf
          %v1627 = vsel %vm1127, %v1606, -inf
          %v1628 = vsel %vm1128, %v1609, -inf
          %v1629 = vsel %vm1129, %v1612, -inf
          %v1630 = vld [vmem:[#allocation2] sm:$0xff]
          %v1631 = vld [vmem:[#allocation2 + $0x8] sm:$0xff]
          %v1632 = vld [vmem:[#allocation2 + $0x10] sm:$0xff]
          %v1633 = vld [vmem:[#allocation2 + $0x18] sm:$0xff]
          %v1634 = vld [vmem:[#allocation2 + $0x20] sm:$0xff]
          %v1635 = vld [vmem:[#allocation2 + $0x28] sm:$0xff]
          %v1636 = vld [vmem:[#allocation2 + $0x30] sm:$0xff]
          %v1637 = vld [vmem:[#allocation2 + $0x38] sm:$0xff]
          %v1638 = vld [vmem:[#allocation2 + $0x40] sm:$0xff]
          %v1639 = vld [vmem:[#allocation2 + $0x48] sm:$0xff]
          %v1640 = vld [vmem:[#allocation2 + $0x50] sm:$0xff]
          %v1641 = vld [vmem:[#allocation2 + $0x58] sm:$0xff]
          %v1642 = vld [vmem:[#allocation2 + $0x60] sm:$0xff]
          %v1643 = vld [vmem:[#allocation2 + $0x68] sm:$0xff]
          %v1644 = vld [vmem:[#allocation2 + $0x70] sm:$0xff]
          %v1645 = vld [vmem:[#allocation2 + $0x78] sm:$0xff]
          %1646 = vmax.xlane.f32.xlu0 %v1614
          %v1647 = vpop.xlane.xlu0 %1646
          %1648 = vmax.xlane.f32.xlu0 %v1615
          %v1649 = vpop.xlane.xlu0 %1648
          %1650 = vmax.xlane.f32.xlu0 %v1616
          %v1651 = vpop.xlane.xlu0 %1650
          %1652 = vmax.xlane.f32.xlu0 %v1617
          %v1653 = vpop.xlane.xlu0 %1652
          %1654 = vmax.xlane.f32.xlu0 %v1618
          %v1655 = vpop.xlane.xlu0 %1654
          %1656 = vmax.xlane.f32.xlu0 %v1619
          %v1657 = vpop.xlane.xlu0 %1656
          %1658 = vmax.xlane.f32.xlu0 %v1620
          %v1659 = vpop.xlane.xlu0 %1658
          %1660 = vmax.xlane.f32.xlu0 %v1621
          %v1661 = vpop.xlane.xlu0 %1660
          %1662 = vmax.xlane.f32.xlu0 %v1622
          %v1663 = vpop.xlane.xlu0 %1662
          %1664 = vmax.xlane.f32.xlu0 %v1623
          %v1665 = vpop.xlane.xlu0 %1664
          %1666 = vmax.xlane.f32.xlu0 %v1624
          %v1667 = vpop.xlane.xlu0 %1666
          %1668 = vmax.xlane.f32.xlu0 %v1625
          %v1669 = vpop.xlane.xlu0 %1668
          %1670 = vmax.xlane.f32.xlu0 %v1626
          %v1671 = vpop.xlane.xlu0 %1670
          %1672 = vmax.xlane.f32.xlu0 %v1627
          %v1673 = vpop.xlane.xlu0 %1672
          %1674 = vmax.xlane.f32.xlu0 %v1628
          %v1675 = vpop.xlane.xlu0 %1674
          %1676 = vmax.xlane.f32.xlu0 %v1629
          %v1677 = vpop.xlane.xlu0 %1676
          %v1678 = vmax.f32 %v1630, %v1647
          %v1679 = vmax.f32 %v1631, %v1649
          %v1680 = vmax.f32 %v1632, %v1651
          %v1681 = vmax.f32 %v1633, %v1653
          %v1682 = vmax.f32 %v1634, %v1655
          %v1683 = vmax.f32 %v1635, %v1657
          %v1684 = vmax.f32 %v1636, %v1659
          %v1685 = vmax.f32 %v1637, %v1661
          %v1686 = vmax.f32 %v1638, %v1663
          %v1687 = vmax.f32 %v1639, %v1665
          %v1688 = vmax.f32 %v1640, %v1667
          %v1689 = vmax.f32 %v1641, %v1669
          %v1690 = vmax.f32 %v1642, %v1671
          %v1691 = vmax.f32 %v1643, %v1673
          %v1692 = vmax.f32 %v1644, %v1675
          %v1693 = vmax.f32 %v1645, %v1677
          %v1694 = vsub.f32 %v1630, %v1678
          %v1695 = vsub.f32 %v1631, %v1679
          %v1696 = vsub.f32 %v1632, %v1680
          %v1697 = vsub.f32 %v1633, %v1681
          %v1698 = vsub.f32 %v1634, %v1682
          %v1699 = vsub.f32 %v1635, %v1683
          %v1700 = vsub.f32 %v1636, %v1684
          %v1701 = vsub.f32 %v1637, %v1685
          %v1702 = vsub.f32 %v1638, %v1686
          %v1703 = vsub.f32 %v1639, %v1687
          %v1704 = vsub.f32 %v1640, %v1688
          %v1705 = vsub.f32 %v1641, %v1689
          %v1706 = vsub.f32 %v1642, %v1690
          %v1707 = vsub.f32 %v1643, %v1691
          %v1708 = vsub.f32 %v1644, %v1692
          %v1709 = vsub.f32 %v1645, %v1693
          %v1710 = vmul.f32 %v1694, 1.442695
          %v1711 = vpow.pop %v1710
          %v1712 = vmul.f32 %v1695, 1.442695
          %v1713 = vpow.pop %v1712
          %v1714 = vmul.f32 %v1696, 1.442695
          %v1715 = vpow.pop %v1714
          %v1716 = vmul.f32 %v1697, 1.442695
          %v1717 = vpow.pop %v1716
          %v1718 = vmul.f32 %v1698, 1.442695
          %v1719 = vpow.pop %v1718
          %v1720 = vmul.f32 %v1699, 1.442695
          %v1721 = vpow.pop %v1720
          %v1722 = vmul.f32 %v1700, 1.442695
          %v1723 = vpow.pop %v1722
          %v1724 = vmul.f32 %v1701, 1.442695
          %v1725 = vpow.pop %v1724
          %v1726 = vmul.f32 %v1702, 1.442695
          %v1727 = vpow.pop %v1726
          %v1728 = vmul.f32 %v1703, 1.442695
          %v1729 = vpow.pop %v1728
          %v1730 = vmul.f32 %v1704, 1.442695
          %v1731 = vpow.pop %v1730
          %v1732 = vmul.f32 %v1705, 1.442695
          %v1733 = vpow.pop %v1732
          %v1734 = vmul.f32 %v1706, 1.442695
          %v1735 = vpow.pop %v1734
          %v1736 = vmul.f32 %v1707, 1.442695
          %v1737 = vpow.pop %v1736
          %v1738 = vmul.f32 %v1708, 1.442695
          %v1739 = vpow.pop %v1738
          %v1740 = vmul.f32 %v1709, 1.442695
          %v1741 = vpow.pop %v1740
          %1743 = vset.pattern.permute.xlu0 0
          %1744 = vperm.xlu0 %1743, %v1678
          %v1745 = vpop.permute.xlu0 %1744
          %1748 = vset.pattern.permute.xlu0 0
          %1749 = vperm.xlu0 %1748, %v1679
          %v1750 = vpop.permute.xlu0 %1749
          %1753 = vset.pattern.permute.xlu0 0
          %1754 = vperm.xlu0 %1753, %v1680
          %v1755 = vpop.permute.xlu0 %1754
          %1758 = vset.pattern.permute.xlu0 0
          %1759 = vperm.xlu0 %1758, %v1681
          %v1760 = vpop.permute.xlu0 %1759
          %1763 = vset.pattern.permute.xlu0 0
          %1764 = vperm.xlu0 %1763, %v1682
          %v1765 = vpop.permute.xlu0 %1764
          %1768 = vset.pattern.permute.xlu0 0
          %1769 = vperm.xlu0 %1768, %v1683
          %v1770 = vpop.permute.xlu0 %1769
          %1773 = vset.pattern.permute.xlu0 0
          %1774 = vperm.xlu0 %1773, %v1684
          %v1775 = vpop.permute.xlu0 %1774
          %1778 = vset.pattern.permute.xlu0 0
          %1779 = vperm.xlu0 %1778, %v1685
          %v1780 = vpop.permute.xlu0 %1779
          %1783 = vset.pattern.permute.xlu0 0
          %1784 = vperm.xlu0 %1783, %v1686
          %v1785 = vpop.permute.xlu0 %1784
          %1788 = vset.pattern.permute.xlu0 0
          %1789 = vperm.xlu0 %1788, %v1687
          %v1790 = vpop.permute.xlu0 %1789
          %1793 = vset.pattern.permute.xlu0 0
          %1794 = vperm.xlu0 %1793, %v1688
          %v1795 = vpop.permute.xlu0 %1794
          %1798 = vset.pattern.permute.xlu0 0
          %1799 = vperm.xlu0 %1798, %v1689
          %v1800 = vpop.permute.xlu0 %1799
          %1803 = vset.pattern.permute.xlu0 0
          %1804 = vperm.xlu0 %1803, %v1690
          %v1805 = vpop.permute.xlu0 %1804
          %1808 = vset.pattern.permute.xlu0 0
          %1809 = vperm.xlu0 %1808, %v1691
          %v1810 = vpop.permute.xlu0 %1809
          %1813 = vset.pattern.permute.xlu0 0
          %1814 = vperm.xlu0 %1813, %v1692
          %v1815 = vpop.permute.xlu0 %1814
          %1818 = vset.pattern.permute.xlu0 0
          %1819 = vperm.xlu0 %1818, %v1693
          %v1820 = vpop.permute.xlu0 %1819
          %v1822 = vsub.f32 %v1614, %v1745
          %v1823 = vsub.f32 %v1615, %v1750
          %v1824 = vsub.f32 %v1616, %v1755
          %v1825 = vsub.f32 %v1617, %v1760
          %v1826 = vsub.f32 %v1618, %v1765
          %v1827 = vsub.f32 %v1619, %v1770
          %v1828 = vsub.f32 %v1620, %v1775
          %v1829 = vsub.f32 %v1621, %v1780
          %v1830 = vsub.f32 %v1622, %v1785
          %v1831 = vsub.f32 %v1623, %v1790
          %v1832 = vsub.f32 %v1624, %v1795
          %v1833 = vsub.f32 %v1625, %v1800
          %v1834 = vsub.f32 %v1626, %v1805
          %v1835 = vsub.f32 %v1627, %v1810
          %v1836 = vsub.f32 %v1628, %v1815
          %v1837 = vsub.f32 %v1629, %v1820
          %v1838 = vmul.f32 %v1822, 1.442695
          %v1839 = vpow.pop %v1838
          %v1840 = vmul.f32 %v1823, 1.442695
          %v1841 = vpow.pop %v1840
          %v1842 = vmul.f32 %v1824, 1.442695
          %v1843 = vpow.pop %v1842
          %v1844 = vmul.f32 %v1825, 1.442695
          %v1845 = vpow.pop %v1844
          %v1846 = vmul.f32 %v1826, 1.442695
          %v1847 = vpow.pop %v1846
          %v1848 = vmul.f32 %v1827, 1.442695
          %v1849 = vpow.pop %v1848
          %v1850 = vmul.f32 %v1828, 1.442695
          %v1851 = vpow.pop %v1850
          %v1852 = vmul.f32 %v1829, 1.442695
          %v1853 = vpow.pop %v1852
          %v1854 = vmul.f32 %v1830, 1.442695
          %v1855 = vpow.pop %v1854
          %v1856 = vmul.f32 %v1831, 1.442695
          %v1857 = vpow.pop %v1856
          %v1858 = vmul.f32 %v1832, 1.442695
          %v1859 = vpow.pop %v1858
          %v1860 = vmul.f32 %v1833, 1.442695
          %v1861 = vpow.pop %v1860
          %v1862 = vmul.f32 %v1834, 1.442695
          %v1863 = vpow.pop %v1862
          %v1864 = vmul.f32 %v1835, 1.442695
          %v1865 = vpow.pop %v1864
          %v1866 = vmul.f32 %v1836, 1.442695
          %v1867 = vpow.pop %v1866
          %v1868 = vmul.f32 %v1837, 1.442695
          %v1869 = vpow.pop %v1868
          %v1870 = vld [vmem:[#allocation3] sm:$0xff]
          %v1871 = vld [vmem:[#allocation3 + $0x8] sm:$0xff]
          %v1872 = vld [vmem:[#allocation3 + $0x10] sm:$0xff]
          %v1873 = vld [vmem:[#allocation3 + $0x18] sm:$0xff]
          %v1874 = vld [vmem:[#allocation3 + $0x20] sm:$0xff]
          %v1875 = vld [vmem:[#allocation3 + $0x28] sm:$0xff]
          %v1876 = vld [vmem:[#allocation3 + $0x30] sm:$0xff]
          %v1877 = vld [vmem:[#allocation3 + $0x38] sm:$0xff]
          %v1878 = vld [vmem:[#allocation3 + $0x40] sm:$0xff]
          %v1879 = vld [vmem:[#allocation3 + $0x48] sm:$0xff]
          %v1880 = vld [vmem:[#allocation3 + $0x50] sm:$0xff]
          %v1881 = vld [vmem:[#allocation3 + $0x58] sm:$0xff]
          %v1882 = vld [vmem:[#allocation3 + $0x60] sm:$0xff]
          %v1883 = vld [vmem:[#allocation3 + $0x68] sm:$0xff]
          %v1884 = vld [vmem:[#allocation3 + $0x70] sm:$0xff]
          %v1885 = vld [vmem:[#allocation3 + $0x78] sm:$0xff]
          %v1886 = vmul.f32 %v1711, %v1870
          %v1887 = vmul.f32 %v1713, %v1871
          %v1888 = vmul.f32 %v1715, %v1872
          %v1889 = vmul.f32 %v1717, %v1873
          %v1890 = vmul.f32 %v1719, %v1874
          %v1891 = vmul.f32 %v1721, %v1875
          %v1892 = vmul.f32 %v1723, %v1876
          %v1893 = vmul.f32 %v1725, %v1877
          %v1894 = vmul.f32 %v1727, %v1878
          %v1895 = vmul.f32 %v1729, %v1879
          %v1896 = vmul.f32 %v1731, %v1880
          %v1897 = vmul.f32 %v1733, %v1881
          %v1898 = vmul.f32 %v1735, %v1882
          %v1899 = vmul.f32 %v1737, %v1883
          %v1900 = vmul.f32 %v1739, %v1884
          %v1901 = vmul.f32 %v1741, %v1885
          %1902 = vadd.xlane.f32.xlu0 %v1839
          %v1903 = vpop.xlane.xlu0 %1902
          %1904 = vadd.xlane.f32.xlu0 %v1841
          %v1905 = vpop.xlane.xlu0 %1904
          %1906 = vadd.xlane.f32.xlu0 %v1843
          %v1907 = vpop.xlane.xlu0 %1906
          %1908 = vadd.xlane.f32.xlu0 %v1845
          %v1909 = vpop.xlane.xlu0 %1908
          %1910 = vadd.xlane.f32.xlu0 %v1847
          %v1911 = vpop.xlane.xlu0 %1910
          %1912 = vadd.xlane.f32.xlu0 %v1849
          %v1913 = vpop.xlane.xlu0 %1912
          %1914 = vadd.xlane.f32.xlu0 %v1851
          %v1915 = vpop.xlane.xlu0 %1914
          %1916 = vadd.xlane.f32.xlu0 %v1853
          %v1917 = vpop.xlane.xlu0 %1916
          %1918 = vadd.xlane.f32.xlu0 %v1855
          %v1919 = vpop.xlane.xlu0 %1918
          %1920 = vadd.xlane.f32.xlu0 %v1857
          %v1921 = vpop.xlane.xlu0 %1920
          %1922 = vadd.xlane.f32.xlu0 %v1859
          %v1923 = vpop.xlane.xlu0 %1922
          %1924 = vadd.xlane.f32.xlu0 %v1861
          %v1925 = vpop.xlane.xlu0 %1924
          %1926 = vadd.xlane.f32.xlu0 %v1863
          %v1927 = vpop.xlane.xlu0 %1926
          %1928 = vadd.xlane.f32.xlu0 %v1865
          %v1929 = vpop.xlane.xlu0 %1928
          %1930 = vadd.xlane.f32.xlu0 %v1867
          %v1931 = vpop.xlane.xlu0 %1930
          %1932 = vadd.xlane.f32.xlu0 %v1869
          %v1933 = vpop.xlane.xlu0 %1932
          %v1934 = vadd.f32 %v1886, %v1903
          %v1935 = vadd.f32 %v1887, %v1905
          %v1936 = vadd.f32 %v1888, %v1907
          %v1937 = vadd.f32 %v1889, %v1909
          %v1938 = vadd.f32 %v1890, %v1911
          %v1939 = vadd.f32 %v1891, %v1913
          %v1940 = vadd.f32 %v1892, %v1915
          %v1941 = vadd.f32 %v1893, %v1917
          %v1942 = vadd.f32 %v1894, %v1919
          %v1943 = vadd.f32 %v1895, %v1921
          %v1944 = vadd.f32 %v1896, %v1923
          %v1945 = vadd.f32 %v1897, %v1925
          %v1946 = vadd.f32 %v1898, %v1927
          %v1947 = vadd.f32 %v1899, %v1929
          %v1948 = vadd.f32 %v1900, %v1931
          %v1949 = vadd.f32 %v1901, %v1933
          %vm1950 = vcmask 7168
          %1951 = vst.msk [vmem:[#allocation3] sm:$0xff] %vm1950, %v1934
          %1952 = vst.msk [vmem:[#allocation3 + $0x8] sm:$0xff] %vm1950, %v1935
          %1953 = vst.msk [vmem:[#allocation3 + $0x10] sm:$0xff] %vm1950, %v1936
          %1954 = vst.msk [vmem:[#allocation3 + $0x18] sm:$0xff] %vm1950, %v1937
          %1955 = vst.msk [vmem:[#allocation3 + $0x20] sm:$0xff] %vm1950, %v1938
          %1956 = vst.msk [vmem:[#allocation3 + $0x28] sm:$0xff] %vm1950, %v1939
          %1957 = vst.msk [vmem:[#allocation3 + $0x30] sm:$0xff] %vm1950, %v1940
          %1958 = vst.msk [vmem:[#allocation3 + $0x38] sm:$0xff] %vm1950, %v1941
          %1959 = vst.msk [vmem:[#allocation3 + $0x40] sm:$0xff] %vm1950, %v1942
          %1960 = vst.msk [vmem:[#allocation3 + $0x48] sm:$0xff] %vm1950, %v1943
          %1961 = vst.msk [vmem:[#allocation3 + $0x50] sm:$0xff] %vm1950, %v1944
          %1962 = vst.msk [vmem:[#allocation3 + $0x58] sm:$0xff] %vm1950, %v1945
          %1963 = vst.msk [vmem:[#allocation3 + $0x60] sm:$0xff] %vm1950, %v1946
          %1964 = vst.msk [vmem:[#allocation3 + $0x68] sm:$0xff] %vm1950, %v1947
          %1965 = vst.msk [vmem:[#allocation3 + $0x70] sm:$0xff] %vm1950, %v1948
          %1966 = vst.msk [vmem:[#allocation3 + $0x78] sm:$0xff] %vm1950, %v1949
          %v1967 = vld [vmem:[#allocation4] sm:$0xff]
          %v1968 = vld [vmem:[#allocation4 + $0x8] sm:$0xff]
          %v1969 = vld [vmem:[#allocation4 + $0x10] sm:$0xff]
          %v1970 = vld [vmem:[#allocation4 + $0x18] sm:$0xff]
          %v1971 = vld [vmem:[#allocation4 + $0x20] sm:$0xff]
          %v1972 = vld [vmem:[#allocation4 + $0x28] sm:$0xff]
          %v1973 = vld [vmem:[#allocation4 + $0x30] sm:$0xff]
          %v1974 = vld [vmem:[#allocation4 + $0x38] sm:$0xff]
          %v1975 = vld [vmem:[#allocation4 + $0x40] sm:$0xff]
          %v1976 = vld [vmem:[#allocation4 + $0x48] sm:$0xff]
          %v1977 = vld [vmem:[#allocation4 + $0x50] sm:$0xff]
          %v1978 = vld [vmem:[#allocation4 + $0x58] sm:$0xff]
          %v1979 = vld [vmem:[#allocation4 + $0x60] sm:$0xff]
          %v1980 = vld [vmem:[#allocation4 + $0x68] sm:$0xff]
          %v1981 = vld [vmem:[#allocation4 + $0x70] sm:$0xff]
          %v1982 = vld [vmem:[#allocation4 + $0x78] sm:$0xff]
          %1984 = vset.pattern.permute.xlu0 0
          %1985 = vperm.xlu0 %1984, %v1711
          %v1986 = vpop.permute.xlu0 %1985
          %1989 = vset.pattern.permute.xlu0 0
          %1990 = vperm.xlu0 %1989, %v1713
          %v1991 = vpop.permute.xlu0 %1990
          %1994 = vset.pattern.permute.xlu0 0
          %1995 = vperm.xlu0 %1994, %v1715
          %v1996 = vpop.permute.xlu0 %1995
          %1999 = vset.pattern.permute.xlu0 0
          %2000 = vperm.xlu0 %1999, %v1717
          %v2001 = vpop.permute.xlu0 %2000
          %2004 = vset.pattern.permute.xlu0 0
          %2005 = vperm.xlu0 %2004, %v1719
          %v2006 = vpop.permute.xlu0 %2005
          %2009 = vset.pattern.permute.xlu0 0
          %2010 = vperm.xlu0 %2009, %v1721
          %v2011 = vpop.permute.xlu0 %2010
          %2014 = vset.pattern.permute.xlu0 0
          %2015 = vperm.xlu0 %2014, %v1723
          %v2016 = vpop.permute.xlu0 %2015
          %2019 = vset.pattern.permute.xlu0 0
          %2020 = vperm.xlu0 %2019, %v1725
          %v2021 = vpop.permute.xlu0 %2020
          %2024 = vset.pattern.permute.xlu0 0
          %2025 = vperm.xlu0 %2024, %v1727
          %v2026 = vpop.permute.xlu0 %2025
          %2029 = vset.pattern.permute.xlu0 0
          %2030 = vperm.xlu0 %2029, %v1729
          %v2031 = vpop.permute.xlu0 %2030
          %2034 = vset.pattern.permute.xlu0 0
          %2035 = vperm.xlu0 %2034, %v1731
          %v2036 = vpop.permute.xlu0 %2035
          %2039 = vset.pattern.permute.xlu0 0
          %2040 = vperm.xlu0 %2039, %v1733
          %v2041 = vpop.permute.xlu0 %2040
          %2044 = vset.pattern.permute.xlu0 0
          %2045 = vperm.xlu0 %2044, %v1735
          %v2046 = vpop.permute.xlu0 %2045
          %2049 = vset.pattern.permute.xlu0 0
          %2050 = vperm.xlu0 %2049, %v1737
          %v2051 = vpop.permute.xlu0 %2050
          %2054 = vset.pattern.permute.xlu0 0
          %2055 = vperm.xlu0 %2054, %v1739
          %v2056 = vpop.permute.xlu0 %2055
          %2059 = vset.pattern.permute.xlu0 0
          %2060 = vperm.xlu0 %2059, %v1741
          %v2061 = vpop.permute.xlu0 %2060
          %v2063 = vmul.f32 %v1986, %v1967
          %v2064 = vmul.f32 %v1991, %v1968
          %v2065 = vmul.f32 %v1996, %v1969
          %v2066 = vmul.f32 %v2001, %v1970
          %v2067 = vmul.f32 %v2006, %v1971
          %v2068 = vmul.f32 %v2011, %v1972
          %v2069 = vmul.f32 %v2016, %v1973
          %v2070 = vmul.f32 %v2021, %v1974
          %v2071 = vmul.f32 %v2026, %v1975
          %v2072 = vmul.f32 %v2031, %v1976
          %v2073 = vmul.f32 %v2036, %v1977
          %v2074 = vmul.f32 %v2041, %v1978
          %v2075 = vmul.f32 %v2046, %v1979
          %v2076 = vmul.f32 %v2051, %v1980
          %v2077 = vmul.f32 %v2056, %v1981
          %v2078 = vmul.f32 %v2061, %v1982
          %2079 = vmatpush.msra.mxu0 %v1075
          %2080 = vmatpush.msra.mxu0 %v1074
          %2081 = vmatpush.msra.mxu0 %v1073
          %2082 = vmatpush.msra.mxu0 %v1072
          %2083 = vmatpush.msra.mxu0 %v1071
          %2084 = vmatpush.msra.mxu0 %v1070
          %2085 = vmatpush.msra.mxu0 %v1069
          %2086 = vmatpush.msra.mxu0 %v1068
          %2087 = vmatpush.msra.mxu0 %v1067
          %2088 = vmatpush.msra.mxu0 %v1066
          %2089 = vmatpush.msra.mxu0 %v1065
          %2090 = vmatpush.msra.mxu0 %v1064
          %2091 = vmatpush.msra.mxu0 %v1063
          %2092 = vmatpush.msra.mxu0 %v1062
          %2093 = vmatpush.msra.mxu0 %v1061
          %2094 = vmatpush.msra.mxu0 %v1060
          %2095 = vmatmul.f32.gmra.mxu0 %v1839
          %v2096 = vpop.f32.mrf.mxu0
          %v2097 = vadd.f32 0.0, %v2096
          %2098 = vmatmul.f32.gmra.mxu0 %v1841
          %v2099 = vpop.f32.mrf.mxu0
          %v2100 = vadd.f32 0.0, %v2099
          %2101 = vmatmul.f32.gmra.mxu0 %v1843
          %v2102 = vpop.f32.mrf.mxu0
          %v2103 = vadd.f32 0.0, %v2102
          %2104 = vmatmul.f32.gmra.mxu0 %v1845
          %v2105 = vpop.f32.mrf.mxu0
          %v2106 = vadd.f32 0.0, %v2105
          %2107 = vmatmul.f32.gmra.mxu0 %v1847
          %v2108 = vpop.f32.mrf.mxu0
          %v2109 = vadd.f32 0.0, %v2108
          %2110 = vmatmul.f32.gmra.mxu0 %v1849
          %v2111 = vpop.f32.mrf.mxu0
          %v2112 = vadd.f32 0.0, %v2111
          %2113 = vmatmul.f32.gmra.mxu0 %v1851
          %v2114 = vpop.f32.mrf.mxu0
          %v2115 = vadd.f32 0.0, %v2114
          %2116 = vmatmul.f32.gmra.mxu0 %v1853
          %v2117 = vpop.f32.mrf.mxu0
          %v2118 = vadd.f32 0.0, %v2117
          %2119 = vmatmul.f32.gmra.mxu0 %v1855
          %v2120 = vpop.f32.mrf.mxu0
          %v2121 = vadd.f32 0.0, %v2120
          %2122 = vmatmul.f32.gmra.mxu0 %v1857
          %v2123 = vpop.f32.mrf.mxu0
          %v2124 = vadd.f32 0.0, %v2123
          %2125 = vmatmul.f32.gmra.mxu0 %v1859
          %v2126 = vpop.f32.mrf.mxu0
          %v2127 = vadd.f32 0.0, %v2126
          %2128 = vmatmul.f32.gmra.mxu0 %v1861
          %v2129 = vpop.f32.mrf.mxu0
          %v2130 = vadd.f32 0.0, %v2129
          %2131 = vmatmul.f32.gmra.mxu0 %v1863
          %v2132 = vpop.f32.mrf.mxu0
          %v2133 = vadd.f32 0.0, %v2132
          %2134 = vmatmul.f32.gmra.mxu0 %v1865
          %v2135 = vpop.f32.mrf.mxu0
          %v2136 = vadd.f32 0.0, %v2135
          %2137 = vmatmul.f32.gmra.mxu0 %v1867
          %v2138 = vpop.f32.mrf.mxu0
          %v2139 = vadd.f32 0.0, %v2138
          %2140 = vmatmul.f32.gmra.mxu0 %v1869
          %v2141 = vpop.f32.mrf.mxu0
          %v2142 = vadd.f32 0.0, %v2141
          %2143 = vdwg.mxu0
          %v2144 = vadd.f32 %v2063, %v2097
          %v2145 = vadd.f32 %v2064, %v2100
          %v2146 = vadd.f32 %v2065, %v2103
          %v2147 = vadd.f32 %v2066, %v2106
          %v2148 = vadd.f32 %v2067, %v2109
          %v2149 = vadd.f32 %v2068, %v2112
          %v2150 = vadd.f32 %v2069, %v2115
          %v2151 = vadd.f32 %v2070, %v2118
          %v2152 = vadd.f32 %v2071, %v2121
          %v2153 = vadd.f32 %v2072, %v2124
          %v2154 = vadd.f32 %v2073, %v2127
          %v2155 = vadd.f32 %v2074, %v2130
          %v2156 = vadd.f32 %v2075, %v2133
          %v2157 = vadd.f32 %v2076, %v2136
          %v2158 = vadd.f32 %v2077, %v2139
          %v2159 = vadd.f32 %v2078, %v2142
          %2160 = vst.msk [vmem:[#allocation4] sm:$0xff] %vm1146, %v2144
          %2161 = vst.msk [vmem:[#allocation4 + $0x8] sm:$0xff] %vm1146, %v2145
          %2162 = vst.msk [vmem:[#allocation4 + $0x10] sm:$0xff] %vm1146, %v2146
          %2163 = vst.msk [vmem:[#allocation4 + $0x18] sm:$0xff] %vm1146, %v2147
          %2164 = vst.msk [vmem:[#allocation4 + $0x20] sm:$0xff] %vm1146, %v2148
          %2165 = vst.msk [vmem:[#allocation4 + $0x28] sm:$0xff] %vm1146, %v2149
          %2166 = vst.msk [vmem:[#allocation4 + $0x30] sm:$0xff] %vm1146, %v2150
          %2167 = vst.msk [vmem:[#allocation4 + $0x38] sm:$0xff] %vm1146, %v2151
          %2168 = vst.msk [vmem:[#allocation4 + $0x40] sm:$0xff] %vm1146, %v2152
          %2169 = vst.msk [vmem:[#allocation4 + $0x48] sm:$0xff] %vm1146, %v2153
          %2170 = vst.msk [vmem:[#allocation4 + $0x50] sm:$0xff] %vm1146, %v2154
          %2171 = vst.msk [vmem:[#allocation4 + $0x58] sm:$0xff] %vm1146, %v2155
          %2172 = vst.msk [vmem:[#allocation4 + $0x60] sm:$0xff] %vm1146, %v2156
          %2173 = vst.msk [vmem:[#allocation4 + $0x68] sm:$0xff] %vm1146, %v2157
          %2174 = vst.msk [vmem:[#allocation4 + $0x70] sm:$0xff] %vm1146, %v2158
          %2175 = vst.msk [vmem:[#allocation4 + $0x78] sm:$0xff] %vm1146, %v2159
          %2176 = vst.msk [vmem:[#allocation2] sm:$0xff] %vm1950, %v1678
          %2177 = vst.msk [vmem:[#allocation2 + $0x8] sm:$0xff] %vm1950, %v1679
          %2178 = vst.msk [vmem:[#allocation2 + $0x10] sm:$0xff] %vm1950, %v1680
          %2179 = vst.msk [vmem:[#allocation2 + $0x18] sm:$0xff] %vm1950, %v1681
          %2180 = vst.msk [vmem:[#allocation2 + $0x20] sm:$0xff] %vm1950, %v1682
          %2181 = vst.msk [vmem:[#allocation2 + $0x28] sm:$0xff] %vm1950, %v1683
          %2182 = vst.msk [vmem:[#allocation2 + $0x30] sm:$0xff] %vm1950, %v1684
          %2183 = vst.msk [vmem:[#allocation2 + $0x38] sm:$0xff] %vm1950, %v1685
          %2184 = vst.msk [vmem:[#allocation2 + $0x40] sm:$0xff] %vm1950, %v1686
          %2185 = vst.msk [vmem:[#allocation2 + $0x48] sm:$0xff] %vm1950, %v1687
          %2186 = vst.msk [vmem:[#allocation2 + $0x50] sm:$0xff] %vm1950, %v1688
          %2187 = vst.msk [vmem:[#allocation2 + $0x58] sm:$0xff] %vm1950, %v1689
          %2188 = vst.msk [vmem:[#allocation2 + $0x60] sm:$0xff] %vm1950, %v1690
          %2189 = vst.msk [vmem:[#allocation2 + $0x68] sm:$0xff] %vm1950, %v1691
          %2190 = vst.msk [vmem:[#allocation2 + $0x70] sm:$0xff] %vm1950, %v1692
          %2191 = vst.msk [vmem:[#allocation2 + $0x78] sm:$0xff] %vm1950, %v1693
          %2208 = vrot.lane.b32.xlu0 %v948, 32
          %v2209 = vpop.permute.xlu0 %2208
          %2210 = vrot.lane.b32.xlu0 %v949, 32
          %v2211 = vpop.permute.xlu0 %2210
          %2212 = vrot.lane.b32.xlu0 %v950, 32
          %v2213 = vpop.permute.xlu0 %2212
          %2214 = vrot.lane.b32.xlu0 %v951, 32
          %v2215 = vpop.permute.xlu0 %2214
          %2216 = vrot.lane.b32.xlu0 %v952, 32
          %v2217 = vpop.permute.xlu0 %2216
          %2218 = vrot.lane.b32.xlu0 %v953, 32
          %v2219 = vpop.permute.xlu0 %2218
          %2220 = vrot.lane.b32.xlu0 %v954, 32
          %v2221 = vpop.permute.xlu0 %2220
          %2222 = vrot.lane.b32.xlu0 %v955, 32
          %v2223 = vpop.permute.xlu0 %2222
          %2224 = vrot.lane.b32.xlu0 %v956, 32
          %v2225 = vpop.permute.xlu0 %2224
          %2226 = vrot.lane.b32.xlu0 %v957, 32
          %v2227 = vpop.permute.xlu0 %2226
          %2228 = vrot.lane.b32.xlu0 %v958, 32
          %v2229 = vpop.permute.xlu0 %2228
          %2230 = vrot.lane.b32.xlu0 %v959, 32
          %v2231 = vpop.permute.xlu0 %2230
          %2232 = vrot.lane.b32.xlu0 %v960, 32
          %v2233 = vpop.permute.xlu0 %2232
          %2234 = vrot.lane.b32.xlu0 %v961, 32
          %v2235 = vpop.permute.xlu0 %2234
          %2236 = vrot.lane.b32.xlu0 %v962, 32
          %v2237 = vpop.permute.xlu0 %2236
          %2238 = vrot.lane.b32.xlu0 %v963, 32
          %v2239 = vpop.permute.xlu0 %2238
          %v2256 = vmul.f32 %v1028, %v2209
          %v2257 = vmul.f32 %v1029, %v2211
          %v2258 = vmul.f32 %v1030, %v2213
          %v2259 = vmul.f32 %v1031, %v2215
          %v2260 = vmul.f32 %v1032, %v2217
          %v2261 = vmul.f32 %v1033, %v2219
          %v2262 = vmul.f32 %v1034, %v2221
          %v2263 = vmul.f32 %v1035, %v2223
          %v2264 = vmul.f32 %v1036, %v2225
          %v2265 = vmul.f32 %v1037, %v2227
          %v2266 = vmul.f32 %v1038, %v2229
          %v2267 = vmul.f32 %v1039, %v2231
          %v2268 = vmul.f32 %v1040, %v2233
          %v2269 = vmul.f32 %v1041, %v2235
          %v2270 = vmul.f32 %v1042, %v2237
          %v2271 = vmul.f32 %v1043, %v2239
          %2272 = vrot.lane.b32.xlu0 %v1028, 96
          %v2273 = vpop.permute.xlu0 %2272
          %2274 = vrot.lane.b32.xlu0 %v1029, 96
          %v2275 = vpop.permute.xlu0 %2274
          %2276 = vrot.lane.b32.xlu0 %v1030, 96
          %v2277 = vpop.permute.xlu0 %2276
          %2278 = vrot.lane.b32.xlu0 %v1031, 96
          %v2279 = vpop.permute.xlu0 %2278
          %2280 = vrot.lane.b32.xlu0 %v1032, 96
          %v2281 = vpop.permute.xlu0 %2280
          %2282 = vrot.lane.b32.xlu0 %v1033, 96
          %v2283 = vpop.permute.xlu0 %2282
          %2284 = vrot.lane.b32.xlu0 %v1034, 96
          %v2285 = vpop.permute.xlu0 %2284
          %2286 = vrot.lane.b32.xlu0 %v1035, 96
          %v2287 = vpop.permute.xlu0 %2286
          %2288 = vrot.lane.b32.xlu0 %v1036, 96
          %v2289 = vpop.permute.xlu0 %2288
          %2290 = vrot.lane.b32.xlu0 %v1037, 96
          %v2291 = vpop.permute.xlu0 %2290
          %2292 = vrot.lane.b32.xlu0 %v1038, 96
          %v2293 = vpop.permute.xlu0 %2292
          %2294 = vrot.lane.b32.xlu0 %v1039, 96
          %v2295 = vpop.permute.xlu0 %2294
          %2296 = vrot.lane.b32.xlu0 %v1040, 96
          %v2297 = vpop.permute.xlu0 %2296
          %2298 = vrot.lane.b32.xlu0 %v1041, 96
          %v2299 = vpop.permute.xlu0 %2298
          %2300 = vrot.lane.b32.xlu0 %v1042, 96
          %v2301 = vpop.permute.xlu0 %2300
          %2302 = vrot.lane.b32.xlu0 %v1043, 96
          %v2303 = vpop.permute.xlu0 %2302
          %v2304 = vsel %vm1146, %v2273, 0
          %v2306 = vsel %vm1146, %v2275, 0
          %v2308 = vsel %vm1146, %v2277, 0
          %v2310 = vsel %vm1146, %v2279, 0
          %v2312 = vsel %vm1146, %v2281, 0
          %v2314 = vsel %vm1146, %v2283, 0
          %v2316 = vsel %vm1146, %v2285, 0
          %v2318 = vsel %vm1146, %v2287, 0
          %v2320 = vsel %vm1146, %v2289, 0
          %v2322 = vsel %vm1146, %v2291, 0
          %v2324 = vsel %vm1146, %v2293, 0
          %v2326 = vsel %vm1146, %v2295, 0
          %v2328 = vsel %vm1146, %v2297, 0
          %v2330 = vsel %vm1146, %v2299, 0
          %v2332 = vsel %vm1146, %v2301, 0
          %v2334 = vsel %vm1146, %v2303, 0
          %2336 = vmatpush.msra.mxu0 0.0
          %2337 = vmatpush.msra.mxu0 0.0
          %2338 = vmatpush.msra.mxu0 0.0
          %2339 = vmatpush.msra.mxu0 0.0
          %2340 = vmatpush.msra.mxu0 0.0
          %2341 = vmatpush.msra.mxu0 0.0
          %2342 = vmatpush.msra.mxu0 0.0
          %2343 = vmatpush.msra.mxu0 0.0
          %2344 = vmatpush.msra.mxu0 0.0
          %2345 = vmatpush.msra.mxu0 0.0
          %2346 = vmatpush.msra.mxu0 0.0
          %2347 = vmatpush.msra.mxu0 0.0
          %2348 = vmatpush.msra.mxu0 %v931
          %2349 = vmatpush.msra.mxu0 %v930
          %2350 = vmatpush.msra.mxu0 %v929
          %2351 = vmatpush.msra.mxu0 %v928
          %2352 = vmatmul.f32.gmra.mxu0 %v2304
          %v2353 = vpop.f32.mrf.mxu0
          %v2354 = vadd.f32 0.0, %v2353
          %2355 = vmatmul.f32.gmra.mxu0 %v2306
          %v2356 = vpop.f32.mrf.mxu0
          %v2357 = vadd.f32 0.0, %v2356
          %2358 = vmatmul.f32.gmra.mxu0 %v2308
          %v2359 = vpop.f32.mrf.mxu0
          %v2360 = vadd.f32 0.0, %v2359
          %2361 = vmatmul.f32.gmra.mxu0 %v2310
          %v2362 = vpop.f32.mrf.mxu0
          %v2363 = vadd.f32 0.0, %v2362
          %2364 = vmatmul.f32.gmra.mxu0 %v2312
          %v2365 = vpop.f32.mrf.mxu0
          %v2366 = vadd.f32 0.0, %v2365
          %2367 = vmatmul.f32.gmra.mxu0 %v2314
          %v2368 = vpop.f32.mrf.mxu0
          %v2369 = vadd.f32 0.0, %v2368
          %2370 = vmatmul.f32.gmra.mxu0 %v2316
          %v2371 = vpop.f32.mrf.mxu0
          %v2372 = vadd.f32 0.0, %v2371
          %2373 = vmatmul.f32.gmra.mxu0 %v2318
          %v2374 = vpop.f32.mrf.mxu0
          %v2375 = vadd.f32 0.0, %v2374
          %2376 = vmatmul.f32.gmra.mxu0 %v2320
          %v2377 = vpop.f32.mrf.mxu0
          %v2378 = vadd.f32 0.0, %v2377
          %2379 = vmatmul.f32.gmra.mxu0 %v2322
          %v2380 = vpop.f32.mrf.mxu0
          %v2381 = vadd.f32 0.0, %v2380
          %2382 = vmatmul.f32.gmra.mxu0 %v2324
          %v2383 = vpop.f32.mrf.mxu0
          %v2384 = vadd.f32 0.0, %v2383
          %2385 = vmatmul.f32.gmra.mxu0 %v2326
          %v2386 = vpop.f32.mrf.mxu0
          %v2387 = vadd.f32 0.0, %v2386
          %2388 = vmatmul.f32.gmra.mxu0 %v2328
          %v2389 = vpop.f32.mrf.mxu0
          %v2390 = vadd.f32 0.0, %v2389
          %2391 = vmatmul.f32.gmra.mxu0 %v2330
          %v2392 = vpop.f32.mrf.mxu0
          %v2393 = vadd.f32 0.0, %v2392
          %2394 = vmatmul.f32.gmra.mxu0 %v2332
          %v2395 = vpop.f32.mrf.mxu0
          %v2396 = vadd.f32 0.0, %v2395
          %2397 = vmatmul.f32.gmra.mxu0 %v2334
          %v2398 = vpop.f32.mrf.mxu0
          %v2399 = vadd.f32 0.0, %v2398
          %2400 = vdwg.mxu0
          %v2401 = vmul.f32 %v2354, %v980
          %v2402 = vmul.f32 %v2357, %v981
          %v2403 = vmul.f32 %v2360, %v982
          %v2404 = vmul.f32 %v2363, %v983
          %v2405 = vmul.f32 %v2366, %v984
          %v2406 = vmul.f32 %v2369, %v985
          %v2407 = vmul.f32 %v2372, %v986
          %v2408 = vmul.f32 %v2375, %v987
          %v2409 = vmul.f32 %v2378, %v988
          %v2410 = vmul.f32 %v2381, %v989
          %v2411 = vmul.f32 %v2384, %v990
          %v2412 = vmul.f32 %v2387, %v991
          %v2413 = vmul.f32 %v2390, %v992
          %v2414 = vmul.f32 %v2393, %v993
          %v2415 = vmul.f32 %v2396, %v994
          %v2416 = vmul.f32 %v2399, %v995
          %2433 = vrot.lane.b32.xlu0 %v2401, 32
          %v2434 = vpop.permute.xlu0 %2433
          %2435 = vrot.lane.b32.xlu0 %v2402, 32
          %v2436 = vpop.permute.xlu0 %2435
          %2437 = vrot.lane.b32.xlu0 %v2403, 32
          %v2438 = vpop.permute.xlu0 %2437
          %2439 = vrot.lane.b32.xlu0 %v2404, 32
          %v2440 = vpop.permute.xlu0 %2439
          %2441 = vrot.lane.b32.xlu0 %v2405, 32
          %v2442 = vpop.permute.xlu0 %2441
          %2443 = vrot.lane.b32.xlu0 %v2406, 32
          %v2444 = vpop.permute.xlu0 %2443
          %2445 = vrot.lane.b32.xlu0 %v2407, 32
          %v2446 = vpop.permute.xlu0 %2445
          %2447 = vrot.lane.b32.xlu0 %v2408, 32
          %v2448 = vpop.permute.xlu0 %2447
          %2449 = vrot.lane.b32.xlu0 %v2409, 32
          %v2450 = vpop.permute.xlu0 %2449
          %2451 = vrot.lane.b32.xlu0 %v2410, 32
          %v2452 = vpop.permute.xlu0 %2451
          %2453 = vrot.lane.b32.xlu0 %v2411, 32
          %v2454 = vpop.permute.xlu0 %2453
          %2455 = vrot.lane.b32.xlu0 %v2412, 32
          %v2456 = vpop.permute.xlu0 %2455
          %2457 = vrot.lane.b32.xlu0 %v2413, 32
          %v2458 = vpop.permute.xlu0 %2457
          %2459 = vrot.lane.b32.xlu0 %v2414, 32
          %v2460 = vpop.permute.xlu0 %2459
          %2461 = vrot.lane.b32.xlu0 %v2415, 32
          %v2462 = vpop.permute.xlu0 %2461
          %2463 = vrot.lane.b32.xlu0 %v2416, 32
          %v2464 = vpop.permute.xlu0 %2463
          %v2481 = vadd.f32 %v2256, %v2434
          %v2482 = vadd.f32 %v2257, %v2436
          %v2483 = vadd.f32 %v2258, %v2438
          %v2484 = vadd.f32 %v2259, %v2440
          %v2485 = vadd.f32 %v2260, %v2442
          %v2486 = vadd.f32 %v2261, %v2444
          %v2487 = vadd.f32 %v2262, %v2446
          %v2488 = vadd.f32 %v2263, %v2448
          %v2489 = vadd.f32 %v2264, %v2450
          %v2490 = vadd.f32 %v2265, %v2452
          %v2491 = vadd.f32 %v2266, %v2454
          %v2492 = vadd.f32 %v2267, %v2456
          %v2493 = vadd.f32 %v2268, %v2458
          %v2494 = vadd.f32 %v2269, %v2460
          %v2495 = vadd.f32 %v2270, %v2462
          %v2496 = vadd.f32 %v2271, %v2464
          %2513 = vrot.lane.b32.xlu0 %v996, 32
          %v2514 = vpop.permute.xlu0 %2513
          %2515 = vrot.lane.b32.xlu0 %v997, 32
          %v2516 = vpop.permute.xlu0 %2515
          %2517 = vrot.lane.b32.xlu0 %v998, 32
          %v2518 = vpop.permute.xlu0 %2517
          %2519 = vrot.lane.b32.xlu0 %v999, 32
          %v2520 = vpop.permute.xlu0 %2519
          %2521 = vrot.lane.b32.xlu0 %v1000, 32
          %v2522 = vpop.permute.xlu0 %2521
          %2523 = vrot.lane.b32.xlu0 %v1001, 32
          %v2524 = vpop.permute.xlu0 %2523
          %2525 = vrot.lane.b32.xlu0 %v1002, 32
          %v2526 = vpop.permute.xlu0 %2525
          %2527 = vrot.lane.b32.xlu0 %v1003, 32
          %v2528 = vpop.permute.xlu0 %2527
          %2529 = vrot.lane.b32.xlu0 %v1004, 32
          %v2530 = vpop.permute.xlu0 %2529
          %2531 = vrot.lane.b32.xlu0 %v1005, 32
          %v2532 = vpop.permute.xlu0 %2531
          %2533 = vrot.lane.b32.xlu0 %v1006, 32
          %v2534 = vpop.permute.xlu0 %2533
          %2535 = vrot.lane.b32.xlu0 %v1007, 32
          %v2536 = vpop.permute.xlu0 %2535
          %2537 = vrot.lane.b32.xlu0 %v1008, 32
          %v2538 = vpop.permute.xlu0 %2537
          %2539 = vrot.lane.b32.xlu0 %v1009, 32
          %v2540 = vpop.permute.xlu0 %2539
          %2541 = vrot.lane.b32.xlu0 %v1010, 32
          %v2542 = vpop.permute.xlu0 %2541
          %2543 = vrot.lane.b32.xlu0 %v1011, 32
          %v2544 = vpop.permute.xlu0 %2543
          %v2561 = vmul.f32 %v1044, %v2514
          %v2562 = vmul.f32 %v1045, %v2516
          %v2563 = vmul.f32 %v1046, %v2518
          %v2564 = vmul.f32 %v1047, %v2520
          %v2565 = vmul.f32 %v1048, %v2522
          %v2566 = vmul.f32 %v1049, %v2524
          %v2567 = vmul.f32 %v1050, %v2526
          %v2568 = vmul.f32 %v1051, %v2528
          %v2569 = vmul.f32 %v1052, %v2530
          %v2570 = vmul.f32 %v1053, %v2532
          %v2571 = vmul.f32 %v1054, %v2534
          %v2572 = vmul.f32 %v1055, %v2536
          %v2573 = vmul.f32 %v1056, %v2538
          %v2574 = vmul.f32 %v1057, %v2540
          %v2575 = vmul.f32 %v1058, %v2542
          %v2576 = vmul.f32 %v1059, %v2544
          %2577 = vrot.lane.b32.xlu0 %v1044, 96
          %v2578 = vpop.permute.xlu0 %2577
          %2579 = vrot.lane.b32.xlu0 %v1045, 96
          %v2580 = vpop.permute.xlu0 %2579
          %2581 = vrot.lane.b32.xlu0 %v1046, 96
          %v2582 = vpop.permute.xlu0 %2581
          %2583 = vrot.lane.b32.xlu0 %v1047, 96
          %v2584 = vpop.permute.xlu0 %2583
          %2585 = vrot.lane.b32.xlu0 %v1048, 96
          %v2586 = vpop.permute.xlu0 %2585
          %2587 = vrot.lane.b32.xlu0 %v1049, 96
          %v2588 = vpop.permute.xlu0 %2587
          %2589 = vrot.lane.b32.xlu0 %v1050, 96
          %v2590 = vpop.permute.xlu0 %2589
          %2591 = vrot.lane.b32.xlu0 %v1051, 96
          %v2592 = vpop.permute.xlu0 %2591
          %2593 = vrot.lane.b32.xlu0 %v1052, 96
          %v2594 = vpop.permute.xlu0 %2593
          %2595 = vrot.lane.b32.xlu0 %v1053, 96
          %v2596 = vpop.permute.xlu0 %2595
          %2597 = vrot.lane.b32.xlu0 %v1054, 96
          %v2598 = vpop.permute.xlu0 %2597
          %2599 = vrot.lane.b32.xlu0 %v1055, 96
          %v2600 = vpop.permute.xlu0 %2599
          %2601 = vrot.lane.b32.xlu0 %v1056, 96
          %v2602 = vpop.permute.xlu0 %2601
          %2603 = vrot.lane.b32.xlu0 %v1057, 96
          %v2604 = vpop.permute.xlu0 %2603
          %2605 = vrot.lane.b32.xlu0 %v1058, 96
          %v2606 = vpop.permute.xlu0 %2605
          %2607 = vrot.lane.b32.xlu0 %v1059, 96
          %v2608 = vpop.permute.xlu0 %2607
          %v2609 = vsel %vm1146, %v2578, 0
          %v2611 = vsel %vm1146, %v2580, 0
          %v2613 = vsel %vm1146, %v2582, 0
          %v2615 = vsel %vm1146, %v2584, 0
          %v2617 = vsel %vm1146, %v2586, 0
          %v2619 = vsel %vm1146, %v2588, 0
          %v2621 = vsel %vm1146, %v2590, 0
          %v2623 = vsel %vm1146, %v2592, 0
          %v2625 = vsel %vm1146, %v2594, 0
          %v2627 = vsel %vm1146, %v2596, 0
          %v2629 = vsel %vm1146, %v2598, 0
          %v2631 = vsel %vm1146, %v2600, 0
          %v2633 = vsel %vm1146, %v2602, 0
          %v2635 = vsel %vm1146, %v2604, 0
          %v2637 = vsel %vm1146, %v2606, 0
          %v2639 = vsel %vm1146, %v2608, 0
          %2641 = vmatpush.msra.mxu0 0.0
          %2642 = vmatpush.msra.mxu0 0.0
          %2643 = vmatpush.msra.mxu0 0.0
          %2644 = vmatpush.msra.mxu0 0.0
          %2645 = vmatpush.msra.mxu0 0.0
          %2646 = vmatpush.msra.mxu0 0.0
          %2647 = vmatpush.msra.mxu0 0.0
          %2648 = vmatpush.msra.mxu0 0.0
          %2649 = vmatpush.msra.mxu0 0.0
          %2650 = vmatpush.msra.mxu0 0.0
          %2651 = vmatpush.msra.mxu0 0.0
          %2652 = vmatpush.msra.mxu0 0.0
          %2653 = vmatpush.msra.mxu0 %v931
          %2654 = vmatpush.msra.mxu0 %v930
          %2655 = vmatpush.msra.mxu0 %v929
          %2656 = vmatpush.msra.mxu0 %v928
          %2657 = vmatmul.f32.gmra.mxu0 %v2609
          %v2658 = vpop.f32.mrf.mxu0
          %v2659 = vadd.f32 0.0, %v2658
          %2660 = vmatmul.f32.gmra.mxu0 %v2611
          %v2661 = vpop.f32.mrf.mxu0
          %v2662 = vadd.f32 0.0, %v2661
          %2663 = vmatmul.f32.gmra.mxu0 %v2613
          %v2664 = vpop.f32.mrf.mxu0
          %v2665 = vadd.f32 0.0, %v2664
          %2666 = vmatmul.f32.gmra.mxu0 %v2615
          %v2667 = vpop.f32.mrf.mxu0
          %v2668 = vadd.f32 0.0, %v2667
          %2669 = vmatmul.f32.gmra.mxu0 %v2617
          %v2670 = vpop.f32.mrf.mxu0
          %v2671 = vadd.f32 0.0, %v2670
          %2672 = vmatmul.f32.gmra.mxu0 %v2619
          %v2673 = vpop.f32.mrf.mxu0
          %v2674 = vadd.f32 0.0, %v2673
          %2675 = vmatmul.f32.gmra.mxu0 %v2621
          %v2676 = vpop.f32.mrf.mxu0
          %v2677 = vadd.f32 0.0, %v2676
          %2678 = vmatmul.f32.gmra.mxu0 %v2623
          %v2679 = vpop.f32.mrf.mxu0
          %v2680 = vadd.f32 0.0, %v2679
          %2681 = vmatmul.f32.gmra.mxu0 %v2625
          %v2682 = vpop.f32.mrf.mxu0
          %v2683 = vadd.f32 0.0, %v2682
          %2684 = vmatmul.f32.gmra.mxu0 %v2627
          %v2685 = vpop.f32.mrf.mxu0
          %v2686 = vadd.f32 0.0, %v2685
          %2687 = vmatmul.f32.gmra.mxu0 %v2629
          %v2688 = vpop.f32.mrf.mxu0
          %v2689 = vadd.f32 0.0, %v2688
          %2690 = vmatmul.f32.gmra.mxu0 %v2631
          %v2691 = vpop.f32.mrf.mxu0
          %v2692 = vadd.f32 0.0, %v2691
          %2693 = vmatmul.f32.gmra.mxu0 %v2633
          %v2694 = vpop.f32.mrf.mxu0
          %v2695 = vadd.f32 0.0, %v2694
          %2696 = vmatmul.f32.gmra.mxu0 %v2635
          %v2697 = vpop.f32.mrf.mxu0
          %v2698 = vadd.f32 0.0, %v2697
          %2699 = vmatmul.f32.gmra.mxu0 %v2637
          %v2700 = vpop.f32.mrf.mxu0
          %v2701 = vadd.f32 0.0, %v2700
          %2702 = vmatmul.f32.gmra.mxu0 %v2639
          %v2703 = vpop.f32.mrf.mxu0
          %v2704 = vadd.f32 0.0, %v2703
          %2705 = vdwg.mxu0
          %v2706 = vmul.f32 %v2659, %v1012
          %v2707 = vmul.f32 %v2662, %v1013
          %v2708 = vmul.f32 %v2665, %v1014
          %v2709 = vmul.f32 %v2668, %v1015
          %v2710 = vmul.f32 %v2671, %v1016
          %v2711 = vmul.f32 %v2674, %v1017
          %v2712 = vmul.f32 %v2677, %v1018
          %v2713 = vmul.f32 %v2680, %v1019
          %v2714 = vmul.f32 %v2683, %v1020
          %v2715 = vmul.f32 %v2686, %v1021
          %v2716 = vmul.f32 %v2689, %v1022
          %v2717 = vmul.f32 %v2692, %v1023
          %v2718 = vmul.f32 %v2695, %v1024
          %v2719 = vmul.f32 %v2698, %v1025
          %v2720 = vmul.f32 %v2701, %v1026
          %v2721 = vmul.f32 %v2704, %v1027
          %2738 = vrot.lane.b32.xlu0 %v2706, 32
          %v2739 = vpop.permute.xlu0 %2738
          %2740 = vrot.lane.b32.xlu0 %v2707, 32
          %v2741 = vpop.permute.xlu0 %2740
          %2742 = vrot.lane.b32.xlu0 %v2708, 32
          %v2743 = vpop.permute.xlu0 %2742
          %2744 = vrot.lane.b32.xlu0 %v2709, 32
          %v2745 = vpop.permute.xlu0 %2744
          %2746 = vrot.lane.b32.xlu0 %v2710, 32
          %v2747 = vpop.permute.xlu0 %2746
          %2748 = vrot.lane.b32.xlu0 %v2711, 32
          %v2749 = vpop.permute.xlu0 %2748
          %2750 = vrot.lane.b32.xlu0 %v2712, 32
          %v2751 = vpop.permute.xlu0 %2750
          %2752 = vrot.lane.b32.xlu0 %v2713, 32
          %v2753 = vpop.permute.xlu0 %2752
          %2754 = vrot.lane.b32.xlu0 %v2714, 32
          %v2755 = vpop.permute.xlu0 %2754
          %2756 = vrot.lane.b32.xlu0 %v2715, 32
          %v2757 = vpop.permute.xlu0 %2756
          %2758 = vrot.lane.b32.xlu0 %v2716, 32
          %v2759 = vpop.permute.xlu0 %2758
          %2760 = vrot.lane.b32.xlu0 %v2717, 32
          %v2761 = vpop.permute.xlu0 %2760
          %2762 = vrot.lane.b32.xlu0 %v2718, 32
          %v2763 = vpop.permute.xlu0 %2762
          %2764 = vrot.lane.b32.xlu0 %v2719, 32
          %v2765 = vpop.permute.xlu0 %2764
          %2766 = vrot.lane.b32.xlu0 %v2720, 32
          %v2767 = vpop.permute.xlu0 %2766
          %2768 = vrot.lane.b32.xlu0 %v2721, 32
          %v2769 = vpop.permute.xlu0 %2768
          %v2786 = vadd.f32 %v2561, %v2739
          %v2787 = vadd.f32 %v2562, %v2741
          %v2788 = vadd.f32 %v2563, %v2743
          %v2789 = vadd.f32 %v2564, %v2745
          %v2790 = vadd.f32 %v2565, %v2747
          %v2791 = vadd.f32 %v2566, %v2749
          %v2792 = vadd.f32 %v2567, %v2751
          %v2793 = vadd.f32 %v2568, %v2753
          %v2794 = vadd.f32 %v2569, %v2755
          %v2795 = vadd.f32 %v2570, %v2757
          %v2796 = vadd.f32 %v2571, %v2759
          %v2797 = vadd.f32 %v2572, %v2761
          %v2798 = vadd.f32 %v2573, %v2763
          %v2799 = vadd.f32 %v2574, %v2765
          %v2800 = vadd.f32 %v2575, %v2767
          %v2801 = vadd.f32 %v2576, %v2769
          %2818 = vrot.lane.b32.xlu0 %v2481, 96
          %v2819 = vpop.permute.xlu0 %2818
          %2820 = vrot.lane.b32.xlu0 %v2482, 96
          %v2821 = vpop.permute.xlu0 %2820
          %2822 = vrot.lane.b32.xlu0 %v2483, 96
          %v2823 = vpop.permute.xlu0 %2822
          %2824 = vrot.lane.b32.xlu0 %v2484, 96
          %v2825 = vpop.permute.xlu0 %2824
          %2826 = vrot.lane.b32.xlu0 %v2485, 96
          %v2827 = vpop.permute.xlu0 %2826
          %2828 = vrot.lane.b32.xlu0 %v2486, 96
          %v2829 = vpop.permute.xlu0 %2828
          %2830 = vrot.lane.b32.xlu0 %v2487, 96
          %v2831 = vpop.permute.xlu0 %2830
          %2832 = vrot.lane.b32.xlu0 %v2488, 96
          %v2833 = vpop.permute.xlu0 %2832
          %2834 = vrot.lane.b32.xlu0 %v2489, 96
          %v2835 = vpop.permute.xlu0 %2834
          %2836 = vrot.lane.b32.xlu0 %v2490, 96
          %v2837 = vpop.permute.xlu0 %2836
          %2838 = vrot.lane.b32.xlu0 %v2491, 96
          %v2839 = vpop.permute.xlu0 %2838
          %2840 = vrot.lane.b32.xlu0 %v2492, 96
          %v2841 = vpop.permute.xlu0 %2840
          %2842 = vrot.lane.b32.xlu0 %v2493, 96
          %v2843 = vpop.permute.xlu0 %2842
          %2844 = vrot.lane.b32.xlu0 %v2494, 96
          %v2845 = vpop.permute.xlu0 %2844
          %2846 = vrot.lane.b32.xlu0 %v2495, 96
          %v2847 = vpop.permute.xlu0 %2846
          %2848 = vrot.lane.b32.xlu0 %v2496, 96
          %v2849 = vpop.permute.xlu0 %2848
          %2866 = vrot.lane.b32.xlu0 %v2786, 96
          %v2867 = vpop.permute.xlu0 %2866
          %2868 = vrot.lane.b32.xlu0 %v2787, 96
          %v2869 = vpop.permute.xlu0 %2868
          %2870 = vrot.lane.b32.xlu0 %v2788, 96
          %v2871 = vpop.permute.xlu0 %2870
          %2872 = vrot.lane.b32.xlu0 %v2789, 96
          %v2873 = vpop.permute.xlu0 %2872
          %2874 = vrot.lane.b32.xlu0 %v2790, 96
          %v2875 = vpop.permute.xlu0 %2874
          %2876 = vrot.lane.b32.xlu0 %v2791, 96
          %v2877 = vpop.permute.xlu0 %2876
          %2878 = vrot.lane.b32.xlu0 %v2792, 96
          %v2879 = vpop.permute.xlu0 %2878
          %2880 = vrot.lane.b32.xlu0 %v2793, 96
          %v2881 = vpop.permute.xlu0 %2880
          %2882 = vrot.lane.b32.xlu0 %v2794, 96
          %v2883 = vpop.permute.xlu0 %2882
          %2884 = vrot.lane.b32.xlu0 %v2795, 96
          %v2885 = vpop.permute.xlu0 %2884
          %2886 = vrot.lane.b32.xlu0 %v2796, 96
          %v2887 = vpop.permute.xlu0 %2886
          %2888 = vrot.lane.b32.xlu0 %v2797, 96
          %v2889 = vpop.permute.xlu0 %2888
          %2890 = vrot.lane.b32.xlu0 %v2798, 96
          %v2891 = vpop.permute.xlu0 %2890
          %2892 = vrot.lane.b32.xlu0 %v2799, 96
          %v2893 = vpop.permute.xlu0 %2892
          %2894 = vrot.lane.b32.xlu0 %v2800, 96
          %v2895 = vpop.permute.xlu0 %2894
          %2896 = vrot.lane.b32.xlu0 %v2801, 96
          %v2897 = vpop.permute.xlu0 %2896
          %v2898 = vsel %vm1146, %v2819, 0
          %v2900 = vsel %vm1146, %v2821, 0
          %v2902 = vsel %vm1146, %v2823, 0
          %v2904 = vsel %vm1146, %v2825, 0
          %v2906 = vsel %vm1146, %v2827, 0
          %v2908 = vsel %vm1146, %v2829, 0
          %v2910 = vsel %vm1146, %v2831, 0
          %v2912 = vsel %vm1146, %v2833, 0
          %v2914 = vsel %vm1146, %v2835, 0
          %v2916 = vsel %vm1146, %v2837, 0
          %v2918 = vsel %vm1146, %v2839, 0
          %v2920 = vsel %vm1146, %v2841, 0
          %v2922 = vsel %vm1146, %v2843, 0
          %v2924 = vsel %vm1146, %v2845, 0
          %v2926 = vsel %vm1146, %v2847, 0
          %v2928 = vsel %vm1146, %v2849, 0
          %v2930 = vsel %vm1146, %v2867, 0
          %v2932 = vsel %vm1146, %v2869, 0
          %v2934 = vsel %vm1146, %v2871, 0
          %v2936 = vsel %vm1146, %v2873, 0
          %v2938 = vsel %vm1146, %v2875, 0
          %v2940 = vsel %vm1146, %v2877, 0
          %v2942 = vsel %vm1146, %v2879, 0
          %v2944 = vsel %vm1146, %v2881, 0
          %v2946 = vsel %vm1146, %v2883, 0
          %v2948 = vsel %vm1146, %v2885, 0
          %v2950 = vsel %vm1146, %v2887, 0
          %v2952 = vsel %vm1146, %v2889, 0
          %v2954 = vsel %vm1146, %v2891, 0
          %v2956 = vsel %vm1146, %v2893, 0
          %v2958 = vsel %vm1146, %v2895, 0
          %v2960 = vsel %vm1146, %v2897, 0
          %2962 = vmatpush.xpose.msra.mxu0 %v2960
          %2963 = vmatpush.xpose.msra.mxu0 %v2958
          %2964 = vmatpush.xpose.msra.mxu0 %v2956
          %2965 = vmatpush.xpose.msra.mxu0 %v2954
          %2966 = vmatpush.xpose.msra.mxu0 %v2952
          %2967 = vmatpush.xpose.msra.mxu0 %v2950
          %2968 = vmatpush.xpose.msra.mxu0 %v2948
          %2969 = vmatpush.xpose.msra.mxu0 %v2946
          %2970 = vmatpush.xpose.msra.mxu0 %v2944
          %2971 = vmatpush.xpose.msra.mxu0 %v2942
          %2972 = vmatpush.xpose.msra.mxu0 %v2940
          %2973 = vmatpush.xpose.msra.mxu0 %v2938
          %2974 = vmatpush.xpose.msra.mxu0 %v2936
          %2975 = vmatpush.xpose.msra.mxu0 %v2934
          %2976 = vmatpush.xpose.msra.mxu0 %v2932
          %2977 = vmatpush.xpose.msra.mxu0 %v2930
          %2978 = vmatmul.f32.gmra.mxu0 %v2898
          %v2979 = vpop.f32.mrf.mxu0
          %v2980 = vadd.f32 0.0, %v2979
          %2981 = vmatmul.f32.gmra.mxu0 %v2900
          %v2982 = vpop.f32.mrf.mxu0
          %v2983 = vadd.f32 0.0, %v2982
          %2984 = vmatmul.f32.gmra.mxu0 %v2902
          %v2985 = vpop.f32.mrf.mxu0
          %v2986 = vadd.f32 0.0, %v2985
          %2987 = vmatmul.f32.gmra.mxu0 %v2904
          %v2988 = vpop.f32.mrf.mxu0
          %v2989 = vadd.f32 0.0, %v2988
          %2990 = vmatmul.f32.gmra.mxu0 %v2906
          %v2991 = vpop.f32.mrf.mxu0
          %v2992 = vadd.f32 0.0, %v2991
          %2993 = vmatmul.f32.gmra.mxu0 %v2908
          %v2994 = vpop.f32.mrf.mxu0
          %v2995 = vadd.f32 0.0, %v2994
          %2996 = vmatmul.f32.gmra.mxu0 %v2910
          %v2997 = vpop.f32.mrf.mxu0
          %v2998 = vadd.f32 0.0, %v2997
          %2999 = vmatmul.f32.gmra.mxu0 %v2912
          %v3000 = vpop.f32.mrf.mxu0
          %v3001 = vadd.f32 0.0, %v3000
          %3002 = vmatmul.f32.gmra.mxu0 %v2914
          %v3003 = vpop.f32.mrf.mxu0
          %v3004 = vadd.f32 0.0, %v3003
          %3005 = vmatmul.f32.gmra.mxu0 %v2916
          %v3006 = vpop.f32.mrf.mxu0
          %v3007 = vadd.f32 0.0, %v3006
          %3008 = vmatmul.f32.gmra.mxu0 %v2918
          %v3009 = vpop.f32.mrf.mxu0
          %v3010 = vadd.f32 0.0, %v3009
          %3011 = vmatmul.f32.gmra.mxu0 %v2920
          %v3012 = vpop.f32.mrf.mxu0
          %v3013 = vadd.f32 0.0, %v3012
          %3014 = vmatmul.f32.gmra.mxu0 %v2922
          %v3015 = vpop.f32.mrf.mxu0
          %v3016 = vadd.f32 0.0, %v3015
          %3017 = vmatmul.f32.gmra.mxu0 %v2924
          %v3018 = vpop.f32.mrf.mxu0
          %v3019 = vadd.f32 0.0, %v3018
          %3020 = vmatmul.f32.gmra.mxu0 %v2926
          %v3021 = vpop.f32.mrf.mxu0
          %v3022 = vadd.f32 0.0, %v3021
          %3023 = vmatmul.f32.gmra.mxu0 %v2928
          %v3024 = vpop.f32.mrf.mxu0
          %v3025 = vadd.f32 0.0, %v3024
          %3026 = vdwg.mxu0
          %v3027 = vsel %vm1114, %v2980, -inf
          %v3028 = vsel %vm1115, %v2983, -inf
          %v3029 = vsel %vm1116, %v2986, -inf
          %v3030 = vsel %vm1117, %v2989, -inf
          %v3031 = vsel %vm1118, %v2992, -inf
          %v3032 = vsel %vm1119, %v2995, -inf
          %v3033 = vsel %vm1120, %v2998, -inf
          %v3034 = vsel %vm1121, %v3001, -inf
          %v3035 = vsel %vm1122, %v3004, -inf
          %v3036 = vsel %vm1123, %v3007, -inf
          %v3037 = vsel %vm1124, %v3010, -inf
          %v3038 = vsel %vm1125, %v3013, -inf
          %v3039 = vsel %vm1126, %v3016, -inf
          %v3040 = vsel %vm1127, %v3019, -inf
          %v3041 = vsel %vm1128, %v3022, -inf
          %v3042 = vsel %vm1129, %v3025, -inf
          %s3043 = scalar_lea.vmem [#allocation2], 128
          %v3044 = vld [vmem:[%s3043] sm:$0xff]
          %v3045 = vld [vmem:[%s3043 + $0x8] sm:$0xff]
          %v3046 = vld [vmem:[%s3043 + $0x10] sm:$0xff]
          %v3047 = vld [vmem:[%s3043 + $0x18] sm:$0xff]
          %v3048 = vld [vmem:[%s3043 + $0x20] sm:$0xff]
          %v3049 = vld [vmem:[%s3043 + $0x28] sm:$0xff]
          %v3050 = vld [vmem:[%s3043 + $0x30] sm:$0xff]
          %v3051 = vld [vmem:[%s3043 + $0x38] sm:$0xff]
          %v3052 = vld [vmem:[%s3043 + $0x40] sm:$0xff]
          %v3053 = vld [vmem:[%s3043 + $0x48] sm:$0xff]
          %v3054 = vld [vmem:[%s3043 + $0x50] sm:$0xff]
          %v3055 = vld [vmem:[%s3043 + $0x58] sm:$0xff]
          %v3056 = vld [vmem:[%s3043 + $0x60] sm:$0xff]
          %v3057 = vld [vmem:[%s3043 + $0x68] sm:$0xff]
          %v3058 = vld [vmem:[%s3043 + $0x70] sm:$0xff]
          %v3059 = vld [vmem:[%s3043 + $0x78] sm:$0xff]
          %3060 = vmax.xlane.f32.xlu0 %v3027
          %v3061 = vpop.xlane.xlu0 %3060
          %3062 = vmax.xlane.f32.xlu0 %v3028
          %v3063 = vpop.xlane.xlu0 %3062
          %3064 = vmax.xlane.f32.xlu0 %v3029
          %v3065 = vpop.xlane.xlu0 %3064
          %3066 = vmax.xlane.f32.xlu0 %v3030
          %v3067 = vpop.xlane.xlu0 %3066
          %3068 = vmax.xlane.f32.xlu0 %v3031
          %v3069 = vpop.xlane.xlu0 %3068
          %3070 = vmax.xlane.f32.xlu0 %v3032
          %v3071 = vpop.xlane.xlu0 %3070
          %3072 = vmax.xlane.f32.xlu0 %v3033
          %v3073 = vpop.xlane.xlu0 %3072
          %3074 = vmax.xlane.f32.xlu0 %v3034
          %v3075 = vpop.xlane.xlu0 %3074
          %3076 = vmax.xlane.f32.xlu0 %v3035
          %v3077 = vpop.xlane.xlu0 %3076
          %3078 = vmax.xlane.f32.xlu0 %v3036
          %v3079 = vpop.xlane.xlu0 %3078
          %3080 = vmax.xlane.f32.xlu0 %v3037
          %v3081 = vpop.xlane.xlu0 %3080
          %3082 = vmax.xlane.f32.xlu0 %v3038
          %v3083 = vpop.xlane.xlu0 %3082
          %3084 = vmax.xlane.f32.xlu0 %v3039
          %v3085 = vpop.xlane.xlu0 %3084
          %3086 = vmax.xlane.f32.xlu0 %v3040
          %v3087 = vpop.xlane.xlu0 %3086
          %3088 = vmax.xlane.f32.xlu0 %v3041
          %v3089 = vpop.xlane.xlu0 %3088
          %3090 = vmax.xlane.f32.xlu0 %v3042
          %v3091 = vpop.xlane.xlu0 %3090
          %v3092 = vmax.f32 %v3044, %v3061
          %v3093 = vmax.f32 %v3045, %v3063
          %v3094 = vmax.f32 %v3046, %v3065
          %v3095 = vmax.f32 %v3047, %v3067
          %v3096 = vmax.f32 %v3048, %v3069
          %v3097 = vmax.f32 %v3049, %v3071
          %v3098 = vmax.f32 %v3050, %v3073
          %v3099 = vmax.f32 %v3051, %v3075
          %v3100 = vmax.f32 %v3052, %v3077
          %v3101 = vmax.f32 %v3053, %v3079
          %v3102 = vmax.f32 %v3054, %v3081
          %v3103 = vmax.f32 %v3055, %v3083
          %v3104 = vmax.f32 %v3056, %v3085
          %v3105 = vmax.f32 %v3057, %v3087
          %v3106 = vmax.f32 %v3058, %v3089
          %v3107 = vmax.f32 %v3059, %v3091
          %v3108 = vsub.f32 %v3044, %v3092
          %v3109 = vsub.f32 %v3045, %v3093
          %v3110 = vsub.f32 %v3046, %v3094
          %v3111 = vsub.f32 %v3047, %v3095
          %v3112 = vsub.f32 %v3048, %v3096
          %v3113 = vsub.f32 %v3049, %v3097
          %v3114 = vsub.f32 %v3050, %v3098
          %v3115 = vsub.f32 %v3051, %v3099
          %v3116 = vsub.f32 %v3052, %v3100
          %v3117 = vsub.f32 %v3053, %v3101
          %v3118 = vsub.f32 %v3054, %v3102
          %v3119 = vsub.f32 %v3055, %v3103
          %v3120 = vsub.f32 %v3056, %v3104
          %v3121 = vsub.f32 %v3057, %v3105
          %v3122 = vsub.f32 %v3058, %v3106
          %v3123 = vsub.f32 %v3059, %v3107
          %v3124 = vmul.f32 %v3108, 1.442695
          %v3125 = vpow.pop %v3124
          %v3126 = vmul.f32 %v3109, 1.442695
          %v3127 = vpow.pop %v3126
          %v3128 = vmul.f32 %v3110, 1.442695
          %v3129 = vpow.pop %v3128
          %v3130 = vmul.f32 %v3111, 1.442695
          %v3131 = vpow.pop %v3130
          %v3132 = vmul.f32 %v3112, 1.442695
          %v3133 = vpow.pop %v3132
          %v3134 = vmul.f32 %v3113, 1.442695
          %v3135 = vpow.pop %v3134
          %v3136 = vmul.f32 %v3114, 1.442695
          %v3137 = vpow.pop %v3136
          %v3138 = vmul.f32 %v3115, 1.442695
          %v3139 = vpow.pop %v3138
          %v3140 = vmul.f32 %v3116, 1.442695
          %v3141 = vpow.pop %v3140
          %v3142 = vmul.f32 %v3117, 1.442695
          %v3143 = vpow.pop %v3142
          %v3144 = vmul.f32 %v3118, 1.442695
          %v3145 = vpow.pop %v3144
          %v3146 = vmul.f32 %v3119, 1.442695
          %v3147 = vpow.pop %v3146
          %v3148 = vmul.f32 %v3120, 1.442695
          %v3149 = vpow.pop %v3148
          %v3150 = vmul.f32 %v3121, 1.442695
          %v3151 = vpow.pop %v3150
          %v3152 = vmul.f32 %v3122, 1.442695
          %v3153 = vpow.pop %v3152
          %v3154 = vmul.f32 %v3123, 1.442695
          %v3155 = vpow.pop %v3154
          %3157 = vset.pattern.permute.xlu0 0
          %3158 = vperm.xlu0 %3157, %v3092
          %v3159 = vpop.permute.xlu0 %3158
          %3162 = vset.pattern.permute.xlu0 0
          %3163 = vperm.xlu0 %3162, %v3093
          %v3164 = vpop.permute.xlu0 %3163
          %3167 = vset.pattern.permute.xlu0 0
          %3168 = vperm.xlu0 %3167, %v3094
          %v3169 = vpop.permute.xlu0 %3168
          %3172 = vset.pattern.permute.xlu0 0
          %3173 = vperm.xlu0 %3172, %v3095
          %v3174 = vpop.permute.xlu0 %3173
          %3177 = vset.pattern.permute.xlu0 0
          %3178 = vperm.xlu0 %3177, %v3096
          %v3179 = vpop.permute.xlu0 %3178
          %3182 = vset.pattern.permute.xlu0 0
          %3183 = vperm.xlu0 %3182, %v3097
          %v3184 = vpop.permute.xlu0 %3183
          %3187 = vset.pattern.permute.xlu0 0
          %3188 = vperm.xlu0 %3187, %v3098
          %v3189 = vpop.permute.xlu0 %3188
          %3192 = vset.pattern.permute.xlu0 0
          %3193 = vperm.xlu0 %3192, %v3099
          %v3194 = vpop.permute.xlu0 %3193
          %3197 = vset.pattern.permute.xlu0 0
          %3198 = vperm.xlu0 %3197, %v3100
          %v3199 = vpop.permute.xlu0 %3198
          %3202 = vset.pattern.permute.xlu0 0
          %3203 = vperm.xlu0 %3202, %v3101
          %v3204 = vpop.permute.xlu0 %3203
          %3207 = vset.pattern.permute.xlu0 0
          %3208 = vperm.xlu0 %3207, %v3102
          %v3209 = vpop.permute.xlu0 %3208
          %3212 = vset.pattern.permute.xlu0 0
          %3213 = vperm.xlu0 %3212, %v3103
          %v3214 = vpop.permute.xlu0 %3213
          %3217 = vset.pattern.permute.xlu0 0
          %3218 = vperm.xlu0 %3217, %v3104
          %v3219 = vpop.permute.xlu0 %3218
          %3222 = vset.pattern.permute.xlu0 0
          %3223 = vperm.xlu0 %3222, %v3105
          %v3224 = vpop.permute.xlu0 %3223
          %3227 = vset.pattern.permute.xlu0 0
          %3228 = vperm.xlu0 %3227, %v3106
          %v3229 = vpop.permute.xlu0 %3228
          %3232 = vset.pattern.permute.xlu0 0
          %3233 = vperm.xlu0 %3232, %v3107
          %v3234 = vpop.permute.xlu0 %3233
          %v3236 = vsub.f32 %v3027, %v3159
          %v3237 = vsub.f32 %v3028, %v3164
          %v3238 = vsub.f32 %v3029, %v3169
          %v3239 = vsub.f32 %v3030, %v3174
          %v3240 = vsub.f32 %v3031, %v3179
          %v3241 = vsub.f32 %v3032, %v3184
          %v3242 = vsub.f32 %v3033, %v3189
          %v3243 = vsub.f32 %v3034, %v3194
          %v3244 = vsub.f32 %v3035, %v3199
          %v3245 = vsub.f32 %v3036, %v3204
          %v3246 = vsub.f32 %v3037, %v3209
          %v3247 = vsub.f32 %v3038, %v3214
          %v3248 = vsub.f32 %v3039, %v3219
          %v3249 = vsub.f32 %v3040, %v3224
          %v3250 = vsub.f32 %v3041, %v3229
          %v3251 = vsub.f32 %v3042, %v3234
          %v3252 = vmul.f32 %v3236, 1.442695
          %v3253 = vpow.pop %v3252
          %v3254 = vmul.f32 %v3237, 1.442695
          %v3255 = vpow.pop %v3254
          %v3256 = vmul.f32 %v3238, 1.442695
          %v3257 = vpow.pop %v3256
          %v3258 = vmul.f32 %v3239, 1.442695
          %v3259 = vpow.pop %v3258
          %v3260 = vmul.f32 %v3240, 1.442695
          %v3261 = vpow.pop %v3260
          %v3262 = vmul.f32 %v3241, 1.442695
          %v3263 = vpow.pop %v3262
          %v3264 = vmul.f32 %v3242, 1.442695
          %v3265 = vpow.pop %v3264
          %v3266 = vmul.f32 %v3243, 1.442695
          %v3267 = vpow.pop %v3266
          %v3268 = vmul.f32 %v3244, 1.442695
          %v3269 = vpow.pop %v3268
          %v3270 = vmul.f32 %v3245, 1.442695
          %v3271 = vpow.pop %v3270
          %v3272 = vmul.f32 %v3246, 1.442695
          %v3273 = vpow.pop %v3272
          %v3274 = vmul.f32 %v3247, 1.442695
          %v3275 = vpow.pop %v3274
          %v3276 = vmul.f32 %v3248, 1.442695
          %v3277 = vpow.pop %v3276
          %v3278 = vmul.f32 %v3249, 1.442695
          %v3279 = vpow.pop %v3278
          %v3280 = vmul.f32 %v3250, 1.442695
          %v3281 = vpow.pop %v3280
          %v3282 = vmul.f32 %v3251, 1.442695
          %v3283 = vpow.pop %v3282
          %s3284 = scalar_lea.vmem [#allocation3], 128
          %v3285 = vld [vmem:[%s3284] sm:$0xff]
          %v3286 = vld [vmem:[%s3284 + $0x8] sm:$0xff]
          %v3287 = vld [vmem:[%s3284 + $0x10] sm:$0xff]
          %v3288 = vld [vmem:[%s3284 + $0x18] sm:$0xff]
          %v3289 = vld [vmem:[%s3284 + $0x20] sm:$0xff]
          %v3290 = vld [vmem:[%s3284 + $0x28] sm:$0xff]
          %v3291 = vld [vmem:[%s3284 + $0x30] sm:$0xff]
          %v3292 = vld [vmem:[%s3284 + $0x38] sm:$0xff]
          %v3293 = vld [vmem:[%s3284 + $0x40] sm:$0xff]
          %v3294 = vld [vmem:[%s3284 + $0x48] sm:$0xff]
          %v3295 = vld [vmem:[%s3284 + $0x50] sm:$0xff]
          %v3296 = vld [vmem:[%s3284 + $0x58] sm:$0xff]
          %v3297 = vld [vmem:[%s3284 + $0x60] sm:$0xff]
          %v3298 = vld [vmem:[%s3284 + $0x68] sm:$0xff]
          %v3299 = vld [vmem:[%s3284 + $0x70] sm:$0xff]
          %v3300 = vld [vmem:[%s3284 + $0x78] sm:$0xff]
          %v3301 = vmul.f32 %v3125, %v3285
          %v3302 = vmul.f32 %v3127, %v3286
          %v3303 = vmul.f32 %v3129, %v3287
          %v3304 = vmul.f32 %v3131, %v3288
          %v3305 = vmul.f32 %v3133, %v3289
          %v3306 = vmul.f32 %v3135, %v3290
          %v3307 = vmul.f32 %v3137, %v3291
          %v3308 = vmul.f32 %v3139, %v3292
          %v3309 = vmul.f32 %v3141, %v3293
          %v3310 = vmul.f32 %v3143, %v3294
          %v3311 = vmul.f32 %v3145, %v3295
          %v3312 = vmul.f32 %v3147, %v3296
          %v3313 = vmul.f32 %v3149, %v3297
          %v3314 = vmul.f32 %v3151, %v3298
          %v3315 = vmul.f32 %v3153, %v3299
          %v3316 = vmul.f32 %v3155, %v3300
          %3317 = vadd.xlane.f32.xlu0 %v3253
          %v3318 = vpop.xlane.xlu0 %3317
          %3319 = vadd.xlane.f32.xlu0 %v3255
          %v3320 = vpop.xlane.xlu0 %3319
          %3321 = vadd.xlane.f32.xlu0 %v3257
          %v3322 = vpop.xlane.xlu0 %3321
          %3323 = vadd.xlane.f32.xlu0 %v3259
          %v3324 = vpop.xlane.xlu0 %3323
          %3325 = vadd.xlane.f32.xlu0 %v3261
          %v3326 = vpop.xlane.xlu0 %3325
          %3327 = vadd.xlane.f32.xlu0 %v3263
          %v3328 = vpop.xlane.xlu0 %3327
          %3329 = vadd.xlane.f32.xlu0 %v3265
          %v3330 = vpop.xlane.xlu0 %3329
          %3331 = vadd.xlane.f32.xlu0 %v3267
          %v3332 = vpop.xlane.xlu0 %3331
          %3333 = vadd.xlane.f32.xlu0 %v3269
          %v3334 = vpop.xlane.xlu0 %3333
          %3335 = vadd.xlane.f32.xlu0 %v3271
          %v3336 = vpop.xlane.xlu0 %3335
          %3337 = vadd.xlane.f32.xlu0 %v3273
          %v3338 = vpop.xlane.xlu0 %3337
          %3339 = vadd.xlane.f32.xlu0 %v3275
          %v3340 = vpop.xlane.xlu0 %3339
          %3341 = vadd.xlane.f32.xlu0 %v3277
          %v3342 = vpop.xlane.xlu0 %3341
          %3343 = vadd.xlane.f32.xlu0 %v3279
          %v3344 = vpop.xlane.xlu0 %3343
          %3345 = vadd.xlane.f32.xlu0 %v3281
          %v3346 = vpop.xlane.xlu0 %3345
          %3347 = vadd.xlane.f32.xlu0 %v3283
          %v3348 = vpop.xlane.xlu0 %3347
          %v3349 = vadd.f32 %v3301, %v3318
          %v3350 = vadd.f32 %v3302, %v3320
          %v3351 = vadd.f32 %v3303, %v3322
          %v3352 = vadd.f32 %v3304, %v3324
          %v3353 = vadd.f32 %v3305, %v3326
          %v3354 = vadd.f32 %v3306, %v3328
          %v3355 = vadd.f32 %v3307, %v3330
          %v3356 = vadd.f32 %v3308, %v3332
          %v3357 = vadd.f32 %v3309, %v3334
          %v3358 = vadd.f32 %v3310, %v3336
          %v3359 = vadd.f32 %v3311, %v3338
          %v3360 = vadd.f32 %v3312, %v3340
          %v3361 = vadd.f32 %v3313, %v3342
          %v3362 = vadd.f32 %v3314, %v3344
          %v3363 = vadd.f32 %v3315, %v3346
          %v3364 = vadd.f32 %v3316, %v3348
          %3365 = vst.msk [vmem:[%s3284] sm:$0xff] %vm1950, %v3349
          %3366 = vst.msk [vmem:[%s3284 + $0x8] sm:$0xff] %vm1950, %v3350
          %3367 = vst.msk [vmem:[%s3284 + $0x10] sm:$0xff] %vm1950, %v3351
          %3368 = vst.msk [vmem:[%s3284 + $0x18] sm:$0xff] %vm1950, %v3352
          %3369 = vst.msk [vmem:[%s3284 + $0x20] sm:$0xff] %vm1950, %v3353
          %3370 = vst.msk [vmem:[%s3284 + $0x28] sm:$0xff] %vm1950, %v3354
          %3371 = vst.msk [vmem:[%s3284 + $0x30] sm:$0xff] %vm1950, %v3355
          %3372 = vst.msk [vmem:[%s3284 + $0x38] sm:$0xff] %vm1950, %v3356
          %3373 = vst.msk [vmem:[%s3284 + $0x40] sm:$0xff] %vm1950, %v3357
          %3374 = vst.msk [vmem:[%s3284 + $0x48] sm:$0xff] %vm1950, %v3358
          %3375 = vst.msk [vmem:[%s3284 + $0x50] sm:$0xff] %vm1950, %v3359
          %3376 = vst.msk [vmem:[%s3284 + $0x58] sm:$0xff] %vm1950, %v3360
          %3377 = vst.msk [vmem:[%s3284 + $0x60] sm:$0xff] %vm1950, %v3361
          %3378 = vst.msk [vmem:[%s3284 + $0x68] sm:$0xff] %vm1950, %v3362
          %3379 = vst.msk [vmem:[%s3284 + $0x70] sm:$0xff] %vm1950, %v3363
          %3380 = vst.msk [vmem:[%s3284 + $0x78] sm:$0xff] %vm1950, %v3364
          %v3381 = vld [vmem:[#allocation4] sm:$0xff]
          %v3382 = vld [vmem:[#allocation4 + $0x8] sm:$0xff]
          %v3383 = vld [vmem:[#allocation4 + $0x10] sm:$0xff]
          %v3384 = vld [vmem:[#allocation4 + $0x18] sm:$0xff]
          %v3385 = vld [vmem:[#allocation4 + $0x20] sm:$0xff]
          %v3386 = vld [vmem:[#allocation4 + $0x28] sm:$0xff]
          %v3387 = vld [vmem:[#allocation4 + $0x30] sm:$0xff]
          %v3388 = vld [vmem:[#allocation4 + $0x38] sm:$0xff]
          %v3389 = vld [vmem:[#allocation4 + $0x40] sm:$0xff]
          %v3390 = vld [vmem:[#allocation4 + $0x48] sm:$0xff]
          %v3391 = vld [vmem:[#allocation4 + $0x50] sm:$0xff]
          %v3392 = vld [vmem:[#allocation4 + $0x58] sm:$0xff]
          %v3393 = vld [vmem:[#allocation4 + $0x60] sm:$0xff]
          %v3394 = vld [vmem:[#allocation4 + $0x68] sm:$0xff]
          %v3395 = vld [vmem:[#allocation4 + $0x70] sm:$0xff]
          %v3396 = vld [vmem:[#allocation4 + $0x78] sm:$0xff]
          %3398 = vset.pattern.permute.xlu0 0
          %3399 = vperm.xlu0 %3398, %v3125
          %v3400 = vpop.permute.xlu0 %3399
          %3403 = vset.pattern.permute.xlu0 0
          %3404 = vperm.xlu0 %3403, %v3127
          %v3405 = vpop.permute.xlu0 %3404
          %3408 = vset.pattern.permute.xlu0 0
          %3409 = vperm.xlu0 %3408, %v3129
          %v3410 = vpop.permute.xlu0 %3409
          %3413 = vset.pattern.permute.xlu0 0
          %3414 = vperm.xlu0 %3413, %v3131
          %v3415 = vpop.permute.xlu0 %3414
          %3418 = vset.pattern.permute.xlu0 0
          %3419 = vperm.xlu0 %3418, %v3133
          %v3420 = vpop.permute.xlu0 %3419
          %3423 = vset.pattern.permute.xlu0 0
          %3424 = vperm.xlu0 %3423, %v3135
          %v3425 = vpop.permute.xlu0 %3424
          %3428 = vset.pattern.permute.xlu0 0
          %3429 = vperm.xlu0 %3428, %v3137
          %v3430 = vpop.permute.xlu0 %3429
          %3433 = vset.pattern.permute.xlu0 0
          %3434 = vperm.xlu0 %3433, %v3139
          %v3435 = vpop.permute.xlu0 %3434
          %3438 = vset.pattern.permute.xlu0 0
          %3439 = vperm.xlu0 %3438, %v3141
          %v3440 = vpop.permute.xlu0 %3439
          %3443 = vset.pattern.permute.xlu0 0
          %3444 = vperm.xlu0 %3443, %v3143
          %v3445 = vpop.permute.xlu0 %3444
          %3448 = vset.pattern.permute.xlu0 0
          %3449 = vperm.xlu0 %3448, %v3145
          %v3450 = vpop.permute.xlu0 %3449
          %3453 = vset.pattern.permute.xlu0 0
          %3454 = vperm.xlu0 %3453, %v3147
          %v3455 = vpop.permute.xlu0 %3454
          %3458 = vset.pattern.permute.xlu0 0
          %3459 = vperm.xlu0 %3458, %v3149
          %v3460 = vpop.permute.xlu0 %3459
          %3463 = vset.pattern.permute.xlu0 0
          %3464 = vperm.xlu0 %3463, %v3151
          %v3465 = vpop.permute.xlu0 %3464
          %3468 = vset.pattern.permute.xlu0 0
          %3469 = vperm.xlu0 %3468, %v3153
          %v3470 = vpop.permute.xlu0 %3469
          %3473 = vset.pattern.permute.xlu0 0
          %3474 = vperm.xlu0 %3473, %v3155
          %v3475 = vpop.permute.xlu0 %3474
          %v3477 = vmul.f32 %v3400, %v3381
          %v3478 = vmul.f32 %v3405, %v3382
          %v3479 = vmul.f32 %v3410, %v3383
          %v3480 = vmul.f32 %v3415, %v3384
          %v3481 = vmul.f32 %v3420, %v3385
          %v3482 = vmul.f32 %v3425, %v3386
          %v3483 = vmul.f32 %v3430, %v3387
          %v3484 = vmul.f32 %v3435, %v3388
          %v3485 = vmul.f32 %v3440, %v3389
          %v3486 = vmul.f32 %v3445, %v3390
          %v3487 = vmul.f32 %v3450, %v3391
          %v3488 = vmul.f32 %v3455, %v3392
          %v3489 = vmul.f32 %v3460, %v3393
          %v3490 = vmul.f32 %v3465, %v3394
          %v3491 = vmul.f32 %v3470, %v3395
          %v3492 = vmul.f32 %v3475, %v3396
          %3509 = vrot.lane.b32.xlu0 %v1060, 96
          %v3510 = vpop.permute.xlu0 %3509
          %3511 = vrot.lane.b32.xlu0 %v1061, 96
          %v3512 = vpop.permute.xlu0 %3511
          %3513 = vrot.lane.b32.xlu0 %v1062, 96
          %v3514 = vpop.permute.xlu0 %3513
          %3515 = vrot.lane.b32.xlu0 %v1063, 96
          %v3516 = vpop.permute.xlu0 %3515
          %3517 = vrot.lane.b32.xlu0 %v1064, 96
          %v3518 = vpop.permute.xlu0 %3517
          %3519 = vrot.lane.b32.xlu0 %v1065, 96
          %v3520 = vpop.permute.xlu0 %3519
          %3521 = vrot.lane.b32.xlu0 %v1066, 96
          %v3522 = vpop.permute.xlu0 %3521
          %3523 = vrot.lane.b32.xlu0 %v1067, 96
          %v3524 = vpop.permute.xlu0 %3523
          %3525 = vrot.lane.b32.xlu0 %v1068, 96
          %v3526 = vpop.permute.xlu0 %3525
          %3527 = vrot.lane.b32.xlu0 %v1069, 96
          %v3528 = vpop.permute.xlu0 %3527
          %3529 = vrot.lane.b32.xlu0 %v1070, 96
          %v3530 = vpop.permute.xlu0 %3529
          %3531 = vrot.lane.b32.xlu0 %v1071, 96
          %v3532 = vpop.permute.xlu0 %3531
          %3533 = vrot.lane.b32.xlu0 %v1072, 96
          %v3534 = vpop.permute.xlu0 %3533
          %3535 = vrot.lane.b32.xlu0 %v1073, 96
          %v3536 = vpop.permute.xlu0 %3535
          %3537 = vrot.lane.b32.xlu0 %v1074, 96
          %v3538 = vpop.permute.xlu0 %3537
          %3539 = vrot.lane.b32.xlu0 %v1075, 96
          %v3540 = vpop.permute.xlu0 %3539
          %3557 = vmatpush.msra.mxu0 %v3540
          %3558 = vmatpush.msra.mxu0 %v3538
          %3559 = vmatpush.msra.mxu0 %v3536
          %3560 = vmatpush.msra.mxu0 %v3534
          %3561 = vmatpush.msra.mxu0 %v3532
          %3562 = vmatpush.msra.mxu0 %v3530
          %3563 = vmatpush.msra.mxu0 %v3528
          %3564 = vmatpush.msra.mxu0 %v3526
          %3565 = vmatpush.msra.mxu0 %v3524
          %3566 = vmatpush.msra.mxu0 %v3522
          %3567 = vmatpush.msra.mxu0 %v3520
          %3568 = vmatpush.msra.mxu0 %v3518
          %3569 = vmatpush.msra.mxu0 %v3516
          %3570 = vmatpush.msra.mxu0 %v3514
          %3571 = vmatpush.msra.mxu0 %v3512
          %3572 = vmatpush.msra.mxu0 %v3510
          %3573 = vmatmul.f32.gmra.mxu0 %v3253
          %v3574 = vpop.f32.mrf.mxu0
          %v3575 = vadd.f32 0.0, %v3574
          %3576 = vmatmul.f32.gmra.mxu0 %v3255
          %v3577 = vpop.f32.mrf.mxu0
          %v3578 = vadd.f32 0.0, %v3577
          %3579 = vmatmul.f32.gmra.mxu0 %v3257
          %v3580 = vpop.f32.mrf.mxu0
          %v3581 = vadd.f32 0.0, %v3580
          %3582 = vmatmul.f32.gmra.mxu0 %v3259
          %v3583 = vpop.f32.mrf.mxu0
          %v3584 = vadd.f32 0.0, %v3583
          %3585 = vmatmul.f32.gmra.mxu0 %v3261
          %v3586 = vpop.f32.mrf.mxu0
          %v3587 = vadd.f32 0.0, %v3586
          %3588 = vmatmul.f32.gmra.mxu0 %v3263
          %v3589 = vpop.f32.mrf.mxu0
          %v3590 = vadd.f32 0.0, %v3589
          %3591 = vmatmul.f32.gmra.mxu0 %v3265
          %v3592 = vpop.f32.mrf.mxu0
          %v3593 = vadd.f32 0.0, %v3592
          %3594 = vmatmul.f32.gmra.mxu0 %v3267
          %v3595 = vpop.f32.mrf.mxu0
          %v3596 = vadd.f32 0.0, %v3595
          %3597 = vmatmul.f32.gmra.mxu0 %v3269
          %v3598 = vpop.f32.mrf.mxu0
          %v3599 = vadd.f32 0.0, %v3598
          %3600 = vmatmul.f32.gmra.mxu0 %v3271
          %v3601 = vpop.f32.mrf.mxu0
          %v3602 = vadd.f32 0.0, %v3601
          %3603 = vmatmul.f32.gmra.mxu0 %v3273
          %v3604 = vpop.f32.mrf.mxu0
          %v3605 = vadd.f32 0.0, %v3604
          %3606 = vmatmul.f32.gmra.mxu0 %v3275
          %v3607 = vpop.f32.mrf.mxu0
          %v3608 = vadd.f32 0.0, %v3607
          %3609 = vmatmul.f32.gmra.mxu0 %v3277
          %v3610 = vpop.f32.mrf.mxu0
          %v3611 = vadd.f32 0.0, %v3610
          %3612 = vmatmul.f32.gmra.mxu0 %v3279
          %v3613 = vpop.f32.mrf.mxu0
          %v3614 = vadd.f32 0.0, %v3613
          %3615 = vmatmul.f32.gmra.mxu0 %v3281
          %v3616 = vpop.f32.mrf.mxu0
          %v3617 = vadd.f32 0.0, %v3616
          %3618 = vmatmul.f32.gmra.mxu0 %v3283
          %v3619 = vpop.f32.mrf.mxu0
          %v3620 = vadd.f32 0.0, %v3619
          %3621 = vdwg.mxu0
          %3638 = vrot.lane.b32.xlu0 %v3575, 32
          %v3639 = vpop.permute.xlu0 %3638
          %3640 = vrot.lane.b32.xlu0 %v3578, 32
          %v3641 = vpop.permute.xlu0 %3640
          %3642 = vrot.lane.b32.xlu0 %v3581, 32
          %v3643 = vpop.permute.xlu0 %3642
          %3644 = vrot.lane.b32.xlu0 %v3584, 32
          %v3645 = vpop.permute.xlu0 %3644
          %3646 = vrot.lane.b32.xlu0 %v3587, 32
          %v3647 = vpop.permute.xlu0 %3646
          %3648 = vrot.lane.b32.xlu0 %v3590, 32
          %v3649 = vpop.permute.xlu0 %3648
          %3650 = vrot.lane.b32.xlu0 %v3593, 32
          %v3651 = vpop.permute.xlu0 %3650
          %3652 = vrot.lane.b32.xlu0 %v3596, 32
          %v3653 = vpop.permute.xlu0 %3652
          %3654 = vrot.lane.b32.xlu0 %v3599, 32
          %v3655 = vpop.permute.xlu0 %3654
          %3656 = vrot.lane.b32.xlu0 %v3602, 32
          %v3657 = vpop.permute.xlu0 %3656
          %3658 = vrot.lane.b32.xlu0 %v3605, 32
          %v3659 = vpop.permute.xlu0 %3658
          %3660 = vrot.lane.b32.xlu0 %v3608, 32
          %v3661 = vpop.permute.xlu0 %3660
          %3662 = vrot.lane.b32.xlu0 %v3611, 32
          %v3663 = vpop.permute.xlu0 %3662
          %3664 = vrot.lane.b32.xlu0 %v3614, 32
          %v3665 = vpop.permute.xlu0 %3664
          %3666 = vrot.lane.b32.xlu0 %v3617, 32
          %v3667 = vpop.permute.xlu0 %3666
          %3668 = vrot.lane.b32.xlu0 %v3620, 32
          %v3669 = vpop.permute.xlu0 %3668
          %v3686 = vadd.f32 %v3477, %v3639
          %v3687 = vadd.f32 %v3478, %v3641
          %v3688 = vadd.f32 %v3479, %v3643
          %v3689 = vadd.f32 %v3480, %v3645
          %v3690 = vadd.f32 %v3481, %v3647
          %v3691 = vadd.f32 %v3482, %v3649
          %v3692 = vadd.f32 %v3483, %v3651
          %v3693 = vadd.f32 %v3484, %v3653
          %v3694 = vadd.f32 %v3485, %v3655
          %v3695 = vadd.f32 %v3486, %v3657
          %v3696 = vadd.f32 %v3487, %v3659
          %v3697 = vadd.f32 %v3488, %v3661
          %v3698 = vadd.f32 %v3489, %v3663
          %v3699 = vadd.f32 %v3490, %v3665
          %v3700 = vadd.f32 %v3491, %v3667
          %v3701 = vadd.f32 %v3492, %v3669
          %vm3702 = vcmask 523520
          %3703 = vst.msk [vmem:[#allocation4] sm:$0xff] %vm3702, %v3686
          %3704 = vst.msk [vmem:[#allocation4 + $0x8] sm:$0xff] %vm3702, %v3687
          %3705 = vst.msk [vmem:[#allocation4 + $0x10] sm:$0xff] %vm3702, %v3688
          %3706 = vst.msk [vmem:[#allocation4 + $0x18] sm:$0xff] %vm3702, %v3689
          %3707 = vst.msk [vmem:[#allocation4 + $0x20] sm:$0xff] %vm3702, %v3690
          %3708 = vst.msk [vmem:[#allocation4 + $0x28] sm:$0xff] %vm3702, %v3691
          %3709 = vst.msk [vmem:[#allocation4 + $0x30] sm:$0xff] %vm3702, %v3692
          %3710 = vst.msk [vmem:[#allocation4 + $0x38] sm:$0xff] %vm3702, %v3693
          %3711 = vst.msk [vmem:[#allocation4 + $0x40] sm:$0xff] %vm3702, %v3694
          %3712 = vst.msk [vmem:[#allocation4 + $0x48] sm:$0xff] %vm3702, %v3695
          %3713 = vst.msk [vmem:[#allocation4 + $0x50] sm:$0xff] %vm3702, %v3696
          %3714 = vst.msk [vmem:[#allocation4 + $0x58] sm:$0xff] %vm3702, %v3697
          %3715 = vst.msk [vmem:[#allocation4 + $0x60] sm:$0xff] %vm3702, %v3698
          %3716 = vst.msk [vmem:[#allocation4 + $0x68] sm:$0xff] %vm3702, %v3699
          %3717 = vst.msk [vmem:[#allocation4 + $0x70] sm:$0xff] %vm3702, %v3700
          %3718 = vst.msk [vmem:[#allocation4 + $0x78] sm:$0xff] %vm3702, %v3701
          %3719 = vst.msk [vmem:[%s3043] sm:$0xff] %vm1950, %v3092
          %3720 = vst.msk [vmem:[%s3043 + $0x8] sm:$0xff] %vm1950, %v3093
          %3721 = vst.msk [vmem:[%s3043 + $0x10] sm:$0xff] %vm1950, %v3094
          %3722 = vst.msk [vmem:[%s3043 + $0x18] sm:$0xff] %vm1950, %v3095
          %3723 = vst.msk [vmem:[%s3043 + $0x20] sm:$0xff] %vm1950, %v3096
          %3724 = vst.msk [vmem:[%s3043 + $0x28] sm:$0xff] %vm1950, %v3097
          %3725 = vst.msk [vmem:[%s3043 + $0x30] sm:$0xff] %vm1950, %v3098
          %3726 = vst.msk [vmem:[%s3043 + $0x38] sm:$0xff] %vm1950, %v3099
          %3727 = vst.msk [vmem:[%s3043 + $0x40] sm:$0xff] %vm1950, %v3100
          %3728 = vst.msk [vmem:[%s3043 + $0x48] sm:$0xff] %vm1950, %v3101
          %3729 = vst.msk [vmem:[%s3043 + $0x50] sm:$0xff] %vm1950, %v3102
          %3730 = vst.msk [vmem:[%s3043 + $0x58] sm:$0xff] %vm1950, %v3103
          %3731 = vst.msk [vmem:[%s3043 + $0x60] sm:$0xff] %vm1950, %v3104
          %3732 = vst.msk [vmem:[%s3043 + $0x68] sm:$0xff] %vm1950, %v3105
          %3733 = vst.msk [vmem:[%s3043 + $0x70] sm:$0xff] %vm1950, %v3106
          %3734 = vst.msk [vmem:[%s3043 + $0x78] sm:$0xff] %vm1950, %v3107
          %3735 = vrot.lane.b32.xlu0 %v948, 64
          %v3736 = vpop.permute.xlu0 %3735
          %3737 = vrot.lane.b32.xlu0 %v949, 64
          %v3738 = vpop.permute.xlu0 %3737
          %3739 = vrot.lane.b32.xlu0 %v950, 64
          %v3740 = vpop.permute.xlu0 %3739
          %3741 = vrot.lane.b32.xlu0 %v951, 64
          %v3742 = vpop.permute.xlu0 %3741
          %3743 = vrot.lane.b32.xlu0 %v952, 64
          %v3744 = vpop.permute.xlu0 %3743
          %3745 = vrot.lane.b32.xlu0 %v953, 64
          %v3746 = vpop.permute.xlu0 %3745
          %3747 = vrot.lane.b32.xlu0 %v954, 64
          %v3748 = vpop.permute.xlu0 %3747
          %3749 = vrot.lane.b32.xlu0 %v955, 64
          %v3750 = vpop.permute.xlu0 %3749
          %3751 = vrot.lane.b32.xlu0 %v956, 64
          %v3752 = vpop.permute.xlu0 %3751
          %3753 = vrot.lane.b32.xlu0 %v957, 64
          %v3754 = vpop.permute.xlu0 %3753
          %3755 = vrot.lane.b32.xlu0 %v958, 64
          %v3756 = vpop.permute.xlu0 %3755
          %3757 = vrot.lane.b32.xlu0 %v959, 64
          %v3758 = vpop.permute.xlu0 %3757
          %3759 = vrot.lane.b32.xlu0 %v960, 64
          %v3760 = vpop.permute.xlu0 %3759
          %3761 = vrot.lane.b32.xlu0 %v961, 64
          %v3762 = vpop.permute.xlu0 %3761
          %3763 = vrot.lane.b32.xlu0 %v962, 64
          %v3764 = vpop.permute.xlu0 %3763
          %3765 = vrot.lane.b32.xlu0 %v963, 64
          %v3766 = vpop.permute.xlu0 %3765
          %v3783 = vmul.f32 %v1028, %v3736
          %v3784 = vmul.f32 %v1029, %v3738
          %v3785 = vmul.f32 %v1030, %v3740
          %v3786 = vmul.f32 %v1031, %v3742
          %v3787 = vmul.f32 %v1032, %v3744
          %v3788 = vmul.f32 %v1033, %v3746
          %v3789 = vmul.f32 %v1034, %v3748
          %v3790 = vmul.f32 %v1035, %v3750
          %v3791 = vmul.f32 %v1036, %v3752
          %v3792 = vmul.f32 %v1037, %v3754
          %v3793 = vmul.f32 %v1038, %v3756
          %v3794 = vmul.f32 %v1039, %v3758
          %v3795 = vmul.f32 %v1040, %v3760
          %v3796 = vmul.f32 %v1041, %v3762
          %v3797 = vmul.f32 %v1042, %v3764
          %v3798 = vmul.f32 %v1043, %v3766
          %3799 = vrot.lane.b32.xlu0 %v1028, 64
          %v3800 = vpop.permute.xlu0 %3799
          %3801 = vrot.lane.b32.xlu0 %v1029, 64
          %v3802 = vpop.permute.xlu0 %3801
          %3803 = vrot.lane.b32.xlu0 %v1030, 64
          %v3804 = vpop.permute.xlu0 %3803
          %3805 = vrot.lane.b32.xlu0 %v1031, 64
          %v3806 = vpop.permute.xlu0 %3805
          %3807 = vrot.lane.b32.xlu0 %v1032, 64
          %v3808 = vpop.permute.xlu0 %3807
          %3809 = vrot.lane.b32.xlu0 %v1033, 64
          %v3810 = vpop.permute.xlu0 %3809
          %3811 = vrot.lane.b32.xlu0 %v1034, 64
          %v3812 = vpop.permute.xlu0 %3811
          %3813 = vrot.lane.b32.xlu0 %v1035, 64
          %v3814 = vpop.permute.xlu0 %3813
          %3815 = vrot.lane.b32.xlu0 %v1036, 64
          %v3816 = vpop.permute.xlu0 %3815
          %3817 = vrot.lane.b32.xlu0 %v1037, 64
          %v3818 = vpop.permute.xlu0 %3817
          %3819 = vrot.lane.b32.xlu0 %v1038, 64
          %v3820 = vpop.permute.xlu0 %3819
          %3821 = vrot.lane.b32.xlu0 %v1039, 64
          %v3822 = vpop.permute.xlu0 %3821
          %3823 = vrot.lane.b32.xlu0 %v1040, 64
          %v3824 = vpop.permute.xlu0 %3823
          %3825 = vrot.lane.b32.xlu0 %v1041, 64
          %v3826 = vpop.permute.xlu0 %3825
          %3827 = vrot.lane.b32.xlu0 %v1042, 64
          %v3828 = vpop.permute.xlu0 %3827
          %3829 = vrot.lane.b32.xlu0 %v1043, 64
          %v3830 = vpop.permute.xlu0 %3829
          %v3831 = vsel %vm1146, %v3800, 0
          %v3833 = vsel %vm1146, %v3802, 0
          %v3835 = vsel %vm1146, %v3804, 0
          %v3837 = vsel %vm1146, %v3806, 0
          %v3839 = vsel %vm1146, %v3808, 0
          %v3841 = vsel %vm1146, %v3810, 0
          %v3843 = vsel %vm1146, %v3812, 0
          %v3845 = vsel %vm1146, %v3814, 0
          %v3847 = vsel %vm1146, %v3816, 0
          %v3849 = vsel %vm1146, %v3818, 0
          %v3851 = vsel %vm1146, %v3820, 0
          %v3853 = vsel %vm1146, %v3822, 0
          %v3855 = vsel %vm1146, %v3824, 0
          %v3857 = vsel %vm1146, %v3826, 0
          %v3859 = vsel %vm1146, %v3828, 0
          %v3861 = vsel %vm1146, %v3830, 0
          %3863 = vmatpush.msra.mxu0 0.0
          %3864 = vmatpush.msra.mxu0 0.0
          %3865 = vmatpush.msra.mxu0 0.0
          %3866 = vmatpush.msra.mxu0 0.0
          %3867 = vmatpush.msra.mxu0 0.0
          %3868 = vmatpush.msra.mxu0 0.0
          %3869 = vmatpush.msra.mxu0 0.0
          %3870 = vmatpush.msra.mxu0 0.0
          %3871 = vmatpush.msra.mxu0 0.0
          %3872 = vmatpush.msra.mxu0 0.0
          %3873 = vmatpush.msra.mxu0 0.0
          %3874 = vmatpush.msra.mxu0 0.0
          %3875 = vmatpush.msra.mxu0 %v931
          %3876 = vmatpush.msra.mxu0 %v930
          %3877 = vmatpush.msra.mxu0 %v929
          %3878 = vmatpush.msra.mxu0 %v928
          %3879 = vmatmul.f32.gmra.mxu0 %v3831
          %v3880 = vpop.f32.mrf.mxu0
          %v3881 = vadd.f32 0.0, %v3880
          %3882 = vmatmul.f32.gmra.mxu0 %v3833
          %v3883 = vpop.f32.mrf.mxu0
          %v3884 = vadd.f32 0.0, %v3883
          %3885 = vmatmul.f32.gmra.mxu0 %v3835
          %v3886 = vpop.f32.mrf.mxu0
          %v3887 = vadd.f32 0.0, %v3886
          %3888 = vmatmul.f32.gmra.mxu0 %v3837
          %v3889 = vpop.f32.mrf.mxu0
          %v3890 = vadd.f32 0.0, %v3889
          %3891 = vmatmul.f32.gmra.mxu0 %v3839
          %v3892 = vpop.f32.mrf.mxu0
          %v3893 = vadd.f32 0.0, %v3892
          %3894 = vmatmul.f32.gmra.mxu0 %v3841
          %v3895 = vpop.f32.mrf.mxu0
          %v3896 = vadd.f32 0.0, %v3895
          %3897 = vmatmul.f32.gmra.mxu0 %v3843
          %v3898 = vpop.f32.mrf.mxu0
          %v3899 = vadd.f32 0.0, %v3898
          %3900 = vmatmul.f32.gmra.mxu0 %v3845
          %v3901 = vpop.f32.mrf.mxu0
          %v3902 = vadd.f32 0.0, %v3901
          %3903 = vmatmul.f32.gmra.mxu0 %v3847
          %v3904 = vpop.f32.mrf.mxu0
          %v3905 = vadd.f32 0.0, %v3904
          %3906 = vmatmul.f32.gmra.mxu0 %v3849
          %v3907 = vpop.f32.mrf.mxu0
          %v3908 = vadd.f32 0.0, %v3907
          %3909 = vmatmul.f32.gmra.mxu0 %v3851
          %v3910 = vpop.f32.mrf.mxu0
          %v3911 = vadd.f32 0.0, %v3910
          %3912 = vmatmul.f32.gmra.mxu0 %v3853
          %v3913 = vpop.f32.mrf.mxu0
          %v3914 = vadd.f32 0.0, %v3913
          %3915 = vmatmul.f32.gmra.mxu0 %v3855
          %v3916 = vpop.f32.mrf.mxu0
          %v3917 = vadd.f32 0.0, %v3916
          %3918 = vmatmul.f32.gmra.mxu0 %v3857
          %v3919 = vpop.f32.mrf.mxu0
          %v3920 = vadd.f32 0.0, %v3919
          %3921 = vmatmul.f32.gmra.mxu0 %v3859
          %v3922 = vpop.f32.mrf.mxu0
          %v3923 = vadd.f32 0.0, %v3922
          %3924 = vmatmul.f32.gmra.mxu0 %v3861
          %v3925 = vpop.f32.mrf.mxu0
          %v3926 = vadd.f32 0.0, %v3925
          %3927 = vdwg.mxu0
          %v3928 = vmul.f32 %v3881, %v980
          %v3929 = vmul.f32 %v3884, %v981
          %v3930 = vmul.f32 %v3887, %v982
          %v3931 = vmul.f32 %v3890, %v983
          %v3932 = vmul.f32 %v3893, %v984
          %v3933 = vmul.f32 %v3896, %v985
          %v3934 = vmul.f32 %v3899, %v986
          %v3935 = vmul.f32 %v3902, %v987
          %v3936 = vmul.f32 %v3905, %v988
          %v3937 = vmul.f32 %v3908, %v989
          %v3938 = vmul.f32 %v3911, %v990
          %v3939 = vmul.f32 %v3914, %v991
          %v3940 = vmul.f32 %v3917, %v992
          %v3941 = vmul.f32 %v3920, %v993
          %v3942 = vmul.f32 %v3923, %v994
          %v3943 = vmul.f32 %v3926, %v995
          %3960 = vrot.lane.b32.xlu0 %v3928, 64
          %v3961 = vpop.permute.xlu0 %3960
          %3962 = vrot.lane.b32.xlu0 %v3929, 64
          %v3963 = vpop.permute.xlu0 %3962
          %3964 = vrot.lane.b32.xlu0 %v3930, 64
          %v3965 = vpop.permute.xlu0 %3964
          %3966 = vrot.lane.b32.xlu0 %v3931, 64
          %v3967 = vpop.permute.xlu0 %3966
          %3968 = vrot.lane.b32.xlu0 %v3932, 64
          %v3969 = vpop.permute.xlu0 %3968
          %3970 = vrot.lane.b32.xlu0 %v3933, 64
          %v3971 = vpop.permute.xlu0 %3970
          %3972 = vrot.lane.b32.xlu0 %v3934, 64
          %v3973 = vpop.permute.xlu0 %3972
          %3974 = vrot.lane.b32.xlu0 %v3935, 64
          %v3975 = vpop.permute.xlu0 %3974
          %3976 = vrot.lane.b32.xlu0 %v3936, 64
          %v3977 = vpop.permute.xlu0 %3976
          %3978 = vrot.lane.b32.xlu0 %v3937, 64
          %v3979 = vpop.permute.xlu0 %3978
          %3980 = vrot.lane.b32.xlu0 %v3938, 64
          %v3981 = vpop.permute.xlu0 %3980
          %3982 = vrot.lane.b32.xlu0 %v3939, 64
          %v3983 = vpop.permute.xlu0 %3982
          %3984 = vrot.lane.b32.xlu0 %v3940, 64
          %v3985 = vpop.permute.xlu0 %3984
          %3986 = vrot.lane.b32.xlu0 %v3941, 64
          %v3987 = vpop.permute.xlu0 %3986
          %3988 = vrot.lane.b32.xlu0 %v3942, 64
          %v3989 = vpop.permute.xlu0 %3988
          %3990 = vrot.lane.b32.xlu0 %v3943, 64
          %v3991 = vpop.permute.xlu0 %3990
          %v4008 = vadd.f32 %v3783, %v3961
          %v4009 = vadd.f32 %v3784, %v3963
          %v4010 = vadd.f32 %v3785, %v3965
          %v4011 = vadd.f32 %v3786, %v3967
          %v4012 = vadd.f32 %v3787, %v3969
          %v4013 = vadd.f32 %v3788, %v3971
          %v4014 = vadd.f32 %v3789, %v3973
          %v4015 = vadd.f32 %v3790, %v3975
          %v4016 = vadd.f32 %v3791, %v3977
          %v4017 = vadd.f32 %v3792, %v3979
          %v4018 = vadd.f32 %v3793, %v3981
          %v4019 = vadd.f32 %v3794, %v3983
          %v4020 = vadd.f32 %v3795, %v3985
          %v4021 = vadd.f32 %v3796, %v3987
          %v4022 = vadd.f32 %v3797, %v3989
          %v4023 = vadd.f32 %v3798, %v3991
          %4024 = vrot.lane.b32.xlu0 %v996, 64
          %v4025 = vpop.permute.xlu0 %4024
          %4026 = vrot.lane.b32.xlu0 %v997, 64
          %v4027 = vpop.permute.xlu0 %4026
          %4028 = vrot.lane.b32.xlu0 %v998, 64
          %v4029 = vpop.permute.xlu0 %4028
          %4030 = vrot.lane.b32.xlu0 %v999, 64
          %v4031 = vpop.permute.xlu0 %4030
          %4032 = vrot.lane.b32.xlu0 %v1000, 64
          %v4033 = vpop.permute.xlu0 %4032
          %4034 = vrot.lane.b32.xlu0 %v1001, 64
          %v4035 = vpop.permute.xlu0 %4034
          %4036 = vrot.lane.b32.xlu0 %v1002, 64
          %v4037 = vpop.permute.xlu0 %4036
          %4038 = vrot.lane.b32.xlu0 %v1003, 64
          %v4039 = vpop.permute.xlu0 %4038
          %4040 = vrot.lane.b32.xlu0 %v1004, 64
          %v4041 = vpop.permute.xlu0 %4040
          %4042 = vrot.lane.b32.xlu0 %v1005, 64
          %v4043 = vpop.permute.xlu0 %4042
          %4044 = vrot.lane.b32.xlu0 %v1006, 64
          %v4045 = vpop.permute.xlu0 %4044
          %4046 = vrot.lane.b32.xlu0 %v1007, 64
          %v4047 = vpop.permute.xlu0 %4046
          %4048 = vrot.lane.b32.xlu0 %v1008, 64
          %v4049 = vpop.permute.xlu0 %4048
          %4050 = vrot.lane.b32.xlu0 %v1009, 64
          %v4051 = vpop.permute.xlu0 %4050
          %4052 = vrot.lane.b32.xlu0 %v1010, 64
          %v4053 = vpop.permute.xlu0 %4052
          %4054 = vrot.lane.b32.xlu0 %v1011, 64
          %v4055 = vpop.permute.xlu0 %4054
          %v4072 = vmul.f32 %v1044, %v4025
          %v4073 = vmul.f32 %v1045, %v4027
          %v4074 = vmul.f32 %v1046, %v4029
          %v4075 = vmul.f32 %v1047, %v4031
          %v4076 = vmul.f32 %v1048, %v4033
          %v4077 = vmul.f32 %v1049, %v4035
          %v4078 = vmul.f32 %v1050, %v4037
          %v4079 = vmul.f32 %v1051, %v4039
          %v4080 = vmul.f32 %v1052, %v4041
          %v4081 = vmul.f32 %v1053, %v4043
          %v4082 = vmul.f32 %v1054, %v4045
          %v4083 = vmul.f32 %v1055, %v4047
          %v4084 = vmul.f32 %v1056, %v4049
          %v4085 = vmul.f32 %v1057, %v4051
          %v4086 = vmul.f32 %v1058, %v4053
          %v4087 = vmul.f32 %v1059, %v4055
          %4088 = vrot.lane.b32.xlu0 %v1044, 64
          %v4089 = vpop.permute.xlu0 %4088
          %4090 = vrot.lane.b32.xlu0 %v1045, 64
          %v4091 = vpop.permute.xlu0 %4090
          %4092 = vrot.lane.b32.xlu0 %v1046, 64
          %v4093 = vpop.permute.xlu0 %4092
          %4094 = vrot.lane.b32.xlu0 %v1047, 64
          %v4095 = vpop.permute.xlu0 %4094
          %4096 = vrot.lane.b32.xlu0 %v1048, 64
          %v4097 = vpop.permute.xlu0 %4096
          %4098 = vrot.lane.b32.xlu0 %v1049, 64
          %v4099 = vpop.permute.xlu0 %4098
          %4100 = vrot.lane.b32.xlu0 %v1050, 64
          %v4101 = vpop.permute.xlu0 %4100
          %4102 = vrot.lane.b32.xlu0 %v1051, 64
          %v4103 = vpop.permute.xlu0 %4102
          %4104 = vrot.lane.b32.xlu0 %v1052, 64
          %v4105 = vpop.permute.xlu0 %4104
          %4106 = vrot.lane.b32.xlu0 %v1053, 64
          %v4107 = vpop.permute.xlu0 %4106
          %4108 = vrot.lane.b32.xlu0 %v1054, 64
          %v4109 = vpop.permute.xlu0 %4108
          %4110 = vrot.lane.b32.xlu0 %v1055, 64
          %v4111 = vpop.permute.xlu0 %4110
          %4112 = vrot.lane.b32.xlu0 %v1056, 64
          %v4113 = vpop.permute.xlu0 %4112
          %4114 = vrot.lane.b32.xlu0 %v1057, 64
          %v4115 = vpop.permute.xlu0 %4114
          %4116 = vrot.lane.b32.xlu0 %v1058, 64
          %v4117 = vpop.permute.xlu0 %4116
          %4118 = vrot.lane.b32.xlu0 %v1059, 64
          %v4119 = vpop.permute.xlu0 %4118
          %v4120 = vsel %vm1146, %v4089, 0
          %v4122 = vsel %vm1146, %v4091, 0
          %v4124 = vsel %vm1146, %v4093, 0
          %v4126 = vsel %vm1146, %v4095, 0
          %v4128 = vsel %vm1146, %v4097, 0
          %v4130 = vsel %vm1146, %v4099, 0
          %v4132 = vsel %vm1146, %v4101, 0
          %v4134 = vsel %vm1146, %v4103, 0
          %v4136 = vsel %vm1146, %v4105, 0
          %v4138 = vsel %vm1146, %v4107, 0
          %v4140 = vsel %vm1146, %v4109, 0
          %v4142 = vsel %vm1146, %v4111, 0
          %v4144 = vsel %vm1146, %v4113, 0
          %v4146 = vsel %vm1146, %v4115, 0
          %v4148 = vsel %vm1146, %v4117, 0
          %v4150 = vsel %vm1146, %v4119, 0
          %4152 = vmatpush.msra.mxu0 0.0
          %4153 = vmatpush.msra.mxu0 0.0
          %4154 = vmatpush.msra.mxu0 0.0
          %4155 = vmatpush.msra.mxu0 0.0
          %4156 = vmatpush.msra.mxu0 0.0
          %4157 = vmatpush.msra.mxu0 0.0
          %4158 = vmatpush.msra.mxu0 0.0
          %4159 = vmatpush.msra.mxu0 0.0
          %4160 = vmatpush.msra.mxu0 0.0
          %4161 = vmatpush.msra.mxu0 0.0
          %4162 = vmatpush.msra.mxu0 0.0
          %4163 = vmatpush.msra.mxu0 0.0
          %4164 = vmatpush.msra.mxu0 %v931
          %4165 = vmatpush.msra.mxu0 %v930
          %4166 = vmatpush.msra.mxu0 %v929
          %4167 = vmatpush.msra.mxu0 %v928
          %4168 = vmatmul.f32.gmra.mxu0 %v4120
          %v4169 = vpop.f32.mrf.mxu0
          %v4170 = vadd.f32 0.0, %v4169
          %4171 = vmatmul.f32.gmra.mxu0 %v4122
          %v4172 = vpop.f32.mrf.mxu0
          %v4173 = vadd.f32 0.0, %v4172
          %4174 = vmatmul.f32.gmra.mxu0 %v4124
          %v4175 = vpop.f32.mrf.mxu0
          %v4176 = vadd.f32 0.0, %v4175
          %4177 = vmatmul.f32.gmra.mxu0 %v4126
          %v4178 = vpop.f32.mrf.mxu0
          %v4179 = vadd.f32 0.0, %v4178
          %4180 = vmatmul.f32.gmra.mxu0 %v4128
          %v4181 = vpop.f32.mrf.mxu0
          %v4182 = vadd.f32 0.0, %v4181
          %4183 = vmatmul.f32.gmra.mxu0 %v4130
          %v4184 = vpop.f32.mrf.mxu0
          %v4185 = vadd.f32 0.0, %v4184
          %4186 = vmatmul.f32.gmra.mxu0 %v4132
          %v4187 = vpop.f32.mrf.mxu0
          %v4188 = vadd.f32 0.0, %v4187
          %4189 = vmatmul.f32.gmra.mxu0 %v4134
          %v4190 = vpop.f32.mrf.mxu0
          %v4191 = vadd.f32 0.0, %v4190
          %4192 = vmatmul.f32.gmra.mxu0 %v4136
          %v4193 = vpop.f32.mrf.mxu0
          %v4194 = vadd.f32 0.0, %v4193
          %4195 = vmatmul.f32.gmra.mxu0 %v4138
          %v4196 = vpop.f32.mrf.mxu0
          %v4197 = vadd.f32 0.0, %v4196
          %4198 = vmatmul.f32.gmra.mxu0 %v4140
          %v4199 = vpop.f32.mrf.mxu0
          %v4200 = vadd.f32 0.0, %v4199
          %4201 = vmatmul.f32.gmra.mxu0 %v4142
          %v4202 = vpop.f32.mrf.mxu0
          %v4203 = vadd.f32 0.0, %v4202
          %4204 = vmatmul.f32.gmra.mxu0 %v4144
          %v4205 = vpop.f32.mrf.mxu0
          %v4206 = vadd.f32 0.0, %v4205
          %4207 = vmatmul.f32.gmra.mxu0 %v4146
          %v4208 = vpop.f32.mrf.mxu0
          %v4209 = vadd.f32 0.0, %v4208
          %4210 = vmatmul.f32.gmra.mxu0 %v4148
          %v4211 = vpop.f32.mrf.mxu0
          %v4212 = vadd.f32 0.0, %v4211
          %4213 = vmatmul.f32.gmra.mxu0 %v4150
          %v4214 = vpop.f32.mrf.mxu0
          %v4215 = vadd.f32 0.0, %v4214
          %4216 = vdwg.mxu0
          %v4217 = vmul.f32 %v4170, %v1012
          %v4218 = vmul.f32 %v4173, %v1013
          %v4219 = vmul.f32 %v4176, %v1014
          %v4220 = vmul.f32 %v4179, %v1015
          %v4221 = vmul.f32 %v4182, %v1016
          %v4222 = vmul.f32 %v4185, %v1017
          %v4223 = vmul.f32 %v4188, %v1018
          %v4224 = vmul.f32 %v4191, %v1019
          %v4225 = vmul.f32 %v4194, %v1020
          %v4226 = vmul.f32 %v4197, %v1021
          %v4227 = vmul.f32 %v4200, %v1022
          %v4228 = vmul.f32 %v4203, %v1023
          %v4229 = vmul.f32 %v4206, %v1024
          %v4230 = vmul.f32 %v4209, %v1025
          %v4231 = vmul.f32 %v4212, %v1026
          %v4232 = vmul.f32 %v4215, %v1027
          %4249 = vrot.lane.b32.xlu0 %v4217, 64
          %v4250 = vpop.permute.xlu0 %4249
          %4251 = vrot.lane.b32.xlu0 %v4218, 64
          %v4252 = vpop.permute.xlu0 %4251
          %4253 = vrot.lane.b32.xlu0 %v4219, 64
          %v4254 = vpop.permute.xlu0 %4253
          %4255 = vrot.lane.b32.xlu0 %v4220, 64
          %v4256 = vpop.permute.xlu0 %4255
          %4257 = vrot.lane.b32.xlu0 %v4221, 64
          %v4258 = vpop.permute.xlu0 %4257
          %4259 = vrot.lane.b32.xlu0 %v4222, 64
          %v4260 = vpop.permute.xlu0 %4259
          %4261 = vrot.lane.b32.xlu0 %v4223, 64
          %v4262 = vpop.permute.xlu0 %4261
          %4263 = vrot.lane.b32.xlu0 %v4224, 64
          %v4264 = vpop.permute.xlu0 %4263
          %4265 = vrot.lane.b32.xlu0 %v4225, 64
          %v4266 = vpop.permute.xlu0 %4265
          %4267 = vrot.lane.b32.xlu0 %v4226, 64
          %v4268 = vpop.permute.xlu0 %4267
          %4269 = vrot.lane.b32.xlu0 %v4227, 64
          %v4270 = vpop.permute.xlu0 %4269
          %4271 = vrot.lane.b32.xlu0 %v4228, 64
          %v4272 = vpop.permute.xlu0 %4271
          %4273 = vrot.lane.b32.xlu0 %v4229, 64
          %v4274 = vpop.permute.xlu0 %4273
          %4275 = vrot.lane.b32.xlu0 %v4230, 64
          %v4276 = vpop.permute.xlu0 %4275
          %4277 = vrot.lane.b32.xlu0 %v4231, 64
          %v4278 = vpop.permute.xlu0 %4277
          %4279 = vrot.lane.b32.xlu0 %v4232, 64
          %v4280 = vpop.permute.xlu0 %4279
          %v4297 = vadd.f32 %v4072, %v4250
          %v4298 = vadd.f32 %v4073, %v4252
          %v4299 = vadd.f32 %v4074, %v4254
          %v4300 = vadd.f32 %v4075, %v4256
          %v4301 = vadd.f32 %v4076, %v4258
          %v4302 = vadd.f32 %v4077, %v4260
          %v4303 = vadd.f32 %v4078, %v4262
          %v4304 = vadd.f32 %v4079, %v4264
          %v4305 = vadd.f32 %v4080, %v4266
          %v4306 = vadd.f32 %v4081, %v4268
          %v4307 = vadd.f32 %v4082, %v4270
          %v4308 = vadd.f32 %v4083, %v4272
          %v4309 = vadd.f32 %v4084, %v4274
          %v4310 = vadd.f32 %v4085, %v4276
          %v4311 = vadd.f32 %v4086, %v4278
          %v4312 = vadd.f32 %v4087, %v4280
          %4329 = vrot.lane.b32.xlu0 %v4008, 64
          %v4330 = vpop.permute.xlu0 %4329
          %4331 = vrot.lane.b32.xlu0 %v4009, 64
          %v4332 = vpop.permute.xlu0 %4331
          %4333 = vrot.lane.b32.xlu0 %v4010, 64
          %v4334 = vpop.permute.xlu0 %4333
          %4335 = vrot.lane.b32.xlu0 %v4011, 64
          %v4336 = vpop.permute.xlu0 %4335
          %4337 = vrot.lane.b32.xlu0 %v4012, 64
          %v4338 = vpop.permute.xlu0 %4337
          %4339 = vrot.lane.b32.xlu0 %v4013, 64
          %v4340 = vpop.permute.xlu0 %4339
          %4341 = vrot.lane.b32.xlu0 %v4014, 64
          %v4342 = vpop.permute.xlu0 %4341
          %4343 = vrot.lane.b32.xlu0 %v4015, 64
          %v4344 = vpop.permute.xlu0 %4343
          %4345 = vrot.lane.b32.xlu0 %v4016, 64
          %v4346 = vpop.permute.xlu0 %4345
          %4347 = vrot.lane.b32.xlu0 %v4017, 64
          %v4348 = vpop.permute.xlu0 %4347
          %4349 = vrot.lane.b32.xlu0 %v4018, 64
          %v4350 = vpop.permute.xlu0 %4349
          %4351 = vrot.lane.b32.xlu0 %v4019, 64
          %v4352 = vpop.permute.xlu0 %4351
          %4353 = vrot.lane.b32.xlu0 %v4020, 64
          %v4354 = vpop.permute.xlu0 %4353
          %4355 = vrot.lane.b32.xlu0 %v4021, 64
          %v4356 = vpop.permute.xlu0 %4355
          %4357 = vrot.lane.b32.xlu0 %v4022, 64
          %v4358 = vpop.permute.xlu0 %4357
          %4359 = vrot.lane.b32.xlu0 %v4023, 64
          %v4360 = vpop.permute.xlu0 %4359
          %4377 = vrot.lane.b32.xlu0 %v4297, 64
          %v4378 = vpop.permute.xlu0 %4377
          %4379 = vrot.lane.b32.xlu0 %v4298, 64
          %v4380 = vpop.permute.xlu0 %4379
          %4381 = vrot.lane.b32.xlu0 %v4299, 64
          %v4382 = vpop.permute.xlu0 %4381
          %4383 = vrot.lane.b32.xlu0 %v4300, 64
          %v4384 = vpop.permute.xlu0 %4383
          %4385 = vrot.lane.b32.xlu0 %v4301, 64
          %v4386 = vpop.permute.xlu0 %4385
          %4387 = vrot.lane.b32.xlu0 %v4302, 64
          %v4388 = vpop.permute.xlu0 %4387
          %4389 = vrot.lane.b32.xlu0 %v4303, 64
          %v4390 = vpop.permute.xlu0 %4389
          %4391 = vrot.lane.b32.xlu0 %v4304, 64
          %v4392 = vpop.permute.xlu0 %4391
          %4393 = vrot.lane.b32.xlu0 %v4305, 64
          %v4394 = vpop.permute.xlu0 %4393
          %4395 = vrot.lane.b32.xlu0 %v4306, 64
          %v4396 = vpop.permute.xlu0 %4395
          %4397 = vrot.lane.b32.xlu0 %v4307, 64
          %v4398 = vpop.permute.xlu0 %4397
          %4399 = vrot.lane.b32.xlu0 %v4308, 64
          %v4400 = vpop.permute.xlu0 %4399
          %4401 = vrot.lane.b32.xlu0 %v4309, 64
          %v4402 = vpop.permute.xlu0 %4401
          %4403 = vrot.lane.b32.xlu0 %v4310, 64
          %v4404 = vpop.permute.xlu0 %4403
          %4405 = vrot.lane.b32.xlu0 %v4311, 64
          %v4406 = vpop.permute.xlu0 %4405
          %4407 = vrot.lane.b32.xlu0 %v4312, 64
          %v4408 = vpop.permute.xlu0 %4407
          %v4409 = vsel %vm1146, %v4330, 0
          %v4411 = vsel %vm1146, %v4332, 0
          %v4413 = vsel %vm1146, %v4334, 0
          %v4415 = vsel %vm1146, %v4336, 0
          %v4417 = vsel %vm1146, %v4338, 0
          %v4419 = vsel %vm1146, %v4340, 0
          %v4421 = vsel %vm1146, %v4342, 0
          %v4423 = vsel %vm1146, %v4344, 0
          %v4425 = vsel %vm1146, %v4346, 0
          %v4427 = vsel %vm1146, %v4348, 0
          %v4429 = vsel %vm1146, %v4350, 0
          %v4431 = vsel %vm1146, %v4352, 0
          %v4433 = vsel %vm1146, %v4354, 0
          %v4435 = vsel %vm1146, %v4356, 0
          %v4437 = vsel %vm1146, %v4358, 0
          %v4439 = vsel %vm1146, %v4360, 0
          %v4441 = vsel %vm1146, %v4378, 0
          %v4443 = vsel %vm1146, %v4380, 0
          %v4445 = vsel %vm1146, %v4382, 0
          %v4447 = vsel %vm1146, %v4384, 0
          %v4449 = vsel %vm1146, %v4386, 0
          %v4451 = vsel %vm1146, %v4388, 0
          %v4453 = vsel %vm1146, %v4390, 0
          %v4455 = vsel %vm1146, %v4392, 0
          %v4457 = vsel %vm1146, %v4394, 0
          %v4459 = vsel %vm1146, %v4396, 0
          %v4461 = vsel %vm1146, %v4398, 0
          %v4463 = vsel %vm1146, %v4400, 0
          %v4465 = vsel %vm1146, %v4402, 0
          %v4467 = vsel %vm1146, %v4404, 0
          %v4469 = vsel %vm1146, %v4406, 0
          %v4471 = vsel %vm1146, %v4408, 0
          %4473 = vmatpush.xpose.msra.mxu0 %v4471
          %4474 = vmatpush.xpose.msra.mxu0 %v4469
          %4475 = vmatpush.xpose.msra.mxu0 %v4467
          %4476 = vmatpush.xpose.msra.mxu0 %v4465
          %4477 = vmatpush.xpose.msra.mxu0 %v4463
          %4478 = vmatpush.xpose.msra.mxu0 %v4461
          %4479 = vmatpush.xpose.msra.mxu0 %v4459
          %4480 = vmatpush.xpose.msra.mxu0 %v4457
          %4481 = vmatpush.xpose.msra.mxu0 %v4455
          %4482 = vmatpush.xpose.msra.mxu0 %v4453
          %4483 = vmatpush.xpose.msra.mxu0 %v4451
          %4484 = vmatpush.xpose.msra.mxu0 %v4449
          %4485 = vmatpush.xpose.msra.mxu0 %v4447
          %4486 = vmatpush.xpose.msra.mxu0 %v4445
          %4487 = vmatpush.xpose.msra.mxu0 %v4443
          %4488 = vmatpush.xpose.msra.mxu0 %v4441
          %4489 = vmatmul.f32.gmra.mxu0 %v4409
          %v4490 = vpop.f32.mrf.mxu0
          %v4491 = vadd.f32 0.0, %v4490
          %4492 = vmatmul.f32.gmra.mxu0 %v4411
          %v4493 = vpop.f32.mrf.mxu0
          %v4494 = vadd.f32 0.0, %v4493
          %4495 = vmatmul.f32.gmra.mxu0 %v4413
          %v4496 = vpop.f32.mrf.mxu0
          %v4497 = vadd.f32 0.0, %v4496
          %4498 = vmatmul.f32.gmra.mxu0 %v4415
          %v4499 = vpop.f32.mrf.mxu0
          %v4500 = vadd.f32 0.0, %v4499
          %4501 = vmatmul.f32.gmra.mxu0 %v4417
          %v4502 = vpop.f32.mrf.mxu0
          %v4503 = vadd.f32 0.0, %v4502
          %4504 = vmatmul.f32.gmra.mxu0 %v4419
          %v4505 = vpop.f32.mrf.mxu0
          %v4506 = vadd.f32 0.0, %v4505
          %4507 = vmatmul.f32.gmra.mxu0 %v4421
          %v4508 = vpop.f32.mrf.mxu0
          %v4509 = vadd.f32 0.0, %v4508
          %4510 = vmatmul.f32.gmra.mxu0 %v4423
          %v4511 = vpop.f32.mrf.mxu0
          %v4512 = vadd.f32 0.0, %v4511
          %4513 = vmatmul.f32.gmra.mxu0 %v4425
          %v4514 = vpop.f32.mrf.mxu0
          %v4515 = vadd.f32 0.0, %v4514
          %4516 = vmatmul.f32.gmra.mxu0 %v4427
          %v4517 = vpop.f32.mrf.mxu0
          %v4518 = vadd.f32 0.0, %v4517
          %4519 = vmatmul.f32.gmra.mxu0 %v4429
          %v4520 = vpop.f32.mrf.mxu0
          %v4521 = vadd.f32 0.0, %v4520
          %4522 = vmatmul.f32.gmra.mxu0 %v4431
          %v4523 = vpop.f32.mrf.mxu0
          %v4524 = vadd.f32 0.0, %v4523
          %4525 = vmatmul.f32.gmra.mxu0 %v4433
          %v4526 = vpop.f32.mrf.mxu0
          %v4527 = vadd.f32 0.0, %v4526
          %4528 = vmatmul.f32.gmra.mxu0 %v4435
          %v4529 = vpop.f32.mrf.mxu0
          %v4530 = vadd.f32 0.0, %v4529
          %4531 = vmatmul.f32.gmra.mxu0 %v4437
          %v4532 = vpop.f32.mrf.mxu0
          %v4533 = vadd.f32 0.0, %v4532
          %4534 = vmatmul.f32.gmra.mxu0 %v4439
          %v4535 = vpop.f32.mrf.mxu0
          %v4536 = vadd.f32 0.0, %v4535
          %4537 = vdwg.mxu0
          %v4538 = vsel %vm1114, %v4491, -inf
          %v4539 = vsel %vm1115, %v4494, -inf
          %v4540 = vsel %vm1116, %v4497, -inf
          %v4541 = vsel %vm1117, %v4500, -inf
          %v4542 = vsel %vm1118, %v4503, -inf
          %v4543 = vsel %vm1119, %v4506, -inf
          %v4544 = vsel %vm1120, %v4509, -inf
          %v4545 = vsel %vm1121, %v4512, -inf
          %v4546 = vsel %vm1122, %v4515, -inf
          %v4547 = vsel %vm1123, %v4518, -inf
          %v4548 = vsel %vm1124, %v4521, -inf
          %v4549 = vsel %vm1125, %v4524, -inf
          %v4550 = vsel %vm1126, %v4527, -inf
          %v4551 = vsel %vm1127, %v4530, -inf
          %v4552 = vsel %vm1128, %v4533, -inf
          %v4553 = vsel %vm1129, %v4536, -inf
          %s4554 = scalar_lea.vmem [#allocation2], 256
          %v4555 = vld [vmem:[%s4554] sm:$0xff]
          %v4556 = vld [vmem:[%s4554 + $0x8] sm:$0xff]
          %v4557 = vld [vmem:[%s4554 + $0x10] sm:$0xff]
          %v4558 = vld [vmem:[%s4554 + $0x18] sm:$0xff]
          %v4559 = vld [vmem:[%s4554 + $0x20] sm:$0xff]
          %v4560 = vld [vmem:[%s4554 + $0x28] sm:$0xff]
          %v4561 = vld [vmem:[%s4554 + $0x30] sm:$0xff]
          %v4562 = vld [vmem:[%s4554 + $0x38] sm:$0xff]
          %v4563 = vld [vmem:[%s4554 + $0x40] sm:$0xff]
          %v4564 = vld [vmem:[%s4554 + $0x48] sm:$0xff]
          %v4565 = vld [vmem:[%s4554 + $0x50] sm:$0xff]
          %v4566 = vld [vmem:[%s4554 + $0x58] sm:$0xff]
          %v4567 = vld [vmem:[%s4554 + $0x60] sm:$0xff]
          %v4568 = vld [vmem:[%s4554 + $0x68] sm:$0xff]
          %v4569 = vld [vmem:[%s4554 + $0x70] sm:$0xff]
          %v4570 = vld [vmem:[%s4554 + $0x78] sm:$0xff]
          %4571 = vmax.xlane.f32.xlu0 %v4538
          %v4572 = vpop.xlane.xlu0 %4571
          %4573 = vmax.xlane.f32.xlu0 %v4539
          %v4574 = vpop.xlane.xlu0 %4573
          %4575 = vmax.xlane.f32.xlu0 %v4540
          %v4576 = vpop.xlane.xlu0 %4575
          %4577 = vmax.xlane.f32.xlu0 %v4541
          %v4578 = vpop.xlane.xlu0 %4577
          %4579 = vmax.xlane.f32.xlu0 %v4542
          %v4580 = vpop.xlane.xlu0 %4579
          %4581 = vmax.xlane.f32.xlu0 %v4543
          %v4582 = vpop.xlane.xlu0 %4581
          %4583 = vmax.xlane.f32.xlu0 %v4544
          %v4584 = vpop.xlane.xlu0 %4583
          %4585 = vmax.xlane.f32.xlu0 %v4545
          %v4586 = vpop.xlane.xlu0 %4585
          %4587 = vmax.xlane.f32.xlu0 %v4546
          %v4588 = vpop.xlane.xlu0 %4587
          %4589 = vmax.xlane.f32.xlu0 %v4547
          %v4590 = vpop.xlane.xlu0 %4589
          %4591 = vmax.xlane.f32.xlu0 %v4548
          %v4592 = vpop.xlane.xlu0 %4591
          %4593 = vmax.xlane.f32.xlu0 %v4549
          %v4594 = vpop.xlane.xlu0 %4593
          %4595 = vmax.xlane.f32.xlu0 %v4550
          %v4596 = vpop.xlane.xlu0 %4595
          %4597 = vmax.xlane.f32.xlu0 %v4551
          %v4598 = vpop.xlane.xlu0 %4597
          %4599 = vmax.xlane.f32.xlu0 %v4552
          %v4600 = vpop.xlane.xlu0 %4599
          %4601 = vmax.xlane.f32.xlu0 %v4553
          %v4602 = vpop.xlane.xlu0 %4601
          %v4603 = vmax.f32 %v4555, %v4572
          %v4604 = vmax.f32 %v4556, %v4574
          %v4605 = vmax.f32 %v4557, %v4576
          %v4606 = vmax.f32 %v4558, %v4578
          %v4607 = vmax.f32 %v4559, %v4580
          %v4608 = vmax.f32 %v4560, %v4582
          %v4609 = vmax.f32 %v4561, %v4584
          %v4610 = vmax.f32 %v4562, %v4586
          %v4611 = vmax.f32 %v4563, %v4588
          %v4612 = vmax.f32 %v4564, %v4590
          %v4613 = vmax.f32 %v4565, %v4592
          %v4614 = vmax.f32 %v4566, %v4594
          %v4615 = vmax.f32 %v4567, %v4596
          %v4616 = vmax.f32 %v4568, %v4598
          %v4617 = vmax.f32 %v4569, %v4600
          %v4618 = vmax.f32 %v4570, %v4602
          %v4619 = vsub.f32 %v4555, %v4603
          %v4620 = vsub.f32 %v4556, %v4604
          %v4621 = vsub.f32 %v4557, %v4605
          %v4622 = vsub.f32 %v4558, %v4606
          %v4623 = vsub.f32 %v4559, %v4607
          %v4624 = vsub.f32 %v4560, %v4608
          %v4625 = vsub.f32 %v4561, %v4609
          %v4626 = vsub.f32 %v4562, %v4610
          %v4627 = vsub.f32 %v4563, %v4611
          %v4628 = vsub.f32 %v4564, %v4612
          %v4629 = vsub.f32 %v4565, %v4613
          %v4630 = vsub.f32 %v4566, %v4614
          %v4631 = vsub.f32 %v4567, %v4615
          %v4632 = vsub.f32 %v4568, %v4616
          %v4633 = vsub.f32 %v4569, %v4617
          %v4634 = vsub.f32 %v4570, %v4618
          %v4635 = vmul.f32 %v4619, 1.442695
          %v4636 = vpow.pop %v4635
          %v4637 = vmul.f32 %v4620, 1.442695
          %v4638 = vpow.pop %v4637
          %v4639 = vmul.f32 %v4621, 1.442695
          %v4640 = vpow.pop %v4639
          %v4641 = vmul.f32 %v4622, 1.442695
          %v4642 = vpow.pop %v4641
          %v4643 = vmul.f32 %v4623, 1.442695
          %v4644 = vpow.pop %v4643
          %v4645 = vmul.f32 %v4624, 1.442695
          %v4646 = vpow.pop %v4645
          %v4647 = vmul.f32 %v4625, 1.442695
          %v4648 = vpow.pop %v4647
          %v4649 = vmul.f32 %v4626, 1.442695
          %v4650 = vpow.pop %v4649
          %v4651 = vmul.f32 %v4627, 1.442695
          %v4652 = vpow.pop %v4651
          %v4653 = vmul.f32 %v4628, 1.442695
          %v4654 = vpow.pop %v4653
          %v4655 = vmul.f32 %v4629, 1.442695
          %v4656 = vpow.pop %v4655
          %v4657 = vmul.f32 %v4630, 1.442695
          %v4658 = vpow.pop %v4657
          %v4659 = vmul.f32 %v4631, 1.442695
          %v4660 = vpow.pop %v4659
          %v4661 = vmul.f32 %v4632, 1.442695
          %v4662 = vpow.pop %v4661
          %v4663 = vmul.f32 %v4633, 1.442695
          %v4664 = vpow.pop %v4663
          %v4665 = vmul.f32 %v4634, 1.442695
          %v4666 = vpow.pop %v4665
          %4668 = vset.pattern.permute.xlu0 0
          %4669 = vperm.xlu0 %4668, %v4603
          %v4670 = vpop.permute.xlu0 %4669
          %4673 = vset.pattern.permute.xlu0 0
          %4674 = vperm.xlu0 %4673, %v4604
          %v4675 = vpop.permute.xlu0 %4674
          %4678 = vset.pattern.permute.xlu0 0
          %4679 = vperm.xlu0 %4678, %v4605
          %v4680 = vpop.permute.xlu0 %4679
          %4683 = vset.pattern.permute.xlu0 0
          %4684 = vperm.xlu0 %4683, %v4606
          %v4685 = vpop.permute.xlu0 %4684
          %4688 = vset.pattern.permute.xlu0 0
          %4689 = vperm.xlu0 %4688, %v4607
          %v4690 = vpop.permute.xlu0 %4689
          %4693 = vset.pattern.permute.xlu0 0
          %4694 = vperm.xlu0 %4693, %v4608
          %v4695 = vpop.permute.xlu0 %4694
          %4698 = vset.pattern.permute.xlu0 0
          %4699 = vperm.xlu0 %4698, %v4609
          %v4700 = vpop.permute.xlu0 %4699
          %4703 = vset.pattern.permute.xlu0 0
          %4704 = vperm.xlu0 %4703, %v4610
          %v4705 = vpop.permute.xlu0 %4704
          %4708 = vset.pattern.permute.xlu0 0
          %4709 = vperm.xlu0 %4708, %v4611
          %v4710 = vpop.permute.xlu0 %4709
          %4713 = vset.pattern.permute.xlu0 0
          %4714 = vperm.xlu0 %4713, %v4612
          %v4715 = vpop.permute.xlu0 %4714
          %4718 = vset.pattern.permute.xlu0 0
          %4719 = vperm.xlu0 %4718, %v4613
          %v4720 = vpop.permute.xlu0 %4719
          %4723 = vset.pattern.permute.xlu0 0
          %4724 = vperm.xlu0 %4723, %v4614
          %v4725 = vpop.permute.xlu0 %4724
          %4728 = vset.pattern.permute.xlu0 0
          %4729 = vperm.xlu0 %4728, %v4615
          %v4730 = vpop.permute.xlu0 %4729
          %4733 = vset.pattern.permute.xlu0 0
          %4734 = vperm.xlu0 %4733, %v4616
          %v4735 = vpop.permute.xlu0 %4734
          %4738 = vset.pattern.permute.xlu0 0
          %4739 = vperm.xlu0 %4738, %v4617
          %v4740 = vpop.permute.xlu0 %4739
          %4743 = vset.pattern.permute.xlu0 0
          %4744 = vperm.xlu0 %4743, %v4618
          %v4745 = vpop.permute.xlu0 %4744
          %v4747 = vsub.f32 %v4538, %v4670
          %v4748 = vsub.f32 %v4539, %v4675
          %v4749 = vsub.f32 %v4540, %v4680
          %v4750 = vsub.f32 %v4541, %v4685
          %v4751 = vsub.f32 %v4542, %v4690
          %v4752 = vsub.f32 %v4543, %v4695
          %v4753 = vsub.f32 %v4544, %v4700
          %v4754 = vsub.f32 %v4545, %v4705
          %v4755 = vsub.f32 %v4546, %v4710
          %v4756 = vsub.f32 %v4547, %v4715
          %v4757 = vsub.f32 %v4548, %v4720
          %v4758 = vsub.f32 %v4549, %v4725
          %v4759 = vsub.f32 %v4550, %v4730
          %v4760 = vsub.f32 %v4551, %v4735
          %v4761 = vsub.f32 %v4552, %v4740
          %v4762 = vsub.f32 %v4553, %v4745
          %v4763 = vmul.f32 %v4747, 1.442695
          %v4764 = vpow.pop %v4763
          %v4765 = vmul.f32 %v4748, 1.442695
          %v4766 = vpow.pop %v4765
          %v4767 = vmul.f32 %v4749, 1.442695
          %v4768 = vpow.pop %v4767
          %v4769 = vmul.f32 %v4750, 1.442695
          %v4770 = vpow.pop %v4769
          %v4771 = vmul.f32 %v4751, 1.442695
          %v4772 = vpow.pop %v4771
          %v4773 = vmul.f32 %v4752, 1.442695
          %v4774 = vpow.pop %v4773
          %v4775 = vmul.f32 %v4753, 1.442695
          %v4776 = vpow.pop %v4775
          %v4777 = vmul.f32 %v4754, 1.442695
          %v4778 = vpow.pop %v4777
          %v4779 = vmul.f32 %v4755, 1.442695
          %v4780 = vpow.pop %v4779
          %v4781 = vmul.f32 %v4756, 1.442695
          %v4782 = vpow.pop %v4781
          %v4783 = vmul.f32 %v4757, 1.442695
          %v4784 = vpow.pop %v4783
          %v4785 = vmul.f32 %v4758, 1.442695
          %v4786 = vpow.pop %v4785
          %v4787 = vmul.f32 %v4759, 1.442695
          %v4788 = vpow.pop %v4787
          %v4789 = vmul.f32 %v4760, 1.442695
          %v4790 = vpow.pop %v4789
          %v4791 = vmul.f32 %v4761, 1.442695
          %v4792 = vpow.pop %v4791
          %v4793 = vmul.f32 %v4762, 1.442695
          %v4794 = vpow.pop %v4793
          %s4795 = scalar_lea.vmem [#allocation3], 256
          %v4796 = vld [vmem:[%s4795] sm:$0xff]
          %v4797 = vld [vmem:[%s4795 + $0x8] sm:$0xff]
          %v4798 = vld [vmem:[%s4795 + $0x10] sm:$0xff]
          %v4799 = vld [vmem:[%s4795 + $0x18] sm:$0xff]
          %v4800 = vld [vmem:[%s4795 + $0x20] sm:$0xff]
          %v4801 = vld [vmem:[%s4795 + $0x28] sm:$0xff]
          %v4802 = vld [vmem:[%s4795 + $0x30] sm:$0xff]
          %v4803 = vld [vmem:[%s4795 + $0x38] sm:$0xff]
          %v4804 = vld [vmem:[%s4795 + $0x40] sm:$0xff]
          %v4805 = vld [vmem:[%s4795 + $0x48] sm:$0xff]
          %v4806 = vld [vmem:[%s4795 + $0x50] sm:$0xff]
          %v4807 = vld [vmem:[%s4795 + $0x58] sm:$0xff]
          %v4808 = vld [vmem:[%s4795 + $0x60] sm:$0xff]
          %v4809 = vld [vmem:[%s4795 + $0x68] sm:$0xff]
          %v4810 = vld [vmem:[%s4795 + $0x70] sm:$0xff]
          %v4811 = vld [vmem:[%s4795 + $0x78] sm:$0xff]
          %v4812 = vmul.f32 %v4636, %v4796
          %v4813 = vmul.f32 %v4638, %v4797
          %v4814 = vmul.f32 %v4640, %v4798
          %v4815 = vmul.f32 %v4642, %v4799
          %v4816 = vmul.f32 %v4644, %v4800
          %v4817 = vmul.f32 %v4646, %v4801
          %v4818 = vmul.f32 %v4648, %v4802
          %v4819 = vmul.f32 %v4650, %v4803
          %v4820 = vmul.f32 %v4652, %v4804
          %v4821 = vmul.f32 %v4654, %v4805
          %v4822 = vmul.f32 %v4656, %v4806
          %v4823 = vmul.f32 %v4658, %v4807
          %v4824 = vmul.f32 %v4660, %v4808
          %v4825 = vmul.f32 %v4662, %v4809
          %v4826 = vmul.f32 %v4664, %v4810
          %v4827 = vmul.f32 %v4666, %v4811
          %4828 = vadd.xlane.f32.xlu0 %v4764
          %v4829 = vpop.xlane.xlu0 %4828
          %4830 = vadd.xlane.f32.xlu0 %v4766
          %v4831 = vpop.xlane.xlu0 %4830
          %4832 = vadd.xlane.f32.xlu0 %v4768
          %v4833 = vpop.xlane.xlu0 %4832
          %4834 = vadd.xlane.f32.xlu0 %v4770
          %v4835 = vpop.xlane.xlu0 %4834
          %4836 = vadd.xlane.f32.xlu0 %v4772
          %v4837 = vpop.xlane.xlu0 %4836
          %4838 = vadd.xlane.f32.xlu0 %v4774
          %v4839 = vpop.xlane.xlu0 %4838
          %4840 = vadd.xlane.f32.xlu0 %v4776
          %v4841 = vpop.xlane.xlu0 %4840
          %4842 = vadd.xlane.f32.xlu0 %v4778
          %v4843 = vpop.xlane.xlu0 %4842
          %4844 = vadd.xlane.f32.xlu0 %v4780
          %v4845 = vpop.xlane.xlu0 %4844
          %4846 = vadd.xlane.f32.xlu0 %v4782
          %v4847 = vpop.xlane.xlu0 %4846
          %4848 = vadd.xlane.f32.xlu0 %v4784
          %v4849 = vpop.xlane.xlu0 %4848
          %4850 = vadd.xlane.f32.xlu0 %v4786
          %v4851 = vpop.xlane.xlu0 %4850
          %4852 = vadd.xlane.f32.xlu0 %v4788
          %v4853 = vpop.xlane.xlu0 %4852
          %4854 = vadd.xlane.f32.xlu0 %v4790
          %v4855 = vpop.xlane.xlu0 %4854
          %4856 = vadd.xlane.f32.xlu0 %v4792
          %v4857 = vpop.xlane.xlu0 %4856
          %4858 = vadd.xlane.f32.xlu0 %v4794
          %v4859 = vpop.xlane.xlu0 %4858
          %v4860 = vadd.f32 %v4812, %v4829
          %v4861 = vadd.f32 %v4813, %v4831
          %v4862 = vadd.f32 %v4814, %v4833
          %v4863 = vadd.f32 %v4815, %v4835
          %v4864 = vadd.f32 %v4816, %v4837
          %v4865 = vadd.f32 %v4817, %v4839
          %v4866 = vadd.f32 %v4818, %v4841
          %v4867 = vadd.f32 %v4819, %v4843
          %v4868 = vadd.f32 %v4820, %v4845
          %v4869 = vadd.f32 %v4821, %v4847
          %v4870 = vadd.f32 %v4822, %v4849
          %v4871 = vadd.f32 %v4823, %v4851
          %v4872 = vadd.f32 %v4824, %v4853
          %v4873 = vadd.f32 %v4825, %v4855
          %v4874 = vadd.f32 %v4826, %v4857
          %v4875 = vadd.f32 %v4827, %v4859
          %4876 = vst.msk [vmem:[%s4795] sm:$0xff] %vm1950, %v4860
          %4877 = vst.msk [vmem:[%s4795 + $0x8] sm:$0xff] %vm1950, %v4861
          %4878 = vst.msk [vmem:[%s4795 + $0x10] sm:$0xff] %vm1950, %v4862
          %4879 = vst.msk [vmem:[%s4795 + $0x18] sm:$0xff] %vm1950, %v4863
          %4880 = vst.msk [vmem:[%s4795 + $0x20] sm:$0xff] %vm1950, %v4864
          %4881 = vst.msk [vmem:[%s4795 + $0x28] sm:$0xff] %vm1950, %v4865
          %4882 = vst.msk [vmem:[%s4795 + $0x30] sm:$0xff] %vm1950, %v4866
          %4883 = vst.msk [vmem:[%s4795 + $0x38] sm:$0xff] %vm1950, %v4867
          %4884 = vst.msk [vmem:[%s4795 + $0x40] sm:$0xff] %vm1950, %v4868
          %4885 = vst.msk [vmem:[%s4795 + $0x48] sm:$0xff] %vm1950, %v4869
          %4886 = vst.msk [vmem:[%s4795 + $0x50] sm:$0xff] %vm1950, %v4870
          %4887 = vst.msk [vmem:[%s4795 + $0x58] sm:$0xff] %vm1950, %v4871
          %4888 = vst.msk [vmem:[%s4795 + $0x60] sm:$0xff] %vm1950, %v4872
          %4889 = vst.msk [vmem:[%s4795 + $0x68] sm:$0xff] %vm1950, %v4873
          %4890 = vst.msk [vmem:[%s4795 + $0x70] sm:$0xff] %vm1950, %v4874
          %4891 = vst.msk [vmem:[%s4795 + $0x78] sm:$0xff] %vm1950, %v4875
          %v4892 = vld [vmem:[#allocation4] sm:$0xff]
          %v4893 = vld [vmem:[#allocation4 + $0x8] sm:$0xff]
          %v4894 = vld [vmem:[#allocation4 + $0x10] sm:$0xff]
          %v4895 = vld [vmem:[#allocation4 + $0x18] sm:$0xff]
          %v4896 = vld [vmem:[#allocation4 + $0x20] sm:$0xff]
          %v4897 = vld [vmem:[#allocation4 + $0x28] sm:$0xff]
          %v4898 = vld [vmem:[#allocation4 + $0x30] sm:$0xff]
          %v4899 = vld [vmem:[#allocation4 + $0x38] sm:$0xff]
          %v4900 = vld [vmem:[#allocation4 + $0x40] sm:$0xff]
          %v4901 = vld [vmem:[#allocation4 + $0x48] sm:$0xff]
          %v4902 = vld [vmem:[#allocation4 + $0x50] sm:$0xff]
          %v4903 = vld [vmem:[#allocation4 + $0x58] sm:$0xff]
          %v4904 = vld [vmem:[#allocation4 + $0x60] sm:$0xff]
          %v4905 = vld [vmem:[#allocation4 + $0x68] sm:$0xff]
          %v4906 = vld [vmem:[#allocation4 + $0x70] sm:$0xff]
          %v4907 = vld [vmem:[#allocation4 + $0x78] sm:$0xff]
          %4909 = vset.pattern.permute.xlu0 0
          %4910 = vperm.xlu0 %4909, %v4636
          %v4911 = vpop.permute.xlu0 %4910
          %4914 = vset.pattern.permute.xlu0 0
          %4915 = vperm.xlu0 %4914, %v4638
          %v4916 = vpop.permute.xlu0 %4915
          %4919 = vset.pattern.permute.xlu0 0
          %4920 = vperm.xlu0 %4919, %v4640
          %v4921 = vpop.permute.xlu0 %4920
          %4924 = vset.pattern.permute.xlu0 0
          %4925 = vperm.xlu0 %4924, %v4642
          %v4926 = vpop.permute.xlu0 %4925
          %4929 = vset.pattern.permute.xlu0 0
          %4930 = vperm.xlu0 %4929, %v4644
          %v4931 = vpop.permute.xlu0 %4930
          %4934 = vset.pattern.permute.xlu0 0
          %4935 = vperm.xlu0 %4934, %v4646
          %v4936 = vpop.permute.xlu0 %4935
          %4939 = vset.pattern.permute.xlu0 0
          %4940 = vperm.xlu0 %4939, %v4648
          %v4941 = vpop.permute.xlu0 %4940
          %4944 = vset.pattern.permute.xlu0 0
          %4945 = vperm.xlu0 %4944, %v4650
          %v4946 = vpop.permute.xlu0 %4945
          %4949 = vset.pattern.permute.xlu0 0
          %4950 = vperm.xlu0 %4949, %v4652
          %v4951 = vpop.permute.xlu0 %4950
          %4954 = vset.pattern.permute.xlu0 0
          %4955 = vperm.xlu0 %4954, %v4654
          %v4956 = vpop.permute.xlu0 %4955
          %4959 = vset.pattern.permute.xlu0 0
          %4960 = vperm.xlu0 %4959, %v4656
          %v4961 = vpop.permute.xlu0 %4960
          %4964 = vset.pattern.permute.xlu0 0
          %4965 = vperm.xlu0 %4964, %v4658
          %v4966 = vpop.permute.xlu0 %4965
          %4969 = vset.pattern.permute.xlu0 0
          %4970 = vperm.xlu0 %4969, %v4660
          %v4971 = vpop.permute.xlu0 %4970
          %4974 = vset.pattern.permute.xlu0 0
          %4975 = vperm.xlu0 %4974, %v4662
          %v4976 = vpop.permute.xlu0 %4975
          %4979 = vset.pattern.permute.xlu0 0
          %4980 = vperm.xlu0 %4979, %v4664
          %v4981 = vpop.permute.xlu0 %4980
          %4984 = vset.pattern.permute.xlu0 0
          %4985 = vperm.xlu0 %4984, %v4666
          %v4986 = vpop.permute.xlu0 %4985
          %v4988 = vmul.f32 %v4911, %v4892
          %v4989 = vmul.f32 %v4916, %v4893
          %v4990 = vmul.f32 %v4921, %v4894
          %v4991 = vmul.f32 %v4926, %v4895
          %v4992 = vmul.f32 %v4931, %v4896
          %v4993 = vmul.f32 %v4936, %v4897
          %v4994 = vmul.f32 %v4941, %v4898
          %v4995 = vmul.f32 %v4946, %v4899
          %v4996 = vmul.f32 %v4951, %v4900
          %v4997 = vmul.f32 %v4956, %v4901
          %v4998 = vmul.f32 %v4961, %v4902
          %v4999 = vmul.f32 %v4966, %v4903
          %v5000 = vmul.f32 %v4971, %v4904
          %v5001 = vmul.f32 %v4976, %v4905
          %v5002 = vmul.f32 %v4981, %v4906
          %v5003 = vmul.f32 %v4986, %v4907
          %5004 = vrot.lane.b32.xlu0 %v1060, 64
          %v5005 = vpop.permute.xlu0 %5004
          %5006 = vrot.lane.b32.xlu0 %v1061, 64
          %v5007 = vpop.permute.xlu0 %5006
          %5008 = vrot.lane.b32.xlu0 %v1062, 64
          %v5009 = vpop.permute.xlu0 %5008
          %5010 = vrot.lane.b32.xlu0 %v1063, 64
          %v5011 = vpop.permute.xlu0 %5010
          %5012 = vrot.lane.b32.xlu0 %v1064, 64
          %v5013 = vpop.permute.xlu0 %5012
          %5014 = vrot.lane.b32.xlu0 %v1065, 64
          %v5015 = vpop.permute.xlu0 %5014
          %5016 = vrot.lane.b32.xlu0 %v1066, 64
          %v5017 = vpop.permute.xlu0 %5016
          %5018 = vrot.lane.b32.xlu0 %v1067, 64
          %v5019 = vpop.permute.xlu0 %5018
          %5020 = vrot.lane.b32.xlu0 %v1068, 64
          %v5021 = vpop.permute.xlu0 %5020
          %5022 = vrot.lane.b32.xlu0 %v1069, 64
          %v5023 = vpop.permute.xlu0 %5022
          %5024 = vrot.lane.b32.xlu0 %v1070, 64
          %v5025 = vpop.permute.xlu0 %5024
          %5026 = vrot.lane.b32.xlu0 %v1071, 64
          %v5027 = vpop.permute.xlu0 %5026
          %5028 = vrot.lane.b32.xlu0 %v1072, 64
          %v5029 = vpop.permute.xlu0 %5028
          %5030 = vrot.lane.b32.xlu0 %v1073, 64
          %v5031 = vpop.permute.xlu0 %5030
          %5032 = vrot.lane.b32.xlu0 %v1074, 64
          %v5033 = vpop.permute.xlu0 %5032
          %5034 = vrot.lane.b32.xlu0 %v1075, 64
          %v5035 = vpop.permute.xlu0 %5034
          %5052 = vmatpush.msra.mxu0 %v5035
          %5053 = vmatpush.msra.mxu0 %v5033
          %5054 = vmatpush.msra.mxu0 %v5031
          %5055 = vmatpush.msra.mxu0 %v5029
          %5056 = vmatpush.msra.mxu0 %v5027
          %5057 = vmatpush.msra.mxu0 %v5025
          %5058 = vmatpush.msra.mxu0 %v5023
          %5059 = vmatpush.msra.mxu0 %v5021
          %5060 = vmatpush.msra.mxu0 %v5019
          %5061 = vmatpush.msra.mxu0 %v5017
          %5062 = vmatpush.msra.mxu0 %v5015
          %5063 = vmatpush.msra.mxu0 %v5013
          %5064 = vmatpush.msra.mxu0 %v5011
          %5065 = vmatpush.msra.mxu0 %v5009
          %5066 = vmatpush.msra.mxu0 %v5007
          %5067 = vmatpush.msra.mxu0 %v5005
          %5068 = vmatmul.f32.gmra.mxu0 %v4764
          %v5069 = vpop.f32.mrf.mxu0
          %v5070 = vadd.f32 0.0, %v5069
          %5071 = vmatmul.f32.gmra.mxu0 %v4766
          %v5072 = vpop.f32.mrf.mxu0
          %v5073 = vadd.f32 0.0, %v5072
          %5074 = vmatmul.f32.gmra.mxu0 %v4768
          %v5075 = vpop.f32.mrf.mxu0
          %v5076 = vadd.f32 0.0, %v5075
          %5077 = vmatmul.f32.gmra.mxu0 %v4770
          %v5078 = vpop.f32.mrf.mxu0
          %v5079 = vadd.f32 0.0, %v5078
          %5080 = vmatmul.f32.gmra.mxu0 %v4772
          %v5081 = vpop.f32.mrf.mxu0
          %v5082 = vadd.f32 0.0, %v5081
          %5083 = vmatmul.f32.gmra.mxu0 %v4774
          %v5084 = vpop.f32.mrf.mxu0
          %v5085 = vadd.f32 0.0, %v5084
          %5086 = vmatmul.f32.gmra.mxu0 %v4776
          %v5087 = vpop.f32.mrf.mxu0
          %v5088 = vadd.f32 0.0, %v5087
          %5089 = vmatmul.f32.gmra.mxu0 %v4778
          %v5090 = vpop.f32.mrf.mxu0
          %v5091 = vadd.f32 0.0, %v5090
          %5092 = vmatmul.f32.gmra.mxu0 %v4780
          %v5093 = vpop.f32.mrf.mxu0
          %v5094 = vadd.f32 0.0, %v5093
          %5095 = vmatmul.f32.gmra.mxu0 %v4782
          %v5096 = vpop.f32.mrf.mxu0
          %v5097 = vadd.f32 0.0, %v5096
          %5098 = vmatmul.f32.gmra.mxu0 %v4784
          %v5099 = vpop.f32.mrf.mxu0
          %v5100 = vadd.f32 0.0, %v5099
          %5101 = vmatmul.f32.gmra.mxu0 %v4786
          %v5102 = vpop.f32.mrf.mxu0
          %v5103 = vadd.f32 0.0, %v5102
          %5104 = vmatmul.f32.gmra.mxu0 %v4788
          %v5105 = vpop.f32.mrf.mxu0
          %v5106 = vadd.f32 0.0, %v5105
          %5107 = vmatmul.f32.gmra.mxu0 %v4790
          %v5108 = vpop.f32.mrf.mxu0
          %v5109 = vadd.f32 0.0, %v5108
          %5110 = vmatmul.f32.gmra.mxu0 %v4792
          %v5111 = vpop.f32.mrf.mxu0
          %v5112 = vadd.f32 0.0, %v5111
          %5113 = vmatmul.f32.gmra.mxu0 %v4794
          %v5114 = vpop.f32.mrf.mxu0
          %v5115 = vadd.f32 0.0, %v5114
          %5116 = vdwg.mxu0
          %5133 = vrot.lane.b32.xlu0 %v5070, 64
          %v5134 = vpop.permute.xlu0 %5133
          %5135 = vrot.lane.b32.xlu0 %v5073, 64
          %v5136 = vpop.permute.xlu0 %5135
          %5137 = vrot.lane.b32.xlu0 %v5076, 64
          %v5138 = vpop.permute.xlu0 %5137
          %5139 = vrot.lane.b32.xlu0 %v5079, 64
          %v5140 = vpop.permute.xlu0 %5139
          %5141 = vrot.lane.b32.xlu0 %v5082, 64
          %v5142 = vpop.permute.xlu0 %5141
          %5143 = vrot.lane.b32.xlu0 %v5085, 64
          %v5144 = vpop.permute.xlu0 %5143
          %5145 = vrot.lane.b32.xlu0 %v5088, 64
          %v5146 = vpop.permute.xlu0 %5145
          %5147 = vrot.lane.b32.xlu0 %v5091, 64
          %v5148 = vpop.permute.xlu0 %5147
          %5149 = vrot.lane.b32.xlu0 %v5094, 64
          %v5150 = vpop.permute.xlu0 %5149
          %5151 = vrot.lane.b32.xlu0 %v5097, 64
          %v5152 = vpop.permute.xlu0 %5151
          %5153 = vrot.lane.b32.xlu0 %v5100, 64
          %v5154 = vpop.permute.xlu0 %5153
          %5155 = vrot.lane.b32.xlu0 %v5103, 64
          %v5156 = vpop.permute.xlu0 %5155
          %5157 = vrot.lane.b32.xlu0 %v5106, 64
          %v5158 = vpop.permute.xlu0 %5157
          %5159 = vrot.lane.b32.xlu0 %v5109, 64
          %v5160 = vpop.permute.xlu0 %5159
          %5161 = vrot.lane.b32.xlu0 %v5112, 64
          %v5162 = vpop.permute.xlu0 %5161
          %5163 = vrot.lane.b32.xlu0 %v5115, 64
          %v5164 = vpop.permute.xlu0 %5163
          %v5181 = vadd.f32 %v4988, %v5134
          %v5182 = vadd.f32 %v4989, %v5136
          %v5183 = vadd.f32 %v4990, %v5138
          %v5184 = vadd.f32 %v4991, %v5140
          %v5185 = vadd.f32 %v4992, %v5142
          %v5186 = vadd.f32 %v4993, %v5144
          %v5187 = vadd.f32 %v4994, %v5146
          %v5188 = vadd.f32 %v4995, %v5148
          %v5189 = vadd.f32 %v4996, %v5150
          %v5190 = vadd.f32 %v4997, %v5152
          %v5191 = vadd.f32 %v4998, %v5154
          %v5192 = vadd.f32 %v4999, %v5156
          %v5193 = vadd.f32 %v5000, %v5158
          %v5194 = vadd.f32 %v5001, %v5160
          %v5195 = vadd.f32 %v5002, %v5162
          %v5196 = vadd.f32 %v5003, %v5164
          %vm5197 = vcmask 785920
          %5198 = vst.msk [vmem:[#allocation4] sm:$0xff] %vm5197, %v5181
          %5199 = vst.msk [vmem:[#allocation4 + $0x8] sm:$0xff] %vm5197, %v5182
          %5200 = vst.msk [vmem:[#allocation4 + $0x10] sm:$0xff] %vm5197, %v5183
          %5201 = vst.msk [vmem:[#allocation4 + $0x18] sm:$0xff] %vm5197, %v5184
          %5202 = vst.msk [vmem:[#allocation4 + $0x20] sm:$0xff] %vm5197, %v5185
          %5203 = vst.msk [vmem:[#allocation4 + $0x28] sm:$0xff] %vm5197, %v5186
          %5204 = vst.msk [vmem:[#allocation4 + $0x30] sm:$0xff] %vm5197, %v5187
          %5205 = vst.msk [vmem:[#allocation4 + $0x38] sm:$0xff] %vm5197, %v5188
          %5206 = vst.msk [vmem:[#allocation4 + $0x40] sm:$0xff] %vm5197, %v5189
          %5207 = vst.msk [vmem:[#allocation4 + $0x48] sm:$0xff] %vm5197, %v5190
          %5208 = vst.msk [vmem:[#allocation4 + $0x50] sm:$0xff] %vm5197, %v5191
          %5209 = vst.msk [vmem:[#allocation4 + $0x58] sm:$0xff] %vm5197, %v5192
          %5210 = vst.msk [vmem:[#allocation4 + $0x60] sm:$0xff] %vm5197, %v5193
          %5211 = vst.msk [vmem:[#allocation4 + $0x68] sm:$0xff] %vm5197, %v5194
          %5212 = vst.msk [vmem:[#allocation4 + $0x70] sm:$0xff] %vm5197, %v5195
          %5213 = vst.msk [vmem:[#allocation4 + $0x78] sm:$0xff] %vm5197, %v5196
          %5214 = vst.msk [vmem:[%s4554] sm:$0xff] %vm1950, %v4603
          %5215 = vst.msk [vmem:[%s4554 + $0x8] sm:$0xff] %vm1950, %v4604
          %5216 = vst.msk [vmem:[%s4554 + $0x10] sm:$0xff] %vm1950, %v4605
          %5217 = vst.msk [vmem:[%s4554 + $0x18] sm:$0xff] %vm1950, %v4606
          %5218 = vst.msk [vmem:[%s4554 + $0x20] sm:$0xff] %vm1950, %v4607
          %5219 = vst.msk [vmem:[%s4554 + $0x28] sm:$0xff] %vm1950, %v4608
          %5220 = vst.msk [vmem:[%s4554 + $0x30] sm:$0xff] %vm1950, %v4609
          %5221 = vst.msk [vmem:[%s4554 + $0x38] sm:$0xff] %vm1950, %v4610
          %5222 = vst.msk [vmem:[%s4554 + $0x40] sm:$0xff] %vm1950, %v4611
          %5223 = vst.msk [vmem:[%s4554 + $0x48] sm:$0xff] %vm1950, %v4612
          %5224 = vst.msk [vmem:[%s4554 + $0x50] sm:$0xff] %vm1950, %v4613
          %5225 = vst.msk [vmem:[%s4554 + $0x58] sm:$0xff] %vm1950, %v4614
          %5226 = vst.msk [vmem:[%s4554 + $0x60] sm:$0xff] %vm1950, %v4615
          %5227 = vst.msk [vmem:[%s4554 + $0x68] sm:$0xff] %vm1950, %v4616
          %5228 = vst.msk [vmem:[%s4554 + $0x70] sm:$0xff] %vm1950, %v4617
          %5229 = vst.msk [vmem:[%s4554 + $0x78] sm:$0xff] %vm1950, %v4618
          %5230 = vrot.lane.b32.xlu0 %v948, 96
          %v5231 = vpop.permute.xlu0 %5230
          %5232 = vrot.lane.b32.xlu0 %v949, 96
          %v5233 = vpop.permute.xlu0 %5232
          %5234 = vrot.lane.b32.xlu0 %v950, 96
          %v5235 = vpop.permute.xlu0 %5234
          %5236 = vrot.lane.b32.xlu0 %v951, 96
          %v5237 = vpop.permute.xlu0 %5236
          %5238 = vrot.lane.b32.xlu0 %v952, 96
          %v5239 = vpop.permute.xlu0 %5238
          %5240 = vrot.lane.b32.xlu0 %v953, 96
          %v5241 = vpop.permute.xlu0 %5240
          %5242 = vrot.lane.b32.xlu0 %v954, 96
          %v5243 = vpop.permute.xlu0 %5242
          %5244 = vrot.lane.b32.xlu0 %v955, 96
          %v5245 = vpop.permute.xlu0 %5244
          %5246 = vrot.lane.b32.xlu0 %v956, 96
          %v5247 = vpop.permute.xlu0 %5246
          %5248 = vrot.lane.b32.xlu0 %v957, 96
          %v5249 = vpop.permute.xlu0 %5248
          %5250 = vrot.lane.b32.xlu0 %v958, 96
          %v5251 = vpop.permute.xlu0 %5250
          %5252 = vrot.lane.b32.xlu0 %v959, 96
          %v5253 = vpop.permute.xlu0 %5252
          %5254 = vrot.lane.b32.xlu0 %v960, 96
          %v5255 = vpop.permute.xlu0 %5254
          %5256 = vrot.lane.b32.xlu0 %v961, 96
          %v5257 = vpop.permute.xlu0 %5256
          %5258 = vrot.lane.b32.xlu0 %v962, 96
          %v5259 = vpop.permute.xlu0 %5258
          %5260 = vrot.lane.b32.xlu0 %v963, 96
          %v5261 = vpop.permute.xlu0 %5260
          %v5278 = vmul.f32 %v1028, %v5231
          %v5279 = vmul.f32 %v1029, %v5233
          %v5280 = vmul.f32 %v1030, %v5235
          %v5281 = vmul.f32 %v1031, %v5237
          %v5282 = vmul.f32 %v1032, %v5239
          %v5283 = vmul.f32 %v1033, %v5241
          %v5284 = vmul.f32 %v1034, %v5243
          %v5285 = vmul.f32 %v1035, %v5245
          %v5286 = vmul.f32 %v1036, %v5247
          %v5287 = vmul.f32 %v1037, %v5249
          %v5288 = vmul.f32 %v1038, %v5251
          %v5289 = vmul.f32 %v1039, %v5253
          %v5290 = vmul.f32 %v1040, %v5255
          %v5291 = vmul.f32 %v1041, %v5257
          %v5292 = vmul.f32 %v1042, %v5259
          %v5293 = vmul.f32 %v1043, %v5261
          %5294 = vrot.lane.b32.xlu0 %v1028, 32
          %v5295 = vpop.permute.xlu0 %5294
          %5296 = vrot.lane.b32.xlu0 %v1029, 32
          %v5297 = vpop.permute.xlu0 %5296
          %5298 = vrot.lane.b32.xlu0 %v1030, 32
          %v5299 = vpop.permute.xlu0 %5298
          %5300 = vrot.lane.b32.xlu0 %v1031, 32
          %v5301 = vpop.permute.xlu0 %5300
          %5302 = vrot.lane.b32.xlu0 %v1032, 32
          %v5303 = vpop.permute.xlu0 %5302
          %5304 = vrot.lane.b32.xlu0 %v1033, 32
          %v5305 = vpop.permute.xlu0 %5304
          %5306 = vrot.lane.b32.xlu0 %v1034, 32
          %v5307 = vpop.permute.xlu0 %5306
          %5308 = vrot.lane.b32.xlu0 %v1035, 32
          %v5309 = vpop.permute.xlu0 %5308
          %5310 = vrot.lane.b32.xlu0 %v1036, 32
          %v5311 = vpop.permute.xlu0 %5310
          %5312 = vrot.lane.b32.xlu0 %v1037, 32
          %v5313 = vpop.permute.xlu0 %5312
          %5314 = vrot.lane.b32.xlu0 %v1038, 32
          %v5315 = vpop.permute.xlu0 %5314
          %5316 = vrot.lane.b32.xlu0 %v1039, 32
          %v5317 = vpop.permute.xlu0 %5316
          %5318 = vrot.lane.b32.xlu0 %v1040, 32
          %v5319 = vpop.permute.xlu0 %5318
          %5320 = vrot.lane.b32.xlu0 %v1041, 32
          %v5321 = vpop.permute.xlu0 %5320
          %5322 = vrot.lane.b32.xlu0 %v1042, 32
          %v5323 = vpop.permute.xlu0 %5322
          %5324 = vrot.lane.b32.xlu0 %v1043, 32
          %v5325 = vpop.permute.xlu0 %5324
          %v5326 = vsel %vm1146, %v5295, 0
          %v5328 = vsel %vm1146, %v5297, 0
          %v5330 = vsel %vm1146, %v5299, 0
          %v5332 = vsel %vm1146, %v5301, 0
          %v5334 = vsel %vm1146, %v5303, 0
          %v5336 = vsel %vm1146, %v5305, 0
          %v5338 = vsel %vm1146, %v5307, 0
          %v5340 = vsel %vm1146, %v5309, 0
          %v5342 = vsel %vm1146, %v5311, 0
          %v5344 = vsel %vm1146, %v5313, 0
          %v5346 = vsel %vm1146, %v5315, 0
          %v5348 = vsel %vm1146, %v5317, 0
          %v5350 = vsel %vm1146, %v5319, 0
          %v5352 = vsel %vm1146, %v5321, 0
          %v5354 = vsel %vm1146, %v5323, 0
          %v5356 = vsel %vm1146, %v5325, 0
          %5358 = vmatpush.msra.mxu0 0.0
          %5359 = vmatpush.msra.mxu0 0.0
          %5360 = vmatpush.msra.mxu0 0.0
          %5361 = vmatpush.msra.mxu0 0.0
          %5362 = vmatpush.msra.mxu0 0.0
          %5363 = vmatpush.msra.mxu0 0.0
          %5364 = vmatpush.msra.mxu0 0.0
          %5365 = vmatpush.msra.mxu0 0.0
          %5366 = vmatpush.msra.mxu0 0.0
          %5367 = vmatpush.msra.mxu0 0.0
          %5368 = vmatpush.msra.mxu0 0.0
          %5369 = vmatpush.msra.mxu0 0.0
          %5370 = vmatpush.msra.mxu0 %v931
          %5371 = vmatpush.msra.mxu0 %v930
          %5372 = vmatpush.msra.mxu0 %v929
          %5373 = vmatpush.msra.mxu0 %v928
          %5374 = vmatmul.f32.gmra.mxu0 %v5326
          %v5375 = vpop.f32.mrf.mxu0
          %v5376 = vadd.f32 0.0, %v5375
          %5377 = vmatmul.f32.gmra.mxu0 %v5328
          %v5378 = vpop.f32.mrf.mxu0
          %v5379 = vadd.f32 0.0, %v5378
          %5380 = vmatmul.f32.gmra.mxu0 %v5330
          %v5381 = vpop.f32.mrf.mxu0
          %v5382 = vadd.f32 0.0, %v5381
          %5383 = vmatmul.f32.gmra.mxu0 %v5332
          %v5384 = vpop.f32.mrf.mxu0
          %v5385 = vadd.f32 0.0, %v5384
          %5386 = vmatmul.f32.gmra.mxu0 %v5334
          %v5387 = vpop.f32.mrf.mxu0
          %v5388 = vadd.f32 0.0, %v5387
          %5389 = vmatmul.f32.gmra.mxu0 %v5336
          %v5390 = vpop.f32.mrf.mxu0
          %v5391 = vadd.f32 0.0, %v5390
          %5392 = vmatmul.f32.gmra.mxu0 %v5338
          %v5393 = vpop.f32.mrf.mxu0
          %v5394 = vadd.f32 0.0, %v5393
          %5395 = vmatmul.f32.gmra.mxu0 %v5340
          %v5396 = vpop.f32.mrf.mxu0
          %v5397 = vadd.f32 0.0, %v5396
          %5398 = vmatmul.f32.gmra.mxu0 %v5342
          %v5399 = vpop.f32.mrf.mxu0
          %v5400 = vadd.f32 0.0, %v5399
          %5401 = vmatmul.f32.gmra.mxu0 %v5344
          %v5402 = vpop.f32.mrf.mxu0
          %v5403 = vadd.f32 0.0, %v5402
          %5404 = vmatmul.f32.gmra.mxu0 %v5346
          %v5405 = vpop.f32.mrf.mxu0
          %v5406 = vadd.f32 0.0, %v5405
          %5407 = vmatmul.f32.gmra.mxu0 %v5348
          %v5408 = vpop.f32.mrf.mxu0
          %v5409 = vadd.f32 0.0, %v5408
          %5410 = vmatmul.f32.gmra.mxu0 %v5350
          %v5411 = vpop.f32.mrf.mxu0
          %v5412 = vadd.f32 0.0, %v5411
          %5413 = vmatmul.f32.gmra.mxu0 %v5352
          %v5414 = vpop.f32.mrf.mxu0
          %v5415 = vadd.f32 0.0, %v5414
          %5416 = vmatmul.f32.gmra.mxu0 %v5354
          %v5417 = vpop.f32.mrf.mxu0
          %v5418 = vadd.f32 0.0, %v5417
          %5419 = vmatmul.f32.gmra.mxu0 %v5356
          %v5420 = vpop.f32.mrf.mxu0
          %v5421 = vadd.f32 0.0, %v5420
          %5422 = vdwg.mxu0
          %v5423 = vmul.f32 %v5376, %v980
          %v5424 = vmul.f32 %v5379, %v981
          %v5425 = vmul.f32 %v5382, %v982
          %v5426 = vmul.f32 %v5385, %v983
          %v5427 = vmul.f32 %v5388, %v984
          %v5428 = vmul.f32 %v5391, %v985
          %v5429 = vmul.f32 %v5394, %v986
          %v5430 = vmul.f32 %v5397, %v987
          %v5431 = vmul.f32 %v5400, %v988
          %v5432 = vmul.f32 %v5403, %v989
          %v5433 = vmul.f32 %v5406, %v990
          %v5434 = vmul.f32 %v5409, %v991
          %v5435 = vmul.f32 %v5412, %v992
          %v5436 = vmul.f32 %v5415, %v993
          %v5437 = vmul.f32 %v5418, %v994
          %v5438 = vmul.f32 %v5421, %v995
          %5455 = vrot.lane.b32.xlu0 %v5423, 96
          %v5456 = vpop.permute.xlu0 %5455
          %5457 = vrot.lane.b32.xlu0 %v5424, 96
          %v5458 = vpop.permute.xlu0 %5457
          %5459 = vrot.lane.b32.xlu0 %v5425, 96
          %v5460 = vpop.permute.xlu0 %5459
          %5461 = vrot.lane.b32.xlu0 %v5426, 96
          %v5462 = vpop.permute.xlu0 %5461
          %5463 = vrot.lane.b32.xlu0 %v5427, 96
          %v5464 = vpop.permute.xlu0 %5463
          %5465 = vrot.lane.b32.xlu0 %v5428, 96
          %v5466 = vpop.permute.xlu0 %5465
          %5467 = vrot.lane.b32.xlu0 %v5429, 96
          %v5468 = vpop.permute.xlu0 %5467
          %5469 = vrot.lane.b32.xlu0 %v5430, 96
          %v5470 = vpop.permute.xlu0 %5469
          %5471 = vrot.lane.b32.xlu0 %v5431, 96
          %v5472 = vpop.permute.xlu0 %5471
          %5473 = vrot.lane.b32.xlu0 %v5432, 96
          %v5474 = vpop.permute.xlu0 %5473
          %5475 = vrot.lane.b32.xlu0 %v5433, 96
          %v5476 = vpop.permute.xlu0 %5475
          %5477 = vrot.lane.b32.xlu0 %v5434, 96
          %v5478 = vpop.permute.xlu0 %5477
          %5479 = vrot.lane.b32.xlu0 %v5435, 96
          %v5480 = vpop.permute.xlu0 %5479
          %5481 = vrot.lane.b32.xlu0 %v5436, 96
          %v5482 = vpop.permute.xlu0 %5481
          %5483 = vrot.lane.b32.xlu0 %v5437, 96
          %v5484 = vpop.permute.xlu0 %5483
          %5485 = vrot.lane.b32.xlu0 %v5438, 96
          %v5486 = vpop.permute.xlu0 %5485
          %v5503 = vadd.f32 %v5278, %v5456
          %v5504 = vadd.f32 %v5279, %v5458
          %v5505 = vadd.f32 %v5280, %v5460
          %v5506 = vadd.f32 %v5281, %v5462
          %v5507 = vadd.f32 %v5282, %v5464
          %v5508 = vadd.f32 %v5283, %v5466
          %v5509 = vadd.f32 %v5284, %v5468
          %v5510 = vadd.f32 %v5285, %v5470
          %v5511 = vadd.f32 %v5286, %v5472
          %v5512 = vadd.f32 %v5287, %v5474
          %v5513 = vadd.f32 %v5288, %v5476
          %v5514 = vadd.f32 %v5289, %v5478
          %v5515 = vadd.f32 %v5290, %v5480
          %v5516 = vadd.f32 %v5291, %v5482
          %v5517 = vadd.f32 %v5292, %v5484
          %v5518 = vadd.f32 %v5293, %v5486
          %5519 = vrot.lane.b32.xlu0 %v996, 96
          %v5520 = vpop.permute.xlu0 %5519
          %5521 = vrot.lane.b32.xlu0 %v997, 96
          %v5522 = vpop.permute.xlu0 %5521
          %5523 = vrot.lane.b32.xlu0 %v998, 96
          %v5524 = vpop.permute.xlu0 %5523
          %5525 = vrot.lane.b32.xlu0 %v999, 96
          %v5526 = vpop.permute.xlu0 %5525
          %5527 = vrot.lane.b32.xlu0 %v1000, 96
          %v5528 = vpop.permute.xlu0 %5527
          %5529 = vrot.lane.b32.xlu0 %v1001, 96
          %v5530 = vpop.permute.xlu0 %5529
          %5531 = vrot.lane.b32.xlu0 %v1002, 96
          %v5532 = vpop.permute.xlu0 %5531
          %5533 = vrot.lane.b32.xlu0 %v1003, 96
          %v5534 = vpop.permute.xlu0 %5533
          %5535 = vrot.lane.b32.xlu0 %v1004, 96
          %v5536 = vpop.permute.xlu0 %5535
          %5537 = vrot.lane.b32.xlu0 %v1005, 96
          %v5538 = vpop.permute.xlu0 %5537
          %5539 = vrot.lane.b32.xlu0 %v1006, 96
          %v5540 = vpop.permute.xlu0 %5539
          %5541 = vrot.lane.b32.xlu0 %v1007, 96
          %v5542 = vpop.permute.xlu0 %5541
          %5543 = vrot.lane.b32.xlu0 %v1008, 96
          %v5544 = vpop.permute.xlu0 %5543
          %5545 = vrot.lane.b32.xlu0 %v1009, 96
          %v5546 = vpop.permute.xlu0 %5545
          %5547 = vrot.lane.b32.xlu0 %v1010, 96
          %v5548 = vpop.permute.xlu0 %5547
          %5549 = vrot.lane.b32.xlu0 %v1011, 96
          %v5550 = vpop.permute.xlu0 %5549
          %v5567 = vmul.f32 %v1044, %v5520
          %v5568 = vmul.f32 %v1045, %v5522
          %v5569 = vmul.f32 %v1046, %v5524
          %v5570 = vmul.f32 %v1047, %v5526
          %v5571 = vmul.f32 %v1048, %v5528
          %v5572 = vmul.f32 %v1049, %v5530
          %v5573 = vmul.f32 %v1050, %v5532
          %v5574 = vmul.f32 %v1051, %v5534
          %v5575 = vmul.f32 %v1052, %v5536
          %v5576 = vmul.f32 %v1053, %v5538
          %v5577 = vmul.f32 %v1054, %v5540
          %v5578 = vmul.f32 %v1055, %v5542
          %v5579 = vmul.f32 %v1056, %v5544
          %v5580 = vmul.f32 %v1057, %v5546
          %v5581 = vmul.f32 %v1058, %v5548
          %v5582 = vmul.f32 %v1059, %v5550
          %5583 = vrot.lane.b32.xlu0 %v1044, 32
          %v5584 = vpop.permute.xlu0 %5583
          %5585 = vrot.lane.b32.xlu0 %v1045, 32
          %v5586 = vpop.permute.xlu0 %5585
          %5587 = vrot.lane.b32.xlu0 %v1046, 32
          %v5588 = vpop.permute.xlu0 %5587
          %5589 = vrot.lane.b32.xlu0 %v1047, 32
          %v5590 = vpop.permute.xlu0 %5589
          %5591 = vrot.lane.b32.xlu0 %v1048, 32
          %v5592 = vpop.permute.xlu0 %5591
          %5593 = vrot.lane.b32.xlu0 %v1049, 32
          %v5594 = vpop.permute.xlu0 %5593
          %5595 = vrot.lane.b32.xlu0 %v1050, 32
          %v5596 = vpop.permute.xlu0 %5595
          %5597 = vrot.lane.b32.xlu0 %v1051, 32
          %v5598 = vpop.permute.xlu0 %5597
          %5599 = vrot.lane.b32.xlu0 %v1052, 32
          %v5600 = vpop.permute.xlu0 %5599
          %5601 = vrot.lane.b32.xlu0 %v1053, 32
          %v5602 = vpop.permute.xlu0 %5601
          %5603 = vrot.lane.b32.xlu0 %v1054, 32
          %v5604 = vpop.permute.xlu0 %5603
          %5605 = vrot.lane.b32.xlu0 %v1055, 32
          %v5606 = vpop.permute.xlu0 %5605
          %5607 = vrot.lane.b32.xlu0 %v1056, 32
          %v5608 = vpop.permute.xlu0 %5607
          %5609 = vrot.lane.b32.xlu0 %v1057, 32
          %v5610 = vpop.permute.xlu0 %5609
          %5611 = vrot.lane.b32.xlu0 %v1058, 32
          %v5612 = vpop.permute.xlu0 %5611
          %5613 = vrot.lane.b32.xlu0 %v1059, 32
          %v5614 = vpop.permute.xlu0 %5613
          %v5615 = vsel %vm1146, %v5584, 0
          %v5617 = vsel %vm1146, %v5586, 0
          %v5619 = vsel %vm1146, %v5588, 0
          %v5621 = vsel %vm1146, %v5590, 0
          %v5623 = vsel %vm1146, %v5592, 0
          %v5625 = vsel %vm1146, %v5594, 0
          %v5627 = vsel %vm1146, %v5596, 0
          %v5629 = vsel %vm1146, %v5598, 0
          %v5631 = vsel %vm1146, %v5600, 0
          %v5633 = vsel %vm1146, %v5602, 0
          %v5635 = vsel %vm1146, %v5604, 0
          %v5637 = vsel %vm1146, %v5606, 0
          %v5639 = vsel %vm1146, %v5608, 0
          %v5641 = vsel %vm1146, %v5610, 0
          %v5643 = vsel %vm1146, %v5612, 0
          %v5645 = vsel %vm1146, %v5614, 0
          %5647 = vmatpush.msra.mxu0 0.0
          %5648 = vmatpush.msra.mxu0 0.0
          %5649 = vmatpush.msra.mxu0 0.0
          %5650 = vmatpush.msra.mxu0 0.0
          %5651 = vmatpush.msra.mxu0 0.0
          %5652 = vmatpush.msra.mxu0 0.0
          %5653 = vmatpush.msra.mxu0 0.0
          %5654 = vmatpush.msra.mxu0 0.0
          %5655 = vmatpush.msra.mxu0 0.0
          %5656 = vmatpush.msra.mxu0 0.0
          %5657 = vmatpush.msra.mxu0 0.0
          %5658 = vmatpush.msra.mxu0 0.0
          %5659 = vmatpush.msra.mxu0 %v931
          %5660 = vmatpush.msra.mxu0 %v930
          %5661 = vmatpush.msra.mxu0 %v929
          %5662 = vmatpush.msra.mxu0 %v928
          %5663 = vmatmul.f32.gmra.mxu0 %v5615
          %v5664 = vpop.f32.mrf.mxu0
          %v5665 = vadd.f32 0.0, %v5664
          %5666 = vmatmul.f32.gmra.mxu0 %v5617
          %v5667 = vpop.f32.mrf.mxu0
          %v5668 = vadd.f32 0.0, %v5667
          %5669 = vmatmul.f32.gmra.mxu0 %v5619
          %v5670 = vpop.f32.mrf.mxu0
          %v5671 = vadd.f32 0.0, %v5670
          %5672 = vmatmul.f32.gmra.mxu0 %v5621
          %v5673 = vpop.f32.mrf.mxu0
          %v5674 = vadd.f32 0.0, %v5673
          %5675 = vmatmul.f32.gmra.mxu0 %v5623
          %v5676 = vpop.f32.mrf.mxu0
          %v5677 = vadd.f32 0.0, %v5676
          %5678 = vmatmul.f32.gmra.mxu0 %v5625
          %v5679 = vpop.f32.mrf.mxu0
          %v5680 = vadd.f32 0.0, %v5679
          %5681 = vmatmul.f32.gmra.mxu0 %v5627
          %v5682 = vpop.f32.mrf.mxu0
          %v5683 = vadd.f32 0.0, %v5682
          %5684 = vmatmul.f32.gmra.mxu0 %v5629
          %v5685 = vpop.f32.mrf.mxu0
          %v5686 = vadd.f32 0.0, %v5685
          %5687 = vmatmul.f32.gmra.mxu0 %v5631
          %v5688 = vpop.f32.mrf.mxu0
          %v5689 = vadd.f32 0.0, %v5688
          %5690 = vmatmul.f32.gmra.mxu0 %v5633
          %v5691 = vpop.f32.mrf.mxu0
          %v5692 = vadd.f32 0.0, %v5691
          %5693 = vmatmul.f32.gmra.mxu0 %v5635
          %v5694 = vpop.f32.mrf.mxu0
          %v5695 = vadd.f32 0.0, %v5694
          %5696 = vmatmul.f32.gmra.mxu0 %v5637
          %v5697 = vpop.f32.mrf.mxu0
          %v5698 = vadd.f32 0.0, %v5697
          %5699 = vmatmul.f32.gmra.mxu0 %v5639
          %v5700 = vpop.f32.mrf.mxu0
          %v5701 = vadd.f32 0.0, %v5700
          %5702 = vmatmul.f32.gmra.mxu0 %v5641
          %v5703 = vpop.f32.mrf.mxu0
          %v5704 = vadd.f32 0.0, %v5703
          %5705 = vmatmul.f32.gmra.mxu0 %v5643
          %v5706 = vpop.f32.mrf.mxu0
          %v5707 = vadd.f32 0.0, %v5706
          %5708 = vmatmul.f32.gmra.mxu0 %v5645
          %v5709 = vpop.f32.mrf.mxu0
          %v5710 = vadd.f32 0.0, %v5709
          %5711 = vdwg.mxu0
          %v5712 = vmul.f32 %v5665, %v1012
          %v5713 = vmul.f32 %v5668, %v1013
          %v5714 = vmul.f32 %v5671, %v1014
          %v5715 = vmul.f32 %v5674, %v1015
          %v5716 = vmul.f32 %v5677, %v1016
          %v5717 = vmul.f32 %v5680, %v1017
          %v5718 = vmul.f32 %v5683, %v1018
          %v5719 = vmul.f32 %v5686, %v1019
          %v5720 = vmul.f32 %v5689, %v1020
          %v5721 = vmul.f32 %v5692, %v1021
          %v5722 = vmul.f32 %v5695, %v1022
          %v5723 = vmul.f32 %v5698, %v1023
          %v5724 = vmul.f32 %v5701, %v1024
          %v5725 = vmul.f32 %v5704, %v1025
          %v5726 = vmul.f32 %v5707, %v1026
          %v5727 = vmul.f32 %v5710, %v1027
          %5744 = vrot.lane.b32.xlu0 %v5712, 96
          %v5745 = vpop.permute.xlu0 %5744
          %5746 = vrot.lane.b32.xlu0 %v5713, 96
          %v5747 = vpop.permute.xlu0 %5746
          %5748 = vrot.lane.b32.xlu0 %v5714, 96
          %v5749 = vpop.permute.xlu0 %5748
          %5750 = vrot.lane.b32.xlu0 %v5715, 96
          %v5751 = vpop.permute.xlu0 %5750
          %5752 = vrot.lane.b32.xlu0 %v5716, 96
          %v5753 = vpop.permute.xlu0 %5752
          %5754 = vrot.lane.b32.xlu0 %v5717, 96
          %v5755 = vpop.permute.xlu0 %5754
          %5756 = vrot.lane.b32.xlu0 %v5718, 96
          %v5757 = vpop.permute.xlu0 %5756
          %5758 = vrot.lane.b32.xlu0 %v5719, 96
          %v5759 = vpop.permute.xlu0 %5758
          %5760 = vrot.lane.b32.xlu0 %v5720, 96
          %v5761 = vpop.permute.xlu0 %5760
          %5762 = vrot.lane.b32.xlu0 %v5721, 96
          %v5763 = vpop.permute.xlu0 %5762
          %5764 = vrot.lane.b32.xlu0 %v5722, 96
          %v5765 = vpop.permute.xlu0 %5764
          %5766 = vrot.lane.b32.xlu0 %v5723, 96
          %v5767 = vpop.permute.xlu0 %5766
          %5768 = vrot.lane.b32.xlu0 %v5724, 96
          %v5769 = vpop.permute.xlu0 %5768
          %5770 = vrot.lane.b32.xlu0 %v5725, 96
          %v5771 = vpop.permute.xlu0 %5770
          %5772 = vrot.lane.b32.xlu0 %v5726, 96
          %v5773 = vpop.permute.xlu0 %5772
          %5774 = vrot.lane.b32.xlu0 %v5727, 96
          %v5775 = vpop.permute.xlu0 %5774
          %v5792 = vadd.f32 %v5567, %v5745
          %v5793 = vadd.f32 %v5568, %v5747
          %v5794 = vadd.f32 %v5569, %v5749
          %v5795 = vadd.f32 %v5570, %v5751
          %v5796 = vadd.f32 %v5571, %v5753
          %v5797 = vadd.f32 %v5572, %v5755
          %v5798 = vadd.f32 %v5573, %v5757
          %v5799 = vadd.f32 %v5574, %v5759
          %v5800 = vadd.f32 %v5575, %v5761
          %v5801 = vadd.f32 %v5576, %v5763
          %v5802 = vadd.f32 %v5577, %v5765
          %v5803 = vadd.f32 %v5578, %v5767
          %v5804 = vadd.f32 %v5579, %v5769
          %v5805 = vadd.f32 %v5580, %v5771
          %v5806 = vadd.f32 %v5581, %v5773
          %v5807 = vadd.f32 %v5582, %v5775
          %5824 = vrot.lane.b32.xlu0 %v5503, 32
          %v5825 = vpop.permute.xlu0 %5824
          %5826 = vrot.lane.b32.xlu0 %v5504, 32
          %v5827 = vpop.permute.xlu0 %5826
          %5828 = vrot.lane.b32.xlu0 %v5505, 32
          %v5829 = vpop.permute.xlu0 %5828
          %5830 = vrot.lane.b32.xlu0 %v5506, 32
          %v5831 = vpop.permute.xlu0 %5830
          %5832 = vrot.lane.b32.xlu0 %v5507, 32
          %v5833 = vpop.permute.xlu0 %5832
          %5834 = vrot.lane.b32.xlu0 %v5508, 32
          %v5835 = vpop.permute.xlu0 %5834
          %5836 = vrot.lane.b32.xlu0 %v5509, 32
          %v5837 = vpop.permute.xlu0 %5836
          %5838 = vrot.lane.b32.xlu0 %v5510, 32
          %v5839 = vpop.permute.xlu0 %5838
          %5840 = vrot.lane.b32.xlu0 %v5511, 32
          %v5841 = vpop.permute.xlu0 %5840
          %5842 = vrot.lane.b32.xlu0 %v5512, 32
          %v5843 = vpop.permute.xlu0 %5842
          %5844 = vrot.lane.b32.xlu0 %v5513, 32
          %v5845 = vpop.permute.xlu0 %5844
          %5846 = vrot.lane.b32.xlu0 %v5514, 32
          %v5847 = vpop.permute.xlu0 %5846
          %5848 = vrot.lane.b32.xlu0 %v5515, 32
          %v5849 = vpop.permute.xlu0 %5848
          %5850 = vrot.lane.b32.xlu0 %v5516, 32
          %v5851 = vpop.permute.xlu0 %5850
          %5852 = vrot.lane.b32.xlu0 %v5517, 32
          %v5853 = vpop.permute.xlu0 %5852
          %5854 = vrot.lane.b32.xlu0 %v5518, 32
          %v5855 = vpop.permute.xlu0 %5854
          %5872 = vrot.lane.b32.xlu0 %v5792, 32
          %v5873 = vpop.permute.xlu0 %5872
          %5874 = vrot.lane.b32.xlu0 %v5793, 32
          %v5875 = vpop.permute.xlu0 %5874
          %5876 = vrot.lane.b32.xlu0 %v5794, 32
          %v5877 = vpop.permute.xlu0 %5876
          %5878 = vrot.lane.b32.xlu0 %v5795, 32
          %v5879 = vpop.permute.xlu0 %5878
          %5880 = vrot.lane.b32.xlu0 %v5796, 32
          %v5881 = vpop.permute.xlu0 %5880
          %5882 = vrot.lane.b32.xlu0 %v5797, 32
          %v5883 = vpop.permute.xlu0 %5882
          %5884 = vrot.lane.b32.xlu0 %v5798, 32
          %v5885 = vpop.permute.xlu0 %5884
          %5886 = vrot.lane.b32.xlu0 %v5799, 32
          %v5887 = vpop.permute.xlu0 %5886
          %5888 = vrot.lane.b32.xlu0 %v5800, 32
          %v5889 = vpop.permute.xlu0 %5888
          %5890 = vrot.lane.b32.xlu0 %v5801, 32
          %v5891 = vpop.permute.xlu0 %5890
          %5892 = vrot.lane.b32.xlu0 %v5802, 32
          %v5893 = vpop.permute.xlu0 %5892
          %5894 = vrot.lane.b32.xlu0 %v5803, 32
          %v5895 = vpop.permute.xlu0 %5894
          %5896 = vrot.lane.b32.xlu0 %v5804, 32
          %v5897 = vpop.permute.xlu0 %5896
          %5898 = vrot.lane.b32.xlu0 %v5805, 32
          %v5899 = vpop.permute.xlu0 %5898
          %5900 = vrot.lane.b32.xlu0 %v5806, 32
          %v5901 = vpop.permute.xlu0 %5900
          %5902 = vrot.lane.b32.xlu0 %v5807, 32
          %v5903 = vpop.permute.xlu0 %5902
          %v5904 = vsel %vm1146, %v5825, 0
          %v5906 = vsel %vm1146, %v5827, 0
          %v5908 = vsel %vm1146, %v5829, 0
          %v5910 = vsel %vm1146, %v5831, 0
          %v5912 = vsel %vm1146, %v5833, 0
          %v5914 = vsel %vm1146, %v5835, 0
          %v5916 = vsel %vm1146, %v5837, 0
          %v5918 = vsel %vm1146, %v5839, 0
          %v5920 = vsel %vm1146, %v5841, 0
          %v5922 = vsel %vm1146, %v5843, 0
          %v5924 = vsel %vm1146, %v5845, 0
          %v5926 = vsel %vm1146, %v5847, 0
          %v5928 = vsel %vm1146, %v5849, 0
          %v5930 = vsel %vm1146, %v5851, 0
          %v5932 = vsel %vm1146, %v5853, 0
          %v5934 = vsel %vm1146, %v5855, 0
          %v5936 = vsel %vm1146, %v5873, 0
          %v5938 = vsel %vm1146, %v5875, 0
          %v5940 = vsel %vm1146, %v5877, 0
          %v5942 = vsel %vm1146, %v5879, 0
          %v5944 = vsel %vm1146, %v5881, 0
          %v5946 = vsel %vm1146, %v5883, 0
          %v5948 = vsel %vm1146, %v5885, 0
          %v5950 = vsel %vm1146, %v5887, 0
          %v5952 = vsel %vm1146, %v5889, 0
          %v5954 = vsel %vm1146, %v5891, 0
          %v5956 = vsel %vm1146, %v5893, 0
          %v5958 = vsel %vm1146, %v5895, 0
          %v5960 = vsel %vm1146, %v5897, 0
          %v5962 = vsel %vm1146, %v5899, 0
          %v5964 = vsel %vm1146, %v5901, 0
          %v5966 = vsel %vm1146, %v5903, 0
          %5968 = vmatpush.xpose.msra.mxu0 %v5966
          %5969 = vmatpush.xpose.msra.mxu0 %v5964
          %5970 = vmatpush.xpose.msra.mxu0 %v5962
          %5971 = vmatpush.xpose.msra.mxu0 %v5960
          %5972 = vmatpush.xpose.msra.mxu0 %v5958
          %5973 = vmatpush.xpose.msra.mxu0 %v5956
          %5974 = vmatpush.xpose.msra.mxu0 %v5954
          %5975 = vmatpush.xpose.msra.mxu0 %v5952
          %5976 = vmatpush.xpose.msra.mxu0 %v5950
          %5977 = vmatpush.xpose.msra.mxu0 %v5948
          %5978 = vmatpush.xpose.msra.mxu0 %v5946
          %5979 = vmatpush.xpose.msra.mxu0 %v5944
          %5980 = vmatpush.xpose.msra.mxu0 %v5942
          %5981 = vmatpush.xpose.msra.mxu0 %v5940
          %5982 = vmatpush.xpose.msra.mxu0 %v5938
          %5983 = vmatpush.xpose.msra.mxu0 %v5936
          %5984 = vmatmul.f32.gmra.mxu0 %v5904
          %v5985 = vpop.f32.mrf.mxu0
          %v5986 = vadd.f32 0.0, %v5985
          %5987 = vmatmul.f32.gmra.mxu0 %v5906
          %v5988 = vpop.f32.mrf.mxu0
          %v5989 = vadd.f32 0.0, %v5988
          %5990 = vmatmul.f32.gmra.mxu0 %v5908
          %v5991 = vpop.f32.mrf.mxu0
          %v5992 = vadd.f32 0.0, %v5991
          %5993 = vmatmul.f32.gmra.mxu0 %v5910
          %v5994 = vpop.f32.mrf.mxu0
          %v5995 = vadd.f32 0.0, %v5994
          %5996 = vmatmul.f32.gmra.mxu0 %v5912
          %v5997 = vpop.f32.mrf.mxu0
          %v5998 = vadd.f32 0.0, %v5997
          %5999 = vmatmul.f32.gmra.mxu0 %v5914
          %v6000 = vpop.f32.mrf.mxu0
          %v6001 = vadd.f32 0.0, %v6000
          %6002 = vmatmul.f32.gmra.mxu0 %v5916
          %v6003 = vpop.f32.mrf.mxu0
          %v6004 = vadd.f32 0.0, %v6003
          %6005 = vmatmul.f32.gmra.mxu0 %v5918
          %v6006 = vpop.f32.mrf.mxu0
          %v6007 = vadd.f32 0.0, %v6006
          %6008 = vmatmul.f32.gmra.mxu0 %v5920
          %v6009 = vpop.f32.mrf.mxu0
          %v6010 = vadd.f32 0.0, %v6009
          %6011 = vmatmul.f32.gmra.mxu0 %v5922
          %v6012 = vpop.f32.mrf.mxu0
          %v6013 = vadd.f32 0.0, %v6012
          %6014 = vmatmul.f32.gmra.mxu0 %v5924
          %v6015 = vpop.f32.mrf.mxu0
          %v6016 = vadd.f32 0.0, %v6015
          %6017 = vmatmul.f32.gmra.mxu0 %v5926
          %v6018 = vpop.f32.mrf.mxu0
          %v6019 = vadd.f32 0.0, %v6018
          %6020 = vmatmul.f32.gmra.mxu0 %v5928
          %v6021 = vpop.f32.mrf.mxu0
          %v6022 = vadd.f32 0.0, %v6021
          %6023 = vmatmul.f32.gmra.mxu0 %v5930
          %v6024 = vpop.f32.mrf.mxu0
          %v6025 = vadd.f32 0.0, %v6024
          %6026 = vmatmul.f32.gmra.mxu0 %v5932
          %v6027 = vpop.f32.mrf.mxu0
          %v6028 = vadd.f32 0.0, %v6027
          %6029 = vmatmul.f32.gmra.mxu0 %v5934
          %v6030 = vpop.f32.mrf.mxu0
          %v6031 = vadd.f32 0.0, %v6030
          %6032 = vdwg.mxu0
          %v6033 = vsel %vm1114, %v5986, -inf
          %v6034 = vsel %vm1115, %v5989, -inf
          %v6035 = vsel %vm1116, %v5992, -inf
          %v6036 = vsel %vm1117, %v5995, -inf
          %v6037 = vsel %vm1118, %v5998, -inf
          %v6038 = vsel %vm1119, %v6001, -inf
          %v6039 = vsel %vm1120, %v6004, -inf
          %v6040 = vsel %vm1121, %v6007, -inf
          %v6041 = vsel %vm1122, %v6010, -inf
          %v6042 = vsel %vm1123, %v6013, -inf
          %v6043 = vsel %vm1124, %v6016, -inf
          %v6044 = vsel %vm1125, %v6019, -inf
          %v6045 = vsel %vm1126, %v6022, -inf
          %v6046 = vsel %vm1127, %v6025, -inf
          %v6047 = vsel %vm1128, %v6028, -inf
          %v6048 = vsel %vm1129, %v6031, -inf
          %s6049 = scalar_lea.vmem [#allocation2], 384
          %v6050 = vld [vmem:[%s6049] sm:$0xff]
          %v6051 = vld [vmem:[%s6049 + $0x8] sm:$0xff]
          %v6052 = vld [vmem:[%s6049 + $0x10] sm:$0xff]
          %v6053 = vld [vmem:[%s6049 + $0x18] sm:$0xff]
          %v6054 = vld [vmem:[%s6049 + $0x20] sm:$0xff]
          %v6055 = vld [vmem:[%s6049 + $0x28] sm:$0xff]
          %v6056 = vld [vmem:[%s6049 + $0x30] sm:$0xff]
          %v6057 = vld [vmem:[%s6049 + $0x38] sm:$0xff]
          %v6058 = vld [vmem:[%s6049 + $0x40] sm:$0xff]
          %v6059 = vld [vmem:[%s6049 + $0x48] sm:$0xff]
          %v6060 = vld [vmem:[%s6049 + $0x50] sm:$0xff]
          %v6061 = vld [vmem:[%s6049 + $0x58] sm:$0xff]
          %v6062 = vld [vmem:[%s6049 + $0x60] sm:$0xff]
          %v6063 = vld [vmem:[%s6049 + $0x68] sm:$0xff]
          %v6064 = vld [vmem:[%s6049 + $0x70] sm:$0xff]
          %v6065 = vld [vmem:[%s6049 + $0x78] sm:$0xff]
          %6066 = vmax.xlane.f32.xlu0 %v6033
          %v6067 = vpop.xlane.xlu0 %6066
          %6068 = vmax.xlane.f32.xlu0 %v6034
          %v6069 = vpop.xlane.xlu0 %6068
          %6070 = vmax.xlane.f32.xlu0 %v6035
          %v6071 = vpop.xlane.xlu0 %6070
          %6072 = vmax.xlane.f32.xlu0 %v6036
          %v6073 = vpop.xlane.xlu0 %6072
          %6074 = vmax.xlane.f32.xlu0 %v6037
          %v6075 = vpop.xlane.xlu0 %6074
          %6076 = vmax.xlane.f32.xlu0 %v6038
          %v6077 = vpop.xlane.xlu0 %6076
          %6078 = vmax.xlane.f32.xlu0 %v6039
          %v6079 = vpop.xlane.xlu0 %6078
          %6080 = vmax.xlane.f32.xlu0 %v6040
          %v6081 = vpop.xlane.xlu0 %6080
          %6082 = vmax.xlane.f32.xlu0 %v6041
          %v6083 = vpop.xlane.xlu0 %6082
          %6084 = vmax.xlane.f32.xlu0 %v6042
          %v6085 = vpop.xlane.xlu0 %6084
          %6086 = vmax.xlane.f32.xlu0 %v6043
          %v6087 = vpop.xlane.xlu0 %6086
          %6088 = vmax.xlane.f32.xlu0 %v6044
          %v6089 = vpop.xlane.xlu0 %6088
          %6090 = vmax.xlane.f32.xlu0 %v6045
          %v6091 = vpop.xlane.xlu0 %6090
          %6092 = vmax.xlane.f32.xlu0 %v6046
          %v6093 = vpop.xlane.xlu0 %6092
          %6094 = vmax.xlane.f32.xlu0 %v6047
          %v6095 = vpop.xlane.xlu0 %6094
          %6096 = vmax.xlane.f32.xlu0 %v6048
          %v6097 = vpop.xlane.xlu0 %6096
          %v6098 = vmax.f32 %v6050, %v6067
          %v6099 = vmax.f32 %v6051, %v6069
          %v6100 = vmax.f32 %v6052, %v6071
          %v6101 = vmax.f32 %v6053, %v6073
          %v6102 = vmax.f32 %v6054, %v6075
          %v6103 = vmax.f32 %v6055, %v6077
          %v6104 = vmax.f32 %v6056, %v6079
          %v6105 = vmax.f32 %v6057, %v6081
          %v6106 = vmax.f32 %v6058, %v6083
          %v6107 = vmax.f32 %v6059, %v6085
          %v6108 = vmax.f32 %v6060, %v6087
          %v6109 = vmax.f32 %v6061, %v6089
          %v6110 = vmax.f32 %v6062, %v6091
          %v6111 = vmax.f32 %v6063, %v6093
          %v6112 = vmax.f32 %v6064, %v6095
          %v6113 = vmax.f32 %v6065, %v6097
          %v6114 = vsub.f32 %v6050, %v6098
          %v6115 = vsub.f32 %v6051, %v6099
          %v6116 = vsub.f32 %v6052, %v6100
          %v6117 = vsub.f32 %v6053, %v6101
          %v6118 = vsub.f32 %v6054, %v6102
          %v6119 = vsub.f32 %v6055, %v6103
          %v6120 = vsub.f32 %v6056, %v6104
          %v6121 = vsub.f32 %v6057, %v6105
          %v6122 = vsub.f32 %v6058, %v6106
          %v6123 = vsub.f32 %v6059, %v6107
          %v6124 = vsub.f32 %v6060, %v6108
          %v6125 = vsub.f32 %v6061, %v6109
          %v6126 = vsub.f32 %v6062, %v6110
          %v6127 = vsub.f32 %v6063, %v6111
          %v6128 = vsub.f32 %v6064, %v6112
          %v6129 = vsub.f32 %v6065, %v6113
          %v6130 = vmul.f32 %v6114, 1.442695
          %v6131 = vpow.pop %v6130
          %v6132 = vmul.f32 %v6115, 1.442695
          %v6133 = vpow.pop %v6132
          %v6134 = vmul.f32 %v6116, 1.442695
          %v6135 = vpow.pop %v6134
          %v6136 = vmul.f32 %v6117, 1.442695
          %v6137 = vpow.pop %v6136
          %v6138 = vmul.f32 %v6118, 1.442695
          %v6139 = vpow.pop %v6138
          %v6140 = vmul.f32 %v6119, 1.442695
          %v6141 = vpow.pop %v6140
          %v6142 = vmul.f32 %v6120, 1.442695
          %v6143 = vpow.pop %v6142
          %v6144 = vmul.f32 %v6121, 1.442695
          %v6145 = vpow.pop %v6144
          %v6146 = vmul.f32 %v6122, 1.442695
          %v6147 = vpow.pop %v6146
          %v6148 = vmul.f32 %v6123, 1.442695
          %v6149 = vpow.pop %v6148
          %v6150 = vmul.f32 %v6124, 1.442695
          %v6151 = vpow.pop %v6150
          %v6152 = vmul.f32 %v6125, 1.442695
          %v6153 = vpow.pop %v6152
          %v6154 = vmul.f32 %v6126, 1.442695
          %v6155 = vpow.pop %v6154
          %v6156 = vmul.f32 %v6127, 1.442695
          %v6157 = vpow.pop %v6156
          %v6158 = vmul.f32 %v6128, 1.442695
          %v6159 = vpow.pop %v6158
          %v6160 = vmul.f32 %v6129, 1.442695
          %v6161 = vpow.pop %v6160
          %6163 = vset.pattern.permute.xlu0 0
          %6164 = vperm.xlu0 %6163, %v6098
          %v6165 = vpop.permute.xlu0 %6164
          %6168 = vset.pattern.permute.xlu0 0
          %6169 = vperm.xlu0 %6168, %v6099
          %v6170 = vpop.permute.xlu0 %6169
          %6173 = vset.pattern.permute.xlu0 0
          %6174 = vperm.xlu0 %6173, %v6100
          %v6175 = vpop.permute.xlu0 %6174
          %6178 = vset.pattern.permute.xlu0 0
          %6179 = vperm.xlu0 %6178, %v6101
          %v6180 = vpop.permute.xlu0 %6179
          %6183 = vset.pattern.permute.xlu0 0
          %6184 = vperm.xlu0 %6183, %v6102
          %v6185 = vpop.permute.xlu0 %6184
          %6188 = vset.pattern.permute.xlu0 0
          %6189 = vperm.xlu0 %6188, %v6103
          %v6190 = vpop.permute.xlu0 %6189
          %6193 = vset.pattern.permute.xlu0 0
          %6194 = vperm.xlu0 %6193, %v6104
          %v6195 = vpop.permute.xlu0 %6194
          %6198 = vset.pattern.permute.xlu0 0
          %6199 = vperm.xlu0 %6198, %v6105
          %v6200 = vpop.permute.xlu0 %6199
          %6203 = vset.pattern.permute.xlu0 0
          %6204 = vperm.xlu0 %6203, %v6106
          %v6205 = vpop.permute.xlu0 %6204
          %6208 = vset.pattern.permute.xlu0 0
          %6209 = vperm.xlu0 %6208, %v6107
          %v6210 = vpop.permute.xlu0 %6209
          %6213 = vset.pattern.permute.xlu0 0
          %6214 = vperm.xlu0 %6213, %v6108
          %v6215 = vpop.permute.xlu0 %6214
          %6218 = vset.pattern.permute.xlu0 0
          %6219 = vperm.xlu0 %6218, %v6109
          %v6220 = vpop.permute.xlu0 %6219
          %6223 = vset.pattern.permute.xlu0 0
          %6224 = vperm.xlu0 %6223, %v6110
          %v6225 = vpop.permute.xlu0 %6224
          %6228 = vset.pattern.permute.xlu0 0
          %6229 = vperm.xlu0 %6228, %v6111
          %v6230 = vpop.permute.xlu0 %6229
          %6233 = vset.pattern.permute.xlu0 0
          %6234 = vperm.xlu0 %6233, %v6112
          %v6235 = vpop.permute.xlu0 %6234
          %6238 = vset.pattern.permute.xlu0 0
          %6239 = vperm.xlu0 %6238, %v6113
          %v6240 = vpop.permute.xlu0 %6239
          %v6242 = vsub.f32 %v6033, %v6165
          %v6243 = vsub.f32 %v6034, %v6170
          %v6244 = vsub.f32 %v6035, %v6175
          %v6245 = vsub.f32 %v6036, %v6180
          %v6246 = vsub.f32 %v6037, %v6185
          %v6247 = vsub.f32 %v6038, %v6190
          %v6248 = vsub.f32 %v6039, %v6195
          %v6249 = vsub.f32 %v6040, %v6200
          %v6250 = vsub.f32 %v6041, %v6205
          %v6251 = vsub.f32 %v6042, %v6210
          %v6252 = vsub.f32 %v6043, %v6215
          %v6253 = vsub.f32 %v6044, %v6220
          %v6254 = vsub.f32 %v6045, %v6225
          %v6255 = vsub.f32 %v6046, %v6230
          %v6256 = vsub.f32 %v6047, %v6235
          %v6257 = vsub.f32 %v6048, %v6240
          %v6258 = vmul.f32 %v6242, 1.442695
          %v6259 = vpow.pop %v6258
          %v6260 = vmul.f32 %v6243, 1.442695
          %v6261 = vpow.pop %v6260
          %v6262 = vmul.f32 %v6244, 1.442695
          %v6263 = vpow.pop %v6262
          %v6264 = vmul.f32 %v6245, 1.442695
          %v6265 = vpow.pop %v6264
          %v6266 = vmul.f32 %v6246, 1.442695
          %v6267 = vpow.pop %v6266
          %v6268 = vmul.f32 %v6247, 1.442695
          %v6269 = vpow.pop %v6268
          %v6270 = vmul.f32 %v6248, 1.442695
          %v6271 = vpow.pop %v6270
          %v6272 = vmul.f32 %v6249, 1.442695
          %v6273 = vpow.pop %v6272
          %v6274 = vmul.f32 %v6250, 1.442695
          %v6275 = vpow.pop %v6274
          %v6276 = vmul.f32 %v6251, 1.442695
          %v6277 = vpow.pop %v6276
          %v6278 = vmul.f32 %v6252, 1.442695
          %v6279 = vpow.pop %v6278
          %v6280 = vmul.f32 %v6253, 1.442695
          %v6281 = vpow.pop %v6280
          %v6282 = vmul.f32 %v6254, 1.442695
          %v6283 = vpow.pop %v6282
          %v6284 = vmul.f32 %v6255, 1.442695
          %v6285 = vpow.pop %v6284
          %v6286 = vmul.f32 %v6256, 1.442695
          %v6287 = vpow.pop %v6286
          %v6288 = vmul.f32 %v6257, 1.442695
          %v6289 = vpow.pop %v6288
          %s6290 = scalar_lea.vmem [#allocation3], 384
          %v6291 = vld [vmem:[%s6290] sm:$0xff]
          %v6292 = vld [vmem:[%s6290 + $0x8] sm:$0xff]
          %v6293 = vld [vmem:[%s6290 + $0x10] sm:$0xff]
          %v6294 = vld [vmem:[%s6290 + $0x18] sm:$0xff]
          %v6295 = vld [vmem:[%s6290 + $0x20] sm:$0xff]
          %v6296 = vld [vmem:[%s6290 + $0x28] sm:$0xff]
          %v6297 = vld [vmem:[%s6290 + $0x30] sm:$0xff]
          %v6298 = vld [vmem:[%s6290 + $0x38] sm:$0xff]
          %v6299 = vld [vmem:[%s6290 + $0x40] sm:$0xff]
          %v6300 = vld [vmem:[%s6290 + $0x48] sm:$0xff]
          %v6301 = vld [vmem:[%s6290 + $0x50] sm:$0xff]
          %v6302 = vld [vmem:[%s6290 + $0x58] sm:$0xff]
          %v6303 = vld [vmem:[%s6290 + $0x60] sm:$0xff]
          %v6304 = vld [vmem:[%s6290 + $0x68] sm:$0xff]
          %v6305 = vld [vmem:[%s6290 + $0x70] sm:$0xff]
          %v6306 = vld [vmem:[%s6290 + $0x78] sm:$0xff]
          %v6307 = vmul.f32 %v6131, %v6291
          %v6308 = vmul.f32 %v6133, %v6292
          %v6309 = vmul.f32 %v6135, %v6293
          %v6310 = vmul.f32 %v6137, %v6294
          %v6311 = vmul.f32 %v6139, %v6295
          %v6312 = vmul.f32 %v6141, %v6296
          %v6313 = vmul.f32 %v6143, %v6297
          %v6314 = vmul.f32 %v6145, %v6298
          %v6315 = vmul.f32 %v6147, %v6299
          %v6316 = vmul.f32 %v6149, %v6300
          %v6317 = vmul.f32 %v6151, %v6301
          %v6318 = vmul.f32 %v6153, %v6302
          %v6319 = vmul.f32 %v6155, %v6303
          %v6320 = vmul.f32 %v6157, %v6304
          %v6321 = vmul.f32 %v6159, %v6305
          %v6322 = vmul.f32 %v6161, %v6306
          %6323 = vadd.xlane.f32.xlu0 %v6259
          %v6324 = vpop.xlane.xlu0 %6323
          %6325 = vadd.xlane.f32.xlu0 %v6261
          %v6326 = vpop.xlane.xlu0 %6325
          %6327 = vadd.xlane.f32.xlu0 %v6263
          %v6328 = vpop.xlane.xlu0 %6327
          %6329 = vadd.xlane.f32.xlu0 %v6265
          %v6330 = vpop.xlane.xlu0 %6329
          %6331 = vadd.xlane.f32.xlu0 %v6267
          %v6332 = vpop.xlane.xlu0 %6331
          %6333 = vadd.xlane.f32.xlu0 %v6269
          %v6334 = vpop.xlane.xlu0 %6333
          %6335 = vadd.xlane.f32.xlu0 %v6271
          %v6336 = vpop.xlane.xlu0 %6335
          %6337 = vadd.xlane.f32.xlu0 %v6273
          %v6338 = vpop.xlane.xlu0 %6337
          %6339 = vadd.xlane.f32.xlu0 %v6275
          %v6340 = vpop.xlane.xlu0 %6339
          %6341 = vadd.xlane.f32.xlu0 %v6277
          %v6342 = vpop.xlane.xlu0 %6341
          %6343 = vadd.xlane.f32.xlu0 %v6279
          %v6344 = vpop.xlane.xlu0 %6343
          %6345 = vadd.xlane.f32.xlu0 %v6281
          %v6346 = vpop.xlane.xlu0 %6345
          %6347 = vadd.xlane.f32.xlu0 %v6283
          %v6348 = vpop.xlane.xlu0 %6347
          %6349 = vadd.xlane.f32.xlu0 %v6285
          %v6350 = vpop.xlane.xlu0 %6349
          %6351 = vadd.xlane.f32.xlu0 %v6287
          %v6352 = vpop.xlane.xlu0 %6351
          %6353 = vadd.xlane.f32.xlu0 %v6289
          %v6354 = vpop.xlane.xlu0 %6353
          %v6355 = vadd.f32 %v6307, %v6324
          %v6356 = vadd.f32 %v6308, %v6326
          %v6357 = vadd.f32 %v6309, %v6328
          %v6358 = vadd.f32 %v6310, %v6330
          %v6359 = vadd.f32 %v6311, %v6332
          %v6360 = vadd.f32 %v6312, %v6334
          %v6361 = vadd.f32 %v6313, %v6336
          %v6362 = vadd.f32 %v6314, %v6338
          %v6363 = vadd.f32 %v6315, %v6340
          %v6364 = vadd.f32 %v6316, %v6342
          %v6365 = vadd.f32 %v6317, %v6344
          %v6366 = vadd.f32 %v6318, %v6346
          %v6367 = vadd.f32 %v6319, %v6348
          %v6368 = vadd.f32 %v6320, %v6350
          %v6369 = vadd.f32 %v6321, %v6352
          %v6370 = vadd.f32 %v6322, %v6354
          %6371 = vst.msk [vmem:[%s6290] sm:$0xff] %vm1950, %v6355
          %6372 = vst.msk [vmem:[%s6290 + $0x8] sm:$0xff] %vm1950, %v6356
          %6373 = vst.msk [vmem:[%s6290 + $0x10] sm:$0xff] %vm1950, %v6357
          %6374 = vst.msk [vmem:[%s6290 + $0x18] sm:$0xff] %vm1950, %v6358
          %6375 = vst.msk [vmem:[%s6290 + $0x20] sm:$0xff] %vm1950, %v6359
          %6376 = vst.msk [vmem:[%s6290 + $0x28] sm:$0xff] %vm1950, %v6360
          %6377 = vst.msk [vmem:[%s6290 + $0x30] sm:$0xff] %vm1950, %v6361
          %6378 = vst.msk [vmem:[%s6290 + $0x38] sm:$0xff] %vm1950, %v6362
          %6379 = vst.msk [vmem:[%s6290 + $0x40] sm:$0xff] %vm1950, %v6363
          %6380 = vst.msk [vmem:[%s6290 + $0x48] sm:$0xff] %vm1950, %v6364
          %6381 = vst.msk [vmem:[%s6290 + $0x50] sm:$0xff] %vm1950, %v6365
          %6382 = vst.msk [vmem:[%s6290 + $0x58] sm:$0xff] %vm1950, %v6366
          %6383 = vst.msk [vmem:[%s6290 + $0x60] sm:$0xff] %vm1950, %v6367
          %6384 = vst.msk [vmem:[%s6290 + $0x68] sm:$0xff] %vm1950, %v6368
          %6385 = vst.msk [vmem:[%s6290 + $0x70] sm:$0xff] %vm1950, %v6369
          %6386 = vst.msk [vmem:[%s6290 + $0x78] sm:$0xff] %vm1950, %v6370
          %v6387 = vld [vmem:[#allocation4] sm:$0xff]
          %v6388 = vld [vmem:[#allocation4 + $0x8] sm:$0xff]
          %v6389 = vld [vmem:[#allocation4 + $0x10] sm:$0xff]
          %v6390 = vld [vmem:[#allocation4 + $0x18] sm:$0xff]
          %v6391 = vld [vmem:[#allocation4 + $0x20] sm:$0xff]
          %v6392 = vld [vmem:[#allocation4 + $0x28] sm:$0xff]
          %v6393 = vld [vmem:[#allocation4 + $0x30] sm:$0xff]
          %v6394 = vld [vmem:[#allocation4 + $0x38] sm:$0xff]
          %v6395 = vld [vmem:[#allocation4 + $0x40] sm:$0xff]
          %v6396 = vld [vmem:[#allocation4 + $0x48] sm:$0xff]
          %v6397 = vld [vmem:[#allocation4 + $0x50] sm:$0xff]
          %v6398 = vld [vmem:[#allocation4 + $0x58] sm:$0xff]
          %v6399 = vld [vmem:[#allocation4 + $0x60] sm:$0xff]
          %v6400 = vld [vmem:[#allocation4 + $0x68] sm:$0xff]
          %v6401 = vld [vmem:[#allocation4 + $0x70] sm:$0xff]
          %v6402 = vld [vmem:[#allocation4 + $0x78] sm:$0xff]
          %6404 = vset.pattern.permute.xlu0 0
          %6405 = vperm.xlu0 %6404, %v6131
          %v6406 = vpop.permute.xlu0 %6405
          %6409 = vset.pattern.permute.xlu0 0
          %6410 = vperm.xlu0 %6409, %v6133
          %v6411 = vpop.permute.xlu0 %6410
          %6414 = vset.pattern.permute.xlu0 0
          %6415 = vperm.xlu0 %6414, %v6135
          %v6416 = vpop.permute.xlu0 %6415
          %6419 = vset.pattern.permute.xlu0 0
          %6420 = vperm.xlu0 %6419, %v6137
          %v6421 = vpop.permute.xlu0 %6420
          %6424 = vset.pattern.permute.xlu0 0
          %6425 = vperm.xlu0 %6424, %v6139
          %v6426 = vpop.permute.xlu0 %6425
          %6429 = vset.pattern.permute.xlu0 0
          %6430 = vperm.xlu0 %6429, %v6141
          %v6431 = vpop.permute.xlu0 %6430
          %6434 = vset.pattern.permute.xlu0 0
          %6435 = vperm.xlu0 %6434, %v6143
          %v6436 = vpop.permute.xlu0 %6435
          %6439 = vset.pattern.permute.xlu0 0
          %6440 = vperm.xlu0 %6439, %v6145
          %v6441 = vpop.permute.xlu0 %6440
          %6444 = vset.pattern.permute.xlu0 0
          %6445 = vperm.xlu0 %6444, %v6147
          %v6446 = vpop.permute.xlu0 %6445
          %6449 = vset.pattern.permute.xlu0 0
          %6450 = vperm.xlu0 %6449, %v6149
          %v6451 = vpop.permute.xlu0 %6450
          %6454 = vset.pattern.permute.xlu0 0
          %6455 = vperm.xlu0 %6454, %v6151
          %v6456 = vpop.permute.xlu0 %6455
          %6459 = vset.pattern.permute.xlu0 0
          %6460 = vperm.xlu0 %6459, %v6153
          %v6461 = vpop.permute.xlu0 %6460
          %6464 = vset.pattern.permute.xlu0 0
          %6465 = vperm.xlu0 %6464, %v6155
          %v6466 = vpop.permute.xlu0 %6465
          %6469 = vset.pattern.permute.xlu0 0
          %6470 = vperm.xlu0 %6469, %v6157
          %v6471 = vpop.permute.xlu0 %6470
          %6474 = vset.pattern.permute.xlu0 0
          %6475 = vperm.xlu0 %6474, %v6159
          %v6476 = vpop.permute.xlu0 %6475
          %6479 = vset.pattern.permute.xlu0 0
          %6480 = vperm.xlu0 %6479, %v6161
          %v6481 = vpop.permute.xlu0 %6480
          %v6483 = vmul.f32 %v6406, %v6387
          %v6484 = vmul.f32 %v6411, %v6388
          %v6485 = vmul.f32 %v6416, %v6389
          %v6486 = vmul.f32 %v6421, %v6390
          %v6487 = vmul.f32 %v6426, %v6391
          %v6488 = vmul.f32 %v6431, %v6392
          %v6489 = vmul.f32 %v6436, %v6393
          %v6490 = vmul.f32 %v6441, %v6394
          %v6491 = vmul.f32 %v6446, %v6395
          %v6492 = vmul.f32 %v6451, %v6396
          %v6493 = vmul.f32 %v6456, %v6397
          %v6494 = vmul.f32 %v6461, %v6398
          %v6495 = vmul.f32 %v6466, %v6399
          %v6496 = vmul.f32 %v6471, %v6400
          %v6497 = vmul.f32 %v6476, %v6401
          %v6498 = vmul.f32 %v6481, %v6402
          %6499 = vrot.lane.b32.xlu0 %v1060, 32
          %v6500 = vpop.permute.xlu0 %6499
          %6501 = vrot.lane.b32.xlu0 %v1061, 32
          %v6502 = vpop.permute.xlu0 %6501
          %6503 = vrot.lane.b32.xlu0 %v1062, 32
          %v6504 = vpop.permute.xlu0 %6503
          %6505 = vrot.lane.b32.xlu0 %v1063, 32
          %v6506 = vpop.permute.xlu0 %6505
          %6507 = vrot.lane.b32.xlu0 %v1064, 32
          %v6508 = vpop.permute.xlu0 %6507
          %6509 = vrot.lane.b32.xlu0 %v1065, 32
          %v6510 = vpop.permute.xlu0 %6509
          %6511 = vrot.lane.b32.xlu0 %v1066, 32
          %v6512 = vpop.permute.xlu0 %6511
          %6513 = vrot.lane.b32.xlu0 %v1067, 32
          %v6514 = vpop.permute.xlu0 %6513
          %6515 = vrot.lane.b32.xlu0 %v1068, 32
          %v6516 = vpop.permute.xlu0 %6515
          %6517 = vrot.lane.b32.xlu0 %v1069, 32
          %v6518 = vpop.permute.xlu0 %6517
          %6519 = vrot.lane.b32.xlu0 %v1070, 32
          %v6520 = vpop.permute.xlu0 %6519
          %6521 = vrot.lane.b32.xlu0 %v1071, 32
          %v6522 = vpop.permute.xlu0 %6521
          %6523 = vrot.lane.b32.xlu0 %v1072, 32
          %v6524 = vpop.permute.xlu0 %6523
          %6525 = vrot.lane.b32.xlu0 %v1073, 32
          %v6526 = vpop.permute.xlu0 %6525
          %6527 = vrot.lane.b32.xlu0 %v1074, 32
          %v6528 = vpop.permute.xlu0 %6527
          %6529 = vrot.lane.b32.xlu0 %v1075, 32
          %v6530 = vpop.permute.xlu0 %6529
          %6547 = vmatpush.msra.mxu0 %v6530
          %6548 = vmatpush.msra.mxu0 %v6528
          %6549 = vmatpush.msra.mxu0 %v6526
          %6550 = vmatpush.msra.mxu0 %v6524
          %6551 = vmatpush.msra.mxu0 %v6522
          %6552 = vmatpush.msra.mxu0 %v6520
          %6553 = vmatpush.msra.mxu0 %v6518
          %6554 = vmatpush.msra.mxu0 %v6516
          %6555 = vmatpush.msra.mxu0 %v6514
          %6556 = vmatpush.msra.mxu0 %v6512
          %6557 = vmatpush.msra.mxu0 %v6510
          %6558 = vmatpush.msra.mxu0 %v6508
          %6559 = vmatpush.msra.mxu0 %v6506
          %6560 = vmatpush.msra.mxu0 %v6504
          %6561 = vmatpush.msra.mxu0 %v6502
          %6562 = vmatpush.msra.mxu0 %v6500
          %6563 = vmatmul.f32.gmra.mxu0 %v6259
          %v6564 = vpop.f32.mrf.mxu0
          %v6565 = vadd.f32 0.0, %v6564
          %6566 = vmatmul.f32.gmra.mxu0 %v6261
          %v6567 = vpop.f32.mrf.mxu0
          %v6568 = vadd.f32 0.0, %v6567
          %6569 = vmatmul.f32.gmra.mxu0 %v6263
          %v6570 = vpop.f32.mrf.mxu0
          %v6571 = vadd.f32 0.0, %v6570
          %6572 = vmatmul.f32.gmra.mxu0 %v6265
          %v6573 = vpop.f32.mrf.mxu0
          %v6574 = vadd.f32 0.0, %v6573
          %6575 = vmatmul.f32.gmra.mxu0 %v6267
          %v6576 = vpop.f32.mrf.mxu0
          %v6577 = vadd.f32 0.0, %v6576
          %6578 = vmatmul.f32.gmra.mxu0 %v6269
          %v6579 = vpop.f32.mrf.mxu0
          %v6580 = vadd.f32 0.0, %v6579
          %6581 = vmatmul.f32.gmra.mxu0 %v6271
          %v6582 = vpop.f32.mrf.mxu0
          %v6583 = vadd.f32 0.0, %v6582
          %6584 = vmatmul.f32.gmra.mxu0 %v6273
          %v6585 = vpop.f32.mrf.mxu0
          %v6586 = vadd.f32 0.0, %v6585
          %6587 = vmatmul.f32.gmra.mxu0 %v6275
          %v6588 = vpop.f32.mrf.mxu0
          %v6589 = vadd.f32 0.0, %v6588
          %6590 = vmatmul.f32.gmra.mxu0 %v6277
          %v6591 = vpop.f32.mrf.mxu0
          %v6592 = vadd.f32 0.0, %v6591
          %6593 = vmatmul.f32.gmra.mxu0 %v6279
          %v6594 = vpop.f32.mrf.mxu0
          %v6595 = vadd.f32 0.0, %v6594
          %6596 = vmatmul.f32.gmra.mxu0 %v6281
          %v6597 = vpop.f32.mrf.mxu0
          %v6598 = vadd.f32 0.0, %v6597
          %6599 = vmatmul.f32.gmra.mxu0 %v6283
          %v6600 = vpop.f32.mrf.mxu0
          %v6601 = vadd.f32 0.0, %v6600
          %6602 = vmatmul.f32.gmra.mxu0 %v6285
          %v6603 = vpop.f32.mrf.mxu0
          %v6604 = vadd.f32 0.0, %v6603
          %6605 = vmatmul.f32.gmra.mxu0 %v6287
          %v6606 = vpop.f32.mrf.mxu0
          %v6607 = vadd.f32 0.0, %v6606
          %6608 = vmatmul.f32.gmra.mxu0 %v6289
          %v6609 = vpop.f32.mrf.mxu0
          %v6610 = vadd.f32 0.0, %v6609
          %6611 = vdwg.mxu0
          %6628 = vrot.lane.b32.xlu0 %v6565, 96
          %v6629 = vpop.permute.xlu0 %6628
          %6630 = vrot.lane.b32.xlu0 %v6568, 96
          %v6631 = vpop.permute.xlu0 %6630
          %6632 = vrot.lane.b32.xlu0 %v6571, 96
          %v6633 = vpop.permute.xlu0 %6632
          %6634 = vrot.lane.b32.xlu0 %v6574, 96
          %v6635 = vpop.permute.xlu0 %6634
          %6636 = vrot.lane.b32.xlu0 %v6577, 96
          %v6637 = vpop.permute.xlu0 %6636
          %6638 = vrot.lane.b32.xlu0 %v6580, 96
          %v6639 = vpop.permute.xlu0 %6638
          %6640 = vrot.lane.b32.xlu0 %v6583, 96
          %v6641 = vpop.permute.xlu0 %6640
          %6642 = vrot.lane.b32.xlu0 %v6586, 96
          %v6643 = vpop.permute.xlu0 %6642
          %6644 = vrot.lane.b32.xlu0 %v6589, 96
          %v6645 = vpop.permute.xlu0 %6644
          %6646 = vrot.lane.b32.xlu0 %v6592, 96
          %v6647 = vpop.permute.xlu0 %6646
          %6648 = vrot.lane.b32.xlu0 %v6595, 96
          %v6649 = vpop.permute.xlu0 %6648
          %6650 = vrot.lane.b32.xlu0 %v6598, 96
          %v6651 = vpop.permute.xlu0 %6650
          %6652 = vrot.lane.b32.xlu0 %v6601, 96
          %v6653 = vpop.permute.xlu0 %6652
          %6654 = vrot.lane.b32.xlu0 %v6604, 96
          %v6655 = vpop.permute.xlu0 %6654
          %6656 = vrot.lane.b32.xlu0 %v6607, 96
          %v6657 = vpop.permute.xlu0 %6656
          %6658 = vrot.lane.b32.xlu0 %v6610, 96
          %v6659 = vpop.permute.xlu0 %6658
          %v6676 = vadd.f32 %v6483, %v6629
          %v6677 = vadd.f32 %v6484, %v6631
          %v6678 = vadd.f32 %v6485, %v6633
          %v6679 = vadd.f32 %v6486, %v6635
          %v6680 = vadd.f32 %v6487, %v6637
          %v6681 = vadd.f32 %v6488, %v6639
          %v6682 = vadd.f32 %v6489, %v6641
          %v6683 = vadd.f32 %v6490, %v6643
          %v6684 = vadd.f32 %v6491, %v6645
          %v6685 = vadd.f32 %v6492, %v6647
          %v6686 = vadd.f32 %v6493, %v6649
          %v6687 = vadd.f32 %v6494, %v6651
          %v6688 = vadd.f32 %v6495, %v6653
          %v6689 = vadd.f32 %v6496, %v6655
          %v6690 = vadd.f32 %v6497, %v6657
          %v6691 = vadd.f32 %v6498, %v6659
          %vm6692 = vcmask 1048320
          %6693 = vst.msk [vmem:[#allocation4] sm:$0xff] %vm6692, %v6676
          %6694 = vst.msk [vmem:[#allocation4 + $0x8] sm:$0xff] %vm6692, %v6677
          %6695 = vst.msk [vmem:[#allocation4 + $0x10] sm:$0xff] %vm6692, %v6678
          %6696 = vst.msk [vmem:[#allocation4 + $0x18] sm:$0xff] %vm6692, %v6679
          %6697 = vst.msk [vmem:[#allocation4 + $0x20] sm:$0xff] %vm6692, %v6680
          %6698 = vst.msk [vmem:[#allocation4 + $0x28] sm:$0xff] %vm6692, %v6681
          %6699 = vst.msk [vmem:[#allocation4 + $0x30] sm:$0xff] %vm6692, %v6682
          %6700 = vst.msk [vmem:[#allocation4 + $0x38] sm:$0xff] %vm6692, %v6683
          %6701 = vst.msk [vmem:[#allocation4 + $0x40] sm:$0xff] %vm6692, %v6684
          %6702 = vst.msk [vmem:[#allocation4 + $0x48] sm:$0xff] %vm6692, %v6685
          %6703 = vst.msk [vmem:[#allocation4 + $0x50] sm:$0xff] %vm6692, %v6686
          %6704 = vst.msk [vmem:[#allocation4 + $0x58] sm:$0xff] %vm6692, %v6687
          %6705 = vst.msk [vmem:[#allocation4 + $0x60] sm:$0xff] %vm6692, %v6688
          %6706 = vst.msk [vmem:[#allocation4 + $0x68] sm:$0xff] %vm6692, %v6689
          %6707 = vst.msk [vmem:[#allocation4 + $0x70] sm:$0xff] %vm6692, %v6690
          %6708 = vst.msk [vmem:[#allocation4 + $0x78] sm:$0xff] %vm6692, %v6691
          %6709 = vst.msk [vmem:[%s6049] sm:$0xff] %vm1950, %v6098
          %6710 = vst.msk [vmem:[%s6049 + $0x8] sm:$0xff] %vm1950, %v6099
          %6711 = vst.msk [vmem:[%s6049 + $0x10] sm:$0xff] %vm1950, %v6100
          %6712 = vst.msk [vmem:[%s6049 + $0x18] sm:$0xff] %vm1950, %v6101
          %6713 = vst.msk [vmem:[%s6049 + $0x20] sm:$0xff] %vm1950, %v6102
          %6714 = vst.msk [vmem:[%s6049 + $0x28] sm:$0xff] %vm1950, %v6103
          %6715 = vst.msk [vmem:[%s6049 + $0x30] sm:$0xff] %vm1950, %v6104
          %6716 = vst.msk [vmem:[%s6049 + $0x38] sm:$0xff] %vm1950, %v6105
          %6717 = vst.msk [vmem:[%s6049 + $0x40] sm:$0xff] %vm1950, %v6106
          %6718 = vst.msk [vmem:[%s6049 + $0x48] sm:$0xff] %vm1950, %v6107
          %6719 = vst.msk [vmem:[%s6049 + $0x50] sm:$0xff] %vm1950, %v6108
          %6720 = vst.msk [vmem:[%s6049 + $0x58] sm:$0xff] %vm1950, %v6109
          %6721 = vst.msk [vmem:[%s6049 + $0x60] sm:$0xff] %vm1950, %v6110
          %6722 = vst.msk [vmem:[%s6049 + $0x68] sm:$0xff] %vm1950, %v6111
          %6723 = vst.msk [vmem:[%s6049 + $0x70] sm:$0xff] %vm1950, %v6112
          %6724 = vst.msk [vmem:[%s6049 + $0x78] sm:$0xff] %vm1950, %v6113
        $region174: #{causal_self_attention.4} parent=153 // pred_fallthru
          _
        %p6725 = scmp.eq.s32.totalorder %s26, 1
        // Predicated region
        $region175: #{causal_self_attention.4} parent=153 // pred_check
          %p6726 = pneg %p6725
        $region176: #{causal_self_attention.4} parent=153 // pred_check_branch
          %6728 = sbr.rel (%p6726) target = $region178
        $region177: #{causal_self_attention.4} parent=153 // pred_region
          %v6729 = vld [vmem:[#allocation3] sm:$0xff]
          %v6730 = vld [vmem:[#allocation3 + $0x8] sm:$0xff]
          %v6731 = vld [vmem:[#allocation3 + $0x10] sm:$0xff]
          %v6732 = vld [vmem:[#allocation3 + $0x18] sm:$0xff]
          %v6733 = vld [vmem:[#allocation3 + $0x20] sm:$0xff]
          %v6734 = vld [vmem:[#allocation3 + $0x28] sm:$0xff]
          %v6735 = vld [vmem:[#allocation3 + $0x30] sm:$0xff]
          %v6736 = vld [vmem:[#allocation3 + $0x38] sm:$0xff]
          %v6737 = vld [vmem:[#allocation3 + $0x40] sm:$0xff]
          %v6738 = vld [vmem:[#allocation3 + $0x48] sm:$0xff]
          %v6739 = vld [vmem:[#allocation3 + $0x50] sm:$0xff]
          %v6740 = vld [vmem:[#allocation3 + $0x58] sm:$0xff]
          %v6741 = vld [vmem:[#allocation3 + $0x60] sm:$0xff]
          %v6742 = vld [vmem:[#allocation3 + $0x68] sm:$0xff]
          %v6743 = vld [vmem:[#allocation3 + $0x70] sm:$0xff]
          %v6744 = vld [vmem:[#allocation3 + $0x78] sm:$0xff]
          %v6745 = vrcp.pop %v6729
          %v6746 = vrcp.pop %v6730
          %v6747 = vrcp.pop %v6731
          %v6748 = vrcp.pop %v6732
          %v6749 = vrcp.pop %v6733
          %v6750 = vrcp.pop %v6734
          %v6751 = vrcp.pop %v6735
          %v6752 = vrcp.pop %v6736
          %v6753 = vrcp.pop %v6737
          %v6754 = vrcp.pop %v6738
          %v6755 = vrcp.pop %v6739
          %v6756 = vrcp.pop %v6740
          %v6757 = vrcp.pop %v6741
          %v6758 = vrcp.pop %v6742
          %v6759 = vrcp.pop %v6743
          %v6760 = vrcp.pop %v6744
          %v6761 = vld [vmem:[#allocation4] sm:$0xff]
          %v6762 = vld [vmem:[#allocation4 + $0x8] sm:$0xff]
          %v6763 = vld [vmem:[#allocation4 + $0x10] sm:$0xff]
          %v6764 = vld [vmem:[#allocation4 + $0x18] sm:$0xff]
          %v6765 = vld [vmem:[#allocation4 + $0x20] sm:$0xff]
          %v6766 = vld [vmem:[#allocation4 + $0x28] sm:$0xff]
          %v6767 = vld [vmem:[#allocation4 + $0x30] sm:$0xff]
          %v6768 = vld [vmem:[#allocation4 + $0x38] sm:$0xff]
          %v6769 = vld [vmem:[#allocation4 + $0x40] sm:$0xff]
          %v6770 = vld [vmem:[#allocation4 + $0x48] sm:$0xff]
          %v6771 = vld [vmem:[#allocation4 + $0x50] sm:$0xff]
          %v6772 = vld [vmem:[#allocation4 + $0x58] sm:$0xff]
          %v6773 = vld [vmem:[#allocation4 + $0x60] sm:$0xff]
          %v6774 = vld [vmem:[#allocation4 + $0x68] sm:$0xff]
          %v6775 = vld [vmem:[#allocation4 + $0x70] sm:$0xff]
          %v6776 = vld [vmem:[#allocation4 + $0x78] sm:$0xff]
          %6778 = vset.pattern.permute.xlu0 0
          %6779 = vperm.xlu0 %6778, %v6745
          %v6780 = vpop.permute.xlu0 %6779
          %6783 = vset.pattern.permute.xlu0 0
          %6784 = vperm.xlu0 %6783, %v6746
          %v6785 = vpop.permute.xlu0 %6784
          %6788 = vset.pattern.permute.xlu0 0
          %6789 = vperm.xlu0 %6788, %v6747
          %v6790 = vpop.permute.xlu0 %6789
          %6793 = vset.pattern.permute.xlu0 0
          %6794 = vperm.xlu0 %6793, %v6748
          %v6795 = vpop.permute.xlu0 %6794
          %6798 = vset.pattern.permute.xlu0 0
          %6799 = vperm.xlu0 %6798, %v6749
          %v6800 = vpop.permute.xlu0 %6799
          %6803 = vset.pattern.permute.xlu0 0
          %6804 = vperm.xlu0 %6803, %v6750
          %v6805 = vpop.permute.xlu0 %6804
          %6808 = vset.pattern.permute.xlu0 0
          %6809 = vperm.xlu0 %6808, %v6751
          %v6810 = vpop.permute.xlu0 %6809
          %6813 = vset.pattern.permute.xlu0 0
          %6814 = vperm.xlu0 %6813, %v6752
          %v6815 = vpop.permute.xlu0 %6814
          %6818 = vset.pattern.permute.xlu0 0
          %6819 = vperm.xlu0 %6818, %v6753
          %v6820 = vpop.permute.xlu0 %6819
          %6823 = vset.pattern.permute.xlu0 0
          %6824 = vperm.xlu0 %6823, %v6754
          %v6825 = vpop.permute.xlu0 %6824
          %6828 = vset.pattern.permute.xlu0 0
          %6829 = vperm.xlu0 %6828, %v6755
          %v6830 = vpop.permute.xlu0 %6829
          %6833 = vset.pattern.permute.xlu0 0
          %6834 = vperm.xlu0 %6833, %v6756
          %v6835 = vpop.permute.xlu0 %6834
          %6838 = vset.pattern.permute.xlu0 0
          %6839 = vperm.xlu0 %6838, %v6757
          %v6840 = vpop.permute.xlu0 %6839
          %6843 = vset.pattern.permute.xlu0 0
          %6844 = vperm.xlu0 %6843, %v6758
          %v6845 = vpop.permute.xlu0 %6844
          %6848 = vset.pattern.permute.xlu0 0
          %6849 = vperm.xlu0 %6848, %v6759
          %v6850 = vpop.permute.xlu0 %6849
          %6853 = vset.pattern.permute.xlu0 0
          %6854 = vperm.xlu0 %6853, %v6760
          %v6855 = vpop.permute.xlu0 %6854
          %v6857 = vmul.f32 %v6761, %v6780
          %v6858 = vmul.f32 %v6762, %v6785
          %v6859 = vmul.f32 %v6763, %v6790
          %v6860 = vmul.f32 %v6764, %v6795
          %v6861 = vmul.f32 %v6765, %v6800
          %v6862 = vmul.f32 %v6766, %v6805
          %v6863 = vmul.f32 %v6767, %v6810
          %v6864 = vmul.f32 %v6768, %v6815
          %v6865 = vmul.f32 %v6769, %v6820
          %v6866 = vmul.f32 %v6770, %v6825
          %v6867 = vmul.f32 %v6771, %v6830
          %v6868 = vmul.f32 %v6772, %v6835
          %v6869 = vmul.f32 %v6773, %v6840
          %v6870 = vmul.f32 %v6774, %v6845
          %v6871 = vmul.f32 %v6775, %v6850
          %v6872 = vmul.f32 %v6776, %v6855
          %s6873 = scalar_lea.vmem [#allocation3], 128
          %v6874 = vld [vmem:[%s6873] sm:$0xff]
          %v6875 = vld [vmem:[%s6873 + $0x8] sm:$0xff]
          %v6876 = vld [vmem:[%s6873 + $0x10] sm:$0xff]
          %v6877 = vld [vmem:[%s6873 + $0x18] sm:$0xff]
          %v6878 = vld [vmem:[%s6873 + $0x20] sm:$0xff]
          %v6879 = vld [vmem:[%s6873 + $0x28] sm:$0xff]
          %v6880 = vld [vmem:[%s6873 + $0x30] sm:$0xff]
          %v6881 = vld [vmem:[%s6873 + $0x38] sm:$0xff]
          %v6882 = vld [vmem:[%s6873 + $0x40] sm:$0xff]
          %v6883 = vld [vmem:[%s6873 + $0x48] sm:$0xff]
          %v6884 = vld [vmem:[%s6873 + $0x50] sm:$0xff]
          %v6885 = vld [vmem:[%s6873 + $0x58] sm:$0xff]
          %v6886 = vld [vmem:[%s6873 + $0x60] sm:$0xff]
          %v6887 = vld [vmem:[%s6873 + $0x68] sm:$0xff]
          %v6888 = vld [vmem:[%s6873 + $0x70] sm:$0xff]
          %v6889 = vld [vmem:[%s6873 + $0x78] sm:$0xff]
          %v6890 = vrcp.pop %v6874
          %v6891 = vrcp.pop %v6875
          %v6892 = vrcp.pop %v6876
          %v6893 = vrcp.pop %v6877
          %v6894 = vrcp.pop %v6878
          %v6895 = vrcp.pop %v6879
          %v6896 = vrcp.pop %v6880
          %v6897 = vrcp.pop %v6881
          %v6898 = vrcp.pop %v6882
          %v6899 = vrcp.pop %v6883
          %v6900 = vrcp.pop %v6884
          %v6901 = vrcp.pop %v6885
          %v6902 = vrcp.pop %v6886
          %v6903 = vrcp.pop %v6887
          %v6904 = vrcp.pop %v6888
          %v6905 = vrcp.pop %v6889
          %6907 = vset.pattern.permute.xlu0 0
          %6908 = vperm.xlu0 %6907, %v6890
          %v6909 = vpop.permute.xlu0 %6908
          %6912 = vset.pattern.permute.xlu0 0
          %6913 = vperm.xlu0 %6912, %v6891
          %v6914 = vpop.permute.xlu0 %6913
          %6917 = vset.pattern.permute.xlu0 0
          %6918 = vperm.xlu0 %6917, %v6892
          %v6919 = vpop.permute.xlu0 %6918
          %6922 = vset.pattern.permute.xlu0 0
          %6923 = vperm.xlu0 %6922, %v6893
          %v6924 = vpop.permute.xlu0 %6923
          %6927 = vset.pattern.permute.xlu0 0
          %6928 = vperm.xlu0 %6927, %v6894
          %v6929 = vpop.permute.xlu0 %6928
          %6932 = vset.pattern.permute.xlu0 0
          %6933 = vperm.xlu0 %6932, %v6895
          %v6934 = vpop.permute.xlu0 %6933
          %6937 = vset.pattern.permute.xlu0 0
          %6938 = vperm.xlu0 %6937, %v6896
          %v6939 = vpop.permute.xlu0 %6938
          %6942 = vset.pattern.permute.xlu0 0
          %6943 = vperm.xlu0 %6942, %v6897
          %v6944 = vpop.permute.xlu0 %6943
          %6947 = vset.pattern.permute.xlu0 0
          %6948 = vperm.xlu0 %6947, %v6898
          %v6949 = vpop.permute.xlu0 %6948
          %6952 = vset.pattern.permute.xlu0 0
          %6953 = vperm.xlu0 %6952, %v6899
          %v6954 = vpop.permute.xlu0 %6953
          %6957 = vset.pattern.permute.xlu0 0
          %6958 = vperm.xlu0 %6957, %v6900
          %v6959 = vpop.permute.xlu0 %6958
          %6962 = vset.pattern.permute.xlu0 0
          %6963 = vperm.xlu0 %6962, %v6901
          %v6964 = vpop.permute.xlu0 %6963
          %6967 = vset.pattern.permute.xlu0 0
          %6968 = vperm.xlu0 %6967, %v6902
          %v6969 = vpop.permute.xlu0 %6968
          %6972 = vset.pattern.permute.xlu0 0
          %6973 = vperm.xlu0 %6972, %v6903
          %v6974 = vpop.permute.xlu0 %6973
          %6977 = vset.pattern.permute.xlu0 0
          %6978 = vperm.xlu0 %6977, %v6904
          %v6979 = vpop.permute.xlu0 %6978
          %6982 = vset.pattern.permute.xlu0 0
          %6983 = vperm.xlu0 %6982, %v6905
          %v6984 = vpop.permute.xlu0 %6983
          %v6986 = vmul.f32 %v6761, %v6909
          %v6987 = vmul.f32 %v6762, %v6914
          %v6988 = vmul.f32 %v6763, %v6919
          %v6989 = vmul.f32 %v6764, %v6924
          %v6990 = vmul.f32 %v6765, %v6929
          %v6991 = vmul.f32 %v6766, %v6934
          %v6992 = vmul.f32 %v6767, %v6939
          %v6993 = vmul.f32 %v6768, %v6944
          %v6994 = vmul.f32 %v6769, %v6949
          %v6995 = vmul.f32 %v6770, %v6954
          %v6996 = vmul.f32 %v6771, %v6959
          %v6997 = vmul.f32 %v6772, %v6964
          %v6998 = vmul.f32 %v6773, %v6969
          %v6999 = vmul.f32 %v6774, %v6974
          %v7000 = vmul.f32 %v6775, %v6979
          %v7001 = vmul.f32 %v6776, %v6984
          %s7002 = scalar_lea.vmem [#allocation3], 256
          %v7003 = vld [vmem:[%s7002] sm:$0xff]
          %v7004 = vld [vmem:[%s7002 + $0x8] sm:$0xff]
          %v7005 = vld [vmem:[%s7002 + $0x10] sm:$0xff]
          %v7006 = vld [vmem:[%s7002 + $0x18] sm:$0xff]
          %v7007 = vld [vmem:[%s7002 + $0x20] sm:$0xff]
          %v7008 = vld [vmem:[%s7002 + $0x28] sm:$0xff]
          %v7009 = vld [vmem:[%s7002 + $0x30] sm:$0xff]
          %v7010 = vld [vmem:[%s7002 + $0x38] sm:$0xff]
          %v7011 = vld [vmem:[%s7002 + $0x40] sm:$0xff]
          %v7012 = vld [vmem:[%s7002 + $0x48] sm:$0xff]
          %v7013 = vld [vmem:[%s7002 + $0x50] sm:$0xff]
          %v7014 = vld [vmem:[%s7002 + $0x58] sm:$0xff]
          %v7015 = vld [vmem:[%s7002 + $0x60] sm:$0xff]
          %v7016 = vld [vmem:[%s7002 + $0x68] sm:$0xff]
          %v7017 = vld [vmem:[%s7002 + $0x70] sm:$0xff]
          %v7018 = vld [vmem:[%s7002 + $0x78] sm:$0xff]
          %v7019 = vrcp.pop %v7003
          %v7020 = vrcp.pop %v7004
          %v7021 = vrcp.pop %v7005
          %v7022 = vrcp.pop %v7006
          %v7023 = vrcp.pop %v7007
          %v7024 = vrcp.pop %v7008
          %v7025 = vrcp.pop %v7009
          %v7026 = vrcp.pop %v7010
          %v7027 = vrcp.pop %v7011
          %v7028 = vrcp.pop %v7012
          %v7029 = vrcp.pop %v7013
          %v7030 = vrcp.pop %v7014
          %v7031 = vrcp.pop %v7015
          %v7032 = vrcp.pop %v7016
          %v7033 = vrcp.pop %v7017
          %v7034 = vrcp.pop %v7018
          %7036 = vset.pattern.permute.xlu0 0
          %7037 = vperm.xlu0 %7036, %v7019
          %v7038 = vpop.permute.xlu0 %7037
          %7041 = vset.pattern.permute.xlu0 0
          %7042 = vperm.xlu0 %7041, %v7020
          %v7043 = vpop.permute.xlu0 %7042
          %7046 = vset.pattern.permute.xlu0 0
          %7047 = vperm.xlu0 %7046, %v7021
          %v7048 = vpop.permute.xlu0 %7047
          %7051 = vset.pattern.permute.xlu0 0
          %7052 = vperm.xlu0 %7051, %v7022
          %v7053 = vpop.permute.xlu0 %7052
          %7056 = vset.pattern.permute.xlu0 0
          %7057 = vperm.xlu0 %7056, %v7023
          %v7058 = vpop.permute.xlu0 %7057
          %7061 = vset.pattern.permute.xlu0 0
          %7062 = vperm.xlu0 %7061, %v7024
          %v7063 = vpop.permute.xlu0 %7062
          %7066 = vset.pattern.permute.xlu0 0
          %7067 = vperm.xlu0 %7066, %v7025
          %v7068 = vpop.permute.xlu0 %7067
          %7071 = vset.pattern.permute.xlu0 0
          %7072 = vperm.xlu0 %7071, %v7026
          %v7073 = vpop.permute.xlu0 %7072
          %7076 = vset.pattern.permute.xlu0 0
          %7077 = vperm.xlu0 %7076, %v7027
          %v7078 = vpop.permute.xlu0 %7077
          %7081 = vset.pattern.permute.xlu0 0
          %7082 = vperm.xlu0 %7081, %v7028
          %v7083 = vpop.permute.xlu0 %7082
          %7086 = vset.pattern.permute.xlu0 0
          %7087 = vperm.xlu0 %7086, %v7029
          %v7088 = vpop.permute.xlu0 %7087
          %7091 = vset.pattern.permute.xlu0 0
          %7092 = vperm.xlu0 %7091, %v7030
          %v7093 = vpop.permute.xlu0 %7092
          %7096 = vset.pattern.permute.xlu0 0
          %7097 = vperm.xlu0 %7096, %v7031
          %v7098 = vpop.permute.xlu0 %7097
          %7101 = vset.pattern.permute.xlu0 0
          %7102 = vperm.xlu0 %7101, %v7032
          %v7103 = vpop.permute.xlu0 %7102
          %7106 = vset.pattern.permute.xlu0 0
          %7107 = vperm.xlu0 %7106, %v7033
          %v7108 = vpop.permute.xlu0 %7107
          %7111 = vset.pattern.permute.xlu0 0
          %7112 = vperm.xlu0 %7111, %v7034
          %v7113 = vpop.permute.xlu0 %7112
          %v7115 = vmul.f32 %v6761, %v7038
          %v7116 = vmul.f32 %v6762, %v7043
          %v7117 = vmul.f32 %v6763, %v7048
          %v7118 = vmul.f32 %v6764, %v7053
          %v7119 = vmul.f32 %v6765, %v7058
          %v7120 = vmul.f32 %v6766, %v7063
          %v7121 = vmul.f32 %v6767, %v7068
          %v7122 = vmul.f32 %v6768, %v7073
          %v7123 = vmul.f32 %v6769, %v7078
          %v7124 = vmul.f32 %v6770, %v7083
          %v7125 = vmul.f32 %v6771, %v7088
          %v7126 = vmul.f32 %v6772, %v7093
          %v7127 = vmul.f32 %v6773, %v7098
          %v7128 = vmul.f32 %v6774, %v7103
          %v7129 = vmul.f32 %v6775, %v7108
          %v7130 = vmul.f32 %v6776, %v7113
          %s7131 = scalar_lea.vmem [#allocation3], 384
          %v7132 = vld [vmem:[%s7131] sm:$0xff]
          %v7133 = vld [vmem:[%s7131 + $0x8] sm:$0xff]
          %v7134 = vld [vmem:[%s7131 + $0x10] sm:$0xff]
          %v7135 = vld [vmem:[%s7131 + $0x18] sm:$0xff]
          %v7136 = vld [vmem:[%s7131 + $0x20] sm:$0xff]
          %v7137 = vld [vmem:[%s7131 + $0x28] sm:$0xff]
          %v7138 = vld [vmem:[%s7131 + $0x30] sm:$0xff]
          %v7139 = vld [vmem:[%s7131 + $0x38] sm:$0xff]
          %v7140 = vld [vmem:[%s7131 + $0x40] sm:$0xff]
          %v7141 = vld [vmem:[%s7131 + $0x48] sm:$0xff]
          %v7142 = vld [vmem:[%s7131 + $0x50] sm:$0xff]
          %v7143 = vld [vmem:[%s7131 + $0x58] sm:$0xff]
          %v7144 = vld [vmem:[%s7131 + $0x60] sm:$0xff]
          %v7145 = vld [vmem:[%s7131 + $0x68] sm:$0xff]
          %v7146 = vld [vmem:[%s7131 + $0x70] sm:$0xff]
          %v7147 = vld [vmem:[%s7131 + $0x78] sm:$0xff]
          %v7148 = vrcp.pop %v7132
          %v7149 = vrcp.pop %v7133
          %v7150 = vrcp.pop %v7134
          %v7151 = vrcp.pop %v7135
          %v7152 = vrcp.pop %v7136
          %v7153 = vrcp.pop %v7137
          %v7154 = vrcp.pop %v7138
          %v7155 = vrcp.pop %v7139
          %v7156 = vrcp.pop %v7140
          %v7157 = vrcp.pop %v7141
          %v7158 = vrcp.pop %v7142
          %v7159 = vrcp.pop %v7143
          %v7160 = vrcp.pop %v7144
          %v7161 = vrcp.pop %v7145
          %v7162 = vrcp.pop %v7146
          %v7163 = vrcp.pop %v7147
          %7165 = vset.pattern.permute.xlu0 0
          %7166 = vperm.xlu0 %7165, %v7148
          %v7167 = vpop.permute.xlu0 %7166
          %7170 = vset.pattern.permute.xlu0 0
          %7171 = vperm.xlu0 %7170, %v7149
          %v7172 = vpop.permute.xlu0 %7171
          %7175 = vset.pattern.permute.xlu0 0
          %7176 = vperm.xlu0 %7175, %v7150
          %v7177 = vpop.permute.xlu0 %7176
          %7180 = vset.pattern.permute.xlu0 0
          %7181 = vperm.xlu0 %7180, %v7151
          %v7182 = vpop.permute.xlu0 %7181
          %7185 = vset.pattern.permute.xlu0 0
          %7186 = vperm.xlu0 %7185, %v7152
          %v7187 = vpop.permute.xlu0 %7186
          %7190 = vset.pattern.permute.xlu0 0
          %7191 = vperm.xlu0 %7190, %v7153
          %v7192 = vpop.permute.xlu0 %7191
          %7195 = vset.pattern.permute.xlu0 0
          %7196 = vperm.xlu0 %7195, %v7154
          %v7197 = vpop.permute.xlu0 %7196
          %7200 = vset.pattern.permute.xlu0 0
          %7201 = vperm.xlu0 %7200, %v7155
          %v7202 = vpop.permute.xlu0 %7201
          %7205 = vset.pattern.permute.xlu0 0
          %7206 = vperm.xlu0 %7205, %v7156
          %v7207 = vpop.permute.xlu0 %7206
          %7210 = vset.pattern.permute.xlu0 0
          %7211 = vperm.xlu0 %7210, %v7157
          %v7212 = vpop.permute.xlu0 %7211
          %7215 = vset.pattern.permute.xlu0 0
          %7216 = vperm.xlu0 %7215, %v7158
          %v7217 = vpop.permute.xlu0 %7216
          %7220 = vset.pattern.permute.xlu0 0
          %7221 = vperm.xlu0 %7220, %v7159
          %v7222 = vpop.permute.xlu0 %7221
          %7225 = vset.pattern.permute.xlu0 0
          %7226 = vperm.xlu0 %7225, %v7160
          %v7227 = vpop.permute.xlu0 %7226
          %7230 = vset.pattern.permute.xlu0 0
          %7231 = vperm.xlu0 %7230, %v7161
          %v7232 = vpop.permute.xlu0 %7231
          %7235 = vset.pattern.permute.xlu0 0
          %7236 = vperm.xlu0 %7235, %v7162
          %v7237 = vpop.permute.xlu0 %7236
          %7240 = vset.pattern.permute.xlu0 0
          %7241 = vperm.xlu0 %7240, %v7163
          %v7242 = vpop.permute.xlu0 %7241
          %v7244 = vmul.f32 %v6761, %v7167
          %v7245 = vmul.f32 %v6762, %v7172
          %v7246 = vmul.f32 %v6763, %v7177
          %v7247 = vmul.f32 %v6764, %v7182
          %v7248 = vmul.f32 %v6765, %v7187
          %v7249 = vmul.f32 %v6766, %v7192
          %v7250 = vmul.f32 %v6767, %v7197
          %v7251 = vmul.f32 %v6768, %v7202
          %v7252 = vmul.f32 %v6769, %v7207
          %v7253 = vmul.f32 %v6770, %v7212
          %v7254 = vmul.f32 %v6771, %v7217
          %v7255 = vmul.f32 %v6772, %v7222
          %v7256 = vmul.f32 %v6773, %v7227
          %v7257 = vmul.f32 %v6774, %v7232
          %v7258 = vmul.f32 %v6775, %v7237
          %v7259 = vmul.f32 %v6776, %v7242
          %vm7260 = vcmask 261120
          %v7261 = vsel %vm7260, %v6857, %v6986
          %v7262 = vsel %vm7260, %v6858, %v6987
          %v7263 = vsel %vm7260, %v6859, %v6988
          %v7264 = vsel %vm7260, %v6860, %v6989
          %v7265 = vsel %vm7260, %v6861, %v6990
          %v7266 = vsel %vm7260, %v6862, %v6991
          %v7267 = vsel %vm7260, %v6863, %v6992
          %v7268 = vsel %vm7260, %v6864, %v6993
          %v7269 = vsel %vm7260, %v6865, %v6994
          %v7270 = vsel %vm7260, %v6866, %v6995
          %v7271 = vsel %vm7260, %v6867, %v6996
          %v7272 = vsel %vm7260, %v6868, %v6997
          %v7273 = vsel %vm7260, %v6869, %v6998
          %v7274 = vsel %vm7260, %v6870, %v6999
          %v7275 = vsel %vm7260, %v6871, %v7000
          %v7276 = vsel %vm7260, %v6872, %v7001
          %vm7277 = vcmask 523264
          %v7278 = vsel %vm7277, %v7261, %v7115
          %v7279 = vsel %vm7277, %v7262, %v7116
          %v7280 = vsel %vm7277, %v7263, %v7117
          %v7281 = vsel %vm7277, %v7264, %v7118
          %v7282 = vsel %vm7277, %v7265, %v7119
          %v7283 = vsel %vm7277, %v7266, %v7120
          %v7284 = vsel %vm7277, %v7267, %v7121
          %v7285 = vsel %vm7277, %v7268, %v7122
          %v7286 = vsel %vm7277, %v7269, %v7123
          %v7287 = vsel %vm7277, %v7270, %v7124
          %v7288 = vsel %vm7277, %v7271, %v7125
          %v7289 = vsel %vm7277, %v7272, %v7126
          %v7290 = vsel %vm7277, %v7273, %v7127
          %v7291 = vsel %vm7277, %v7274, %v7128
          %v7292 = vsel %vm7277, %v7275, %v7129
          %v7293 = vsel %vm7277, %v7276, %v7130
          %vm7294 = vcmask 785408
          %v7295 = vsel %vm7294, %v7278, %v7244
          %v7296 = vsel %vm7294, %v7279, %v7245
          %v7297 = vsel %vm7294, %v7280, %v7246
          %v7298 = vsel %vm7294, %v7281, %v7247
          %v7299 = vsel %vm7294, %v7282, %v7248
          %v7300 = vsel %vm7294, %v7283, %v7249
          %v7301 = vsel %vm7294, %v7284, %v7250
          %v7302 = vsel %vm7294, %v7285, %v7251
          %v7303 = vsel %vm7294, %v7286, %v7252
          %v7304 = vsel %vm7294, %v7287, %v7253
          %v7305 = vsel %vm7294, %v7288, %v7254
          %v7306 = vsel %vm7294, %v7289, %v7255
          %v7307 = vsel %vm7294, %v7290, %v7256
          %v7308 = vsel %vm7294, %v7291, %v7257
          %v7309 = vsel %vm7294, %v7292, %v7258
          %v7310 = vsel %vm7294, %v7293, %v7259
          %7311 = vst [vmem:[%s770] sm:$0xff] %v7295
          %7312 = vst [vmem:[%s770 + $0x8] sm:$0xff] %v7296
          %7313 = vst [vmem:[%s770 + $0x10] sm:$0xff] %v7297
          %7314 = vst [vmem:[%s770 + $0x18] sm:$0xff] %v7298
          %7315 = vst [vmem:[%s770 + $0x20] sm:$0xff] %v7299
          %7316 = vst [vmem:[%s770 + $0x28] sm:$0xff] %v7300
          %7317 = vst [vmem:[%s770 + $0x30] sm:$0xff] %v7301
          %7318 = vst [vmem:[%s770 + $0x38] sm:$0xff] %v7302
          %7319 = vst [vmem:[%s770 + $0x40] sm:$0xff] %v7303
          %7320 = vst [vmem:[%s770 + $0x48] sm:$0xff] %v7304
          %7321 = vst [vmem:[%s770 + $0x50] sm:$0xff] %v7305
          %7322 = vst [vmem:[%s770 + $0x58] sm:$0xff] %v7306
          %7323 = vst [vmem:[%s770 + $0x60] sm:$0xff] %v7307
          %7324 = vst [vmem:[%s770 + $0x68] sm:$0xff] %v7308
          %7325 = vst [vmem:[%s770 + $0x70] sm:$0xff] %v7309
          %7326 = vst [vmem:[%s770 + $0x78] sm:$0xff] %v7310
        $region178: #{causal_self_attention.4} parent=153 // pred_fallthru
          _
        %s7327 = smul.u32 16, %s25
        %p7328 = scmp.lt.s32.totalorder %s24, 1
        %s7329 = scalar_select %p7328, %s24, 1
        %p7330 = scmp.lt.s32.totalorder %s7327, 31
        %s7331 = scalar_select %p7330, %s7327, 31
        %s7332 = smul.addr %s7329, 32
        %s7333 = sadd.s32 %s7331, %s7332
        %s7334 = smul.addr %s7333, 8
        %s7335 = scalar_lea.vmem %s8, %s7334
        // Predicated region
        $region179: #{causal_self_attention.4} parent=153 // pred_check
          %p7336 = pneg %p267
        $region180: #{causal_self_attention.4} parent=153 // pred_check_branch
          %7338 = sbr.rel (%p7336) target = $region182
        $region181: #{causal_self_attention.4} parent=153 // pred_region
          %s7339 = smul.u32 16, %s25
        $region182: #{causal_self_attention.4} parent=153 // pred_fallthru
          _
      $region154: #{causal_self_attention.4} parent=5 // pred_fallthru
        _
      %p7340 = scmp.le.s32.totalorder 2, %s14
      // Predicated region
      $region183: #{causal_self_attention.4} parent=5 // pred_check
        %p7341 = pneg %p7340
      $region184: #{causal_self_attention.4} parent=5 // pred_check_branch
        %7343 = sbr.rel (%p7341) target = $region186
      $region185: #{causal_self_attention.4} parent=5 // pred_region
        %s7344 = ssub.s32 %s14, 2
        // Predicated region
        $region187: #{causal_self_attention.4} parent=185 // pred_check
          %p7345 = pneg %p273
        $region188: #{causal_self_attention.4} parent=185 // pred_check_branch
          %7347 = sbr.rel (%p7345) target = $region190
        $region189: #{causal_self_attention.4} parent=185 // pred_region
          %s7348 = smul.u32 16, %s28
          %p7349 = scmp.lt.s32.totalorder %s27, 1
          %s7350 = scalar_select %p7349, %s27, 1
          %p7351 = scmp.lt.s32.totalorder %s7348, 31
          %s7352 = scalar_select %p7351, %s7348, 31
          %s7353 = smul.addr %s7350, 32
          %s7354 = sadd.s32 %s7352, %s7353
          %s7355 = smul.addr %s7354, 8
          %s7356 = scalar_lea.vmem %s8, %s7355
        $region190: #{causal_self_attention.4} parent=185 // pred_fallthru
          _
      $region186: #{causal_self_attention.4} parent=5 // pred_fallthru
        _
    $region6: #{causal_self_attention.4} parent=1 // loop_footer
      %s18 = sadd.s32 1, %s14
    $region7: #{causal_self_attention.4} parent=1 // loop_footer_branch
      %13 = sbr.rel target = $region3
    $region8: #{causal_self_attention.4} parent=1 // loop_exit
      _

</llo_original>
